<compile_context>
chip_gen: v7x
topology: tpu7x:2x2x1
jax: 0.10.0
libtpu: 0.0.40
codegen_flags: <defaults>
</compile_context>

<pallas_src>
import jax
import jax.numpy as jnp
from jax.experimental import pallas as pl
from jax.experimental.pallas import tpu as pltpu


C_LANE = 128                   # lane-dense channel padding
COMPUTE_DTYPE = jnp.bfloat16   # MXU operand / activation-staging dtype; accumulation is f32
KSIZE = 3
PREP_ROW_CHUNK = 4             # image rows per prep chunk (even; M per dot = CHUNK*W = 64)


def _round_up(x, m):
    return (x + m - 1) // m * m


def _conv3x3_from_padded(pad_ref, w_ref, hh, ww, c):
    """3x3 'SAME' conv over a zero-padded bf16 ref as 3 MXU dots with K = 3*c.

    pad_ref : (>= hh+2, >= ww+2, c) bf16 VMEM ref with a zero ring around the interior.
    w_ref   : (3, 3*c, c) bf16 ref, K index = dx*c + cin for row dy.
    Returns the (hh*ww, c) f32 accumulator (epilogue not applied).
    """
    acc = None
    for dy in range(KSIZE):
        slab = jnp.concatenate(
            [pad_ref[dy:dy + hh, dx:dx + ww, :] for dx in range(KSIZE)],
            axis=-1).reshape(hh * ww, KSIZE * c)
        d = jnp.dot(slab, w_ref[dy], preferred_element_type=jnp.float32)
        acc = d if acc is None else acc + d
    return acc


# ------------------------------- Pallas kernel ------------------------------ #

def residual_layer_kernel(xpad_ref, w1_ref, w2_ref, w3_ref, sb_ref, o_ref,
                          rm_sc, xp_sc, yp_sc):
    """Fused ResidualLayer forward for one image per grid step.

    xpad_ref : (1, H+2, W+2, C) bf16  zero-padded input (channels padded to 128 lanes)
    w*_ref   : (3, 3*C, C)      bf16  conv taps, row dy, K index = dx*C + cin
    sb_ref   : (6, C)           f32   folded BN scale/bias rows [s1,b1,s2,b2,s3,b3]
    o_ref    : (1, Ho*Wo, C)    f32   pool(prep(x)) + res2(res1(pool(prep(x))))
    rm_sc    : (Ho*W, C)        f32   vertical-max staging for the 2x2 pool
    xp_sc    : (Ho+2, Wpad, C)  bf16  pooled activation (residual), zero ring
    yp_sc    : (Ho+2, Wpad, C)  bf16  res1 output, zero ring
    """
    Hp, Wp = xpad_ref.shape[1], xpad_ref.shape[2]
    H, W = Hp - 2, Wp - 2
    Ho, Wo = H // 2, W // 2
    C = o_ref.shape[-1]
    K3 = KSIZE * C

    # ---- zero only the 1-pixel border ring of the padded stage buffers (interior is
    #      fully overwritten below). ----------------------------------------------------
    zrow = jnp.zeros((1,) + xp_sc.shape[1:], xp_sc.dtype)
    zcol = jnp.zeros((Ho, 1, C), xp_sc.dtype)
    for buf in (xp_sc, yp_sc):
        buf[0:1, :, :] = zrow
        buf[Ho + 1:Ho + 2, :, :] = zrow
        buf[1:1 + Ho, 0:1, :] = zcol
        buf[1:1 + Ho, Wo + 1:Wo + 2, :] = zcol

    s1, b1 = sb_ref[0:1, :], sb_ref[1:2, :]
    s2, b2 = sb_ref[2:3, :], sb_ref[3:4, :]
    s3, b3 = sb_ref[4:5, :], sb_ref[5:6, :]

    # ---- prep: 3x3 conv + BN + ReLU, chunked over rows, f32 accumulator in vregs; the
    #      vertical half of the 2x2 max-pool is taken on the register values. -----------
    rch = PREP_ROW_CHUNK
    for r0 in range(0, H, rch):
        acc = None
        for dy in range(KSIZE):
            slab = jnp.concatenate(
                [xpad_ref[0, r0 + dy:r0 + dy + rch, dx:dx + W, :] for dx in range(KSIZE)],
                axis=-1).reshape(rch * W, K3)
            d = jnp.dot(slab, w1_ref[dy], preferred_element_type=jnp.float32)
            acc = d if acc is None else acc + d
        z = jnp.maximum(acc * s1 + b1, 0.0)                       # (rch*W, C) f32
        for pr in range(rch // 2):                                # vertical max of row pairs
            top = z[(2 * pr) * W:(2 * pr + 1) * W, :]
            bot = z[(2 * pr + 1) * W:(2 * pr + 2) * W, :]
            ph = r0 // 2 + pr
            rm_sc[ph * W:(ph + 1) * W, :] = jnp.maximum(top, bot)

    # ---- horizontal half of the pool: two stride-2 loads + one VPU max + one lane-dense
    #      store into the padded interior of xp_sc (bf16-stages the residual). ----------
    pooled = jnp.maximum(rm_sc[pl.ds(0, Ho * Wo, stride=2), :],
                         rm_sc[pl.ds(1, Ho * Wo, stride=2), :])
    xp_sc[1:1 + Ho, 1:1 + Wo, :] = pooled.reshape(Ho, Wo, C).astype(xp_sc.dtype)

    # ---- res1: 3x3 conv + BN + ReLU (input already zero-padded in xp_sc) ---------------
    y2 = jnp.maximum(_conv3x3_from_padded(xp_sc, w2_ref, Ho, Wo, C) * s2 + b2, 0.0)
    yp_sc[1:1 + Ho, 1:1 + Wo, :] = y2.reshape(Ho, Wo, C).astype(yp_sc.dtype)

    # ---- res2: 3x3 conv + BN + ReLU, fused residual add --------------------------------
    y3 = jnp.maximum(_conv3x3_from_padded(yp_sc, w3_ref, Ho, Wo, C) * s3 + b3, 0.0)
    residual = xp_sc[1:1 + Ho, 1:1 + Wo, :].reshape(Ho * Wo, C).astype(jnp.float32)
    o_ref[0] = (residual + y3).astype(o_ref.dtype)


# ----------------------------- pallas_call wrapper --------------------------- #

def residual_layer_pallas(xpad, w1, w2, w3, sb):
    N, Hp, Wp, C = xpad.shape
    H, W = Hp - 2, Wp - 2
    assert H % 2 == 0 and W % 2 == 0, "2x2/stride-2 pool assumes even spatial dims"
    assert PREP_ROW_CHUNK % 2 == 0 and H % PREP_ROW_CHUNK == 0
    Ho, Wo = H // 2, W // 2
    wpad = _round_up(Wo + 2, 8)     # full 8-sublane tiles for the padded stage buffers

    out = pl.pallas_call(
        residual_layer_kernel,
        out_shape=jax.ShapeDtypeStruct((N, Ho * Wo, C), jnp.float32),
        grid=(N,),
        in_specs=[
            pl.BlockSpec((1, Hp, Wp, C), lambda n: (n, 0, 0, 0)),
            pl.BlockSpec((KSIZE, KSIZE * C, C), lambda n: (0, 0, 0)),   # resident weights
            pl.BlockSpec((KSIZE, KSIZE * C, C), lambda n: (0, 0, 0)),
            pl.BlockSpec((KSIZE, KSIZE * C, C), lambda n: (0, 0, 0)),
            pl.BlockSpec((6, C), lambda n: (0, 0)),                     # folded BN scale/bias
        ],
        out_specs=pl.BlockSpec((1, Ho * Wo, C), lambda n: (n, 0, 0)),
        scratch_shapes=[
            pltpu.VMEM((Ho * W, C), jnp.float32),          # pool vertical-max staging
            pltpu.VMEM((Ho + 2, wpad, C), COMPUTE_DTYPE),  # pooled activation / residual
            pltpu.VMEM((Ho + 2, wpad, C), COMPUTE_DTYPE),  # res1 output
        ],
        compiler_params=pltpu.CompilerParams(dimension_semantics=("parallel",)),
    )(xpad, w1, w2, w3, sb)
    return out.reshape(N, Ho, Wo, C)


@jax.jit
def residual_layer_forward(x_nhwc, w1, w2, w3, sb):
    N, H, W, cin = x_nhwc.shape
    C = sb.shape[-1]
    # spatial zero ring (conv padding=1) + channel padding to 128 lanes, staged in bf16
    # (halves input DMA and matches the kernel's bf16 MXU operands).
    xpad = jnp.pad(x_nhwc, ((0, 0), (1, 1), (1, 1), (0, C - cin))).astype(COMPUTE_DTYPE)
    return residual_layer_pallas(xpad, w1, w2, w3, sb)


# ------------------------- host-side parameter folding ----------------------- #

def fold_convbn(p, eps=1e-5):
    """Fold conv bias + inference BatchNorm into per-channel scale/bias; lay conv weights
    out as (dy, dx*C + cin, cout) with channels zero-padded to 128 lanes."""
    cout, cin = p["w"].shape[0], p["w"].shape[1]
    scale = p["gamma"] / jnp.sqrt(p["var"] + eps)
    bias = (p["b"] - p["mean"]) * scale + p["beta"]
    taps = jnp.transpose(p["w"], (2, 3, 1, 0))                       # (dy, dx, cin, cout)
    taps = jnp.pad(taps, ((0, 0), (0, 0), (0, C_LANE - cin), (0, C_LANE - cout)))
    taps = taps.reshape(KSIZE, KSIZE * C_LANE, C_LANE)               # K = dx*C + cin
    return (taps.astype(COMPUTE_DTYPE),
            jnp.pad(scale, (0, C_LANE - cout)),   # zero-padded scale/bias keeps the padded
            jnp.pad(bias, (0, C_LANE - cout)))    # output lanes exactly zero after ReLU


def prepare_params(params):
    """Done once, outside the traced forward."""
    w1, s1, b1 = fold_convbn(params["prep"])
    w2, s2, b2 = fold_convbn(params["res1"])
    w3, s3, b3 = fold_convbn(params["res2"])
    sb = jnp.stack([s1, b1, s2, b2, s3, b3], axis=0).astype(jnp.float32)  # (6, C_LANE)
    return w1, w2, w3, sb


# ------------------------------ pure-JAX reference --------------------------- #

def ref_forward(x_nhwc, params, compute_dtype=jnp.float32, eps=1e-5):
    """Reference ResidualLayer forward (inference BN).  With compute_dtype=bf16 it mirrors
    the kernel's quantization points: bf16 conv inputs/weights, bf16-staged pooled and res1
    activations, f32 accumulation and epilogue."""
    def conv_bn_relu(x, p):
        xq = x.astype(compute_dtype).astype(jnp.float32)
        wq = p["w"].astype(compute_dtype).astype(jnp.float32)
        w_hwio = jnp.transpose(wq, (2, 3, 1, 0))
        z = jax.lax.conv_general_dilated(
            xq, w_hwio, (1, 1), "SAME",
            dimension_numbers=("NHWC", "HWIO", "NHWC"),
            precision=jax.lax.Precision.HIGHEST)
        scale = p["gamma"] / jnp.sqrt(p["var"] + eps)
        bias = (p["b"] - p["mean"]) * scale + p["beta"]
        return jnp.maximum(z * scale + bias, 0.0)

    z = conv_bn_relu(x_nhwc, params["prep"])
    n, h, w, c = z.shape
    z = z.reshape(n, h // 2, 2, w // 2, 2, c).max(axis=(2, 4))
    z = z.astype(compute_dtype).astype(jnp.float32)       # pooled residual staged in bf16
    y = conv_bn_relu(z, params["res1"])
    y = y.astype(compute_dtype).astype(jnp.float32)       # res1 output staged in bf16
    y = conv_bn_relu(y, params["res2"])
    return z + y


# ----------------------------------- main ------------------------------------ #

def init_convbn(key, cin, cout, k=3):
    kw, kb, kg, kbe, km, kv = jax.random.split(key, 6)
    fan_in = cin * k * k
    return dict(
        w=jax.random.normal(kw, (cout, cin, k, k), jnp.float32) / jnp.sqrt(fan_in),
        b=jax.random.normal(kb, (cout,), jnp.float32) * 0.1,
        gamma=jax.random.uniform(kg, (cout,), jnp.float32, 0.5, 1.5),
        beta=jax.random.normal(kbe, (cout,), jnp.float32) * 0.1,
        mean=jax.random.normal(km, (cout,), jnp.float32) * 0.1,
        var=jax.random.uniform(kv, (cout,), jnp.float32, 0.5, 1.5),
    )


if __name__ == "__main__":
    key = jax.random.PRNGKey(0)
    kx, k1, k2, k3 = jax.random.split(key, 4)

    N, CIN, H, W = 2, 4, 16, 16
    COUT = 8

    # PyTorch-style NCHW input, converted to NHWC for the kernel.
    x_nchw = jax.random.normal(kx, (N, CIN, H, W), jnp.float32)
    x_nhwc = jnp.transpose(x_nchw, (0, 2, 3, 1))

    params = {
        "prep": init_convbn(k1, CIN, COUT, KSIZE),
        "res1": init_convbn(k2, COUT, COUT, KSIZE),
        "res2": init_convbn(k3, COUT, COUT, KSIZE),
    }

    # fold + pad once, outside the jitted forward
    w1, w2, w3, sb = prepare_params(params)

    out_full = jax.block_until_ready(residual_layer_forward(x_nhwc, w1, w2, w3, sb))
    out_nhwc = out_full[..., :COUT]                       # drop lane padding
    out_nchw = jnp.transpose(out_nhwc, (0, 3, 1, 2))      # PyTorch NCHW output layout

    # reference with matched quantization points (bf16 operands + staging, f32 accumulation)
    ref_matched = ref_forward(x_nhwc, params, COMPUTE_DTYPE)
    assert out_nhwc.shape == ref_matched.shape == (N, H // 2, W // 2, COUT)
    if not bool(jnp.allclose(out_nhwc, ref_matched, atol=2e-2, rtol=2e-2)):
        max_err = float(jnp.max(jnp.abs(out_nhwc - ref_matched)))
        max_err_f32 = float(jnp.max(jnp.abs(out_nhwc - ref_forward(x_nhwc, params))))
        raise AssertionError(
            f"mismatch vs reference: max abs err (matched precision) = {max_err}, "
            f"vs pure-f32 reference = {max_err_f32}")

    print("KERNEL_OK")
</pallas_src>

<mosaic_0001>
module attributes {stable_mosaic.version = 11 : i64} {
  func.func @residual_layer_kernel(%arg0: i32, %arg1: memref<1x18x18x128xbf16, #tpu.memory_space<vmem>>, %arg2: memref<3x384x128xbf16, #tpu.memory_space<vmem>>, %arg3: memref<3x384x128xbf16, #tpu.memory_space<vmem>>, %arg4: memref<3x384x128xbf16, #tpu.memory_space<vmem>>, %arg5: memref<6x128xf32, #tpu.memory_space<vmem>>, %arg6: memref<1x64x128xf32, #tpu.memory_space<vmem>>, %arg7: memref<128x128xf32, #tpu.memory_space<vmem>>, %arg8: memref<10x16x128xbf16, #tpu.memory_space<vmem>>, %arg9: memref<10x16x128xbf16, #tpu.memory_space<vmem>>) attributes {dimension_semantics = [#tpu.dimension_semantics<parallel>], iteration_bounds = array<i64: 2>, scalar_prefetch = 0 : i64, scratch_operands = 3 : i64, tpu.core_type = #tpu.core_type<tc>, window_params = [{transform_indices = @transform_0, window_bounds = array<i64: 1, 18, 18, 128>}, {pipeline_mode = #tpu.pipeline_mode<synchronous>, transform_indices = @transform_1, window_bounds = array<i64: 3, 384, 128>}, {pipeline_mode = #tpu.pipeline_mode<synchronous>, transform_indices = @transform_2, window_bounds = array<i64: 3, 384, 128>}, {pipeline_mode = #tpu.pipeline_mode<synchronous>, transform_indices = @transform_3, window_bounds = array<i64: 3, 384, 128>}, {pipeline_mode = #tpu.pipeline_mode<synchronous>, transform_indices = @transform_4, window_bounds = array<i64: 6, 128>}, {transform_indices = @transform_5, window_bounds = array<i64: 1, 64, 128>}]} {
    %cst = arith.constant 0.000000e+00 : bf16
    %0 = vector.broadcast %cst : bf16 to vector<1x16x128xbf16>
    %cst_0 = arith.constant 0.000000e+00 : bf16
    %1 = vector.broadcast %cst_0 : bf16 to vector<8x1x128xbf16>
    %c0 = arith.constant 0 : index
    %c0_1 = arith.constant 0 : index
    %c0_2 = arith.constant 0 : index
    %2 = vector.load %arg8[%c0, %c0_1, %c0_2] : memref<10x16x128xbf16, #tpu.memory_space<vmem>>, vector<1x16x128xbf16>
    tpu.vector_store %arg8[%c0, %c0_1, %c0_2], %0 {strides = array<i32>} : memref<10x16x128xbf16, #tpu.memory_space<vmem>>, vector<1x16x128xbf16>,
    %c9 = arith.constant 9 : index
    %c0_3 = arith.constant 0 : index
    %c0_4 = arith.constant 0 : index
    %3 = vector.load %arg8[%c9, %c0_3, %c0_4] : memref<10x16x128xbf16, #tpu.memory_space<vmem>>, vector<1x16x128xbf16>
    tpu.vector_store %arg8[%c9, %c0_3, %c0_4], %0 {strides = array<i32>} : memref<10x16x128xbf16, #tpu.memory_space<vmem>>, vector<1x16x128xbf16>,
    %c1 = arith.constant 1 : index
    %c0_5 = arith.constant 0 : index
    %c0_6 = arith.constant 0 : index
    %4 = vector.load %arg8[%c1, %c0_5, %c0_6] : memref<10x16x128xbf16, #tpu.memory_space<vmem>>, vector<8x1x128xbf16>
    tpu.vector_store %arg8[%c1, %c0_5, %c0_6], %1 {strides = array<i32>} : memref<10x16x128xbf16, #tpu.memory_space<vmem>>, vector<8x1x128xbf16>,
    %c1_7 = arith.constant 1 : index
    %c9_8 = arith.constant 9 : index
    %c0_9 = arith.constant 0 : index
    %5 = vector.load %arg8[%c1_7, %c9_8, %c0_9] : memref<10x16x128xbf16, #tpu.memory_space<vmem>>, vector<8x1x128xbf16>
    tpu.vector_store %arg8[%c1_7, %c9_8, %c0_9], %1 {strides = array<i32>} : memref<10x16x128xbf16, #tpu.memory_space<vmem>>, vector<8x1x128xbf16>,
    %c0_10 = arith.constant 0 : index
    %c0_11 = arith.constant 0 : index
    %c0_12 = arith.constant 0 : index
    %6 = vector.load %arg9[%c0_10, %c0_11, %c0_12] : memref<10x16x128xbf16, #tpu.memory_space<vmem>>, vector<1x16x128xbf16>
    tpu.vector_store %arg9[%c0_10, %c0_11, %c0_12], %0 {strides = array<i32>} : memref<10x16x128xbf16, #tpu.memory_space<vmem>>, vector<1x16x128xbf16>,
    %c9_13 = arith.constant 9 : index
    %c0_14 = arith.constant 0 : index
    %c0_15 = arith.constant 0 : index
    %7 = vector.load %arg9[%c9_13, %c0_14, %c0_15] : memref<10x16x128xbf16, #tpu.memory_space<vmem>>, vector<1x16x128xbf16>
    tpu.vector_store %arg9[%c9_13, %c0_14, %c0_15], %0 {strides = array<i32>} : memref<10x16x128xbf16, #tpu.memory_space<vmem>>, vector<1x16x128xbf16>,
    %c1_16 = arith.constant 1 : index
    %c0_17 = arith.constant 0 : index
    %c0_18 = arith.constant 0 : index
    %8 = vector.load %arg9[%c1_16, %c0_17, %c0_18] : memref<10x16x128xbf16, #tpu.memory_space<vmem>>, vector<8x1x128xbf16>
    tpu.vector_store %arg9[%c1_16, %c0_17, %c0_18], %1 {strides = array<i32>} : memref<10x16x128xbf16, #tpu.memory_space<vmem>>, vector<8x1x128xbf16>,
    %c1_19 = arith.constant 1 : index
    %c9_20 = arith.constant 9 : index
    %c0_21 = arith.constant 0 : index
    %9 = vector.load %arg9[%c1_19, %c9_20, %c0_21] : memref<10x16x128xbf16, #tpu.memory_space<vmem>>, vector<8x1x128xbf16>
    tpu.vector_store %arg9[%c1_19, %c9_20, %c0_21], %1 {strides = array<i32>} : memref<10x16x128xbf16, #tpu.memory_space<vmem>>, vector<8x1x128xbf16>,
    %c0_22 = arith.constant 0 : index
    %c0_23 = arith.constant 0 : index
    %10 = vector.load %arg5[%c0_22, %c0_23] : memref<6x128xf32, #tpu.memory_space<vmem>>, vector<1x128xf32>
    %c1_24 = arith.constant 1 : index
    %c0_25 = arith.constant 0 : index
    %11 = vector.load %arg5[%c1_24, %c0_25] : memref<6x128xf32, #tpu.memory_space<vmem>>, vector<1x128xf32>
    %c2 = arith.constant 2 : index
    %c0_26 = arith.constant 0 : index
    %12 = vector.load %arg5[%c2, %c0_26] : memref<6x128xf32, #tpu.memory_space<vmem>>, vector<1x128xf32>
    %c3 = arith.constant 3 : index
    %c0_27 = arith.constant 0 : index
    %13 = vector.load %arg5[%c3, %c0_27] : memref<6x128xf32, #tpu.memory_space<vmem>>, vector<1x128xf32>
    %c4 = arith.constant 4 : index
    %c0_28 = arith.constant 0 : index
    %14 = vector.load %arg5[%c4, %c0_28] : memref<6x128xf32, #tpu.memory_space<vmem>>, vector<1x128xf32>
    %c5 = arith.constant 5 : index
    %c0_29 = arith.constant 0 : index
    %15 = vector.load %arg5[%c5, %c0_29] : memref<6x128xf32, #tpu.memory_space<vmem>>, vector<1x128xf32>
    %c0_30 = arith.constant 0 : index
    %c0_31 = arith.constant 0 : index
    %c0_32 = arith.constant 0 : index
    %c0_33 = arith.constant 0 : index
    %16 = vector.load %arg1[%c0_30, %c0_31, %c0_32, %c0_33] : memref<1x18x18x128xbf16, #tpu.memory_space<vmem>>, vector<1x4x16x128xbf16>
    %17 = vector.shape_cast %16 : vector<1x4x16x128xbf16> to vector<4x16x128xbf16>
    %c0_34 = arith.constant 0 : index
    %c0_35 = arith.constant 0 : index
    %c1_36 = arith.constant 1 : index
    %c0_37 = arith.constant 0 : index
    %18 = vector.load %arg1[%c0_34, %c0_35, %c1_36, %c0_37] : memref<1x18x18x128xbf16, #tpu.memory_space<vmem>>, vector<1x4x16x128xbf16>
    %19 = vector.shape_cast %18 : vector<1x4x16x128xbf16> to vector<4x16x128xbf16>
    %c0_38 = arith.constant 0 : index
    %c0_39 = arith.constant 0 : index
    %c2_40 = arith.constant 2 : index
    %c0_41 = arith.constant 0 : index
    %20 = vector.load %arg1[%c0_38, %c0_39, %c2_40, %c0_41] : memref<1x18x18x128xbf16, #tpu.memory_space<vmem>>, vector<1x4x16x128xbf16>
    %21 = vector.shape_cast %20 : vector<1x4x16x128xbf16> to vector<4x16x128xbf16>
    %22 = tpu.concatenate %17, %19, %21 in 2 : vector<4x16x128xbf16>, vector<4x16x128xbf16>, vector<4x16x128xbf16> -> vector<4x16x384xbf16>
    %23 = vector.shape_cast %22 : vector<4x16x384xbf16> to vector<64x384xbf16>
    %c0_42 = arith.constant 0 : index
    %c0_43 = arith.constant 0 : index
    %c0_44 = arith.constant 0 : index
    %24 = vector.load %arg2[%c0_42, %c0_43, %c0_44] : memref<3x384x128xbf16, #tpu.memory_space<vmem>>, vector<1x384x128xbf16>
    %25 = vector.shape_cast %24 : vector<1x384x128xbf16> to vector<384x128xbf16>
    %cst_45 = arith.constant dense<0.000000e+00> : vector<64x128xf32>
    %26 = tpu.matmul %23, %25, %cst_45 {dimension_numbers = #tpu.dot_dimension_numbers<[1], [0], [0], [1], [0, 0, 1, 1], [], []>} : vector<64x384xbf16>, vector<384x128xbf16>, vector<64x128xf32> -> vector<64x128xf32>
    %c0_46 = arith.constant 0 : index
    %c1_47 = arith.constant 1 : index
    %c0_48 = arith.constant 0 : index
    %c0_49 = arith.constant 0 : index
    %27 = vector.load %arg1[%c0_46, %c1_47, %c0_48, %c0_49] : memref<1x18x18x128xbf16, #tpu.memory_space<vmem>>, vector<1x4x16x128xbf16>
    %28 = vector.shape_cast %27 : vector<1x4x16x128xbf16> to vector<4x16x128xbf16>
    %c0_50 = arith.constant 0 : index
    %c1_51 = arith.constant 1 : index
    %c1_52 = arith.constant 1 : index
    %c0_53 = arith.constant 0 : index
    %29 = vector.load %arg1[%c0_50, %c1_51, %c1_52, %c0_53] : memref<1x18x18x128xbf16, #tpu.memory_space<vmem>>, vector<1x4x16x128xbf16>
    %30 = vector.shape_cast %29 : vector<1x4x16x128xbf16> to vector<4x16x128xbf16>
    %c0_54 = arith.constant 0 : index
    %c1_55 = arith.constant 1 : index
    %c2_56 = arith.constant 2 : index
    %c0_57 = arith.constant 0 : index
    %31 = vector.load %arg1[%c0_54, %c1_55, %c2_56, %c0_57] : memref<1x18x18x128xbf16, #tpu.memory_space<vmem>>, vector<1x4x16x128xbf16>
    %32 = vector.shape_cast %31 : vector<1x4x16x128xbf16> to vector<4x16x128xbf16>
    %33 = tpu.concatenate %28, %30, %32 in 2 : vector<4x16x128xbf16>, vector<4x16x128xbf16>, vector<4x16x128xbf16> -> vector<4x16x384xbf16>
    %34 = vector.shape_cast %33 : vector<4x16x384xbf16> to vector<64x384xbf16>
    %c1_58 = arith.constant 1 : index
    %c0_59 = arith.constant 0 : index
    %c0_60 = arith.constant 0 : index
    %35 = vector.load %arg2[%c1_58, %c0_59, %c0_60] : memref<3x384x128xbf16, #tpu.memory_space<vmem>>, vector<1x384x128xbf16>
    %36 = vector.shape_cast %35 : vector<1x384x128xbf16> to vector<384x128xbf16>
    %cst_61 = arith.constant dense<0.000000e+00> : vector<64x128xf32>
    %37 = tpu.matmul %34, %36, %cst_61 {dimension_numbers = #tpu.dot_dimension_numbers<[1], [0], [0], [1], [0, 0, 1, 1], [], []>} : vector<64x384xbf16>, vector<384x128xbf16>, vector<64x128xf32> -> vector<64x128xf32>
    %38 = arith.addf %26, %37 : vector<64x128xf32>
    %c0_62 = arith.constant 0 : index
    %c2_63 = arith.constant 2 : index
    %c0_64 = arith.constant 0 : index
    %c0_65 = arith.constant 0 : index
    %39 = vector.load %arg1[%c0_62, %c2_63, %c0_64, %c0_65] : memref<1x18x18x128xbf16, #tpu.memory_space<vmem>>, vector<1x4x16x128xbf16>
    %40 = vector.shape_cast %39 : vector<1x4x16x128xbf16> to vector<4x16x128xbf16>
    %c0_66 = arith.constant 0 : index
    %c2_67 = arith.constant 2 : index
    %c1_68 = arith.constant 1 : index
    %c0_69 = arith.constant 0 : index
    %41 = vector.load %arg1[%c0_66, %c2_67, %c1_68, %c0_69] : memref<1x18x18x128xbf16, #tpu.memory_space<vmem>>, vector<1x4x16x128xbf16>
    %42 = vector.shape_cast %41 : vector<1x4x16x128xbf16> to vector<4x16x128xbf16>
    %c0_70 = arith.constant 0 : index
    %c2_71 = arith.constant 2 : index
    %c2_72 = arith.constant 2 : index
    %c0_73 = arith.constant 0 : index
    %43 = vector.load %arg1[%c0_70, %c2_71, %c2_72, %c0_73] : memref<1x18x18x128xbf16, #tpu.memory_space<vmem>>, vector<1x4x16x128xbf16>
    %44 = vector.shape_cast %43 : vector<1x4x16x128xbf16> to vector<4x16x128xbf16>
    %45 = tpu.concatenate %40, %42, %44 in 2 : vector<4x16x128xbf16>, vector<4x16x128xbf16>, vector<4x16x128xbf16> -> vector<4x16x384xbf16>
    %46 = vector.shape_cast %45 : vector<4x16x384xbf16> to vector<64x384xbf16>
    %c2_74 = arith.constant 2 : index
    %c0_75 = arith.constant 0 : index
    %c0_76 = arith.constant 0 : index
    %47 = vector.load %arg2[%c2_74, %c0_75, %c0_76] : memref<3x384x128xbf16, #tpu.memory_space<vmem>>, vector<1x384x128xbf16>
    %48 = vector.shape_cast %47 : vector<1x384x128xbf16> to vector<384x128xbf16>
    %cst_77 = arith.constant dense<0.000000e+00> : vector<64x128xf32>
    %49 = tpu.matmul %46, %48, %cst_77 {dimension_numbers = #tpu.dot_dimension_numbers<[1], [0], [0], [1], [0, 0, 1, 1], [], []>} : vector<64x384xbf16>, vector<384x128xbf16>, vector<64x128xf32> -> vector<64x128xf32>
    %50 = arith.addf %38, %49 : vector<64x128xf32>
    %51 = vector.broadcast %10 : vector<1x128xf32> to vector<64x128xf32>
    %52 = arith.mulf %50, %51 : vector<64x128xf32>
    %53 = vector.broadcast %11 : vector<1x128xf32> to vector<64x128xf32>
    %54 = arith.addf %52, %53 : vector<64x128xf32>
    %cst_78 = arith.constant 0.000000e+00 : f32
    %55 = vector.broadcast %cst_78 : f32 to vector<64x128xf32>
    %56 = arith.maximumf %54, %55 : vector<64x128xf32>
    %57 = vector.extract_strided_slice %56 {offsets = [0, 0], sizes = [16, 128], strides = [1, 1]} : vector<64x128xf32> to vector<16x128xf32>
    %58 = vector.extract_strided_slice %56 {offsets = [16, 0], sizes = [16, 128], strides = [1, 1]} : vector<64x128xf32> to vector<16x128xf32>
    %59 = arith.maximumf %57, %58 : vector<16x128xf32>
    %c0_79 = arith.constant 0 : index
    %c0_80 = arith.constant 0 : index
    %60 = vector.load %arg7[%c0_79, %c0_80] : memref<128x128xf32, #tpu.memory_space<vmem>>, vector<16x128xf32>
    tpu.vector_store %arg7[%c0_79, %c0_80], %59 {strides = array<i32>} : memref<128x128xf32, #tpu.memory_space<vmem>>, vector<16x128xf32>,
    %61 = vector.extract_strided_slice %56 {offsets = [32, 0], sizes = [16, 128], strides = [1, 1]} : vector<64x128xf32> to vector<16x128xf32>
    %62 = vector.extract_strided_slice %56 {offsets = [48, 0], sizes = [16, 128], strides = [1, 1]} : vector<64x128xf32> to vector<16x128xf32>
    %63 = arith.maximumf %61, %62 : vector<16x128xf32>
    %c16 = arith.constant 16 : index
    %c0_81 = arith.constant 0 : index
    %64 = vector.load %arg7[%c16, %c0_81] : memref<128x128xf32, #tpu.memory_space<vmem>>, vector<16x128xf32>
    tpu.vector_store %arg7[%c16, %c0_81], %63 {strides = array<i32>} : memref<128x128xf32, #tpu.memory_space<vmem>>, vector<16x128xf32>,
    %c0_82 = arith.constant 0 : index
    %c4_83 = arith.constant 4 : index
    %c0_84 = arith.constant 0 : index
    %c0_85 = arith.constant 0 : index
    %65 = vector.load %arg1[%c0_82, %c4_83, %c0_84, %c0_85] : memref<1x18x18x128xbf16, #tpu.memory_space<vmem>>, vector<1x4x16x128xbf16>
    %66 = vector.shape_cast %65 : vector<1x4x16x128xbf16> to vector<4x16x128xbf16>
    %c0_86 = arith.constant 0 : index
    %c4_87 = arith.constant 4 : index
    %c1_88 = arith.constant 1 : index
    %c0_89 = arith.constant 0 : index
    %67 = vector.load %arg1[%c0_86, %c4_87, %c1_88, %c0_89] : memref<1x18x18x128xbf16, #tpu.memory_space<vmem>>, vector<1x4x16x128xbf16>
    %68 = vector.shape_cast %67 : vector<1x4x16x128xbf16> to vector<4x16x128xbf16>
    %c0_90 = arith.constant 0 : index
    %c4_91 = arith.constant 4 : index
    %c2_92 = arith.constant 2 : index
    %c0_93 = arith.constant 0 : index
    %69 = vector.load %arg1[%c0_90, %c4_91, %c2_92, %c0_93] : memref<1x18x18x128xbf16, #tpu.memory_space<vmem>>, vector<1x4x16x128xbf16>
    %70 = vector.shape_cast %69 : vector<1x4x16x128xbf16> to vector<4x16x128xbf16>
    %71 = tpu.concatenate %66, %68, %70 in 2 : vector<4x16x128xbf16>, vector<4x16x128xbf16>, vector<4x16x128xbf16> -> vector<4x16x384xbf16>
    %72 = vector.shape_cast %71 : vector<4x16x384xbf16> to vector<64x384xbf16>
    %c0_94 = arith.constant 0 : index
    %c0_95 = arith.constant 0 : index
    %c0_96 = arith.constant 0 : index
    %73 = vector.load %arg2[%c0_94, %c0_95, %c0_96] : memref<3x384x128xbf16, #tpu.memory_space<vmem>>, vector<1x384x128xbf16>
    %74 = vector.shape_cast %73 : vector<1x384x128xbf16> to vector<384x128xbf16>
    %cst_97 = arith.constant dense<0.000000e+00> : vector<64x128xf32>
    %75 = tpu.matmul %72, %74, %cst_97 {dimension_numbers = #tpu.dot_dimension_numbers<[1], [0], [0], [1], [0, 0, 1, 1], [], []>} : vector<64x384xbf16>, vector<384x128xbf16>, vector<64x128xf32> -> vector<64x128xf32>
    %c0_98 = arith.constant 0 : index
    %c5_99 = arith.constant 5 : index
    %c0_100 = arith.constant 0 : index
    %c0_101 = arith.constant 0 : index
    %76 = vector.load %arg1[%c0_98, %c5_99, %c0_100, %c0_101] : memref<1x18x18x128xbf16, #tpu.memory_space<vmem>>, vector<1x4x16x128xbf16>
    %77 = vector.shape_cast %76 : vector<1x4x16x128xbf16> to vector<4x16x128xbf16>
    %c0_102 = arith.constant 0 : index
    %c5_103 = arith.constant 5 : index
    %c1_104 = arith.constant 1 : index
    %c0_105 = arith.constant 0 : index
    %78 = vector.load %arg1[%c0_102, %c5_103, %c1_104, %c0_105] : memref<1x18x18x128xbf16, #tpu.memory_space<vmem>>, vector<1x4x16x128xbf16>
    %79 = vector.shape_cast %78 : vector<1x4x16x128xbf16> to vector<4x16x128xbf16>
    %c0_106 = arith.constant 0 : index
    %c5_107 = arith.constant 5 : index
    %c2_108 = arith.constant 2 : index
    %c0_109 = arith.constant 0 : index
    %80 = vector.load %arg1[%c0_106, %c5_107, %c2_108, %c0_109] : memref<1x18x18x128xbf16, #tpu.memory_space<vmem>>, vector<1x4x16x128xbf16>
    %81 = vector.shape_cast %80 : vector<1x4x16x128xbf16> to vector<4x16x128xbf16>
    %82 = tpu.concatenate %77, %79, %81 in 2 : vector<4x16x128xbf16>, vector<4x16x128xbf16>, vector<4x16x128xbf16> -> vector<4x16x384xbf16>
    %83 = vector.shape_cast %82 : vector<4x16x384xbf16> to vector<64x384xbf16>
    %c1_110 = arith.constant 1 : index
    %c0_111 = arith.constant 0 : index
    %c0_112 = arith.constant 0 : index
    %84 = vector.load %arg2[%c1_110, %c0_111, %c0_112] : memref<3x384x128xbf16, #tpu.memory_space<vmem>>, vector<1x384x128xbf16>
    %85 = vector.shape_cast %84 : vector<1x384x128xbf16> to vector<384x128xbf16>
    %cst_113 = arith.constant dense<0.000000e+00> : vector<64x128xf32>
    %86 = tpu.matmul %83, %85, %cst_113 {dimension_numbers = #tpu.dot_dimension_numbers<[1], [0], [0], [1], [0, 0, 1, 1], [], []>} : vector<64x384xbf16>, vector<384x128xbf16>, vector<64x128xf32> -> vector<64x128xf32>
    %87 = arith.addf %75, %86 : vector<64x128xf32>
    %c0_114 = arith.constant 0 : index
    %c6 = arith.constant 6 : index
    %c0_115 = arith.constant 0 : index
    %c0_116 = arith.constant 0 : index
    %88 = vector.load %arg1[%c0_114, %c6, %c0_115, %c0_116] : memref<1x18x18x128xbf16, #tpu.memory_space<vmem>>, vector<1x4x16x128xbf16>
    %89 = vector.shape_cast %88 : vector<1x4x16x128xbf16> to vector<4x16x128xbf16>
    %c0_117 = arith.constant 0 : index
    %c6_118 = arith.constant 6 : index
    %c1_119 = arith.constant 1 : index
    %c0_120 = arith.constant 0 : index
    %90 = vector.load %arg1[%c0_117, %c6_118, %c1_119, %c0_120] : memref<1x18x18x128xbf16, #tpu.memory_space<vmem>>, vector<1x4x16x128xbf16>
    %91 = vector.shape_cast %90 : vector<1x4x16x128xbf16> to vector<4x16x128xbf16>
    %c0_121 = arith.constant 0 : index
    %c6_122 = arith.constant 6 : index
    %c2_123 = arith.constant 2 : index
    %c0_124 = arith.constant 0 : index
    %92 = vector.load %arg1[%c0_121, %c6_122, %c2_123, %c0_124] : memref<1x18x18x128xbf16, #tpu.memory_space<vmem>>, vector<1x4x16x128xbf16>
    %93 = vector.shape_cast %92 : vector<1x4x16x128xbf16> to vector<4x16x128xbf16>
    %94 = tpu.concatenate %89, %91, %93 in 2 : vector<4x16x128xbf16>, vector<4x16x128xbf16>, vector<4x16x128xbf16> -> vector<4x16x384xbf16>
    %95 = vector.shape_cast %94 : vector<4x16x384xbf16> to vector<64x384xbf16>
    %c2_125 = arith.constant 2 : index
    %c0_126 = arith.constant 0 : index
    %c0_127 = arith.constant 0 : index
    %96 = vector.load %arg2[%c2_125, %c0_126, %c0_127] : memref<3x384x128xbf16, #tpu.memory_space<vmem>>, vector<1x384x128xbf16>
    %97 = vector.shape_cast %96 : vector<1x384x128xbf16> to vector<384x128xbf16>
    %cst_128 = arith.constant dense<0.000000e+00> : vector<64x128xf32>
    %98 = tpu.matmul %95, %97, %cst_128 {dimension_numbers = #tpu.dot_dimension_numbers<[1], [0], [0], [1], [0, 0, 1, 1], [], []>} : vector<64x384xbf16>, vector<384x128xbf16>, vector<64x128xf32> -> vector<64x128xf32>
    %99 = arith.addf %87, %98 : vector<64x128xf32>
    %100 = vector.broadcast %10 : vector<1x128xf32> to vector<64x128xf32>
    %101 = arith.mulf %99, %100 : vector<64x128xf32>
    %102 = vector.broadcast %11 : vector<1x128xf32> to vector<64x128xf32>
    %103 = arith.addf %101, %102 : vector<64x128xf32>
    %cst_129 = arith.constant 0.000000e+00 : f32
    %104 = vector.broadcast %cst_129 : f32 to vector<64x128xf32>
    %105 = arith.maximumf %103, %104 : vector<64x128xf32>
    %106 = vector.extract_strided_slice %105 {offsets = [0, 0], sizes = [16, 128], strides = [1, 1]} : vector<64x128xf32> to vector<16x128xf32>
    %107 = vector.extract_strided_slice %105 {offsets = [16, 0], sizes = [16, 128], strides = [1, 1]} : vector<64x128xf32> to vector<16x128xf32>
    %108 = arith.maximumf %106, %107 : vector<16x128xf32>
    %c32 = arith.constant 32 : index
    %c0_130 = arith.constant 0 : index
    %109 = vector.load %arg7[%c32, %c0_130] : memref<128x128xf32, #tpu.memory_space<vmem>>, vector<16x128xf32>
    tpu.vector_store %arg7[%c32, %c0_130], %108 {strides = array<i32>} : memref<128x128xf32, #tpu.memory_space<vmem>>, vector<16x128xf32>,
    %110 = vector.extract_strided_slice %105 {offsets = [32, 0], sizes = [16, 128], strides = [1, 1]} : vector<64x128xf32> to vector<16x128xf32>
    %111 = vector.extract_strided_slice %105 {offsets = [48, 0], sizes = [16, 128], strides = [1, 1]} : vector<64x128xf32> to vector<16x128xf32>
    %112 = arith.maximumf %110, %111 : vector<16x128xf32>
    %c48 = arith.constant 48 : index
    %c0_131 = arith.constant 0 : index
    %113 = vector.load %arg7[%c48, %c0_131] : memref<128x128xf32, #tpu.memory_space<vmem>>, vector<16x128xf32>
    tpu.vector_store %arg7[%c48, %c0_131], %112 {strides = array<i32>} : memref<128x128xf32, #tpu.memory_space<vmem>>, vector<16x128xf32>,
    %c0_132 = arith.constant 0 : index
    %c8 = arith.constant 8 : index
    %c0_133 = arith.constant 0 : index
    %c0_134 = arith.constant 0 : index
    %114 = vector.load %arg1[%c0_132, %c8, %c0_133, %c0_134] : memref<1x18x18x128xbf16, #tpu.memory_space<vmem>>, vector<1x4x16x128xbf16>
    %115 = vector.shape_cast %114 : vector<1x4x16x128xbf16> to vector<4x16x128xbf16>
    %c0_135 = arith.constant 0 : index
    %c8_136 = arith.constant 8 : index
    %c1_137 = arith.constant 1 : index
    %c0_138 = arith.constant 0 : index
    %116 = vector.load %arg1[%c0_135, %c8_136, %c1_137, %c0_138] : memref<1x18x18x128xbf16, #tpu.memory_space<vmem>>, vector<1x4x16x128xbf16>
    %117 = vector.shape_cast %116 : vector<1x4x16x128xbf16> to vector<4x16x128xbf16>
    %c0_139 = arith.constant 0 : index
    %c8_140 = arith.constant 8 : index
    %c2_141 = arith.constant 2 : index
    %c0_142 = arith.constant 0 : index
    %118 = vector.load %arg1[%c0_139, %c8_140, %c2_141, %c0_142] : memref<1x18x18x128xbf16, #tpu.memory_space<vmem>>, vector<1x4x16x128xbf16>
    %119 = vector.shape_cast %118 : vector<1x4x16x128xbf16> to vector<4x16x128xbf16>
    %120 = tpu.concatenate %115, %117, %119 in 2 : vector<4x16x128xbf16>, vector<4x16x128xbf16>, vector<4x16x128xbf16> -> vector<4x16x384xbf16>
    %121 = vector.shape_cast %120 : vector<4x16x384xbf16> to vector<64x384xbf16>
    %c0_143 = arith.constant 0 : index
    %c0_144 = arith.constant 0 : index
    %c0_145 = arith.constant 0 : index
    %122 = vector.load %arg2[%c0_143, %c0_144, %c0_145] : memref<3x384x128xbf16, #tpu.memory_space<vmem>>, vector<1x384x128xbf16>
    %123 = vector.shape_cast %122 : vector<1x384x128xbf16> to vector<384x128xbf16>
    %cst_146 = arith.constant dense<0.000000e+00> : vector<64x128xf32>
    %124 = tpu.matmul %121, %123, %cst_146 {dimension_numbers = #tpu.dot_dimension_numbers<[1], [0], [0], [1], [0, 0, 1, 1], [], []>} : vector<64x384xbf16>, vector<384x128xbf16>, vector<64x128xf32> -> vector<64x128xf32>
    %c0_147 = arith.constant 0 : index
    %c9_148 = arith.constant 9 : index
    %c0_149 = arith.constant 0 : index
    %c0_150 = arith.constant 0 : index
    %125 = vector.load %arg1[%c0_147, %c9_148, %c0_149, %c0_150] : memref<1x18x18x128xbf16, #tpu.memory_space<vmem>>, vector<1x4x16x128xbf16>
    %126 = vector.shape_cast %125 : vector<1x4x16x128xbf16> to vector<4x16x128xbf16>
    %c0_151 = arith.constant 0 : index
    %c9_152 = arith.constant 9 : index
    %c1_153 = arith.constant 1 : index
    %c0_154 = arith.constant 0 : index
    %127 = vector.load %arg1[%c0_151, %c9_152, %c1_153, %c0_154] : memref<1x18x18x128xbf16, #tpu.memory_space<vmem>>, vector<1x4x16x128xbf16>
    %128 = vector.shape_cast %127 : vector<1x4x16x128xbf16> to vector<4x16x128xbf16>
    %c0_155 = arith.constant 0 : index
    %c9_156 = arith.constant 9 : index
    %c2_157 = arith.constant 2 : index
    %c0_158 = arith.constant 0 : index
    %129 = vector.load %arg1[%c0_155, %c9_156, %c2_157, %c0_158] : memref<1x18x18x128xbf16, #tpu.memory_space<vmem>>, vector<1x4x16x128xbf16>
    %130 = vector.shape_cast %129 : vector<1x4x16x128xbf16> to vector<4x16x128xbf16>
    %131 = tpu.concatenate %126, %128, %130 in 2 : vector<4x16x128xbf16>, vector<4x16x128xbf16>, vector<4x16x128xbf16> -> vector<4x16x384xbf16>
    %132 = vector.shape_cast %131 : vector<4x16x384xbf16> to vector<64x384xbf16>
    %c1_159 = arith.constant 1 : index
    %c0_160 = arith.constant 0 : index
    %c0_161 = arith.constant 0 : index
    %133 = vector.load %arg2[%c1_159, %c0_160, %c0_161] : memref<3x384x128xbf16, #tpu.memory_space<vmem>>, vector<1x384x128xbf16>
    %134 = vector.shape_cast %133 : vector<1x384x128xbf16> to vector<384x128xbf16>
    %cst_162 = arith.constant dense<0.000000e+00> : vector<64x128xf32>
    %135 = tpu.matmul %132, %134, %cst_162 {dimension_numbers = #tpu.dot_dimension_numbers<[1], [0], [0], [1], [0, 0, 1, 1], [], []>} : vector<64x384xbf16>, vector<384x128xbf16>, vector<64x128xf32> -> vector<64x128xf32>
    %136 = arith.addf %124, %135 : vector<64x128xf32>
    %c0_163 = arith.constant 0 : index
    %c10 = arith.constant 10 : index
    %c0_164 = arith.constant 0 : index
    %c0_165 = arith.constant 0 : index
    %137 = vector.load %arg1[%c0_163, %c10, %c0_164, %c0_165] : memref<1x18x18x128xbf16, #tpu.memory_space<vmem>>, vector<1x4x16x128xbf16>
    %138 = vector.shape_cast %137 : vector<1x4x16x128xbf16> to vector<4x16x128xbf16>
    %c0_166 = arith.constant 0 : index
    %c10_167 = arith.constant 10 : index
    %c1_168 = arith.constant 1 : index
    %c0_169 = arith.constant 0 : index
    %139 = vector.load %arg1[%c0_166, %c10_167, %c1_168, %c0_169] : memref<1x18x18x128xbf16, #tpu.memory_space<vmem>>, vector<1x4x16x128xbf16>
    %140 = vector.shape_cast %139 : vector<1x4x16x128xbf16> to vector<4x16x128xbf16>
    %c0_170 = arith.constant 0 : index
    %c10_171 = arith.constant 10 : index
    %c2_172 = arith.constant 2 : index
    %c0_173 = arith.constant 0 : index
    %141 = vector.load %arg1[%c0_170, %c10_171, %c2_172, %c0_173] : memref<1x18x18x128xbf16, #tpu.memory_space<vmem>>, vector<1x4x16x128xbf16>
    %142 = vector.shape_cast %141 : vector<1x4x16x128xbf16> to vector<4x16x128xbf16>
    %143 = tpu.concatenate %138, %140, %142 in 2 : vector<4x16x128xbf16>, vector<4x16x128xbf16>, vector<4x16x128xbf16> -> vector<4x16x384xbf16>
    %144 = vector.shape_cast %143 : vector<4x16x384xbf16> to vector<64x384xbf16>
    %c2_174 = arith.constant 2 : index
    %c0_175 = arith.constant 0 : index
    %c0_176 = arith.constant 0 : index
    %145 = vector.load %arg2[%c2_174, %c0_175, %c0_176] : memref<3x384x128xbf16, #tpu.memory_space<vmem>>, vector<1x384x128xbf16>
    %146 = vector.shape_cast %145 : vector<1x384x128xbf16> to vector<384x128xbf16>
    %cst_177 = arith.constant dense<0.000000e+00> : vector<64x128xf32>
    %147 = tpu.matmul %144, %146, %cst_177 {dimension_numbers = #tpu.dot_dimension_numbers<[1], [0], [0], [1], [0, 0, 1, 1], [], []>} : vector<64x384xbf16>, vector<384x128xbf16>, vector<64x128xf32> -> vector<64x128xf32>
    %148 = arith.addf %136, %147 : vector<64x128xf32>
    %149 = vector.broadcast %10 : vector<1x128xf32> to vector<64x128xf32>
    %150 = arith.mulf %148, %149 : vector<64x128xf32>
    %151 = vector.broadcast %11 : vector<1x128xf32> to vector<64x128xf32>
    %152 = arith.addf %150, %151 : vector<64x128xf32>
    %cst_178 = arith.constant 0.000000e+00 : f32
    %153 = vector.broadcast %cst_178 : f32 to vector<64x128xf32>
    %154 = arith.maximumf %152, %153 : vector<64x128xf32>
    %155 = vector.extract_strided_slice %154 {offsets = [0, 0], sizes = [16, 128], strides = [1, 1]} : vector<64x128xf32> to vector<16x128xf32>
    %156 = vector.extract_strided_slice %154 {offsets = [16, 0], sizes = [16, 128], strides = [1, 1]} : vector<64x128xf32> to vector<16x128xf32>
    %157 = arith.maximumf %155, %156 : vector<16x128xf32>
    %c64 = arith.constant 64 : index
    %c0_179 = arith.constant 0 : index
    %158 = vector.load %arg7[%c64, %c0_179] : memref<128x128xf32, #tpu.memory_space<vmem>>, vector<16x128xf32>
    tpu.vector_store %arg7[%c64, %c0_179], %157 {strides = array<i32>} : memref<128x128xf32, #tpu.memory_space<vmem>>, vector<16x128xf32>,
    %159 = vector.extract_strided_slice %154 {offsets = [32, 0], sizes = [16, 128], strides = [1, 1]} : vector<64x128xf32> to vector<16x128xf32>
    %160 = vector.extract_strided_slice %154 {offsets = [48, 0], sizes = [16, 128], strides = [1, 1]} : vector<64x128xf32> to vector<16x128xf32>
    %161 = arith.maximumf %159, %160 : vector<16x128xf32>
    %c80 = arith.constant 80 : index
    %c0_180 = arith.constant 0 : index
    %162 = vector.load %arg7[%c80, %c0_180] : memref<128x128xf32, #tpu.memory_space<vmem>>, vector<16x128xf32>
    tpu.vector_store %arg7[%c80, %c0_180], %161 {strides = array<i32>} : memref<128x128xf32, #tpu.memory_space<vmem>>, vector<16x128xf32>,
    %c0_181 = arith.constant 0 : index
    %c12 = arith.constant 12 : index
    %c0_182 = arith.constant 0 : index
    %c0_183 = arith.constant 0 : index
    %163 = vector.load %arg1[%c0_181, %c12, %c0_182, %c0_183] : memref<1x18x18x128xbf16, #tpu.memory_space<vmem>>, vector<1x4x16x128xbf16>
    %164 = vector.shape_cast %163 : vector<1x4x16x128xbf16> to vector<4x16x128xbf16>
    %c0_184 = arith.constant 0 : index
    %c12_185 = arith.constant 12 : index
    %c1_186 = arith.constant 1 : index
    %c0_187 = arith.constant 0 : index
    %165 = vector.load %arg1[%c0_184, %c12_185, %c1_186, %c0_187] : memref<1x18x18x128xbf16, #tpu.memory_space<vmem>>, vector<1x4x16x128xbf16>
    %166 = vector.shape_cast %165 : vector<1x4x16x128xbf16> to vector<4x16x128xbf16>
    %c0_188 = arith.constant 0 : index
    %c12_189 = arith.constant 12 : index
    %c2_190 = arith.constant 2 : index
    %c0_191 = arith.constant 0 : index
    %167 = vector.load %arg1[%c0_188, %c12_189, %c2_190, %c0_191] : memref<1x18x18x128xbf16, #tpu.memory_space<vmem>>, vector<1x4x16x128xbf16>
    %168 = vector.shape_cast %167 : vector<1x4x16x128xbf16> to vector<4x16x128xbf16>
    %169 = tpu.concatenate %164, %166, %168 in 2 : vector<4x16x128xbf16>, vector<4x16x128xbf16>, vector<4x16x128xbf16> -> vector<4x16x384xbf16>
    %170 = vector.shape_cast %169 : vector<4x16x384xbf16> to vector<64x384xbf16>
    %c0_192 = arith.constant 0 : index
    %c0_193 = arith.constant 0 : index
    %c0_194 = arith.constant 0 : index
    %171 = vector.load %arg2[%c0_192, %c0_193, %c0_194] : memref<3x384x128xbf16, #tpu.memory_space<vmem>>, vector<1x384x128xbf16>
    %172 = vector.shape_cast %171 : vector<1x384x128xbf16> to vector<384x128xbf16>
    %cst_195 = arith.constant dense<0.000000e+00> : vector<64x128xf32>
    %173 = tpu.matmul %170, %172, %cst_195 {dimension_numbers = #tpu.dot_dimension_numbers<[1], [0], [0], [1], [0, 0, 1, 1], [], []>} : vector<64x384xbf16>, vector<384x128xbf16>, vector<64x128xf32> -> vector<64x128xf32>
    %c0_196 = arith.constant 0 : index
    %c13 = arith.constant 13 : index
    %c0_197 = arith.constant 0 : index
    %c0_198 = arith.constant 0 : index
    %174 = vector.load %arg1[%c0_196, %c13, %c0_197, %c0_198] : memref<1x18x18x128xbf16, #tpu.memory_space<vmem>>, vector<1x4x16x128xbf16>
    %175 = vector.shape_cast %174 : vector<1x4x16x128xbf16> to vector<4x16x128xbf16>
    %c0_199 = arith.constant 0 : index
    %c13_200 = arith.constant 13 : index
    %c1_201 = arith.constant 1 : index
    %c0_202 = arith.constant 0 : index
    %176 = vector.load %arg1[%c0_199, %c13_200, %c1_201, %c0_202] : memref<1x18x18x128xbf16, #tpu.memory_space<vmem>>, vector<1x4x16x128xbf16>
    %177 = vector.shape_cast %176 : vector<1x4x16x128xbf16> to vector<4x16x128xbf16>
    %c0_203 = arith.constant 0 : index
    %c13_204 = arith.constant 13 : index
    %c2_205 = arith.constant 2 : index
    %c0_206 = arith.constant 0 : index
    %178 = vector.load %arg1[%c0_203, %c13_204, %c2_205, %c0_206] : memref<1x18x18x128xbf16, #tpu.memory_space<vmem>>, vector<1x4x16x128xbf16>
    %179 = vector.shape_cast %178 : vector<1x4x16x128xbf16> to vector<4x16x128xbf16>
    %180 = tpu.concatenate %175, %177, %179 in 2 : vector<4x16x128xbf16>, vector<4x16x128xbf16>, vector<4x16x128xbf16> -> vector<4x16x384xbf16>
    %181 = vector.shape_cast %180 : vector<4x16x384xbf16> to vector<64x384xbf16>
    %c1_207 = arith.constant 1 : index
    %c0_208 = arith.constant 0 : index
    %c0_209 = arith.constant 0 : index
    %182 = vector.load %arg2[%c1_207, %c0_208, %c0_209] : memref<3x384x128xbf16, #tpu.memory_space<vmem>>, vector<1x384x128xbf16>
    %183 = vector.shape_cast %182 : vector<1x384x128xbf16> to vector<384x128xbf16>
    %cst_210 = arith.constant dense<0.000000e+00> : vector<64x128xf32>
    %184 = tpu.matmul %181, %183, %cst_210 {dimension_numbers = #tpu.dot_dimension_numbers<[1], [0], [0], [1], [0, 0, 1, 1], [], []>} : vector<64x384xbf16>, vector<384x128xbf16>, vector<64x128xf32> -> vector<64x128xf32>
    %185 = arith.addf %173, %184 : vector<64x128xf32>
    %c0_211 = arith.constant 0 : index
    %c14 = arith.constant 14 : index
    %c0_212 = arith.constant 0 : index
    %c0_213 = arith.constant 0 : index
    %186 = vector.load %arg1[%c0_211, %c14, %c0_212, %c0_213] : memref<1x18x18x128xbf16, #tpu.memory_space<vmem>>, vector<1x4x16x128xbf16>
    %187 = vector.shape_cast %186 : vector<1x4x16x128xbf16> to vector<4x16x128xbf16>
    %c0_214 = arith.constant 0 : index
    %c14_215 = arith.constant 14 : index
    %c1_216 = arith.constant 1 : index
    %c0_217 = arith.constant 0 : index
    %188 = vector.load %arg1[%c0_214, %c14_215, %c1_216, %c0_217] : memref<1x18x18x128xbf16, #tpu.memory_space<vmem>>, vector<1x4x16x128xbf16>
    %189 = vector.shape_cast %188 : vector<1x4x16x128xbf16> to vector<4x16x128xbf16>
    %c0_218 = arith.constant 0 : index
    %c14_219 = arith.constant 14 : index
    %c2_220 = arith.constant 2 : index
    %c0_221 = arith.constant 0 : index
    %190 = vector.load %arg1[%c0_218, %c14_219, %c2_220, %c0_221] : memref<1x18x18x128xbf16, #tpu.memory_space<vmem>>, vector<1x4x16x128xbf16>
    %191 = vector.shape_cast %190 : vector<1x4x16x128xbf16> to vector<4x16x128xbf16>
    %192 = tpu.concatenate %187, %189, %191 in 2 : vector<4x16x128xbf16>, vector<4x16x128xbf16>, vector<4x16x128xbf16> -> vector<4x16x384xbf16>
    %193 = vector.shape_cast %192 : vector<4x16x384xbf16> to vector<64x384xbf16>
    %c2_222 = arith.constant 2 : index
    %c0_223 = arith.constant 0 : index
    %c0_224 = arith.constant 0 : index
    %194 = vector.load %arg2[%c2_222, %c0_223, %c0_224] : memref<3x384x128xbf16, #tpu.memory_space<vmem>>, vector<1x384x128xbf16>
    %195 = vector.shape_cast %194 : vector<1x384x128xbf16> to vector<384x128xbf16>
    %cst_225 = arith.constant dense<0.000000e+00> : vector<64x128xf32>
    %196 = tpu.matmul %193, %195, %cst_225 {dimension_numbers = #tpu.dot_dimension_numbers<[1], [0], [0], [1], [0, 0, 1, 1], [], []>} : vector<64x384xbf16>, vector<384x128xbf16>, vector<64x128xf32> -> vector<64x128xf32>
    %197 = arith.addf %185, %196 : vector<64x128xf32>
    %198 = vector.broadcast %10 : vector<1x128xf32> to vector<64x128xf32>
    %199 = arith.mulf %197, %198 : vector<64x128xf32>
    %200 = vector.broadcast %11 : vector<1x128xf32> to vector<64x128xf32>
    %201 = arith.addf %199, %200 : vector<64x128xf32>
    %cst_226 = arith.constant 0.000000e+00 : f32
    %202 = vector.broadcast %cst_226 : f32 to vector<64x128xf32>
    %203 = arith.maximumf %201, %202 : vector<64x128xf32>
    %204 = vector.extract_strided_slice %203 {offsets = [0, 0], sizes = [16, 128], strides = [1, 1]} : vector<64x128xf32> to vector<16x128xf32>
    %205 = vector.extract_strided_slice %203 {offsets = [16, 0], sizes = [16, 128], strides = [1, 1]} : vector<64x128xf32> to vector<16x128xf32>
    %206 = arith.maximumf %204, %205 : vector<16x128xf32>
    %c96 = arith.constant 96 : index
    %c0_227 = arith.constant 0 : index
    %207 = vector.load %arg7[%c96, %c0_227] : memref<128x128xf32, #tpu.memory_space<vmem>>, vector<16x128xf32>
    tpu.vector_store %arg7[%c96, %c0_227], %206 {strides = array<i32>} : memref<128x128xf32, #tpu.memory_space<vmem>>, vector<16x128xf32>,
    %208 = vector.extract_strided_slice %203 {offsets = [32, 0], sizes = [16, 128], strides = [1, 1]} : vector<64x128xf32> to vector<16x128xf32>
    %209 = vector.extract_strided_slice %203 {offsets = [48, 0], sizes = [16, 128], strides = [1, 1]} : vector<64x128xf32> to vector<16x128xf32>
    %210 = arith.maximumf %208, %209 : vector<16x128xf32>
    %c112 = arith.constant 112 : index
    %c0_228 = arith.constant 0 : index
    %211 = vector.load %arg7[%c112, %c0_228] : memref<128x128xf32, #tpu.memory_space<vmem>>, vector<16x128xf32>
    tpu.vector_store %arg7[%c112, %c0_228], %210 {strides = array<i32>} : memref<128x128xf32, #tpu.memory_space<vmem>>, vector<16x128xf32>,
    %c0_229 = arith.constant 0 : index
    %c0_230 = arith.constant 0 : index
    %212 = tpu.strided_load %arg7[%c0_229, %c0_230] {strides = array<i32: 2, 1>} : memref<128x128xf32, #tpu.memory_space<vmem>>, vector<64x128xf32>
    %c1_231 = arith.constant 1 : index
    %c0_232 = arith.constant 0 : index
    %213 = tpu.strided_load %arg7[%c1_231, %c0_232] {strides = array<i32: 2, 1>} : memref<128x128xf32, #tpu.memory_space<vmem>>, vector<64x128xf32>
    %214 = arith.maximumf %212, %213 : vector<64x128xf32>
    %215 = vector.shape_cast %214 : vector<64x128xf32> to vector<8x8x128xf32>
    %216 = arith.truncf %215 : vector<8x8x128xf32> to vector<8x8x128xbf16>
    %c1_233 = arith.constant 1 : index
    %c1_234 = arith.constant 1 : index
    %c0_235 = arith.constant 0 : index
    %217 = vector.load %arg8[%c1_233, %c1_234, %c0_235] : memref<10x16x128xbf16, #tpu.memory_space<vmem>>, vector<8x8x128xbf16>
    tpu.vector_store %arg8[%c1_233, %c1_234, %c0_235], %216 {strides = array<i32>} : memref<10x16x128xbf16, #tpu.memory_space<vmem>>, vector<8x8x128xbf16>,
    %c0_236 = arith.constant 0 : index
    %c0_237 = arith.constant 0 : index
    %c0_238 = arith.constant 0 : index
    %218 = vector.load %arg8[%c0_236, %c0_237, %c0_238] : memref<10x16x128xbf16, #tpu.memory_space<vmem>>, vector<8x8x128xbf16>
    %c0_239 = arith.constant 0 : index
    %c1_240 = arith.constant 1 : index
    %c0_241 = arith.constant 0 : index
    %219 = vector.load %arg8[%c0_239, %c1_240, %c0_241] : memref<10x16x128xbf16, #tpu.memory_space<vmem>>, vector<8x8x128xbf16>
    %c0_242 = arith.constant 0 : index
    %c2_243 = arith.constant 2 : index
    %c0_244 = arith.constant 0 : index
    %220 = vector.load %arg8[%c0_242, %c2_243, %c0_244] : memref<10x16x128xbf16, #tpu.memory_space<vmem>>, vector<8x8x128xbf16>
    %221 = tpu.concatenate %218, %219, %220 in 2 : vector<8x8x128xbf16>, vector<8x8x128xbf16>, vector<8x8x128xbf16> -> vector<8x8x384xbf16>
    %222 = vector.shape_cast %221 : vector<8x8x384xbf16> to vector<64x384xbf16>
    %c0_245 = arith.constant 0 : index
    %c0_246 = arith.constant 0 : index
    %c0_247 = arith.constant 0 : index
    %223 = vector.load %arg3[%c0_245, %c0_246, %c0_247] : memref<3x384x128xbf16, #tpu.memory_space<vmem>>, vector<1x384x128xbf16>
    %224 = vector.shape_cast %223 : vector<1x384x128xbf16> to vector<384x128xbf16>
    %cst_248 = arith.constant dense<0.000000e+00> : vector<64x128xf32>
    %225 = tpu.matmul %222, %224, %cst_248 {dimension_numbers = #tpu.dot_dimension_numbers<[1], [0], [0], [1], [0, 0, 1, 1], [], []>} : vector<64x384xbf16>, vector<384x128xbf16>, vector<64x128xf32> -> vector<64x128xf32>
    %c1_249 = arith.constant 1 : index
    %c0_250 = arith.constant 0 : index
    %c0_251 = arith.constant 0 : index
    %226 = vector.load %arg8[%c1_249, %c0_250, %c0_251] : memref<10x16x128xbf16, #tpu.memory_space<vmem>>, vector<8x8x128xbf16>
    %c1_252 = arith.constant 1 : index
    %c1_253 = arith.constant 1 : index
    %c0_254 = arith.constant 0 : index
    %227 = vector.load %arg8[%c1_252, %c1_253, %c0_254] : memref<10x16x128xbf16, #tpu.memory_space<vmem>>, vector<8x8x128xbf16>
    %c1_255 = arith.constant 1 : index
    %c2_256 = arith.constant 2 : index
    %c0_257 = arith.constant 0 : index
    %228 = vector.load %arg8[%c1_255, %c2_256, %c0_257] : memref<10x16x128xbf16, #tpu.memory_space<vmem>>, vector<8x8x128xbf16>
    %229 = tpu.concatenate %226, %227, %228 in 2 : vector<8x8x128xbf16>, vector<8x8x128xbf16>, vector<8x8x128xbf16> -> vector<8x8x384xbf16>
    %230 = vector.shape_cast %229 : vector<8x8x384xbf16> to vector<64x384xbf16>
    %c1_258 = arith.constant 1 : index
    %c0_259 = arith.constant 0 : index
    %c0_260 = arith.constant 0 : index
    %231 = vector.load %arg3[%c1_258, %c0_259, %c0_260] : memref<3x384x128xbf16, #tpu.memory_space<vmem>>, vector<1x384x128xbf16>
    %232 = vector.shape_cast %231 : vector<1x384x128xbf16> to vector<384x128xbf16>
    %cst_261 = arith.constant dense<0.000000e+00> : vector<64x128xf32>
    %233 = tpu.matmul %230, %232, %cst_261 {dimension_numbers = #tpu.dot_dimension_numbers<[1], [0], [0], [1], [0, 0, 1, 1], [], []>} : vector<64x384xbf16>, vector<384x128xbf16>, vector<64x128xf32> -> vector<64x128xf32>
    %234 = arith.addf %225, %233 : vector<64x128xf32>
    %c2_262 = arith.constant 2 : index
    %c0_263 = arith.constant 0 : index
    %c0_264 = arith.constant 0 : index
    %235 = vector.load %arg8[%c2_262, %c0_263, %c0_264] : memref<10x16x128xbf16, #tpu.memory_space<vmem>>, vector<8x8x128xbf16>
    %c2_265 = arith.constant 2 : index
    %c1_266 = arith.constant 1 : index
    %c0_267 = arith.constant 0 : index
    %236 = vector.load %arg8[%c2_265, %c1_266, %c0_267] : memref<10x16x128xbf16, #tpu.memory_space<vmem>>, vector<8x8x128xbf16>
    %c2_268 = arith.constant 2 : index
    %c2_269 = arith.constant 2 : index
    %c0_270 = arith.constant 0 : index
    %237 = vector.load %arg8[%c2_268, %c2_269, %c0_270] : memref<10x16x128xbf16, #tpu.memory_space<vmem>>, vector<8x8x128xbf16>
    %238 = tpu.concatenate %235, %236, %237 in 2 : vector<8x8x128xbf16>, vector<8x8x128xbf16>, vector<8x8x128xbf16> -> vector<8x8x384xbf16>
    %239 = vector.shape_cast %238 : vector<8x8x384xbf16> to vector<64x384xbf16>
    %c2_271 = arith.constant 2 : index
    %c0_272 = arith.constant 0 : index
    %c0_273 = arith.constant 0 : index
    %240 = vector.load %arg3[%c2_271, %c0_272, %c0_273] : memref<3x384x128xbf16, #tpu.memory_space<vmem>>, vector<1x384x128xbf16>
    %241 = vector.shape_cast %240 : vector<1x384x128xbf16> to vector<384x128xbf16>
    %cst_274 = arith.constant dense<0.000000e+00> : vector<64x128xf32>
    %242 = tpu.matmul %239, %241, %cst_274 {dimension_numbers = #tpu.dot_dimension_numbers<[1], [0], [0], [1], [0, 0, 1, 1], [], []>} : vector<64x384xbf16>, vector<384x128xbf16>, vector<64x128xf32> -> vector<64x128xf32>
    %243 = arith.addf %234, %242 : vector<64x128xf32>
    %244 = vector.broadcast %12 : vector<1x128xf32> to vector<64x128xf32>
    %245 = arith.mulf %243, %244 : vector<64x128xf32>
    %246 = vector.broadcast %13 : vector<1x128xf32> to vector<64x128xf32>
    %247 = arith.addf %245, %246 : vector<64x128xf32>
    %cst_275 = arith.constant 0.000000e+00 : f32
    %248 = vector.broadcast %cst_275 : f32 to vector<64x128xf32>
    %249 = arith.maximumf %247, %248 : vector<64x128xf32>
    %250 = vector.shape_cast %249 : vector<64x128xf32> to vector<8x8x128xf32>
    %251 = arith.truncf %250 : vector<8x8x128xf32> to vector<8x8x128xbf16>
    %c1_276 = arith.constant 1 : index
    %c1_277 = arith.constant 1 : index
    %c0_278 = arith.constant 0 : index
    %252 = vector.load %arg9[%c1_276, %c1_277, %c0_278] : memref<10x16x128xbf16, #tpu.memory_space<vmem>>, vector<8x8x128xbf16>
    tpu.vector_store %arg9[%c1_276, %c1_277, %c0_278], %251 {strides = array<i32>} : memref<10x16x128xbf16, #tpu.memory_space<vmem>>, vector<8x8x128xbf16>,
    %c0_279 = arith.constant 0 : index
    %c0_280 = arith.constant 0 : index
    %c0_281 = arith.constant 0 : index
    %253 = vector.load %arg9[%c0_279, %c0_280, %c0_281] : memref<10x16x128xbf16, #tpu.memory_space<vmem>>, vector<8x8x128xbf16>
    %c0_282 = arith.constant 0 : index
    %c1_283 = arith.constant 1 : index
    %c0_284 = arith.constant 0 : index
    %254 = vector.load %arg9[%c0_282, %c1_283, %c0_284] : memref<10x16x128xbf16, #tpu.memory_space<vmem>>, vector<8x8x128xbf16>
    %c0_285 = arith.constant 0 : index
    %c2_286 = arith.constant 2 : index
    %c0_287 = arith.constant 0 : index
    %255 = vector.load %arg9[%c0_285, %c2_286, %c0_287] : memref<10x16x128xbf16, #tpu.memory_space<vmem>>, vector<8x8x128xbf16>
    %256 = tpu.concatenate %253, %254, %255 in 2 : vector<8x8x128xbf16>, vector<8x8x128xbf16>, vector<8x8x128xbf16> -> vector<8x8x384xbf16>
    %257 = vector.shape_cast %256 : vector<8x8x384xbf16> to vector<64x384xbf16>
    %c0_288 = arith.constant 0 : index
    %c0_289 = arith.constant 0 : index
    %c0_290 = arith.constant 0 : index
    %258 = vector.load %arg4[%c0_288, %c0_289, %c0_290] : memref<3x384x128xbf16, #tpu.memory_space<vmem>>, vector<1x384x128xbf16>
    %259 = vector.shape_cast %258 : vector<1x384x128xbf16> to vector<384x128xbf16>
    %cst_291 = arith.constant dense<0.000000e+00> : vector<64x128xf32>
    %260 = tpu.matmul %257, %259, %cst_291 {dimension_numbers = #tpu.dot_dimension_numbers<[1], [0], [0], [1], [0, 0, 1, 1], [], []>} : vector<64x384xbf16>, vector<384x128xbf16>, vector<64x128xf32> -> vector<64x128xf32>
    %c1_292 = arith.constant 1 : index
    %c0_293 = arith.constant 0 : index
    %c0_294 = arith.constant 0 : index
    %261 = vector.load %arg9[%c1_292, %c0_293, %c0_294] : memref<10x16x128xbf16, #tpu.memory_space<vmem>>, vector<8x8x128xbf16>
    %c1_295 = arith.constant 1 : index
    %c1_296 = arith.constant 1 : index
    %c0_297 = arith.constant 0 : index
    %262 = vector.load %arg9[%c1_295, %c1_296, %c0_297] : memref<10x16x128xbf16, #tpu.memory_space<vmem>>, vector<8x8x128xbf16>
    %c1_298 = arith.constant 1 : index
    %c2_299 = arith.constant 2 : index
    %c0_300 = arith.constant 0 : index
    %263 = vector.load %arg9[%c1_298, %c2_299, %c0_300] : memref<10x16x128xbf16, #tpu.memory_space<vmem>>, vector<8x8x128xbf16>
    %264 = tpu.concatenate %261, %262, %263 in 2 : vector<8x8x128xbf16>, vector<8x8x128xbf16>, vector<8x8x128xbf16> -> vector<8x8x384xbf16>
    %265 = vector.shape_cast %264 : vector<8x8x384xbf16> to vector<64x384xbf16>
    %c1_301 = arith.constant 1 : index
    %c0_302 = arith.constant 0 : index
    %c0_303 = arith.constant 0 : index
    %266 = vector.load %arg4[%c1_301, %c0_302, %c0_303] : memref<3x384x128xbf16, #tpu.memory_space<vmem>>, vector<1x384x128xbf16>
    %267 = vector.shape_cast %266 : vector<1x384x128xbf16> to vector<384x128xbf16>
    %cst_304 = arith.constant dense<0.000000e+00> : vector<64x128xf32>
    %268 = tpu.matmul %265, %267, %cst_304 {dimension_numbers = #tpu.dot_dimension_numbers<[1], [0], [0], [1], [0, 0, 1, 1], [], []>} : vector<64x384xbf16>, vector<384x128xbf16>, vector<64x128xf32> -> vector<64x128xf32>
    %269 = arith.addf %260, %268 : vector<64x128xf32>
    %c2_305 = arith.constant 2 : index
    %c0_306 = arith.constant 0 : index
    %c0_307 = arith.constant 0 : index
    %270 = vector.load %arg9[%c2_305, %c0_306, %c0_307] : memref<10x16x128xbf16, #tpu.memory_space<vmem>>, vector<8x8x128xbf16>
    %c2_308 = arith.constant 2 : index
    %c1_309 = arith.constant 1 : index
    %c0_310 = arith.constant 0 : index
    %271 = vector.load %arg9[%c2_308, %c1_309, %c0_310] : memref<10x16x128xbf16, #tpu.memory_space<vmem>>, vector<8x8x128xbf16>
    %c2_311 = arith.constant 2 : index
    %c2_312 = arith.constant 2 : index
    %c0_313 = arith.constant 0 : index
    %272 = vector.load %arg9[%c2_311, %c2_312, %c0_313] : memref<10x16x128xbf16, #tpu.memory_space<vmem>>, vector<8x8x128xbf16>
    %273 = tpu.concatenate %270, %271, %272 in 2 : vector<8x8x128xbf16>, vector<8x8x128xbf16>, vector<8x8x128xbf16> -> vector<8x8x384xbf16>
    %274 = vector.shape_cast %273 : vector<8x8x384xbf16> to vector<64x384xbf16>
    %c2_314 = arith.constant 2 : index
    %c0_315 = arith.constant 0 : index
    %c0_316 = arith.constant 0 : index
    %275 = vector.load %arg4[%c2_314, %c0_315, %c0_316] : memref<3x384x128xbf16, #tpu.memory_space<vmem>>, vector<1x384x128xbf16>
    %276 = vector.shape_cast %275 : vector<1x384x128xbf16> to vector<384x128xbf16>
    %cst_317 = arith.constant dense<0.000000e+00> : vector<64x128xf32>
    %277 = tpu.matmul %274, %276, %cst_317 {dimension_numbers = #tpu.dot_dimension_numbers<[1], [0], [0], [1], [0, 0, 1, 1], [], []>} : vector<64x384xbf16>, vector<384x128xbf16>, vector<64x128xf32> -> vector<64x128xf32>
    %278 = arith.addf %269, %277 : vector<64x128xf32>
    %279 = vector.broadcast %14 : vector<1x128xf32> to vector<64x128xf32>
    %280 = arith.mulf %278, %279 : vector<64x128xf32>
    %281 = vector.broadcast %15 : vector<1x128xf32> to vector<64x128xf32>
    %282 = arith.addf %280, %281 : vector<64x128xf32>
    %cst_318 = arith.constant 0.000000e+00 : f32
    %283 = vector.broadcast %cst_318 : f32 to vector<64x128xf32>
    %284 = arith.maximumf %282, %283 : vector<64x128xf32>
    %c1_319 = arith.constant 1 : index
    %c1_320 = arith.constant 1 : index
    %c0_321 = arith.constant 0 : index
    %285 = vector.load %arg8[%c1_319, %c1_320, %c0_321] : memref<10x16x128xbf16, #tpu.memory_space<vmem>>, vector<8x8x128xbf16>
    %286 = vector.shape_cast %285 : vector<8x8x128xbf16> to vector<64x128xbf16>
    %287 = arith.extf %286 : vector<64x128xbf16> to vector<64x128xf32>
    %288 = arith.addf %287, %284 : vector<64x128xf32>
    %c0_322 = arith.constant 0 : index
    %c0_323 = arith.constant 0 : index
    %c0_324 = arith.constant 0 : index
    %289 = vector.load %arg6[%c0_322, %c0_323, %c0_324] : memref<1x64x128xf32, #tpu.memory_space<vmem>>, vector<1x64x128xf32>
    %290 = vector.shape_cast %289 : vector<1x64x128xf32> to vector<64x128xf32>
    %291 = vector.shape_cast %288 : vector<64x128xf32> to vector<1x64x128xf32>
    tpu.vector_store %arg6[%c0_322, %c0_323, %c0_324], %291 {strides = array<i32>} : memref<1x64x128xf32, #tpu.memory_space<vmem>>, vector<1x64x128xf32>,
    return
  }
  func.func @transform_0(%arg0: i32) -> (i32, i32, i32, i32) {
    %c0_i32 = arith.constant 0 : i32
    %c0_i32_0 = arith.constant 0 : i32
    %c0_i32_1 = arith.constant 0 : i32
    %c0_i32_2 = arith.constant 0 : i32
    return %arg0, %c0_i32, %c0_i32_0, %c0_i32_1 : i32, i32, i32, i32
  }
  func.func @transform_1(%arg0: i32) -> (i32, i32, i32) {
    %c0_i32 = arith.constant 0 : i32
    %c0_i32_0 = arith.constant 0 : i32
    %c0_i32_1 = arith.constant 0 : i32
    %c0_i32_2 = arith.constant 0 : i32
    return %c0_i32, %c0_i32_0, %c0_i32_1 : i32, i32, i32
  }
  func.func @transform_2(%arg0: i32) -> (i32, i32, i32) {
    %c0_i32 = arith.constant 0 : i32
    %c0_i32_0 = arith.constant 0 : i32
    %c0_i32_1 = arith.constant 0 : i32
    %c0_i32_2 = arith.constant 0 : i32
    return %c0_i32, %c0_i32_0, %c0_i32_1 : i32, i32, i32
  }
  func.func @transform_3(%arg0: i32) -> (i32, i32, i32) {
    %c0_i32 = arith.constant 0 : i32
    %c0_i32_0 = arith.constant 0 : i32
    %c0_i32_1 = arith.constant 0 : i32
    %c0_i32_2 = arith.constant 0 : i32
    return %c0_i32, %c0_i32_0, %c0_i32_1 : i32, i32, i32
  }
  func.func @transform_4(%arg0: i32) -> (i32, i32) {
    %c0_i32 = arith.constant 0 : i32
    %c0_i32_0 = arith.constant 0 : i32
    %c0_i32_1 = arith.constant 0 : i32
    return %c0_i32, %c0_i32_0 : i32, i32
  }
  func.func @transform_5(%arg0: i32) -> (i32, i32, i32) {
    %c0_i32 = arith.constant 0 : i32
    %c0_i32_0 = arith.constant 0 : i32
    %c0_i32_1 = arith.constant 0 : i32
    return %arg0, %c0_i32, %c0_i32_0 : i32, i32, i32
  }
}

</mosaic_0001>

<llo_original>
// kernel: residual_layer_forward.1
$region0: #{residual_layer_forward.1}
  #allocation0 [shape = 'u32[]', space=smem, size = 0x4, offset = 0x4, fixed_abs, tag = 'smem constant byte address 0x4 - core index']
  #allocation1 [shape = 'u32[144,128]{1,0:T(1,128)}', space=vmem, size = 0x12000, scoped, tag = 'internal scratch']
  #allocation2 [shape = 'f32[128,128]{1,0:T(8,128)}', space=vmem, size = 0x10000, scoped, tag = 'scratch operand']
  #allocation3 [shape = 'bf16[10,16,128]{2,1,0:T(16,128)(2,1)}', space=vmem, size = 0xa000, scoped, tag = 'scratch operand']
  #allocation4 [shape = 'bf16[10,16,128]{2,1,0:T(16,128)(2,1)}', space=vmem, size = 0xa000, scoped, tag = 'scratch operand']
  %s0 = inlined_call_operand.vmem [shape: bf16[2,18,18,128], index: 0, kind: input, shape index: {}]
  %s1 = inlined_call_operand.vmem [shape: bf16[3,384,128], index: 1, kind: input, shape index: {}]
  %s2 = inlined_call_operand.vmem [shape: bf16[3,384,128], index: 2, kind: input, shape index: {}]
  %s3 = inlined_call_operand.hbm [shape: bf16[3,384,128], index: 3, kind: input, shape index: {}]
  %s4 = inlined_call_operand.vmem [shape: f32[6,128], index: 4, kind: input, shape index: {}]
  %s5 = inlined_call_operand.hbm [shape: f32[2,64,128], index: 5, kind: output, shape index: {}]
  %s6 = sld [smem:[#allocation0]]
  $region57: #{residual_layer_forward.1} parent=0
    _
  %s8 = ssub.s32 1, %s6
  %s9 = scalar_select 0, %s8, %s6
  $region1: #{residual_layer_forward.1} parent=0
    #allocation5 [shape = 'u8[294912]{0}', space=vmem, size = 0x48000, scoped, tag = 'input window, operand 3, single buffered']
    #allocation6 [shape = 's32[2]{0}', space=sflag, size = 0x8, scoped, tag = 'scoped memory for residual_layer_forward.1']
    #allocation7 [shape = 's32[2]{0}', space=sflag, size = 0x8, scoped, tag = 'scoped memory for residual_layer_forward.1']
    #allocation8 [shape = 'u8[65536]{0}', space=vmem, size = 0x10000, scoped, tag = 'output window, operand 0']
    %10 = vsyncpa [#allocation6], 0
    %11 = vsyncpa [#allocation7], 0
    %s12 = scalar_lea.sflag [#allocation7], 1
    %13 = vsyncpa %s12, 0
    loop: start=0, step=1, limit=4
    $region2: #{residual_layer_forward.1} parent=1 // loop_pre_header
      _
    $region3: #{residual_layer_forward.1} parent=1 // loop_header
      %s15 = sphi 0, %s19
      %p16 = scmp.ge.s32.totalorder %s15, 4
      %s25 = sphi 0, %s27
      %s28 = sphi 0, %s25
      %s29 = sphi 0, %s28
      %s45 = sphi 0, %s29
      %s49 = sphi 0, %s49
      %s51 = sphi 0, %s49
      %s52 = sphi 0, %s51
      %s66 = sphi 0, %s52
      %s70 = sphi 0, %s70
      %s72 = sphi 0, %s70
      %s73 = sphi 0, %s72
      %s87 = sphi 0, %s73
      %s91 = sphi 0, %s91
      %s93 = sphi 0, %s91
      %s94 = sphi 0, %s93
      %s108 = sphi 0, %s94
      %s112 = sphi 0, %s112
      %s114 = sphi 0, %s112
      %s115 = sphi 0, %s114
      %s129 = sphi 0, %s115
      %s135 = sphi 0, %s137
      %s138 = sphi 0, %s135
      %s139 = sphi 0, %s138
      %s155 = sphi 0, %s139
    $region4: #{residual_layer_forward.1} parent=1 // loop_header_branch
      %18 = sbr.rel (%p16) target = $region8
    $region5: #{residual_layer_forward.1} parent=1 // loop_body
      %s20 = ssub.s32 %s15, 1
      %s21 = ssub.s32 %s15, 2
      %s22 = sadd.s32 %s15, 1
      %s23 = ssub.s32 %s15, %s22
      %p24 = scmp.eq.s32.totalorder %s23, 0
      %s26 = sadd.s32 %s25, 1
      %s27 = scalar_select %p24, %s25, %s26
      %p30 = pneg %p24
      %p31 = scmp.eq.s32.totalorder %s15, 1
      %p32 = por %p30, %p31
      %p33 = scmp.ne.s32.totalorder %s25, %s28
      %p34 = scmp.eq.s32.totalorder %s15, 0
      %p35 = por %p33, %p34
      %p36 = scmp.ne.s32.totalorder %s25, %s28
      %p37 = scmp.eq.s32.totalorder %s20, 1
      %p38 = por %p36, %p37
      %p39 = scmp.ne.s32.totalorder %s28, %s29
      %p40 = scmp.eq.s32.totalorder %s20, 0
      %p41 = por %p39, %p40
      %p42 = scmp.ne.s32.totalorder %s28, %s29
      %p43 = scmp.eq.s32.totalorder %s21, 1
      %p44 = por %p42, %p43
      %p46 = scmp.ne.s32.totalorder %s29, %s45
      %p47 = scmp.eq.s32.totalorder %s21, 0
      %p48 = por %p46, %p47
      %s50 = sadd.s32 %s49, 1
      %p53 = scmp.eq.s32.totalorder %s15, 1
      %p54 = scmp.ne.s32.totalorder %s49, %s51
      %p55 = scmp.eq.s32.totalorder %s15, 0
      %p56 = por %p54, %p55
      %p57 = scmp.ne.s32.totalorder %s49, %s51
      %p58 = scmp.eq.s32.totalorder %s20, 1
      %p59 = por %p57, %p58
      %p60 = scmp.ne.s32.totalorder %s51, %s52
      %p61 = scmp.eq.s32.totalorder %s20, 0
      %p62 = por %p60, %p61
      %p63 = scmp.ne.s32.totalorder %s51, %s52
      %p64 = scmp.eq.s32.totalorder %s21, 1
      %p65 = por %p63, %p64
      %p67 = scmp.ne.s32.totalorder %s52, %s66
      %p68 = scmp.eq.s32.totalorder %s21, 0
      %p69 = por %p67, %p68
      %s71 = sadd.s32 %s70, 1
      %p74 = scmp.eq.s32.totalorder %s15, 1
      %p75 = scmp.ne.s32.totalorder %s70, %s72
      %p76 = scmp.eq.s32.totalorder %s15, 0
      %p77 = por %p75, %p76
      %p78 = scmp.ne.s32.totalorder %s70, %s72
      %p79 = scmp.eq.s32.totalorder %s20, 1
      %p80 = por %p78, %p79
      %p81 = scmp.ne.s32.totalorder %s72, %s73
      %p82 = scmp.eq.s32.totalorder %s20, 0
      %p83 = por %p81, %p82
      %p84 = scmp.ne.s32.totalorder %s72, %s73
      %p85 = scmp.eq.s32.totalorder %s21, 1
      %p86 = por %p84, %p85
      %p88 = scmp.ne.s32.totalorder %s73, %s87
      %p89 = scmp.eq.s32.totalorder %s21, 0
      %p90 = por %p88, %p89
      %s92 = sadd.s32 %s91, 1
      %p95 = scmp.eq.s32.totalorder %s15, 1
      %p96 = scmp.ne.s32.totalorder %s91, %s93
      %p97 = scmp.eq.s32.totalorder %s15, 0
      %p98 = por %p96, %p97
      %p99 = scmp.ne.s32.totalorder %s91, %s93
      %p100 = scmp.eq.s32.totalorder %s20, 1
      %p101 = por %p99, %p100
      %p102 = scmp.ne.s32.totalorder %s93, %s94
      %p103 = scmp.eq.s32.totalorder %s20, 0
      %p104 = por %p102, %p103
      %p105 = scmp.ne.s32.totalorder %s93, %s94
      %p106 = scmp.eq.s32.totalorder %s21, 1
      %p107 = por %p105, %p106
      %p109 = scmp.ne.s32.totalorder %s94, %s108
      %p110 = scmp.eq.s32.totalorder %s21, 0
      %p111 = por %p109, %p110
      %s113 = sadd.s32 %s112, 1
      %p116 = scmp.eq.s32.totalorder %s15, 1
      %p117 = scmp.ne.s32.totalorder %s112, %s114
      %p118 = scmp.eq.s32.totalorder %s15, 0
      %p119 = por %p117, %p118
      %p120 = scmp.ne.s32.totalorder %s112, %s114
      %p121 = scmp.eq.s32.totalorder %s20, 1
      %p122 = por %p120, %p121
      %p123 = scmp.ne.s32.totalorder %s114, %s115
      %p124 = scmp.eq.s32.totalorder %s20, 0
      %p125 = por %p123, %p124
      %p126 = scmp.ne.s32.totalorder %s114, %s115
      %p127 = scmp.eq.s32.totalorder %s21, 1
      %p128 = por %p126, %p127
      %p130 = scmp.ne.s32.totalorder %s115, %s129
      %p131 = scmp.eq.s32.totalorder %s21, 0
      %p132 = por %p130, %p131
      %s133 = ssub.s32 %s15, %s22
      %p134 = scmp.eq.s32.totalorder %s133, 0
      %s136 = sadd.s32 %s135, 1
      %s137 = scalar_select %p134, %s135, %s136
      %p140 = pneg %p134
      %p141 = scmp.eq.s32.totalorder %s15, 1
      %p142 = por %p140, %p141
      %p143 = scmp.ne.s32.totalorder %s135, %s138
      %p144 = scmp.eq.s32.totalorder %s15, 0
      %p145 = por %p143, %p144
      %p146 = scmp.ne.s32.totalorder %s135, %s138
      %p147 = scmp.eq.s32.totalorder %s20, 1
      %p148 = por %p146, %p147
      %p149 = scmp.ne.s32.totalorder %s138, %s139
      %p150 = scmp.eq.s32.totalorder %s20, 0
      %p151 = por %p149, %p150
      %p152 = scmp.ne.s32.totalorder %s138, %s139
      %p153 = scmp.eq.s32.totalorder %s21, 1
      %p154 = por %p152, %p153
      %p156 = scmp.ne.s32.totalorder %s139, %s155
      %p157 = scmp.eq.s32.totalorder %s21, 0
      %p158 = por %p156, %p157
      %p159 = scmp.le.s32.totalorder 1, %s15
      %p160 = scmp.lt.s32.totalorder %s15, 3
      %p161 = pnand %p159, %p160
      %p162 = pneg %p161
      // Predicated region
      $region9: #{residual_layer_forward.1} parent=5 // pred_check
        _
      $region10: #{residual_layer_forward.1} parent=5 // pred_check_branch
        %164 = sbr.rel (%p161) target = $region12
      $region11: #{residual_layer_forward.1} parent=5 // pred_region
        %s165 = ssub.s32 %s15, 1
        // Predicated region
        $region13: #{residual_layer_forward.1} parent=11 // pred_check
          %p166 = pneg %p62
        $region14: #{residual_layer_forward.1} parent=11 // pred_check_branch
          %168 = sbr.rel (%p166) target = $region16
        $region15: #{residual_layer_forward.1} parent=11 // pred_region
          _
        $region16: #{residual_layer_forward.1} parent=11 // pred_fallthru
          _
        // Predicated region
        $region17: #{residual_layer_forward.1} parent=11 // pred_check
          %p169 = pneg %p83
        $region18: #{residual_layer_forward.1} parent=11 // pred_check_branch
          %171 = sbr.rel (%p169) target = $region20
        $region19: #{residual_layer_forward.1} parent=11 // pred_region
          _
        $region20: #{residual_layer_forward.1} parent=11 // pred_fallthru
          _
        // Predicated region
        $region21: #{residual_layer_forward.1} parent=11 // pred_check
          %p172 = pneg %p104
        $region22: #{residual_layer_forward.1} parent=11 // pred_check_branch
          %174 = sbr.rel (%p172) target = $region24
        $region23: #{residual_layer_forward.1} parent=11 // pred_region
          %s176 = ssub.s32 9216, 9216
          %177 = vsyncadd [#allocation6], %s176
          %s178 = sshll.u32 [#allocation5], 4
          %s179 = int_to_ptr.vmem [resolvable:$true] %s178
          %184 = dma.hbm_to_vmem [thread:$0]  %s3, 9216, %s179, [#allocation6], 64, 64, 4
        $region24: #{residual_layer_forward.1} parent=11 // pred_fallthru
          _
        // Predicated region
        $region25: #{residual_layer_forward.1} parent=11 // pred_check
          %p185 = pneg %p125
        $region26: #{residual_layer_forward.1} parent=11 // pred_check_branch
          %187 = sbr.rel (%p185) target = $region28
        $region27: #{residual_layer_forward.1} parent=11 // pred_region
          _
        $region28: #{residual_layer_forward.1} parent=11 // pred_fallthru
          _
      $region12: #{residual_layer_forward.1} parent=5 // pred_fallthru
        _
      %p188 = scmp.lt.s32.totalorder %s15, 2
      // Predicated region
      $region29: #{residual_layer_forward.1} parent=5 // pred_check
        %p189 = pneg %p188
      $region30: #{residual_layer_forward.1} parent=5 // pred_check_branch
        %191 = sbr.rel (%p189) target = $region32
      $region31: #{residual_layer_forward.1} parent=5 // pred_region
        // Predicated region
        $region33: #{residual_layer_forward.1} parent=31 // pred_check
          %p192 = pneg %p35
        $region34: #{residual_layer_forward.1} parent=31 // pred_check_branch
          %194 = sbr.rel (%p192) target = $region36
        $region35: #{residual_layer_forward.1} parent=31 // pred_region
          %p195 = scmp.lt.s32.totalorder %s15, 1
          %s196 = scalar_select %p195, %s15, 1
          %s197 = smul.addr %s196, 54
          %s198 = smul.addr %s197, 4
          %s199 = scalar_lea.vmem %s0, %s198
        $region36: #{residual_layer_forward.1} parent=31 // pred_fallthru
          _
      $region32: #{residual_layer_forward.1} parent=5 // pred_fallthru
        _
      %p200 = scmp.le.s32.totalorder 1, %s15
      %p201 = scmp.lt.s32.totalorder %s15, 3
      %p202 = pnand %p200, %p201
      %p203 = pneg %p202
      // Predicated region
      $region37: #{residual_layer_forward.1} parent=5 // pred_check
        _
      $region38: #{residual_layer_forward.1} parent=5 // pred_check_branch
        %205 = sbr.rel (%p202) target = $region40
      $region39: #{residual_layer_forward.1} parent=5 // pred_region
        %s206 = ssub.s32 %s15, 1
        // Predicated region
        $region41: #{residual_layer_forward.1} parent=39 // pred_check
          %p207 = pneg %p104
        $region42: #{residual_layer_forward.1} parent=39 // pred_check_branch
          %209 = sbr.rel (%p207) target = $region44
        $region43: #{residual_layer_forward.1} parent=39 // pred_region
          %210 = dma.done [#allocation6], 9216
        $region44: #{residual_layer_forward.1} parent=39 // pred_fallthru
          _
        %p211 = scmp.lt.s32.totalorder %s20, 1
        %s212 = scalar_select %p211, %s20, 1
        %s213 = smul.addr %s212, 54
        %s214 = smul.addr %s213, 4
        %s215 = scalar_lea.vmem %s0, %s214
        %p216 = pneg %p41
        %p217 = pneg %p38
        %p218 = pneg %p62
        %p219 = pneg %p59
        %p220 = pneg %p83
        %p221 = pneg %p80
        %p222 = pneg %p104
        %p223 = pneg %p101
        %p224 = pneg %p125
        %p225 = pneg %p122
        %p226 = pneg %p151
        %p227 = pneg %p148
        %s228 = sand.u32 %s138, 1
        %s229 = scalar_lea.sflag [#allocation7], %s228
        %s230 = sand.u32 %s138, 1
        %s231 = smul.addr %s230, 64
        %s232 = scalar_lea.vmem [#allocation8], %s231
        %p233 = scmp.lt.s32.totalorder %s20, 1
        %s234 = scalar_select %p233, %s20, 1
        %s235 = smul.addr %s234, 54
        %s236 = smul.addr %s235, 4
        %s237 = scalar_lea.vmem %s0, %s236
        %239 = vst [vmem:[#allocation3] sm:$0xff] 0
        %s240 = scalar_lea.vmem [#allocation3], 72
        %241 = vst [vmem:[%s240] sm:$0xff] 0
        %s242 = scalar_lea.vmem [#allocation3], 8
        %vm243 = vcmask 1040384
        %vm244 = vsmask.f32 256
        %vm245 = vmand %vm243, %vm244
        %v246 = vld [vmem:[%s242] sm:$0x1]
        %v247 = vsel %vm245, 0, %v246
        %248 = vst [vmem:[%s242] sm:$0x1] %v247
        %v249 = vld [vmem:[%s242 + $0x8] sm:$0x1]
        %v250 = vsel %vm245, 0, %v249
        %251 = vst [vmem:[%s242 + $0x8] sm:$0x1] %v250
        %v252 = vld [vmem:[%s242 + $0x10] sm:$0x1]
        %v253 = vsel %vm245, 0, %v252
        %254 = vst [vmem:[%s242 + $0x10] sm:$0x1] %v253
        %v255 = vld [vmem:[%s242 + $0x18] sm:$0x1]
        %v256 = vsel %vm245, 0, %v255
        %257 = vst [vmem:[%s242 + $0x18] sm:$0x1] %v256
        %v258 = vld [vmem:[%s242 + $0x20] sm:$0x1]
        %v259 = vsel %vm245, 0, %v258
        %260 = vst [vmem:[%s242 + $0x20] sm:$0x1] %v259
        %v261 = vld [vmem:[%s242 + $0x28] sm:$0x1]
        %v262 = vsel %vm245, 0, %v261
        %263 = vst [vmem:[%s242 + $0x28] sm:$0x1] %v262
        %v264 = vld [vmem:[%s242 + $0x30] sm:$0x1]
        %v265 = vsel %vm245, 0, %v264
        %266 = vst [vmem:[%s242 + $0x30] sm:$0x1] %v265
        %v267 = vld [vmem:[%s242 + $0x38] sm:$0x1]
        %v268 = vsel %vm245, 0, %v267
        %269 = vst [vmem:[%s242 + $0x38] sm:$0x1] %v268
        %vm270 = vcmask 1044484
        %vm271 = vsmask.f32 7954
        %vm272 = vmand %vm270, %vm271
        %v273 = vld [vmem:[%s242] sm:$0x10]
        %v274 = vsel %vm272, 0, %v273
        %275 = vst [vmem:[%s242] sm:$0x10] %v274
        %v276 = vld [vmem:[%s242 + $0x8] sm:$0x10]
        %v277 = vsel %vm272, 0, %v276
        %278 = vst [vmem:[%s242 + $0x8] sm:$0x10] %v277
        %v279 = vld [vmem:[%s242 + $0x10] sm:$0x10]
        %v280 = vsel %vm272, 0, %v279
        %281 = vst [vmem:[%s242 + $0x10] sm:$0x10] %v280
        %v282 = vld [vmem:[%s242 + $0x18] sm:$0x10]
        %v283 = vsel %vm272, 0, %v282
        %284 = vst [vmem:[%s242 + $0x18] sm:$0x10] %v283
        %v285 = vld [vmem:[%s242 + $0x20] sm:$0x10]
        %v286 = vsel %vm272, 0, %v285
        %287 = vst [vmem:[%s242 + $0x20] sm:$0x10] %v286
        %v288 = vld [vmem:[%s242 + $0x28] sm:$0x10]
        %v289 = vsel %vm272, 0, %v288
        %290 = vst [vmem:[%s242 + $0x28] sm:$0x10] %v289
        %v291 = vld [vmem:[%s242 + $0x30] sm:$0x10]
        %v292 = vsel %vm272, 0, %v291
        %293 = vst [vmem:[%s242 + $0x30] sm:$0x10] %v292
        %v294 = vld [vmem:[%s242 + $0x38] sm:$0x10]
        %v295 = vsel %vm272, 0, %v294
        %296 = vst [vmem:[%s242 + $0x38] sm:$0x10] %v295
        %297 = vst [vmem:[#allocation4] sm:$0xff] 0
        %s298 = scalar_lea.vmem [#allocation4], 72
        %299 = vst [vmem:[%s298] sm:$0xff] 0
        %s300 = scalar_lea.vmem [#allocation4], 8
        %v301 = vld [vmem:[%s300] sm:$0x1]
        %v302 = vsel %vm245, 0, %v301
        %303 = vst [vmem:[%s300] sm:$0x1] %v302
        %v304 = vld [vmem:[%s300 + $0x8] sm:$0x1]
        %v305 = vsel %vm245, 0, %v304
        %306 = vst [vmem:[%s300 + $0x8] sm:$0x1] %v305
        %v307 = vld [vmem:[%s300 + $0x10] sm:$0x1]
        %v308 = vsel %vm245, 0, %v307
        %309 = vst [vmem:[%s300 + $0x10] sm:$0x1] %v308
        %v310 = vld [vmem:[%s300 + $0x18] sm:$0x1]
        %v311 = vsel %vm245, 0, %v310
        %312 = vst [vmem:[%s300 + $0x18] sm:$0x1] %v311
        %v313 = vld [vmem:[%s300 + $0x20] sm:$0x1]
        %v314 = vsel %vm245, 0, %v313
        %315 = vst [vmem:[%s300 + $0x20] sm:$0x1] %v314
        %v316 = vld [vmem:[%s300 + $0x28] sm:$0x1]
        %v317 = vsel %vm245, 0, %v316
        %318 = vst [vmem:[%s300 + $0x28] sm:$0x1] %v317
        %v319 = vld [vmem:[%s300 + $0x30] sm:$0x1]
        %v320 = vsel %vm245, 0, %v319
        %321 = vst [vmem:[%s300 + $0x30] sm:$0x1] %v320
        %v322 = vld [vmem:[%s300 + $0x38] sm:$0x1]
        %v323 = vsel %vm245, 0, %v322
        %324 = vst [vmem:[%s300 + $0x38] sm:$0x1] %v323
        %v325 = vld [vmem:[%s300] sm:$0x10]
        %v326 = vsel %vm272, 0, %v325
        %327 = vst [vmem:[%s300] sm:$0x10] %v326
        %v328 = vld [vmem:[%s300 + $0x8] sm:$0x10]
        %v329 = vsel %vm272, 0, %v328
        %330 = vst [vmem:[%s300 + $0x8] sm:$0x10] %v329
        %v331 = vld [vmem:[%s300 + $0x10] sm:$0x10]
        %v332 = vsel %vm272, 0, %v331
        %333 = vst [vmem:[%s300 + $0x10] sm:$0x10] %v332
        %v334 = vld [vmem:[%s300 + $0x18] sm:$0x10]
        %v335 = vsel %vm272, 0, %v334
        %336 = vst [vmem:[%s300 + $0x18] sm:$0x10] %v335
        %v337 = vld [vmem:[%s300 + $0x20] sm:$0x10]
        %v338 = vsel %vm272, 0, %v337
        %339 = vst [vmem:[%s300 + $0x20] sm:$0x10] %v338
        %v340 = vld [vmem:[%s300 + $0x28] sm:$0x10]
        %v341 = vsel %vm272, 0, %v340
        %342 = vst [vmem:[%s300 + $0x28] sm:$0x10] %v341
        %v343 = vld [vmem:[%s300 + $0x30] sm:$0x10]
        %v344 = vsel %vm272, 0, %v343
        %345 = vst [vmem:[%s300 + $0x30] sm:$0x10] %v344
        %v346 = vld [vmem:[%s300 + $0x38] sm:$0x10]
        %v347 = vsel %vm272, 0, %v346
        %348 = vst [vmem:[%s300 + $0x38] sm:$0x10] %v347
        %v349 = vld [vmem:[%s4] sm:$0x1]
        %v350 = vld [vmem:[%s4 + $0x1] sm:$0x1]
        %v351 = vld [vmem:[%s4 + $0x2] sm:$0x1]
        %v352 = vld [vmem:[%s4 + $0x3] sm:$0x1]
        %v353 = vld [vmem:[%s4 + $0x4] sm:$0x1]
        %v354 = vld [vmem:[%s4 + $0x5] sm:$0x1]
        %v355 = vld [vmem:[%s237] sm:$0xf]
        %v356 = vld [vmem:[%s237 + $0x4] sm:$0xf]
        %v357 = vld [vmem:[%s237 + $0xc] sm:$0xf]
        %v358 = vld [vmem:[%s237 + $0x10] sm:$0xf]
        %v359 = vld [vmem:[%s237 + $0x18] sm:$0xf]
        %v360 = vld [vmem:[%s237 + $0x1c] sm:$0xf]
        %v361 = vld [vmem:[%s237 + $0x24] sm:$0xf]
        %v362 = vld [vmem:[%s237 + $0x28] sm:$0xf]
        %v363 = vld [vmem:[%s237 + $0x8] sm:$0x1]
        %v364 = vld [vmem:[%s237 + $0x14] sm:$0x1]
        %v365 = vld [vmem:[%s237 + $0x20] sm:$0x1]
        %v366 = vld [vmem:[%s237 + $0x2c] sm:$0x1]
        %v367 = vld [vmem:[%s237] sm:$0xe]
        %v368 = vld [vmem:[%s237 + $0xc] sm:$0xe]
        %v369 = vld [vmem:[%s237 + $0x18] sm:$0xe]
        %v370 = vld [vmem:[%s237 + $0x24] sm:$0xe]
        %v379 = vunpack.c.l.b16 %v355
        %v380 = vunpack.c.l.b16 %v356
        %v381 = vunpack.c.l.b16 %v357
        %v382 = vunpack.c.l.b16 %v358
        %v383 = vunpack.c.l.b16 %v359
        %v384 = vunpack.c.l.b16 %v360
        %v385 = vunpack.c.l.b16 %v361
        %v386 = vunpack.c.l.b16 %v362
        %v387 = vpack.c.b16 %v380, %v379
        %v388 = vpack.c.b16 %v382, %v381
        %v389 = vpack.c.b16 %v384, %v383
        %v390 = vpack.c.b16 %v386, %v385
        %v399 = vunpack.c.l.b16 %v363
        %v400 = vunpack.c.l.b16 %v364
        %v401 = vunpack.c.l.b16 %v365
        %v402 = vunpack.c.l.b16 %v366
        %v403 = vpack.c.b16 %v399, %v399
        %v404 = vpack.c.b16 %v400, %v400
        %v405 = vpack.c.b16 %v401, %v401
        %v406 = vpack.c.b16 %v402, %v402
        %vm407 = vsmask.f32 7424
        %v409 = vshrl.u32 %v387, 16
        %v411 = vshll.u32 %v387, 16
        %v413 = vrot.slane %v411, 1
        %v414 = vor.u32 %v409, %v413
        %v416 = vshll.u32 %v403, 16
        %v418 = vrot.slane %v416, 1
        %v419 = vsel %vm407, %v414, %v418
        %v421 = vshrl.u32 %v388, 16
        %v423 = vshll.u32 %v388, 16
        %v425 = vrot.slane %v423, 1
        %v426 = vor.u32 %v421, %v425
        %v428 = vshll.u32 %v404, 16
        %v430 = vrot.slane %v428, 1
        %v431 = vsel %vm407, %v426, %v430
        %v433 = vshrl.u32 %v389, 16
        %v435 = vshll.u32 %v389, 16
        %v437 = vrot.slane %v435, 1
        %v438 = vor.u32 %v433, %v437
        %v440 = vshll.u32 %v405, 16
        %v442 = vrot.slane %v440, 1
        %v443 = vsel %vm407, %v438, %v442
        %v445 = vshrl.u32 %v390, 16
        %v447 = vshll.u32 %v390, 16
        %v449 = vrot.slane %v447, 1
        %v450 = vor.u32 %v445, %v449
        %v452 = vshll.u32 %v406, 16
        %v454 = vrot.slane %v452, 1
        %v455 = vsel %vm407, %v450, %v454
        %v464 = vunpack.c.l.b16 %v367
        %v465 = vunpack.c.l.b16 %v368
        %v466 = vunpack.c.l.b16 %v369
        %v467 = vunpack.c.l.b16 %v370
        %v468 = vpack.c.b16 %v380, %v464
        %v469 = vpack.c.b16 %v382, %v465
        %v470 = vpack.c.b16 %v384, %v466
        %v471 = vpack.c.b16 %v386, %v467
        %vm472 = vcmask 1046528
        %v473 = vrot.slane %v468, 1
        %v474 = vrot.slane %v403, 1
        %v475 = vsel %vm472, %v473, %v474
        %v476 = vrot.slane %v469, 1
        %v477 = vrot.slane %v404, 1
        %v478 = vsel %vm472, %v476, %v477
        %v479 = vrot.slane %v470, 1
        %v480 = vrot.slane %v405, 1
        %v481 = vsel %vm472, %v479, %v480
        %v482 = vrot.slane %v471, 1
        %v483 = vrot.slane %v406, 1
        %v484 = vsel %vm472, %v482, %v483
        %v489 = vld [vmem:[%s1] sm:$0xf]
        %v490 = vld [vmem:[%s1 + $0x4] sm:$0xf]
        %v491 = vld [vmem:[%s1 + $0x8] sm:$0xf]
        %v492 = vld [vmem:[%s1 + $0xc] sm:$0xf]
        %v493 = vld [vmem:[%s1 + $0x10] sm:$0xf]
        %v494 = vld [vmem:[%s1 + $0x14] sm:$0xf]
        %v495 = vld [vmem:[%s1 + $0x18] sm:$0xf]
        %v496 = vld [vmem:[%s1 + $0x1c] sm:$0xf]
        %v497 = vld [vmem:[%s1 + $0x20] sm:$0xf]
        %v498 = vld [vmem:[%s1 + $0x24] sm:$0xf]
        %v499 = vld [vmem:[%s1 + $0x28] sm:$0xf]
        %v500 = vld [vmem:[%s1 + $0x2c] sm:$0xf]
        %v501 = vld [vmem:[%s1 + $0x30] sm:$0xf]
        %v502 = vld [vmem:[%s1 + $0x34] sm:$0xf]
        %v503 = vld [vmem:[%s1 + $0x38] sm:$0xf]
        %v504 = vld [vmem:[%s1 + $0x3c] sm:$0xf]
        %v505 = vld [vmem:[%s1 + $0x40] sm:$0xf]
        %v506 = vld [vmem:[%s1 + $0x44] sm:$0xf]
        %v507 = vld [vmem:[%s1 + $0x48] sm:$0xf]
        %v508 = vld [vmem:[%s1 + $0x4c] sm:$0xf]
        %v509 = vld [vmem:[%s1 + $0x50] sm:$0xf]
        %v510 = vld [vmem:[%s1 + $0x54] sm:$0xf]
        %v511 = vld [vmem:[%s1 + $0x58] sm:$0xf]
        %v512 = vld [vmem:[%s1 + $0x5c] sm:$0xf]
        %v513 = vld [vmem:[%s1 + $0x60] sm:$0xf]
        %v514 = vld [vmem:[%s1 + $0x64] sm:$0xf]
        %v515 = vld [vmem:[%s1 + $0x68] sm:$0xf]
        %v516 = vld [vmem:[%s1 + $0x6c] sm:$0xf]
        %v517 = vld [vmem:[%s1 + $0x70] sm:$0xf]
        %v518 = vld [vmem:[%s1 + $0x74] sm:$0xf]
        %v519 = vld [vmem:[%s1 + $0x78] sm:$0xf]
        %v520 = vld [vmem:[%s1 + $0x7c] sm:$0xf]
        %v521 = vld [vmem:[%s1 + $0x80] sm:$0xf]
        %v522 = vld [vmem:[%s1 + $0x84] sm:$0xf]
        %v523 = vld [vmem:[%s1 + $0x88] sm:$0xf]
        %v524 = vld [vmem:[%s1 + $0x8c] sm:$0xf]
        %v525 = vld [vmem:[%s1 + $0x90] sm:$0xf]
        %v526 = vld [vmem:[%s1 + $0x94] sm:$0xf]
        %v527 = vld [vmem:[%s1 + $0x98] sm:$0xf]
        %v528 = vld [vmem:[%s1 + $0x9c] sm:$0xf]
        %v529 = vld [vmem:[%s1 + $0xa0] sm:$0xf]
        %v530 = vld [vmem:[%s1 + $0xa4] sm:$0xf]
        %v531 = vld [vmem:[%s1 + $0xa8] sm:$0xf]
        %v532 = vld [vmem:[%s1 + $0xac] sm:$0xf]
        %v533 = vld [vmem:[%s1 + $0xb0] sm:$0xf]
        %v534 = vld [vmem:[%s1 + $0xb4] sm:$0xf]
        %v535 = vld [vmem:[%s1 + $0xb8] sm:$0xf]
        %v536 = vld [vmem:[%s1 + $0xbc] sm:$0xf]
        %s537 = scalar_lea.vmem %s237, 12
        %v538 = vld [vmem:[%s537] sm:$0xf]
        %v539 = vld [vmem:[%s537 + $0x4] sm:$0xf]
        %v540 = vld [vmem:[%s537 + $0xc] sm:$0xf]
        %v541 = vld [vmem:[%s537 + $0x10] sm:$0xf]
        %v542 = vld [vmem:[%s537 + $0x18] sm:$0xf]
        %v543 = vld [vmem:[%s537 + $0x1c] sm:$0xf]
        %v544 = vld [vmem:[%s537 + $0x24] sm:$0xf]
        %v545 = vld [vmem:[%s537 + $0x28] sm:$0xf]
        %v546 = vld [vmem:[%s537 + $0x8] sm:$0x1]
        %v547 = vld [vmem:[%s537 + $0x14] sm:$0x1]
        %v548 = vld [vmem:[%s537 + $0x20] sm:$0x1]
        %v549 = vld [vmem:[%s537 + $0x2c] sm:$0x1]
        %v550 = vld [vmem:[%s537] sm:$0xe]
        %v551 = vld [vmem:[%s537 + $0xc] sm:$0xe]
        %v552 = vld [vmem:[%s537 + $0x18] sm:$0xe]
        %v553 = vld [vmem:[%s537 + $0x24] sm:$0xe]
        %v562 = vunpack.c.l.b16 %v538
        %v563 = vunpack.c.l.b16 %v539
        %v564 = vunpack.c.l.b16 %v540
        %v565 = vunpack.c.l.b16 %v541
        %v566 = vunpack.c.l.b16 %v542
        %v567 = vunpack.c.l.b16 %v543
        %v568 = vunpack.c.l.b16 %v544
        %v569 = vunpack.c.l.b16 %v545
        %v570 = vpack.c.b16 %v563, %v562
        %v571 = vpack.c.b16 %v565, %v564
        %v572 = vpack.c.b16 %v567, %v566
        %v573 = vpack.c.b16 %v569, %v568
        %v582 = vunpack.c.l.b16 %v546
        %v583 = vunpack.c.l.b16 %v547
        %v584 = vunpack.c.l.b16 %v548
        %v585 = vunpack.c.l.b16 %v549
        %v586 = vpack.c.b16 %v582, %v582
        %v587 = vpack.c.b16 %v583, %v583
        %v588 = vpack.c.b16 %v584, %v584
        %v589 = vpack.c.b16 %v585, %v585
        %v591 = vshrl.u32 %v570, 16
        %v593 = vshll.u32 %v570, 16
        %v595 = vrot.slane %v593, 1
        %v596 = vor.u32 %v591, %v595
        %v598 = vshll.u32 %v586, 16
        %v600 = vrot.slane %v598, 1
        %v601 = vsel %vm407, %v596, %v600
        %v603 = vshrl.u32 %v571, 16
        %v605 = vshll.u32 %v571, 16
        %v607 = vrot.slane %v605, 1
        %v608 = vor.u32 %v603, %v607
        %v610 = vshll.u32 %v587, 16
        %v612 = vrot.slane %v610, 1
        %v613 = vsel %vm407, %v608, %v612
        %v615 = vshrl.u32 %v572, 16
        %v617 = vshll.u32 %v572, 16
        %v619 = vrot.slane %v617, 1
        %v620 = vor.u32 %v615, %v619
        %v622 = vshll.u32 %v588, 16
        %v624 = vrot.slane %v622, 1
        %v625 = vsel %vm407, %v620, %v624
        %v627 = vshrl.u32 %v573, 16
        %v629 = vshll.u32 %v573, 16
        %v631 = vrot.slane %v629, 1
        %v632 = vor.u32 %v627, %v631
        %v634 = vshll.u32 %v589, 16
        %v636 = vrot.slane %v634, 1
        %v637 = vsel %vm407, %v632, %v636
        %v646 = vunpack.c.l.b16 %v550
        %v647 = vunpack.c.l.b16 %v551
        %v648 = vunpack.c.l.b16 %v552
        %v649 = vunpack.c.l.b16 %v553
        %v650 = vpack.c.b16 %v563, %v646
        %v651 = vpack.c.b16 %v565, %v647
        %v652 = vpack.c.b16 %v567, %v648
        %v653 = vpack.c.b16 %v569, %v649
        %v654 = vrot.slane %v650, 1
        %v655 = vrot.slane %v586, 1
        %v656 = vsel %vm472, %v654, %v655
        %v657 = vrot.slane %v651, 1
        %v658 = vrot.slane %v587, 1
        %v659 = vsel %vm472, %v657, %v658
        %v660 = vrot.slane %v652, 1
        %v661 = vrot.slane %v588, 1
        %v662 = vsel %vm472, %v660, %v661
        %v663 = vrot.slane %v653, 1
        %v664 = vrot.slane %v589, 1
        %v665 = vsel %vm472, %v663, %v664
        %s670 = scalar_lea.vmem %s1, 192
        %v671 = vld [vmem:[%s670] sm:$0xf]
        %v672 = vld [vmem:[%s670 + $0x4] sm:$0xf]
        %v673 = vld [vmem:[%s670 + $0x8] sm:$0xf]
        %v674 = vld [vmem:[%s670 + $0xc] sm:$0xf]
        %v675 = vld [vmem:[%s670 + $0x10] sm:$0xf]
        %v676 = vld [vmem:[%s670 + $0x14] sm:$0xf]
        %v677 = vld [vmem:[%s670 + $0x18] sm:$0xf]
        %v678 = vld [vmem:[%s670 + $0x1c] sm:$0xf]
        %v679 = vld [vmem:[%s670 + $0x20] sm:$0xf]
        %v680 = vld [vmem:[%s670 + $0x24] sm:$0xf]
        %v681 = vld [vmem:[%s670 + $0x28] sm:$0xf]
        %v682 = vld [vmem:[%s670 + $0x2c] sm:$0xf]
        %v683 = vld [vmem:[%s670 + $0x30] sm:$0xf]
        %v684 = vld [vmem:[%s670 + $0x34] sm:$0xf]
        %v685 = vld [vmem:[%s670 + $0x38] sm:$0xf]
        %v686 = vld [vmem:[%s670 + $0x3c] sm:$0xf]
        %v687 = vld [vmem:[%s670 + $0x40] sm:$0xf]
        %v688 = vld [vmem:[%s670 + $0x44] sm:$0xf]
        %v689 = vld [vmem:[%s670 + $0x48] sm:$0xf]
        %v690 = vld [vmem:[%s670 + $0x4c] sm:$0xf]
        %v691 = vld [vmem:[%s670 + $0x50] sm:$0xf]
        %v692 = vld [vmem:[%s670 + $0x54] sm:$0xf]
        %v693 = vld [vmem:[%s670 + $0x58] sm:$0xf]
        %v694 = vld [vmem:[%s670 + $0x5c] sm:$0xf]
        %v695 = vld [vmem:[%s670 + $0x60] sm:$0xf]
        %v696 = vld [vmem:[%s670 + $0x64] sm:$0xf]
        %v697 = vld [vmem:[%s670 + $0x68] sm:$0xf]
        %v698 = vld [vmem:[%s670 + $0x6c] sm:$0xf]
        %v699 = vld [vmem:[%s670 + $0x70] sm:$0xf]
        %v700 = vld [vmem:[%s670 + $0x74] sm:$0xf]
        %v701 = vld [vmem:[%s670 + $0x78] sm:$0xf]
        %v702 = vld [vmem:[%s670 + $0x7c] sm:$0xf]
        %v703 = vld [vmem:[%s670 + $0x80] sm:$0xf]
        %v704 = vld [vmem:[%s670 + $0x84] sm:$0xf]
        %v705 = vld [vmem:[%s670 + $0x88] sm:$0xf]
        %v706 = vld [vmem:[%s670 + $0x8c] sm:$0xf]
        %v707 = vld [vmem:[%s670 + $0x90] sm:$0xf]
        %v708 = vld [vmem:[%s670 + $0x94] sm:$0xf]
        %v709 = vld [vmem:[%s670 + $0x98] sm:$0xf]
        %v710 = vld [vmem:[%s670 + $0x9c] sm:$0xf]
        %v711 = vld [vmem:[%s670 + $0xa0] sm:$0xf]
        %v712 = vld [vmem:[%s670 + $0xa4] sm:$0xf]
        %v713 = vld [vmem:[%s670 + $0xa8] sm:$0xf]
        %v714 = vld [vmem:[%s670 + $0xac] sm:$0xf]
        %v715 = vld [vmem:[%s670 + $0xb0] sm:$0xf]
        %v716 = vld [vmem:[%s670 + $0xb4] sm:$0xf]
        %v717 = vld [vmem:[%s670 + $0xb8] sm:$0xf]
        %v718 = vld [vmem:[%s670 + $0xbc] sm:$0xf]
        %v767 = vunpack.c.l.b16 %v671
        %v768 = vunpack.c.l.b16 %v672
        %v769 = vunpack.c.l.b16 %v673
        %v770 = vunpack.c.l.b16 %v674
        %v771 = vunpack.c.l.b16 %v675
        %v772 = vunpack.c.l.b16 %v676
        %v773 = vunpack.c.l.b16 %v677
        %v774 = vunpack.c.l.b16 %v678
        %v775 = vunpack.c.l.b16 %v679
        %v776 = vunpack.c.l.b16 %v680
        %v777 = vunpack.c.l.b16 %v681
        %v778 = vunpack.c.l.b16 %v682
        %v779 = vunpack.c.l.b16 %v683
        %v780 = vunpack.c.l.b16 %v684
        %v781 = vunpack.c.l.b16 %v685
        %v782 = vunpack.c.l.b16 %v686
        %v783 = vunpack.c.l.b16 %v687
        %v784 = vunpack.c.l.b16 %v688
        %v785 = vunpack.c.l.b16 %v689
        %v786 = vunpack.c.l.b16 %v690
        %v787 = vunpack.c.l.b16 %v691
        %v788 = vunpack.c.l.b16 %v692
        %v789 = vunpack.c.l.b16 %v693
        %v790 = vunpack.c.l.b16 %v694
        %v791 = vunpack.c.l.b16 %v695
        %v792 = vunpack.c.l.b16 %v696
        %v793 = vunpack.c.l.b16 %v697
        %v794 = vunpack.c.l.b16 %v698
        %v795 = vunpack.c.l.b16 %v699
        %v796 = vunpack.c.l.b16 %v700
        %v797 = vunpack.c.l.b16 %v701
        %v798 = vunpack.c.l.b16 %v702
        %v799 = vunpack.c.l.b16 %v703
        %v800 = vunpack.c.l.b16 %v704
        %v801 = vunpack.c.l.b16 %v705
        %v802 = vunpack.c.l.b16 %v706
        %v803 = vunpack.c.l.b16 %v707
        %v804 = vunpack.c.l.b16 %v708
        %v805 = vunpack.c.l.b16 %v709
        %v806 = vunpack.c.l.b16 %v710
        %v807 = vunpack.c.l.b16 %v711
        %v808 = vunpack.c.l.b16 %v712
        %v809 = vunpack.c.l.b16 %v713
        %v810 = vunpack.c.l.b16 %v714
        %v811 = vunpack.c.l.b16 %v715
        %v812 = vunpack.c.l.b16 %v716
        %v813 = vunpack.c.l.b16 %v717
        %v814 = vunpack.c.l.b16 %v718
        %v815 = vpack.c.b16 %v768, %v767
        %v816 = vpack.c.b16 %v770, %v769
        %v817 = vpack.c.b16 %v772, %v771
        %v818 = vpack.c.b16 %v774, %v773
        %v819 = vpack.c.b16 %v776, %v775
        %v820 = vpack.c.b16 %v778, %v777
        %v821 = vpack.c.b16 %v780, %v779
        %v822 = vpack.c.b16 %v782, %v781
        %v823 = vpack.c.b16 %v784, %v783
        %v824 = vpack.c.b16 %v786, %v785
        %v825 = vpack.c.b16 %v788, %v787
        %v826 = vpack.c.b16 %v790, %v789
        %v827 = vpack.c.b16 %v792, %v791
        %v828 = vpack.c.b16 %v794, %v793
        %v829 = vpack.c.b16 %v796, %v795
        %v830 = vpack.c.b16 %v798, %v797
        %v831 = vpack.c.b16 %v800, %v799
        %v832 = vpack.c.b16 %v802, %v801
        %v833 = vpack.c.b16 %v804, %v803
        %v834 = vpack.c.b16 %v806, %v805
        %v835 = vpack.c.b16 %v808, %v807
        %v836 = vpack.c.b16 %v810, %v809
        %v837 = vpack.c.b16 %v812, %v811
        %v838 = vpack.c.b16 %v814, %v813
        %863 = vmatprep.subr.bf16.mxu0 0
        %864 = vmatpush1.bf16.msra.mxu0 %v815
        %865 = vmatprep.subr.bf16.mxu0 0
        %866 = vmatpush1.bf16.msra.mxu0 %v816
        %867 = vmatprep.subr.bf16.mxu0 0
        %868 = vmatpush1.bf16.msra.mxu0 %v817
        %869 = vmatprep.subr.bf16.mxu0 0
        %870 = vmatpush1.bf16.msra.mxu0 %v818
        %871 = vmatprep.subr.bf16.mxu0 0
        %872 = vmatpush1.bf16.msra.mxu0 %v819
        %873 = vmatprep.subr.bf16.mxu0 0
        %874 = vmatpush1.bf16.msra.mxu0 %v820
        %875 = vmatprep.subr.bf16.mxu0 0
        %876 = vmatpush1.bf16.msra.mxu0 %v821
        %877 = vmatprep.subr.bf16.mxu0 0
        %878 = vmatpush1.bf16.msra.mxu0 %v822
        %879 = vmatprep.subr.bf16.mxu0 0
        %880 = vmatpush1.bf16.msra.mxu0 %v823
        %881 = vmatprep.subr.bf16.mxu0 0
        %882 = vmatpush1.bf16.msra.mxu0 %v824
        %883 = vmatprep.subr.bf16.mxu0 0
        %884 = vmatpush1.bf16.msra.mxu0 %v825
        %885 = vmatprep.subr.bf16.mxu0 0
        %886 = vmatpush1.bf16.msra.mxu0 %v826
        %887 = vmatprep.subr.bf16.mxu0 0
        %888 = vmatpush1.bf16.msra.mxu0 %v827
        %889 = vmatprep.subr.bf16.mxu0 0
        %890 = vmatpush1.bf16.msra.mxu0 %v828
        %891 = vmatprep.subr.bf16.mxu0 0
        %892 = vmatpush1.bf16.msra.mxu0 %v829
        %893 = vmatprep.subr.bf16.mxu0 0
        %894 = vmatpush1.bf16.msra.mxu0 %v830
        %895 = vmatprep.mubr.bf16.mxu0 %v601
        %896 = vmatmul.mubr.bf16.gmra.mrb[0].mxu0 %v570
        %v897 = vpop.f32.mrb[0].mxu0
        %v898 = vadd.f32 0.0, %v897
        %v899 = vpop.f32.mrb[0].mxu0
        %v900 = vpop.f32.mrb[0].mxu0
        %v901 = vadd.f32 0.0, %v900
        %v902 = vpop.f32.mrb[0].mxu0
        %903 = vmatprep.mubr.bf16.mxu0 %v613
        %904 = vmatmul.mubr.bf16.gmra.mrb[0].mxu0 %v571
        %v905 = vpop.f32.mrb[0].mxu0
        %v906 = vadd.f32 0.0, %v905
        %v907 = vpop.f32.mrb[0].mxu0
        %v908 = vpop.f32.mrb[0].mxu0
        %v909 = vadd.f32 0.0, %v908
        %v910 = vpop.f32.mrb[0].mxu0
        %911 = vmatprep.mubr.bf16.mxu0 %v625
        %912 = vmatmul.mubr.bf16.gmra.mrb[0].mxu0 %v572
        %v913 = vpop.f32.mrb[0].mxu0
        %v914 = vadd.f32 0.0, %v913
        %v915 = vpop.f32.mrb[0].mxu0
        %v916 = vpop.f32.mrb[0].mxu0
        %v917 = vadd.f32 0.0, %v916
        %v918 = vpop.f32.mrb[0].mxu0
        %919 = vmatprep.mubr.bf16.mxu0 %v637
        %920 = vmatmul.mubr.bf16.gmra.mrb[0].mxu0 %v573
        %v921 = vpop.f32.mrb[0].mxu0
        %v922 = vadd.f32 0.0, %v921
        %v923 = vpop.f32.mrb[0].mxu0
        %v924 = vpop.f32.mrb[0].mxu0
        %v925 = vadd.f32 0.0, %v924
        %v926 = vpop.f32.mrb[0].mxu0
        %927 = vdwg.mxu0
        %928 = vmatprep.subr.bf16.mxu0 0
        %929 = vmatpush1.bf16.msra.mxu0 %v831
        %930 = vmatprep.subr.bf16.mxu0 0
        %931 = vmatpush1.bf16.msra.mxu0 %v832
        %932 = vmatprep.subr.bf16.mxu0 0
        %933 = vmatpush1.bf16.msra.mxu0 %v833
        %934 = vmatprep.subr.bf16.mxu0 0
        %935 = vmatpush1.bf16.msra.mxu0 %v834
        %936 = vmatprep.subr.bf16.mxu0 0
        %937 = vmatpush1.bf16.msra.mxu0 %v835
        %938 = vmatprep.subr.bf16.mxu0 0
        %939 = vmatpush1.bf16.msra.mxu0 %v836
        %940 = vmatprep.subr.bf16.mxu0 0
        %941 = vmatpush1.bf16.msra.mxu0 %v837
        %942 = vmatprep.subr.bf16.mxu0 0
        %943 = vmatpush1.bf16.msra.mxu0 %v838
        %944 = vmatprep.subr.bf16.mxu0 0
        %945 = vmatpush1.bf16.msra.mxu0 0
        %946 = vmatprep.subr.bf16.mxu0 0
        %947 = vmatpush1.bf16.msra.mxu0 0
        %948 = vmatprep.subr.bf16.mxu0 0
        %949 = vmatpush1.bf16.msra.mxu0 0
        %950 = vmatprep.subr.bf16.mxu0 0
        %951 = vmatpush1.bf16.msra.mxu0 0
        %952 = vmatprep.subr.bf16.mxu0 0
        %953 = vmatpush1.bf16.msra.mxu0 0
        %954 = vmatprep.subr.bf16.mxu0 0
        %955 = vmatpush1.bf16.msra.mxu0 0
        %956 = vmatprep.subr.bf16.mxu0 0
        %957 = vmatpush1.bf16.msra.mxu0 0
        %958 = vmatprep.subr.bf16.mxu0 0
        %959 = vmatpush1.bf16.msra.mxu0 0
        %960 = vmatprep.mubr.bf16.mxu0 0
        %961 = vmatmul.mubr.bf16.gmra.mrb[0].mxu0 %v656
        %v962 = vpop.f32.mrb[0].mxu0
        %v963 = vadd.f32 %v898, %v962
        %v964 = vpop.f32.mrb[0].mxu0
        %v965 = vpop.f32.mrb[0].mxu0
        %v966 = vadd.f32 %v901, %v965
        %v967 = vpop.f32.mrb[0].mxu0
        %968 = vmatprep.mubr.bf16.mxu0 0
        %969 = vmatmul.mubr.bf16.gmra.mrb[0].mxu0 %v659
        %v970 = vpop.f32.mrb[0].mxu0
        %v971 = vadd.f32 %v906, %v970
        %v972 = vpop.f32.mrb[0].mxu0
        %v973 = vpop.f32.mrb[0].mxu0
        %v974 = vadd.f32 %v909, %v973
        %v975 = vpop.f32.mrb[0].mxu0
        %976 = vmatprep.mubr.bf16.mxu0 0
        %977 = vmatmul.mubr.bf16.gmra.mrb[0].mxu0 %v662
        %v978 = vpop.f32.mrb[0].mxu0
        %v979 = vadd.f32 %v914, %v978
        %v980 = vpop.f32.mrb[0].mxu0
        %v981 = vpop.f32.mrb[0].mxu0
        %v982 = vadd.f32 %v917, %v981
        %v983 = vpop.f32.mrb[0].mxu0
        %984 = vmatprep.mubr.bf16.mxu0 0
        %985 = vmatmul.mubr.bf16.gmra.mrb[0].mxu0 %v665
        %v986 = vpop.f32.mrb[0].mxu0
        %v987 = vadd.f32 %v922, %v986
        %v988 = vpop.f32.mrb[0].mxu0
        %v989 = vpop.f32.mrb[0].mxu0
        %v990 = vadd.f32 %v925, %v989
        %v991 = vpop.f32.mrb[0].mxu0
        %992 = vdwg.mxu0
        %v1041 = vunpack.c.l.b16 %v489
        %v1042 = vunpack.c.l.b16 %v490
        %v1043 = vunpack.c.l.b16 %v491
        %v1044 = vunpack.c.l.b16 %v492
        %v1045 = vunpack.c.l.b16 %v493
        %v1046 = vunpack.c.l.b16 %v494
        %v1047 = vunpack.c.l.b16 %v495
        %v1048 = vunpack.c.l.b16 %v496
        %v1049 = vunpack.c.l.b16 %v497
        %v1050 = vunpack.c.l.b16 %v498
        %v1051 = vunpack.c.l.b16 %v499
        %v1052 = vunpack.c.l.b16 %v500
        %v1053 = vunpack.c.l.b16 %v501
        %v1054 = vunpack.c.l.b16 %v502
        %v1055 = vunpack.c.l.b16 %v503
        %v1056 = vunpack.c.l.b16 %v504
        %v1057 = vunpack.c.l.b16 %v505
        %v1058 = vunpack.c.l.b16 %v506
        %v1059 = vunpack.c.l.b16 %v507
        %v1060 = vunpack.c.l.b16 %v508
        %v1061 = vunpack.c.l.b16 %v509
        %v1062 = vunpack.c.l.b16 %v510
        %v1063 = vunpack.c.l.b16 %v511
        %v1064 = vunpack.c.l.b16 %v512
        %v1065 = vunpack.c.l.b16 %v513
        %v1066 = vunpack.c.l.b16 %v514
        %v1067 = vunpack.c.l.b16 %v515
        %v1068 = vunpack.c.l.b16 %v516
        %v1069 = vunpack.c.l.b16 %v517
        %v1070 = vunpack.c.l.b16 %v518
        %v1071 = vunpack.c.l.b16 %v519
        %v1072 = vunpack.c.l.b16 %v520
        %v1073 = vunpack.c.l.b16 %v521
        %v1074 = vunpack.c.l.b16 %v522
        %v1075 = vunpack.c.l.b16 %v523
        %v1076 = vunpack.c.l.b16 %v524
        %v1077 = vunpack.c.l.b16 %v525
        %v1078 = vunpack.c.l.b16 %v526
        %v1079 = vunpack.c.l.b16 %v527
        %v1080 = vunpack.c.l.b16 %v528
        %v1081 = vunpack.c.l.b16 %v529
        %v1082 = vunpack.c.l.b16 %v530
        %v1083 = vunpack.c.l.b16 %v531
        %v1084 = vunpack.c.l.b16 %v532
        %v1085 = vunpack.c.l.b16 %v533
        %v1086 = vunpack.c.l.b16 %v534
        %v1087 = vunpack.c.l.b16 %v535
        %v1088 = vunpack.c.l.b16 %v536
        %v1089 = vpack.c.b16 %v1042, %v1041
        %v1090 = vpack.c.b16 %v1044, %v1043
        %v1091 = vpack.c.b16 %v1046, %v1045
        %v1092 = vpack.c.b16 %v1048, %v1047
        %v1093 = vpack.c.b16 %v1050, %v1049
        %v1094 = vpack.c.b16 %v1052, %v1051
        %v1095 = vpack.c.b16 %v1054, %v1053
        %v1096 = vpack.c.b16 %v1056, %v1055
        %v1097 = vpack.c.b16 %v1058, %v1057
        %v1098 = vpack.c.b16 %v1060, %v1059
        %v1099 = vpack.c.b16 %v1062, %v1061
        %v1100 = vpack.c.b16 %v1064, %v1063
        %v1101 = vpack.c.b16 %v1066, %v1065
        %v1102 = vpack.c.b16 %v1068, %v1067
        %v1103 = vpack.c.b16 %v1070, %v1069
        %v1104 = vpack.c.b16 %v1072, %v1071
        %v1105 = vpack.c.b16 %v1074, %v1073
        %v1106 = vpack.c.b16 %v1076, %v1075
        %v1107 = vpack.c.b16 %v1078, %v1077
        %v1108 = vpack.c.b16 %v1080, %v1079
        %v1109 = vpack.c.b16 %v1082, %v1081
        %v1110 = vpack.c.b16 %v1084, %v1083
        %v1111 = vpack.c.b16 %v1086, %v1085
        %v1112 = vpack.c.b16 %v1088, %v1087
        %1137 = vmatprep.subr.bf16.mxu0 0
        %1138 = vmatpush1.bf16.msra.mxu0 %v1089
        %1139 = vmatprep.subr.bf16.mxu0 0
        %1140 = vmatpush1.bf16.msra.mxu0 %v1090
        %1141 = vmatprep.subr.bf16.mxu0 0
        %1142 = vmatpush1.bf16.msra.mxu0 %v1091
        %1143 = vmatprep.subr.bf16.mxu0 0
        %1144 = vmatpush1.bf16.msra.mxu0 %v1092
        %1145 = vmatprep.subr.bf16.mxu0 0
        %1146 = vmatpush1.bf16.msra.mxu0 %v1093
        %1147 = vmatprep.subr.bf16.mxu0 0
        %1148 = vmatpush1.bf16.msra.mxu0 %v1094
        %1149 = vmatprep.subr.bf16.mxu0 0
        %1150 = vmatpush1.bf16.msra.mxu0 %v1095
        %1151 = vmatprep.subr.bf16.mxu0 0
        %1152 = vmatpush1.bf16.msra.mxu0 %v1096
        %1153 = vmatprep.subr.bf16.mxu0 0
        %1154 = vmatpush1.bf16.msra.mxu0 %v1097
        %1155 = vmatprep.subr.bf16.mxu0 0
        %1156 = vmatpush1.bf16.msra.mxu0 %v1098
        %1157 = vmatprep.subr.bf16.mxu0 0
        %1158 = vmatpush1.bf16.msra.mxu0 %v1099
        %1159 = vmatprep.subr.bf16.mxu0 0
        %1160 = vmatpush1.bf16.msra.mxu0 %v1100
        %1161 = vmatprep.subr.bf16.mxu0 0
        %1162 = vmatpush1.bf16.msra.mxu0 %v1101
        %1163 = vmatprep.subr.bf16.mxu0 0
        %1164 = vmatpush1.bf16.msra.mxu0 %v1102
        %1165 = vmatprep.subr.bf16.mxu0 0
        %1166 = vmatpush1.bf16.msra.mxu0 %v1103
        %1167 = vmatprep.subr.bf16.mxu0 0
        %1168 = vmatpush1.bf16.msra.mxu0 %v1104
        %1169 = vmatprep.mubr.bf16.mxu0 %v419
        %1170 = vmatmul.mubr.bf16.gmra.mrb[0].mxu0 %v387
        %v1171 = vpop.f32.mrb[0].mxu0
        %v1172 = vadd.f32 %v963, %v1171
        %v1173 = vpop.f32.mrb[0].mxu0
        %v1174 = vpop.f32.mrb[0].mxu0
        %v1175 = vadd.f32 %v966, %v1174
        %v1176 = vpop.f32.mrb[0].mxu0
        %1177 = vmatprep.mubr.bf16.mxu0 %v431
        %1178 = vmatmul.mubr.bf16.gmra.mrb[0].mxu0 %v388
        %v1179 = vpop.f32.mrb[0].mxu0
        %v1180 = vadd.f32 %v971, %v1179
        %v1181 = vpop.f32.mrb[0].mxu0
        %v1182 = vpop.f32.mrb[0].mxu0
        %v1183 = vadd.f32 %v974, %v1182
        %v1184 = vpop.f32.mrb[0].mxu0
        %1185 = vmatprep.mubr.bf16.mxu0 %v443
        %1186 = vmatmul.mubr.bf16.gmra.mrb[0].mxu0 %v389
        %v1187 = vpop.f32.mrb[0].mxu0
        %v1188 = vadd.f32 %v979, %v1187
        %v1189 = vpop.f32.mrb[0].mxu0
        %v1190 = vpop.f32.mrb[0].mxu0
        %v1191 = vadd.f32 %v982, %v1190
        %v1192 = vpop.f32.mrb[0].mxu0
        %1193 = vmatprep.mubr.bf16.mxu0 %v455
        %1194 = vmatmul.mubr.bf16.gmra.mrb[0].mxu0 %v390
        %v1195 = vpop.f32.mrb[0].mxu0
        %v1196 = vadd.f32 %v987, %v1195
        %v1197 = vpop.f32.mrb[0].mxu0
        %v1198 = vpop.f32.mrb[0].mxu0
        %v1199 = vadd.f32 %v990, %v1198
        %v1200 = vpop.f32.mrb[0].mxu0
        %1201 = vdwg.mxu0
        %1202 = vmatprep.subr.bf16.mxu0 0
        %1203 = vmatpush1.bf16.msra.mxu0 %v1105
        %1204 = vmatprep.subr.bf16.mxu0 0
        %1205 = vmatpush1.bf16.msra.mxu0 %v1106
        %1206 = vmatprep.subr.bf16.mxu0 0
        %1207 = vmatpush1.bf16.msra.mxu0 %v1107
        %1208 = vmatprep.subr.bf16.mxu0 0
        %1209 = vmatpush1.bf16.msra.mxu0 %v1108
        %1210 = vmatprep.subr.bf16.mxu0 0
        %1211 = vmatpush1.bf16.msra.mxu0 %v1109
        %1212 = vmatprep.subr.bf16.mxu0 0
        %1213 = vmatpush1.bf16.msra.mxu0 %v1110
        %1214 = vmatprep.subr.bf16.mxu0 0
        %1215 = vmatpush1.bf16.msra.mxu0 %v1111
        %1216 = vmatprep.subr.bf16.mxu0 0
        %1217 = vmatpush1.bf16.msra.mxu0 %v1112
        %1218 = vmatprep.subr.bf16.mxu0 0
        %1219 = vmatpush1.bf16.msra.mxu0 0
        %1220 = vmatprep.subr.bf16.mxu0 0
        %1221 = vmatpush1.bf16.msra.mxu0 0
        %1222 = vmatprep.subr.bf16.mxu0 0
        %1223 = vmatpush1.bf16.msra.mxu0 0
        %1224 = vmatprep.subr.bf16.mxu0 0
        %1225 = vmatpush1.bf16.msra.mxu0 0
        %1226 = vmatprep.subr.bf16.mxu0 0
        %1227 = vmatpush1.bf16.msra.mxu0 0
        %1228 = vmatprep.subr.bf16.mxu0 0
        %1229 = vmatpush1.bf16.msra.mxu0 0
        %1230 = vmatprep.subr.bf16.mxu0 0
        %1231 = vmatpush1.bf16.msra.mxu0 0
        %1232 = vmatprep.subr.bf16.mxu0 0
        %1233 = vmatpush1.bf16.msra.mxu0 0
        %1234 = vmatprep.mubr.bf16.mxu0 0
        %1235 = vmatmul.mubr.bf16.gmra.mrb[0].mxu0 %v475
        %v1236 = vpop.f32.mrb[0].mxu0
        %v1237 = vadd.f32 %v1172, %v1236
        %v1238 = vpop.f32.mrb[0].mxu0
        %v1239 = vpop.f32.mrb[0].mxu0
        %v1240 = vadd.f32 %v1175, %v1239
        %v1241 = vpop.f32.mrb[0].mxu0
        %1242 = vmatprep.mubr.bf16.mxu0 0
        %1243 = vmatmul.mubr.bf16.gmra.mrb[0].mxu0 %v478
        %v1244 = vpop.f32.mrb[0].mxu0
        %v1245 = vadd.f32 %v1180, %v1244
        %v1246 = vpop.f32.mrb[0].mxu0
        %v1247 = vpop.f32.mrb[0].mxu0
        %v1248 = vadd.f32 %v1183, %v1247
        %v1249 = vpop.f32.mrb[0].mxu0
        %1250 = vmatprep.mubr.bf16.mxu0 0
        %1251 = vmatmul.mubr.bf16.gmra.mrb[0].mxu0 %v481
        %v1252 = vpop.f32.mrb[0].mxu0
        %v1253 = vadd.f32 %v1188, %v1252
        %v1254 = vpop.f32.mrb[0].mxu0
        %v1255 = vpop.f32.mrb[0].mxu0
        %v1256 = vadd.f32 %v1191, %v1255
        %v1257 = vpop.f32.mrb[0].mxu0
        %1258 = vmatprep.mubr.bf16.mxu0 0
        %1259 = vmatmul.mubr.bf16.gmra.mrb[0].mxu0 %v484
        %v1260 = vpop.f32.mrb[0].mxu0
        %v1261 = vadd.f32 %v1196, %v1260
        %v1262 = vpop.f32.mrb[0].mxu0
        %v1263 = vpop.f32.mrb[0].mxu0
        %v1264 = vadd.f32 %v1199, %v1263
        %v1265 = vpop.f32.mrb[0].mxu0
        %1266 = vdwg.mxu0
        %s1267 = scalar_lea.vmem %s237, 24
        %v1268 = vld [vmem:[%s1267] sm:$0xf]
        %v1269 = vld [vmem:[%s1267 + $0x4] sm:$0xf]
        %v1270 = vld [vmem:[%s1267 + $0xc] sm:$0xf]
        %v1271 = vld [vmem:[%s1267 + $0x10] sm:$0xf]
        %v1272 = vld [vmem:[%s1267 + $0x18] sm:$0xf]
        %v1273 = vld [vmem:[%s1267 + $0x1c] sm:$0xf]
        %v1274 = vld [vmem:[%s1267 + $0x24] sm:$0xf]
        %v1275 = vld [vmem:[%s1267 + $0x28] sm:$0xf]
        %v1276 = vld [vmem:[%s1267 + $0x8] sm:$0x1]
        %v1277 = vld [vmem:[%s1267 + $0x14] sm:$0x1]
        %v1278 = vld [vmem:[%s1267 + $0x20] sm:$0x1]
        %v1279 = vld [vmem:[%s1267 + $0x2c] sm:$0x1]
        %v1280 = vld [vmem:[%s1267] sm:$0xe]
        %v1281 = vld [vmem:[%s1267 + $0xc] sm:$0xe]
        %v1282 = vld [vmem:[%s1267 + $0x18] sm:$0xe]
        %v1283 = vld [vmem:[%s1267 + $0x24] sm:$0xe]
        %v1292 = vunpack.c.l.b16 %v1268
        %v1293 = vunpack.c.l.b16 %v1269
        %v1294 = vunpack.c.l.b16 %v1270
        %v1295 = vunpack.c.l.b16 %v1271
        %v1296 = vunpack.c.l.b16 %v1272
        %v1297 = vunpack.c.l.b16 %v1273
        %v1298 = vunpack.c.l.b16 %v1274
        %v1299 = vunpack.c.l.b16 %v1275
        %v1300 = vpack.c.b16 %v1293, %v1292
        %v1301 = vpack.c.b16 %v1295, %v1294
        %v1302 = vpack.c.b16 %v1297, %v1296
        %v1303 = vpack.c.b16 %v1299, %v1298
        %v1312 = vunpack.c.l.b16 %v1276
        %v1313 = vunpack.c.l.b16 %v1277
        %v1314 = vunpack.c.l.b16 %v1278
        %v1315 = vunpack.c.l.b16 %v1279
        %v1316 = vpack.c.b16 %v1312, %v1312
        %v1317 = vpack.c.b16 %v1313, %v1313
        %v1318 = vpack.c.b16 %v1314, %v1314
        %v1319 = vpack.c.b16 %v1315, %v1315
        %v1321 = vshrl.u32 %v1300, 16
        %v1323 = vshll.u32 %v1300, 16
        %v1325 = vrot.slane %v1323, 1
        %v1326 = vor.u32 %v1321, %v1325
        %v1328 = vshll.u32 %v1316, 16
        %v1330 = vrot.slane %v1328, 1
        %v1331 = vsel %vm407, %v1326, %v1330
        %v1333 = vshrl.u32 %v1301, 16
        %v1335 = vshll.u32 %v1301, 16
        %v1337 = vrot.slane %v1335, 1
        %v1338 = vor.u32 %v1333, %v1337
        %v1340 = vshll.u32 %v1317, 16
        %v1342 = vrot.slane %v1340, 1
        %v1343 = vsel %vm407, %v1338, %v1342
        %v1345 = vshrl.u32 %v1302, 16
        %v1347 = vshll.u32 %v1302, 16
        %v1349 = vrot.slane %v1347, 1
        %v1350 = vor.u32 %v1345, %v1349
        %v1352 = vshll.u32 %v1318, 16
        %v1354 = vrot.slane %v1352, 1
        %v1355 = vsel %vm407, %v1350, %v1354
        %v1357 = vshrl.u32 %v1303, 16
        %v1359 = vshll.u32 %v1303, 16
        %v1361 = vrot.slane %v1359, 1
        %v1362 = vor.u32 %v1357, %v1361
        %v1364 = vshll.u32 %v1319, 16
        %v1366 = vrot.slane %v1364, 1
        %v1367 = vsel %vm407, %v1362, %v1366
        %v1376 = vunpack.c.l.b16 %v1280
        %v1377 = vunpack.c.l.b16 %v1281
        %v1378 = vunpack.c.l.b16 %v1282
        %v1379 = vunpack.c.l.b16 %v1283
        %v1380 = vpack.c.b16 %v1293, %v1376
        %v1381 = vpack.c.b16 %v1295, %v1377
        %v1382 = vpack.c.b16 %v1297, %v1378
        %v1383 = vpack.c.b16 %v1299, %v1379
        %v1384 = vrot.slane %v1380, 1
        %v1385 = vrot.slane %v1316, 1
        %v1386 = vsel %vm472, %v1384, %v1385
        %v1387 = vrot.slane %v1381, 1
        %v1388 = vrot.slane %v1317, 1
        %v1389 = vsel %vm472, %v1387, %v1388
        %v1390 = vrot.slane %v1382, 1
        %v1391 = vrot.slane %v1318, 1
        %v1392 = vsel %vm472, %v1390, %v1391
        %v1393 = vrot.slane %v1383, 1
        %v1394 = vrot.slane %v1319, 1
        %v1395 = vsel %vm472, %v1393, %v1394
        %s1400 = scalar_lea.vmem %s1, 384
        %v1401 = vld [vmem:[%s1400] sm:$0xf]
        %v1402 = vld [vmem:[%s1400 + $0x4] sm:$0xf]
        %v1403 = vld [vmem:[%s1400 + $0x8] sm:$0xf]
        %v1404 = vld [vmem:[%s1400 + $0xc] sm:$0xf]
        %v1405 = vld [vmem:[%s1400 + $0x10] sm:$0xf]
        %v1406 = vld [vmem:[%s1400 + $0x14] sm:$0xf]
        %v1407 = vld [vmem:[%s1400 + $0x18] sm:$0xf]
        %v1408 = vld [vmem:[%s1400 + $0x1c] sm:$0xf]
        %v1409 = vld [vmem:[%s1400 + $0x20] sm:$0xf]
        %v1410 = vld [vmem:[%s1400 + $0x24] sm:$0xf]
        %v1411 = vld [vmem:[%s1400 + $0x28] sm:$0xf]
        %v1412 = vld [vmem:[%s1400 + $0x2c] sm:$0xf]
        %v1413 = vld [vmem:[%s1400 + $0x30] sm:$0xf]
        %v1414 = vld [vmem:[%s1400 + $0x34] sm:$0xf]
        %v1415 = vld [vmem:[%s1400 + $0x38] sm:$0xf]
        %v1416 = vld [vmem:[%s1400 + $0x3c] sm:$0xf]
        %v1417 = vld [vmem:[%s1400 + $0x40] sm:$0xf]
        %v1418 = vld [vmem:[%s1400 + $0x44] sm:$0xf]
        %v1419 = vld [vmem:[%s1400 + $0x48] sm:$0xf]
        %v1420 = vld [vmem:[%s1400 + $0x4c] sm:$0xf]
        %v1421 = vld [vmem:[%s1400 + $0x50] sm:$0xf]
        %v1422 = vld [vmem:[%s1400 + $0x54] sm:$0xf]
        %v1423 = vld [vmem:[%s1400 + $0x58] sm:$0xf]
        %v1424 = vld [vmem:[%s1400 + $0x5c] sm:$0xf]
        %v1425 = vld [vmem:[%s1400 + $0x60] sm:$0xf]
        %v1426 = vld [vmem:[%s1400 + $0x64] sm:$0xf]
        %v1427 = vld [vmem:[%s1400 + $0x68] sm:$0xf]
        %v1428 = vld [vmem:[%s1400 + $0x6c] sm:$0xf]
        %v1429 = vld [vmem:[%s1400 + $0x70] sm:$0xf]
        %v1430 = vld [vmem:[%s1400 + $0x74] sm:$0xf]
        %v1431 = vld [vmem:[%s1400 + $0x78] sm:$0xf]
        %v1432 = vld [vmem:[%s1400 + $0x7c] sm:$0xf]
        %v1433 = vld [vmem:[%s1400 + $0x80] sm:$0xf]
        %v1434 = vld [vmem:[%s1400 + $0x84] sm:$0xf]
        %v1435 = vld [vmem:[%s1400 + $0x88] sm:$0xf]
        %v1436 = vld [vmem:[%s1400 + $0x8c] sm:$0xf]
        %v1437 = vld [vmem:[%s1400 + $0x90] sm:$0xf]
        %v1438 = vld [vmem:[%s1400 + $0x94] sm:$0xf]
        %v1439 = vld [vmem:[%s1400 + $0x98] sm:$0xf]
        %v1440 = vld [vmem:[%s1400 + $0x9c] sm:$0xf]
        %v1441 = vld [vmem:[%s1400 + $0xa0] sm:$0xf]
        %v1442 = vld [vmem:[%s1400 + $0xa4] sm:$0xf]
        %v1443 = vld [vmem:[%s1400 + $0xa8] sm:$0xf]
        %v1444 = vld [vmem:[%s1400 + $0xac] sm:$0xf]
        %v1445 = vld [vmem:[%s1400 + $0xb0] sm:$0xf]
        %v1446 = vld [vmem:[%s1400 + $0xb4] sm:$0xf]
        %v1447 = vld [vmem:[%s1400 + $0xb8] sm:$0xf]
        %v1448 = vld [vmem:[%s1400 + $0xbc] sm:$0xf]
        %v1497 = vunpack.c.l.b16 %v1401
        %v1498 = vunpack.c.l.b16 %v1402
        %v1499 = vunpack.c.l.b16 %v1403
        %v1500 = vunpack.c.l.b16 %v1404
        %v1501 = vunpack.c.l.b16 %v1405
        %v1502 = vunpack.c.l.b16 %v1406
        %v1503 = vunpack.c.l.b16 %v1407
        %v1504 = vunpack.c.l.b16 %v1408
        %v1505 = vunpack.c.l.b16 %v1409
        %v1506 = vunpack.c.l.b16 %v1410
        %v1507 = vunpack.c.l.b16 %v1411
        %v1508 = vunpack.c.l.b16 %v1412
        %v1509 = vunpack.c.l.b16 %v1413
        %v1510 = vunpack.c.l.b16 %v1414
        %v1511 = vunpack.c.l.b16 %v1415
        %v1512 = vunpack.c.l.b16 %v1416
        %v1513 = vunpack.c.l.b16 %v1417
        %v1514 = vunpack.c.l.b16 %v1418
        %v1515 = vunpack.c.l.b16 %v1419
        %v1516 = vunpack.c.l.b16 %v1420
        %v1517 = vunpack.c.l.b16 %v1421
        %v1518 = vunpack.c.l.b16 %v1422
        %v1519 = vunpack.c.l.b16 %v1423
        %v1520 = vunpack.c.l.b16 %v1424
        %v1521 = vunpack.c.l.b16 %v1425
        %v1522 = vunpack.c.l.b16 %v1426
        %v1523 = vunpack.c.l.b16 %v1427
        %v1524 = vunpack.c.l.b16 %v1428
        %v1525 = vunpack.c.l.b16 %v1429
        %v1526 = vunpack.c.l.b16 %v1430
        %v1527 = vunpack.c.l.b16 %v1431
        %v1528 = vunpack.c.l.b16 %v1432
        %v1529 = vunpack.c.l.b16 %v1433
        %v1530 = vunpack.c.l.b16 %v1434
        %v1531 = vunpack.c.l.b16 %v1435
        %v1532 = vunpack.c.l.b16 %v1436
        %v1533 = vunpack.c.l.b16 %v1437
        %v1534 = vunpack.c.l.b16 %v1438
        %v1535 = vunpack.c.l.b16 %v1439
        %v1536 = vunpack.c.l.b16 %v1440
        %v1537 = vunpack.c.l.b16 %v1441
        %v1538 = vunpack.c.l.b16 %v1442
        %v1539 = vunpack.c.l.b16 %v1443
        %v1540 = vunpack.c.l.b16 %v1444
        %v1541 = vunpack.c.l.b16 %v1445
        %v1542 = vunpack.c.l.b16 %v1446
        %v1543 = vunpack.c.l.b16 %v1447
        %v1544 = vunpack.c.l.b16 %v1448
        %v1545 = vpack.c.b16 %v1498, %v1497
        %v1546 = vpack.c.b16 %v1500, %v1499
        %v1547 = vpack.c.b16 %v1502, %v1501
        %v1548 = vpack.c.b16 %v1504, %v1503
        %v1549 = vpack.c.b16 %v1506, %v1505
        %v1550 = vpack.c.b16 %v1508, %v1507
        %v1551 = vpack.c.b16 %v1510, %v1509
        %v1552 = vpack.c.b16 %v1512, %v1511
        %v1553 = vpack.c.b16 %v1514, %v1513
        %v1554 = vpack.c.b16 %v1516, %v1515
        %v1555 = vpack.c.b16 %v1518, %v1517
        %v1556 = vpack.c.b16 %v1520, %v1519
        %v1557 = vpack.c.b16 %v1522, %v1521
        %v1558 = vpack.c.b16 %v1524, %v1523
        %v1559 = vpack.c.b16 %v1526, %v1525
        %v1560 = vpack.c.b16 %v1528, %v1527
        %v1561 = vpack.c.b16 %v1530, %v1529
        %v1562 = vpack.c.b16 %v1532, %v1531
        %v1563 = vpack.c.b16 %v1534, %v1533
        %v1564 = vpack.c.b16 %v1536, %v1535
        %v1565 = vpack.c.b16 %v1538, %v1537
        %v1566 = vpack.c.b16 %v1540, %v1539
        %v1567 = vpack.c.b16 %v1542, %v1541
        %v1568 = vpack.c.b16 %v1544, %v1543
        %1593 = vmatprep.subr.bf16.mxu0 0
        %1594 = vmatpush1.bf16.msra.mxu0 %v1545
        %1595 = vmatprep.subr.bf16.mxu0 0
        %1596 = vmatpush1.bf16.msra.mxu0 %v1546
        %1597 = vmatprep.subr.bf16.mxu0 0
        %1598 = vmatpush1.bf16.msra.mxu0 %v1547
        %1599 = vmatprep.subr.bf16.mxu0 0
        %1600 = vmatpush1.bf16.msra.mxu0 %v1548
        %1601 = vmatprep.subr.bf16.mxu0 0
        %1602 = vmatpush1.bf16.msra.mxu0 %v1549
        %1603 = vmatprep.subr.bf16.mxu0 0
        %1604 = vmatpush1.bf16.msra.mxu0 %v1550
        %1605 = vmatprep.subr.bf16.mxu0 0
        %1606 = vmatpush1.bf16.msra.mxu0 %v1551
        %1607 = vmatprep.subr.bf16.mxu0 0
        %1608 = vmatpush1.bf16.msra.mxu0 %v1552
        %1609 = vmatprep.subr.bf16.mxu0 0
        %1610 = vmatpush1.bf16.msra.mxu0 %v1553
        %1611 = vmatprep.subr.bf16.mxu0 0
        %1612 = vmatpush1.bf16.msra.mxu0 %v1554
        %1613 = vmatprep.subr.bf16.mxu0 0
        %1614 = vmatpush1.bf16.msra.mxu0 %v1555
        %1615 = vmatprep.subr.bf16.mxu0 0
        %1616 = vmatpush1.bf16.msra.mxu0 %v1556
        %1617 = vmatprep.subr.bf16.mxu0 0
        %1618 = vmatpush1.bf16.msra.mxu0 %v1557
        %1619 = vmatprep.subr.bf16.mxu0 0
        %1620 = vmatpush1.bf16.msra.mxu0 %v1558
        %1621 = vmatprep.subr.bf16.mxu0 0
        %1622 = vmatpush1.bf16.msra.mxu0 %v1559
        %1623 = vmatprep.subr.bf16.mxu0 0
        %1624 = vmatpush1.bf16.msra.mxu0 %v1560
        %1625 = vmatprep.mubr.bf16.mxu0 %v1331
        %1626 = vmatmul.mubr.bf16.gmra.mrb[0].mxu0 %v1300
        %v1627 = vpop.f32.mrb[0].mxu0
        %v1628 = vadd.f32 0.0, %v1627
        %v1629 = vpop.f32.mrb[0].mxu0
        %v1630 = vpop.f32.mrb[0].mxu0
        %v1631 = vadd.f32 0.0, %v1630
        %v1632 = vpop.f32.mrb[0].mxu0
        %1633 = vmatprep.mubr.bf16.mxu0 %v1343
        %1634 = vmatmul.mubr.bf16.gmra.mrb[0].mxu0 %v1301
        %v1635 = vpop.f32.mrb[0].mxu0
        %v1636 = vadd.f32 0.0, %v1635
        %v1637 = vpop.f32.mrb[0].mxu0
        %v1638 = vpop.f32.mrb[0].mxu0
        %v1639 = vadd.f32 0.0, %v1638
        %v1640 = vpop.f32.mrb[0].mxu0
        %1641 = vmatprep.mubr.bf16.mxu0 %v1355
        %1642 = vmatmul.mubr.bf16.gmra.mrb[0].mxu0 %v1302
        %v1643 = vpop.f32.mrb[0].mxu0
        %v1644 = vadd.f32 0.0, %v1643
        %v1645 = vpop.f32.mrb[0].mxu0
        %v1646 = vpop.f32.mrb[0].mxu0
        %v1647 = vadd.f32 0.0, %v1646
        %v1648 = vpop.f32.mrb[0].mxu0
        %1649 = vmatprep.mubr.bf16.mxu0 %v1367
        %1650 = vmatmul.mubr.bf16.gmra.mrb[0].mxu0 %v1303
        %v1651 = vpop.f32.mrb[0].mxu0
        %v1652 = vadd.f32 0.0, %v1651
        %v1653 = vpop.f32.mrb[0].mxu0
        %v1654 = vpop.f32.mrb[0].mxu0
        %v1655 = vadd.f32 0.0, %v1654
        %v1656 = vpop.f32.mrb[0].mxu0
        %1657 = vdwg.mxu0
        %1658 = vmatprep.subr.bf16.mxu0 0
        %1659 = vmatpush1.bf16.msra.mxu0 %v1561
        %1660 = vmatprep.subr.bf16.mxu0 0
        %1661 = vmatpush1.bf16.msra.mxu0 %v1562
        %1662 = vmatprep.subr.bf16.mxu0 0
        %1663 = vmatpush1.bf16.msra.mxu0 %v1563
        %1664 = vmatprep.subr.bf16.mxu0 0
        %1665 = vmatpush1.bf16.msra.mxu0 %v1564
        %1666 = vmatprep.subr.bf16.mxu0 0
        %1667 = vmatpush1.bf16.msra.mxu0 %v1565
        %1668 = vmatprep.subr.bf16.mxu0 0
        %1669 = vmatpush1.bf16.msra.mxu0 %v1566
        %1670 = vmatprep.subr.bf16.mxu0 0
        %1671 = vmatpush1.bf16.msra.mxu0 %v1567
        %1672 = vmatprep.subr.bf16.mxu0 0
        %1673 = vmatpush1.bf16.msra.mxu0 %v1568
        %1674 = vmatprep.subr.bf16.mxu0 0
        %1675 = vmatpush1.bf16.msra.mxu0 0
        %1676 = vmatprep.subr.bf16.mxu0 0
        %1677 = vmatpush1.bf16.msra.mxu0 0
        %1678 = vmatprep.subr.bf16.mxu0 0
        %1679 = vmatpush1.bf16.msra.mxu0 0
        %1680 = vmatprep.subr.bf16.mxu0 0
        %1681 = vmatpush1.bf16.msra.mxu0 0
        %1682 = vmatprep.subr.bf16.mxu0 0
        %1683 = vmatpush1.bf16.msra.mxu0 0
        %1684 = vmatprep.subr.bf16.mxu0 0
        %1685 = vmatpush1.bf16.msra.mxu0 0
        %1686 = vmatprep.subr.bf16.mxu0 0
        %1687 = vmatpush1.bf16.msra.mxu0 0
        %1688 = vmatprep.subr.bf16.mxu0 0
        %1689 = vmatpush1.bf16.msra.mxu0 0
        %1690 = vmatprep.mubr.bf16.mxu0 0
        %1691 = vmatmul.mubr.bf16.gmra.mrb[0].mxu0 %v1386
        %v1692 = vpop.f32.mrb[0].mxu0
        %v1693 = vadd.f32 %v1628, %v1692
        %v1694 = vpop.f32.mrb[0].mxu0
        %v1695 = vpop.f32.mrb[0].mxu0
        %v1696 = vadd.f32 %v1631, %v1695
        %v1697 = vpop.f32.mrb[0].mxu0
        %1698 = vmatprep.mubr.bf16.mxu0 0
        %1699 = vmatmul.mubr.bf16.gmra.mrb[0].mxu0 %v1389
        %v1700 = vpop.f32.mrb[0].mxu0
        %v1701 = vadd.f32 %v1636, %v1700
        %v1702 = vpop.f32.mrb[0].mxu0
        %v1703 = vpop.f32.mrb[0].mxu0
        %v1704 = vadd.f32 %v1639, %v1703
        %v1705 = vpop.f32.mrb[0].mxu0
        %1706 = vmatprep.mubr.bf16.mxu0 0
        %1707 = vmatmul.mubr.bf16.gmra.mrb[0].mxu0 %v1392
        %v1708 = vpop.f32.mrb[0].mxu0
        %v1709 = vadd.f32 %v1644, %v1708
        %v1710 = vpop.f32.mrb[0].mxu0
        %v1711 = vpop.f32.mrb[0].mxu0
        %v1712 = vadd.f32 %v1647, %v1711
        %v1713 = vpop.f32.mrb[0].mxu0
        %1714 = vmatprep.mubr.bf16.mxu0 0
        %1715 = vmatmul.mubr.bf16.gmra.mrb[0].mxu0 %v1395
        %v1716 = vpop.f32.mrb[0].mxu0
        %v1717 = vadd.f32 %v1652, %v1716
        %v1718 = vpop.f32.mrb[0].mxu0
        %v1719 = vpop.f32.mrb[0].mxu0
        %v1720 = vadd.f32 %v1655, %v1719
        %v1721 = vpop.f32.mrb[0].mxu0
        %1722 = vdwg.mxu0
        %v1723 = vadd.f32 %v1237, %v1693
        %v1724 = vadd.f32 %v1240, %v1696
        %v1725 = vadd.f32 %v1245, %v1701
        %v1726 = vadd.f32 %v1248, %v1704
        %v1727 = vadd.f32 %v1253, %v1709
        %v1728 = vadd.f32 %v1256, %v1712
        %v1729 = vadd.f32 %v1261, %v1717
        %v1730 = vadd.f32 %v1264, %v1720
        %v1731 = vlaneseq
        %v1732 = vshrl.u32 %v1731, 7
        %v1733 = vsub.s32 0, %v1732
        %v1734 = vrot.slane %v349, %v1733
        %v1735 = vmul.f32 %v1723, %v1734
        %v1736 = vmul.f32 %v1724, %v1734
        %v1737 = vmul.f32 %v1725, %v1734
        %v1738 = vmul.f32 %v1726, %v1734
        %v1739 = vmul.f32 %v1727, %v1734
        %v1740 = vmul.f32 %v1728, %v1734
        %v1741 = vmul.f32 %v1729, %v1734
        %v1742 = vmul.f32 %v1730, %v1734
        %v1743 = vlaneseq
        %v1744 = vshrl.u32 %v1743, 7
        %v1745 = vsub.s32 0, %v1744
        %v1746 = vrot.slane %v350, %v1745
        %v1747 = vadd.f32 %v1735, %v1746
        %v1748 = vadd.f32 %v1736, %v1746
        %v1749 = vadd.f32 %v1737, %v1746
        %v1750 = vadd.f32 %v1738, %v1746
        %v1751 = vadd.f32 %v1739, %v1746
        %v1752 = vadd.f32 %v1740, %v1746
        %v1753 = vadd.f32 %v1741, %v1746
        %v1754 = vadd.f32 %v1742, %v1746
        %v1755 = vmax.f32 %v1747, 0.0
        %v1756 = vmax.f32 %v1748, 0.0
        %v1757 = vmax.f32 %v1749, 0.0
        %v1758 = vmax.f32 %v1750, 0.0
        %v1759 = vmax.f32 %v1751, 0.0
        %v1760 = vmax.f32 %v1752, 0.0
        %v1761 = vmax.f32 %v1753, 0.0
        %v1762 = vmax.f32 %v1754, 0.0
        %v1763 = vmax.f32 %v1755, %v1757
        %v1764 = vmax.f32 %v1756, %v1758
        %1765 = vst [vmem:[#allocation2] sm:$0xff] %v1763
        %1766 = vst [vmem:[#allocation2 + $0x8] sm:$0xff] %v1764
        %v1767 = vmax.f32 %v1759, %v1761
        %v1768 = vmax.f32 %v1760, %v1762
        %1769 = vst [vmem:[#allocation2 + $0x10] sm:$0xff] %v1767
        %1770 = vst [vmem:[#allocation2 + $0x18] sm:$0xff] %v1768
        %s1771 = scalar_lea.vmem %s237, 48
        %v1772 = vld [vmem:[%s1771] sm:$0xf]
        %v1773 = vld [vmem:[%s1771 + $0x4] sm:$0xf]
        %v1774 = vld [vmem:[%s1771 + $0xc] sm:$0xf]
        %v1775 = vld [vmem:[%s1771 + $0x10] sm:$0xf]
        %v1776 = vld [vmem:[%s1771 + $0x18] sm:$0xf]
        %v1777 = vld [vmem:[%s1771 + $0x1c] sm:$0xf]
        %v1778 = vld [vmem:[%s1771 + $0x24] sm:$0xf]
        %v1779 = vld [vmem:[%s1771 + $0x28] sm:$0xf]
        %v1780 = vld [vmem:[%s1771 + $0x8] sm:$0x1]
        %v1781 = vld [vmem:[%s1771 + $0x14] sm:$0x1]
        %v1782 = vld [vmem:[%s1771 + $0x20] sm:$0x1]
        %v1783 = vld [vmem:[%s1771 + $0x2c] sm:$0x1]
        %v1784 = vld [vmem:[%s1771] sm:$0xe]
        %v1785 = vld [vmem:[%s1771 + $0xc] sm:$0xe]
        %v1786 = vld [vmem:[%s1771 + $0x18] sm:$0xe]
        %v1787 = vld [vmem:[%s1771 + $0x24] sm:$0xe]
        %v1796 = vunpack.c.l.b16 %v1772
        %v1797 = vunpack.c.l.b16 %v1773
        %v1798 = vunpack.c.l.b16 %v1774
        %v1799 = vunpack.c.l.b16 %v1775
        %v1800 = vunpack.c.l.b16 %v1776
        %v1801 = vunpack.c.l.b16 %v1777
        %v1802 = vunpack.c.l.b16 %v1778
        %v1803 = vunpack.c.l.b16 %v1779
        %v1804 = vpack.c.b16 %v1797, %v1796
        %v1805 = vpack.c.b16 %v1799, %v1798
        %v1806 = vpack.c.b16 %v1801, %v1800
        %v1807 = vpack.c.b16 %v1803, %v1802
        %v1816 = vunpack.c.l.b16 %v1780
        %v1817 = vunpack.c.l.b16 %v1781
        %v1818 = vunpack.c.l.b16 %v1782
        %v1819 = vunpack.c.l.b16 %v1783
        %v1820 = vpack.c.b16 %v1816, %v1816
        %v1821 = vpack.c.b16 %v1817, %v1817
        %v1822 = vpack.c.b16 %v1818, %v1818
        %v1823 = vpack.c.b16 %v1819, %v1819
        %v1825 = vshrl.u32 %v1804, 16
        %v1827 = vshll.u32 %v1804, 16
        %v1829 = vrot.slane %v1827, 1
        %v1830 = vor.u32 %v1825, %v1829
        %v1832 = vshll.u32 %v1820, 16
        %v1834 = vrot.slane %v1832, 1
        %v1835 = vsel %vm407, %v1830, %v1834
        %v1837 = vshrl.u32 %v1805, 16
        %v1839 = vshll.u32 %v1805, 16
        %v1841 = vrot.slane %v1839, 1
        %v1842 = vor.u32 %v1837, %v1841
        %v1844 = vshll.u32 %v1821, 16
        %v1846 = vrot.slane %v1844, 1
        %v1847 = vsel %vm407, %v1842, %v1846
        %v1849 = vshrl.u32 %v1806, 16
        %v1851 = vshll.u32 %v1806, 16
        %v1853 = vrot.slane %v1851, 1
        %v1854 = vor.u32 %v1849, %v1853
        %v1856 = vshll.u32 %v1822, 16
        %v1858 = vrot.slane %v1856, 1
        %v1859 = vsel %vm407, %v1854, %v1858
        %v1861 = vshrl.u32 %v1807, 16
        %v1863 = vshll.u32 %v1807, 16
        %v1865 = vrot.slane %v1863, 1
        %v1866 = vor.u32 %v1861, %v1865
        %v1868 = vshll.u32 %v1823, 16
        %v1870 = vrot.slane %v1868, 1
        %v1871 = vsel %vm407, %v1866, %v1870
        %v1880 = vunpack.c.l.b16 %v1784
        %v1881 = vunpack.c.l.b16 %v1785
        %v1882 = vunpack.c.l.b16 %v1786
        %v1883 = vunpack.c.l.b16 %v1787
        %v1884 = vpack.c.b16 %v1797, %v1880
        %v1885 = vpack.c.b16 %v1799, %v1881
        %v1886 = vpack.c.b16 %v1801, %v1882
        %v1887 = vpack.c.b16 %v1803, %v1883
        %v1888 = vrot.slane %v1884, 1
        %v1889 = vrot.slane %v1820, 1
        %v1890 = vsel %vm472, %v1888, %v1889
        %v1891 = vrot.slane %v1885, 1
        %v1892 = vrot.slane %v1821, 1
        %v1893 = vsel %vm472, %v1891, %v1892
        %v1894 = vrot.slane %v1886, 1
        %v1895 = vrot.slane %v1822, 1
        %v1896 = vsel %vm472, %v1894, %v1895
        %v1897 = vrot.slane %v1887, 1
        %v1898 = vrot.slane %v1823, 1
        %v1899 = vsel %vm472, %v1897, %v1898
        %v1904 = vld [vmem:[%s1] sm:$0xf]
        %v1905 = vld [vmem:[%s1 + $0x4] sm:$0xf]
        %v1906 = vld [vmem:[%s1 + $0x8] sm:$0xf]
        %v1907 = vld [vmem:[%s1 + $0xc] sm:$0xf]
        %v1908 = vld [vmem:[%s1 + $0x10] sm:$0xf]
        %v1909 = vld [vmem:[%s1 + $0x14] sm:$0xf]
        %v1910 = vld [vmem:[%s1 + $0x18] sm:$0xf]
        %v1911 = vld [vmem:[%s1 + $0x1c] sm:$0xf]
        %v1912 = vld [vmem:[%s1 + $0x20] sm:$0xf]
        %v1913 = vld [vmem:[%s1 + $0x24] sm:$0xf]
        %v1914 = vld [vmem:[%s1 + $0x28] sm:$0xf]
        %v1915 = vld [vmem:[%s1 + $0x2c] sm:$0xf]
        %v1916 = vld [vmem:[%s1 + $0x30] sm:$0xf]
        %v1917 = vld [vmem:[%s1 + $0x34] sm:$0xf]
        %v1918 = vld [vmem:[%s1 + $0x38] sm:$0xf]
        %v1919 = vld [vmem:[%s1 + $0x3c] sm:$0xf]
        %v1920 = vld [vmem:[%s1 + $0x40] sm:$0xf]
        %v1921 = vld [vmem:[%s1 + $0x44] sm:$0xf]
        %v1922 = vld [vmem:[%s1 + $0x48] sm:$0xf]
        %v1923 = vld [vmem:[%s1 + $0x4c] sm:$0xf]
        %v1924 = vld [vmem:[%s1 + $0x50] sm:$0xf]
        %v1925 = vld [vmem:[%s1 + $0x54] sm:$0xf]
        %v1926 = vld [vmem:[%s1 + $0x58] sm:$0xf]
        %v1927 = vld [vmem:[%s1 + $0x5c] sm:$0xf]
        %v1928 = vld [vmem:[%s1 + $0x60] sm:$0xf]
        %v1929 = vld [vmem:[%s1 + $0x64] sm:$0xf]
        %v1930 = vld [vmem:[%s1 + $0x68] sm:$0xf]
        %v1931 = vld [vmem:[%s1 + $0x6c] sm:$0xf]
        %v1932 = vld [vmem:[%s1 + $0x70] sm:$0xf]
        %v1933 = vld [vmem:[%s1 + $0x74] sm:$0xf]
        %v1934 = vld [vmem:[%s1 + $0x78] sm:$0xf]
        %v1935 = vld [vmem:[%s1 + $0x7c] sm:$0xf]
        %v1936 = vld [vmem:[%s1 + $0x80] sm:$0xf]
        %v1937 = vld [vmem:[%s1 + $0x84] sm:$0xf]
        %v1938 = vld [vmem:[%s1 + $0x88] sm:$0xf]
        %v1939 = vld [vmem:[%s1 + $0x8c] sm:$0xf]
        %v1940 = vld [vmem:[%s1 + $0x90] sm:$0xf]
        %v1941 = vld [vmem:[%s1 + $0x94] sm:$0xf]
        %v1942 = vld [vmem:[%s1 + $0x98] sm:$0xf]
        %v1943 = vld [vmem:[%s1 + $0x9c] sm:$0xf]
        %v1944 = vld [vmem:[%s1 + $0xa0] sm:$0xf]
        %v1945 = vld [vmem:[%s1 + $0xa4] sm:$0xf]
        %v1946 = vld [vmem:[%s1 + $0xa8] sm:$0xf]
        %v1947 = vld [vmem:[%s1 + $0xac] sm:$0xf]
        %v1948 = vld [vmem:[%s1 + $0xb0] sm:$0xf]
        %v1949 = vld [vmem:[%s1 + $0xb4] sm:$0xf]
        %v1950 = vld [vmem:[%s1 + $0xb8] sm:$0xf]
        %v1951 = vld [vmem:[%s1 + $0xbc] sm:$0xf]
        %s1952 = scalar_lea.vmem %s237, 60
        %v1953 = vld [vmem:[%s1952] sm:$0xf]
        %v1954 = vld [vmem:[%s1952 + $0x4] sm:$0xf]
        %v1955 = vld [vmem:[%s1952 + $0xc] sm:$0xf]
        %v1956 = vld [vmem:[%s1952 + $0x10] sm:$0xf]
        %v1957 = vld [vmem:[%s1952 + $0x18] sm:$0xf]
        %v1958 = vld [vmem:[%s1952 + $0x1c] sm:$0xf]
        %v1959 = vld [vmem:[%s1952 + $0x24] sm:$0xf]
        %v1960 = vld [vmem:[%s1952 + $0x28] sm:$0xf]
        %v1961 = vld [vmem:[%s1952 + $0x8] sm:$0x1]
        %v1962 = vld [vmem:[%s1952 + $0x14] sm:$0x1]
        %v1963 = vld [vmem:[%s1952 + $0x20] sm:$0x1]
        %v1964 = vld [vmem:[%s1952 + $0x2c] sm:$0x1]
        %v1965 = vld [vmem:[%s1952] sm:$0xe]
        %v1966 = vld [vmem:[%s1952 + $0xc] sm:$0xe]
        %v1967 = vld [vmem:[%s1952 + $0x18] sm:$0xe]
        %v1968 = vld [vmem:[%s1952 + $0x24] sm:$0xe]
        %v1977 = vunpack.c.l.b16 %v1953
        %v1978 = vunpack.c.l.b16 %v1954
        %v1979 = vunpack.c.l.b16 %v1955
        %v1980 = vunpack.c.l.b16 %v1956
        %v1981 = vunpack.c.l.b16 %v1957
        %v1982 = vunpack.c.l.b16 %v1958
        %v1983 = vunpack.c.l.b16 %v1959
        %v1984 = vunpack.c.l.b16 %v1960
        %v1985 = vpack.c.b16 %v1978, %v1977
        %v1986 = vpack.c.b16 %v1980, %v1979
        %v1987 = vpack.c.b16 %v1982, %v1981
        %v1988 = vpack.c.b16 %v1984, %v1983
        %v1997 = vunpack.c.l.b16 %v1961
        %v1998 = vunpack.c.l.b16 %v1962
        %v1999 = vunpack.c.l.b16 %v1963
        %v2000 = vunpack.c.l.b16 %v1964
        %v2001 = vpack.c.b16 %v1997, %v1997
        %v2002 = vpack.c.b16 %v1998, %v1998
        %v2003 = vpack.c.b16 %v1999, %v1999
        %v2004 = vpack.c.b16 %v2000, %v2000
        %v2006 = vshrl.u32 %v1985, 16
        %v2008 = vshll.u32 %v1985, 16
        %v2010 = vrot.slane %v2008, 1
        %v2011 = vor.u32 %v2006, %v2010
        %v2013 = vshll.u32 %v2001, 16
        %v2015 = vrot.slane %v2013, 1
        %v2016 = vsel %vm407, %v2011, %v2015
        %v2018 = vshrl.u32 %v1986, 16
        %v2020 = vshll.u32 %v1986, 16
        %v2022 = vrot.slane %v2020, 1
        %v2023 = vor.u32 %v2018, %v2022
        %v2025 = vshll.u32 %v2002, 16
        %v2027 = vrot.slane %v2025, 1
        %v2028 = vsel %vm407, %v2023, %v2027
        %v2030 = vshrl.u32 %v1987, 16
        %v2032 = vshll.u32 %v1987, 16
        %v2034 = vrot.slane %v2032, 1
        %v2035 = vor.u32 %v2030, %v2034
        %v2037 = vshll.u32 %v2003, 16
        %v2039 = vrot.slane %v2037, 1
        %v2040 = vsel %vm407, %v2035, %v2039
        %v2042 = vshrl.u32 %v1988, 16
        %v2044 = vshll.u32 %v1988, 16
        %v2046 = vrot.slane %v2044, 1
        %v2047 = vor.u32 %v2042, %v2046
        %v2049 = vshll.u32 %v2004, 16
        %v2051 = vrot.slane %v2049, 1
        %v2052 = vsel %vm407, %v2047, %v2051
        %v2061 = vunpack.c.l.b16 %v1965
        %v2062 = vunpack.c.l.b16 %v1966
        %v2063 = vunpack.c.l.b16 %v1967
        %v2064 = vunpack.c.l.b16 %v1968
        %v2065 = vpack.c.b16 %v1978, %v2061
        %v2066 = vpack.c.b16 %v1980, %v2062
        %v2067 = vpack.c.b16 %v1982, %v2063
        %v2068 = vpack.c.b16 %v1984, %v2064
        %v2069 = vrot.slane %v2065, 1
        %v2070 = vrot.slane %v2001, 1
        %v2071 = vsel %vm472, %v2069, %v2070
        %v2072 = vrot.slane %v2066, 1
        %v2073 = vrot.slane %v2002, 1
        %v2074 = vsel %vm472, %v2072, %v2073
        %v2075 = vrot.slane %v2067, 1
        %v2076 = vrot.slane %v2003, 1
        %v2077 = vsel %vm472, %v2075, %v2076
        %v2078 = vrot.slane %v2068, 1
        %v2079 = vrot.slane %v2004, 1
        %v2080 = vsel %vm472, %v2078, %v2079
        %v2085 = vld [vmem:[%s670] sm:$0xf]
        %v2086 = vld [vmem:[%s670 + $0x4] sm:$0xf]
        %v2087 = vld [vmem:[%s670 + $0x8] sm:$0xf]
        %v2088 = vld [vmem:[%s670 + $0xc] sm:$0xf]
        %v2089 = vld [vmem:[%s670 + $0x10] sm:$0xf]
        %v2090 = vld [vmem:[%s670 + $0x14] sm:$0xf]
        %v2091 = vld [vmem:[%s670 + $0x18] sm:$0xf]
        %v2092 = vld [vmem:[%s670 + $0x1c] sm:$0xf]
        %v2093 = vld [vmem:[%s670 + $0x20] sm:$0xf]
        %v2094 = vld [vmem:[%s670 + $0x24] sm:$0xf]
        %v2095 = vld [vmem:[%s670 + $0x28] sm:$0xf]
        %v2096 = vld [vmem:[%s670 + $0x2c] sm:$0xf]
        %v2097 = vld [vmem:[%s670 + $0x30] sm:$0xf]
        %v2098 = vld [vmem:[%s670 + $0x34] sm:$0xf]
        %v2099 = vld [vmem:[%s670 + $0x38] sm:$0xf]
        %v2100 = vld [vmem:[%s670 + $0x3c] sm:$0xf]
        %v2101 = vld [vmem:[%s670 + $0x40] sm:$0xf]
        %v2102 = vld [vmem:[%s670 + $0x44] sm:$0xf]
        %v2103 = vld [vmem:[%s670 + $0x48] sm:$0xf]
        %v2104 = vld [vmem:[%s670 + $0x4c] sm:$0xf]
        %v2105 = vld [vmem:[%s670 + $0x50] sm:$0xf]
        %v2106 = vld [vmem:[%s670 + $0x54] sm:$0xf]
        %v2107 = vld [vmem:[%s670 + $0x58] sm:$0xf]
        %v2108 = vld [vmem:[%s670 + $0x5c] sm:$0xf]
        %v2109 = vld [vmem:[%s670 + $0x60] sm:$0xf]
        %v2110 = vld [vmem:[%s670 + $0x64] sm:$0xf]
        %v2111 = vld [vmem:[%s670 + $0x68] sm:$0xf]
        %v2112 = vld [vmem:[%s670 + $0x6c] sm:$0xf]
        %v2113 = vld [vmem:[%s670 + $0x70] sm:$0xf]
        %v2114 = vld [vmem:[%s670 + $0x74] sm:$0xf]
        %v2115 = vld [vmem:[%s670 + $0x78] sm:$0xf]
        %v2116 = vld [vmem:[%s670 + $0x7c] sm:$0xf]
        %v2117 = vld [vmem:[%s670 + $0x80] sm:$0xf]
        %v2118 = vld [vmem:[%s670 + $0x84] sm:$0xf]
        %v2119 = vld [vmem:[%s670 + $0x88] sm:$0xf]
        %v2120 = vld [vmem:[%s670 + $0x8c] sm:$0xf]
        %v2121 = vld [vmem:[%s670 + $0x90] sm:$0xf]
        %v2122 = vld [vmem:[%s670 + $0x94] sm:$0xf]
        %v2123 = vld [vmem:[%s670 + $0x98] sm:$0xf]
        %v2124 = vld [vmem:[%s670 + $0x9c] sm:$0xf]
        %v2125 = vld [vmem:[%s670 + $0xa0] sm:$0xf]
        %v2126 = vld [vmem:[%s670 + $0xa4] sm:$0xf]
        %v2127 = vld [vmem:[%s670 + $0xa8] sm:$0xf]
        %v2128 = vld [vmem:[%s670 + $0xac] sm:$0xf]
        %v2129 = vld [vmem:[%s670 + $0xb0] sm:$0xf]
        %v2130 = vld [vmem:[%s670 + $0xb4] sm:$0xf]
        %v2131 = vld [vmem:[%s670 + $0xb8] sm:$0xf]
        %v2132 = vld [vmem:[%s670 + $0xbc] sm:$0xf]
        %v2181 = vunpack.c.l.b16 %v2085
        %v2182 = vunpack.c.l.b16 %v2086
        %v2183 = vunpack.c.l.b16 %v2087
        %v2184 = vunpack.c.l.b16 %v2088
        %v2185 = vunpack.c.l.b16 %v2089
        %v2186 = vunpack.c.l.b16 %v2090
        %v2187 = vunpack.c.l.b16 %v2091
        %v2188 = vunpack.c.l.b16 %v2092
        %v2189 = vunpack.c.l.b16 %v2093
        %v2190 = vunpack.c.l.b16 %v2094
        %v2191 = vunpack.c.l.b16 %v2095
        %v2192 = vunpack.c.l.b16 %v2096
        %v2193 = vunpack.c.l.b16 %v2097
        %v2194 = vunpack.c.l.b16 %v2098
        %v2195 = vunpack.c.l.b16 %v2099
        %v2196 = vunpack.c.l.b16 %v2100
        %v2197 = vunpack.c.l.b16 %v2101
        %v2198 = vunpack.c.l.b16 %v2102
        %v2199 = vunpack.c.l.b16 %v2103
        %v2200 = vunpack.c.l.b16 %v2104
        %v2201 = vunpack.c.l.b16 %v2105
        %v2202 = vunpack.c.l.b16 %v2106
        %v2203 = vunpack.c.l.b16 %v2107
        %v2204 = vunpack.c.l.b16 %v2108
        %v2205 = vunpack.c.l.b16 %v2109
        %v2206 = vunpack.c.l.b16 %v2110
        %v2207 = vunpack.c.l.b16 %v2111
        %v2208 = vunpack.c.l.b16 %v2112
        %v2209 = vunpack.c.l.b16 %v2113
        %v2210 = vunpack.c.l.b16 %v2114
        %v2211 = vunpack.c.l.b16 %v2115
        %v2212 = vunpack.c.l.b16 %v2116
        %v2213 = vunpack.c.l.b16 %v2117
        %v2214 = vunpack.c.l.b16 %v2118
        %v2215 = vunpack.c.l.b16 %v2119
        %v2216 = vunpack.c.l.b16 %v2120
        %v2217 = vunpack.c.l.b16 %v2121
        %v2218 = vunpack.c.l.b16 %v2122
        %v2219 = vunpack.c.l.b16 %v2123
        %v2220 = vunpack.c.l.b16 %v2124
        %v2221 = vunpack.c.l.b16 %v2125
        %v2222 = vunpack.c.l.b16 %v2126
        %v2223 = vunpack.c.l.b16 %v2127
        %v2224 = vunpack.c.l.b16 %v2128
        %v2225 = vunpack.c.l.b16 %v2129
        %v2226 = vunpack.c.l.b16 %v2130
        %v2227 = vunpack.c.l.b16 %v2131
        %v2228 = vunpack.c.l.b16 %v2132
        %v2229 = vpack.c.b16 %v2182, %v2181
        %v2230 = vpack.c.b16 %v2184, %v2183
        %v2231 = vpack.c.b16 %v2186, %v2185
        %v2232 = vpack.c.b16 %v2188, %v2187
        %v2233 = vpack.c.b16 %v2190, %v2189
        %v2234 = vpack.c.b16 %v2192, %v2191
        %v2235 = vpack.c.b16 %v2194, %v2193
        %v2236 = vpack.c.b16 %v2196, %v2195
        %v2237 = vpack.c.b16 %v2198, %v2197
        %v2238 = vpack.c.b16 %v2200, %v2199
        %v2239 = vpack.c.b16 %v2202, %v2201
        %v2240 = vpack.c.b16 %v2204, %v2203
        %v2241 = vpack.c.b16 %v2206, %v2205
        %v2242 = vpack.c.b16 %v2208, %v2207
        %v2243 = vpack.c.b16 %v2210, %v2209
        %v2244 = vpack.c.b16 %v2212, %v2211
        %v2245 = vpack.c.b16 %v2214, %v2213
        %v2246 = vpack.c.b16 %v2216, %v2215
        %v2247 = vpack.c.b16 %v2218, %v2217
        %v2248 = vpack.c.b16 %v2220, %v2219
        %v2249 = vpack.c.b16 %v2222, %v2221
        %v2250 = vpack.c.b16 %v2224, %v2223
        %v2251 = vpack.c.b16 %v2226, %v2225
        %v2252 = vpack.c.b16 %v2228, %v2227
        %2277 = vmatprep.subr.bf16.mxu0 0
        %2278 = vmatpush1.bf16.msra.mxu0 %v2229
        %2279 = vmatprep.subr.bf16.mxu0 0
        %2280 = vmatpush1.bf16.msra.mxu0 %v2230
        %2281 = vmatprep.subr.bf16.mxu0 0
        %2282 = vmatpush1.bf16.msra.mxu0 %v2231
        %2283 = vmatprep.subr.bf16.mxu0 0
        %2284 = vmatpush1.bf16.msra.mxu0 %v2232
        %2285 = vmatprep.subr.bf16.mxu0 0
        %2286 = vmatpush1.bf16.msra.mxu0 %v2233
        %2287 = vmatprep.subr.bf16.mxu0 0
        %2288 = vmatpush1.bf16.msra.mxu0 %v2234
        %2289 = vmatprep.subr.bf16.mxu0 0
        %2290 = vmatpush1.bf16.msra.mxu0 %v2235
        %2291 = vmatprep.subr.bf16.mxu0 0
        %2292 = vmatpush1.bf16.msra.mxu0 %v2236
        %2293 = vmatprep.subr.bf16.mxu0 0
        %2294 = vmatpush1.bf16.msra.mxu0 %v2237
        %2295 = vmatprep.subr.bf16.mxu0 0
        %2296 = vmatpush1.bf16.msra.mxu0 %v2238
        %2297 = vmatprep.subr.bf16.mxu0 0
        %2298 = vmatpush1.bf16.msra.mxu0 %v2239
        %2299 = vmatprep.subr.bf16.mxu0 0
        %2300 = vmatpush1.bf16.msra.mxu0 %v2240
        %2301 = vmatprep.subr.bf16.mxu0 0
        %2302 = vmatpush1.bf16.msra.mxu0 %v2241
        %2303 = vmatprep.subr.bf16.mxu0 0
        %2304 = vmatpush1.bf16.msra.mxu0 %v2242
        %2305 = vmatprep.subr.bf16.mxu0 0
        %2306 = vmatpush1.bf16.msra.mxu0 %v2243
        %2307 = vmatprep.subr.bf16.mxu0 0
        %2308 = vmatpush1.bf16.msra.mxu0 %v2244
        %2309 = vmatprep.mubr.bf16.mxu0 %v2016
        %2310 = vmatmul.mubr.bf16.gmra.mrb[0].mxu0 %v1985
        %v2311 = vpop.f32.mrb[0].mxu0
        %v2312 = vadd.f32 0.0, %v2311
        %v2313 = vpop.f32.mrb[0].mxu0
        %v2314 = vpop.f32.mrb[0].mxu0
        %v2315 = vadd.f32 0.0, %v2314
        %v2316 = vpop.f32.mrb[0].mxu0
        %2317 = vmatprep.mubr.bf16.mxu0 %v2028
        %2318 = vmatmul.mubr.bf16.gmra.mrb[0].mxu0 %v1986
        %v2319 = vpop.f32.mrb[0].mxu0
        %v2320 = vadd.f32 0.0, %v2319
        %v2321 = vpop.f32.mrb[0].mxu0
        %v2322 = vpop.f32.mrb[0].mxu0
        %v2323 = vadd.f32 0.0, %v2322
        %v2324 = vpop.f32.mrb[0].mxu0
        %2325 = vmatprep.mubr.bf16.mxu0 %v2040
        %2326 = vmatmul.mubr.bf16.gmra.mrb[0].mxu0 %v1987
        %v2327 = vpop.f32.mrb[0].mxu0
        %v2328 = vadd.f32 0.0, %v2327
        %v2329 = vpop.f32.mrb[0].mxu0
        %v2330 = vpop.f32.mrb[0].mxu0
        %v2331 = vadd.f32 0.0, %v2330
        %v2332 = vpop.f32.mrb[0].mxu0
        %2333 = vmatprep.mubr.bf16.mxu0 %v2052
        %2334 = vmatmul.mubr.bf16.gmra.mrb[0].mxu0 %v1988
        %v2335 = vpop.f32.mrb[0].mxu0
        %v2336 = vadd.f32 0.0, %v2335
        %v2337 = vpop.f32.mrb[0].mxu0
        %v2338 = vpop.f32.mrb[0].mxu0
        %v2339 = vadd.f32 0.0, %v2338
        %v2340 = vpop.f32.mrb[0].mxu0
        %2341 = vdwg.mxu0
        %2342 = vmatprep.subr.bf16.mxu0 0
        %2343 = vmatpush1.bf16.msra.mxu0 %v2245
        %2344 = vmatprep.subr.bf16.mxu0 0
        %2345 = vmatpush1.bf16.msra.mxu0 %v2246
        %2346 = vmatprep.subr.bf16.mxu0 0
        %2347 = vmatpush1.bf16.msra.mxu0 %v2247
        %2348 = vmatprep.subr.bf16.mxu0 0
        %2349 = vmatpush1.bf16.msra.mxu0 %v2248
        %2350 = vmatprep.subr.bf16.mxu0 0
        %2351 = vmatpush1.bf16.msra.mxu0 %v2249
        %2352 = vmatprep.subr.bf16.mxu0 0
        %2353 = vmatpush1.bf16.msra.mxu0 %v2250
        %2354 = vmatprep.subr.bf16.mxu0 0
        %2355 = vmatpush1.bf16.msra.mxu0 %v2251
        %2356 = vmatprep.subr.bf16.mxu0 0
        %2357 = vmatpush1.bf16.msra.mxu0 %v2252
        %2358 = vmatprep.subr.bf16.mxu0 0
        %2359 = vmatpush1.bf16.msra.mxu0 0
        %2360 = vmatprep.subr.bf16.mxu0 0
        %2361 = vmatpush1.bf16.msra.mxu0 0
        %2362 = vmatprep.subr.bf16.mxu0 0
        %2363 = vmatpush1.bf16.msra.mxu0 0
        %2364 = vmatprep.subr.bf16.mxu0 0
        %2365 = vmatpush1.bf16.msra.mxu0 0
        %2366 = vmatprep.subr.bf16.mxu0 0
        %2367 = vmatpush1.bf16.msra.mxu0 0
        %2368 = vmatprep.subr.bf16.mxu0 0
        %2369 = vmatpush1.bf16.msra.mxu0 0
        %2370 = vmatprep.subr.bf16.mxu0 0
        %2371 = vmatpush1.bf16.msra.mxu0 0
        %2372 = vmatprep.subr.bf16.mxu0 0
        %2373 = vmatpush1.bf16.msra.mxu0 0
        %2374 = vmatprep.mubr.bf16.mxu0 0
        %2375 = vmatmul.mubr.bf16.gmra.mrb[0].mxu0 %v2071
        %v2376 = vpop.f32.mrb[0].mxu0
        %v2377 = vadd.f32 %v2312, %v2376
        %v2378 = vpop.f32.mrb[0].mxu0
        %v2379 = vpop.f32.mrb[0].mxu0
        %v2380 = vadd.f32 %v2315, %v2379
        %v2381 = vpop.f32.mrb[0].mxu0
        %2382 = vmatprep.mubr.bf16.mxu0 0
        %2383 = vmatmul.mubr.bf16.gmra.mrb[0].mxu0 %v2074
        %v2384 = vpop.f32.mrb[0].mxu0
        %v2385 = vadd.f32 %v2320, %v2384
        %v2386 = vpop.f32.mrb[0].mxu0
        %v2387 = vpop.f32.mrb[0].mxu0
        %v2388 = vadd.f32 %v2323, %v2387
        %v2389 = vpop.f32.mrb[0].mxu0
        %2390 = vmatprep.mubr.bf16.mxu0 0
        %2391 = vmatmul.mubr.bf16.gmra.mrb[0].mxu0 %v2077
        %v2392 = vpop.f32.mrb[0].mxu0
        %v2393 = vadd.f32 %v2328, %v2392
        %v2394 = vpop.f32.mrb[0].mxu0
        %v2395 = vpop.f32.mrb[0].mxu0
        %v2396 = vadd.f32 %v2331, %v2395
        %v2397 = vpop.f32.mrb[0].mxu0
        %2398 = vmatprep.mubr.bf16.mxu0 0
        %2399 = vmatmul.mubr.bf16.gmra.mrb[0].mxu0 %v2080
        %v2400 = vpop.f32.mrb[0].mxu0
        %v2401 = vadd.f32 %v2336, %v2400
        %v2402 = vpop.f32.mrb[0].mxu0
        %v2403 = vpop.f32.mrb[0].mxu0
        %v2404 = vadd.f32 %v2339, %v2403
        %v2405 = vpop.f32.mrb[0].mxu0
        %2406 = vdwg.mxu0
        %v2455 = vunpack.c.l.b16 %v1904
        %v2456 = vunpack.c.l.b16 %v1905
        %v2457 = vunpack.c.l.b16 %v1906
        %v2458 = vunpack.c.l.b16 %v1907
        %v2459 = vunpack.c.l.b16 %v1908
        %v2460 = vunpack.c.l.b16 %v1909
        %v2461 = vunpack.c.l.b16 %v1910
        %v2462 = vunpack.c.l.b16 %v1911
        %v2463 = vunpack.c.l.b16 %v1912
        %v2464 = vunpack.c.l.b16 %v1913
        %v2465 = vunpack.c.l.b16 %v1914
        %v2466 = vunpack.c.l.b16 %v1915
        %v2467 = vunpack.c.l.b16 %v1916
        %v2468 = vunpack.c.l.b16 %v1917
        %v2469 = vunpack.c.l.b16 %v1918
        %v2470 = vunpack.c.l.b16 %v1919
        %v2471 = vunpack.c.l.b16 %v1920
        %v2472 = vunpack.c.l.b16 %v1921
        %v2473 = vunpack.c.l.b16 %v1922
        %v2474 = vunpack.c.l.b16 %v1923
        %v2475 = vunpack.c.l.b16 %v1924
        %v2476 = vunpack.c.l.b16 %v1925
        %v2477 = vunpack.c.l.b16 %v1926
        %v2478 = vunpack.c.l.b16 %v1927
        %v2479 = vunpack.c.l.b16 %v1928
        %v2480 = vunpack.c.l.b16 %v1929
        %v2481 = vunpack.c.l.b16 %v1930
        %v2482 = vunpack.c.l.b16 %v1931
        %v2483 = vunpack.c.l.b16 %v1932
        %v2484 = vunpack.c.l.b16 %v1933
        %v2485 = vunpack.c.l.b16 %v1934
        %v2486 = vunpack.c.l.b16 %v1935
        %v2487 = vunpack.c.l.b16 %v1936
        %v2488 = vunpack.c.l.b16 %v1937
        %v2489 = vunpack.c.l.b16 %v1938
        %v2490 = vunpack.c.l.b16 %v1939
        %v2491 = vunpack.c.l.b16 %v1940
        %v2492 = vunpack.c.l.b16 %v1941
        %v2493 = vunpack.c.l.b16 %v1942
        %v2494 = vunpack.c.l.b16 %v1943
        %v2495 = vunpack.c.l.b16 %v1944
        %v2496 = vunpack.c.l.b16 %v1945
        %v2497 = vunpack.c.l.b16 %v1946
        %v2498 = vunpack.c.l.b16 %v1947
        %v2499 = vunpack.c.l.b16 %v1948
        %v2500 = vunpack.c.l.b16 %v1949
        %v2501 = vunpack.c.l.b16 %v1950
        %v2502 = vunpack.c.l.b16 %v1951
        %v2503 = vpack.c.b16 %v2456, %v2455
        %v2504 = vpack.c.b16 %v2458, %v2457
        %v2505 = vpack.c.b16 %v2460, %v2459
        %v2506 = vpack.c.b16 %v2462, %v2461
        %v2507 = vpack.c.b16 %v2464, %v2463
        %v2508 = vpack.c.b16 %v2466, %v2465
        %v2509 = vpack.c.b16 %v2468, %v2467
        %v2510 = vpack.c.b16 %v2470, %v2469
        %v2511 = vpack.c.b16 %v2472, %v2471
        %v2512 = vpack.c.b16 %v2474, %v2473
        %v2513 = vpack.c.b16 %v2476, %v2475
        %v2514 = vpack.c.b16 %v2478, %v2477
        %v2515 = vpack.c.b16 %v2480, %v2479
        %v2516 = vpack.c.b16 %v2482, %v2481
        %v2517 = vpack.c.b16 %v2484, %v2483
        %v2518 = vpack.c.b16 %v2486, %v2485
        %v2519 = vpack.c.b16 %v2488, %v2487
        %v2520 = vpack.c.b16 %v2490, %v2489
        %v2521 = vpack.c.b16 %v2492, %v2491
        %v2522 = vpack.c.b16 %v2494, %v2493
        %v2523 = vpack.c.b16 %v2496, %v2495
        %v2524 = vpack.c.b16 %v2498, %v2497
        %v2525 = vpack.c.b16 %v2500, %v2499
        %v2526 = vpack.c.b16 %v2502, %v2501
        %2551 = vmatprep.subr.bf16.mxu0 0
        %2552 = vmatpush1.bf16.msra.mxu0 %v2503
        %2553 = vmatprep.subr.bf16.mxu0 0
        %2554 = vmatpush1.bf16.msra.mxu0 %v2504
        %2555 = vmatprep.subr.bf16.mxu0 0
        %2556 = vmatpush1.bf16.msra.mxu0 %v2505
        %2557 = vmatprep.subr.bf16.mxu0 0
        %2558 = vmatpush1.bf16.msra.mxu0 %v2506
        %2559 = vmatprep.subr.bf16.mxu0 0
        %2560 = vmatpush1.bf16.msra.mxu0 %v2507
        %2561 = vmatprep.subr.bf16.mxu0 0
        %2562 = vmatpush1.bf16.msra.mxu0 %v2508
        %2563 = vmatprep.subr.bf16.mxu0 0
        %2564 = vmatpush1.bf16.msra.mxu0 %v2509
        %2565 = vmatprep.subr.bf16.mxu0 0
        %2566 = vmatpush1.bf16.msra.mxu0 %v2510
        %2567 = vmatprep.subr.bf16.mxu0 0
        %2568 = vmatpush1.bf16.msra.mxu0 %v2511
        %2569 = vmatprep.subr.bf16.mxu0 0
        %2570 = vmatpush1.bf16.msra.mxu0 %v2512
        %2571 = vmatprep.subr.bf16.mxu0 0
        %2572 = vmatpush1.bf16.msra.mxu0 %v2513
        %2573 = vmatprep.subr.bf16.mxu0 0
        %2574 = vmatpush1.bf16.msra.mxu0 %v2514
        %2575 = vmatprep.subr.bf16.mxu0 0
        %2576 = vmatpush1.bf16.msra.mxu0 %v2515
        %2577 = vmatprep.subr.bf16.mxu0 0
        %2578 = vmatpush1.bf16.msra.mxu0 %v2516
        %2579 = vmatprep.subr.bf16.mxu0 0
        %2580 = vmatpush1.bf16.msra.mxu0 %v2517
        %2581 = vmatprep.subr.bf16.mxu0 0
        %2582 = vmatpush1.bf16.msra.mxu0 %v2518
        %2583 = vmatprep.mubr.bf16.mxu0 %v1835
        %2584 = vmatmul.mubr.bf16.gmra.mrb[0].mxu0 %v1804
        %v2585 = vpop.f32.mrb[0].mxu0
        %v2586 = vadd.f32 %v2377, %v2585
        %v2587 = vpop.f32.mrb[0].mxu0
        %v2588 = vpop.f32.mrb[0].mxu0
        %v2589 = vadd.f32 %v2380, %v2588
        %v2590 = vpop.f32.mrb[0].mxu0
        %2591 = vmatprep.mubr.bf16.mxu0 %v1847
        %2592 = vmatmul.mubr.bf16.gmra.mrb[0].mxu0 %v1805
        %v2593 = vpop.f32.mrb[0].mxu0
        %v2594 = vadd.f32 %v2385, %v2593
        %v2595 = vpop.f32.mrb[0].mxu0
        %v2596 = vpop.f32.mrb[0].mxu0
        %v2597 = vadd.f32 %v2388, %v2596
        %v2598 = vpop.f32.mrb[0].mxu0
        %2599 = vmatprep.mubr.bf16.mxu0 %v1859
        %2600 = vmatmul.mubr.bf16.gmra.mrb[0].mxu0 %v1806
        %v2601 = vpop.f32.mrb[0].mxu0
        %v2602 = vadd.f32 %v2393, %v2601
        %v2603 = vpop.f32.mrb[0].mxu0
        %v2604 = vpop.f32.mrb[0].mxu0
        %v2605 = vadd.f32 %v2396, %v2604
        %v2606 = vpop.f32.mrb[0].mxu0
        %2607 = vmatprep.mubr.bf16.mxu0 %v1871
        %2608 = vmatmul.mubr.bf16.gmra.mrb[0].mxu0 %v1807
        %v2609 = vpop.f32.mrb[0].mxu0
        %v2610 = vadd.f32 %v2401, %v2609
        %v2611 = vpop.f32.mrb[0].mxu0
        %v2612 = vpop.f32.mrb[0].mxu0
        %v2613 = vadd.f32 %v2404, %v2612
        %v2614 = vpop.f32.mrb[0].mxu0
        %2615 = vdwg.mxu0
        %2616 = vmatprep.subr.bf16.mxu0 0
        %2617 = vmatpush1.bf16.msra.mxu0 %v2519
        %2618 = vmatprep.subr.bf16.mxu0 0
        %2619 = vmatpush1.bf16.msra.mxu0 %v2520
        %2620 = vmatprep.subr.bf16.mxu0 0
        %2621 = vmatpush1.bf16.msra.mxu0 %v2521
        %2622 = vmatprep.subr.bf16.mxu0 0
        %2623 = vmatpush1.bf16.msra.mxu0 %v2522
        %2624 = vmatprep.subr.bf16.mxu0 0
        %2625 = vmatpush1.bf16.msra.mxu0 %v2523
        %2626 = vmatprep.subr.bf16.mxu0 0
        %2627 = vmatpush1.bf16.msra.mxu0 %v2524
        %2628 = vmatprep.subr.bf16.mxu0 0
        %2629 = vmatpush1.bf16.msra.mxu0 %v2525
        %2630 = vmatprep.subr.bf16.mxu0 0
        %2631 = vmatpush1.bf16.msra.mxu0 %v2526
        %2632 = vmatprep.subr.bf16.mxu0 0
        %2633 = vmatpush1.bf16.msra.mxu0 0
        %2634 = vmatprep.subr.bf16.mxu0 0
        %2635 = vmatpush1.bf16.msra.mxu0 0
        %2636 = vmatprep.subr.bf16.mxu0 0
        %2637 = vmatpush1.bf16.msra.mxu0 0
        %2638 = vmatprep.subr.bf16.mxu0 0
        %2639 = vmatpush1.bf16.msra.mxu0 0
        %2640 = vmatprep.subr.bf16.mxu0 0
        %2641 = vmatpush1.bf16.msra.mxu0 0
        %2642 = vmatprep.subr.bf16.mxu0 0
        %2643 = vmatpush1.bf16.msra.mxu0 0
        %2644 = vmatprep.subr.bf16.mxu0 0
        %2645 = vmatpush1.bf16.msra.mxu0 0
        %2646 = vmatprep.subr.bf16.mxu0 0
        %2647 = vmatpush1.bf16.msra.mxu0 0
        %2648 = vmatprep.mubr.bf16.mxu0 0
        %2649 = vmatmul.mubr.bf16.gmra.mrb[0].mxu0 %v1890
        %v2650 = vpop.f32.mrb[0].mxu0
        %v2651 = vadd.f32 %v2586, %v2650
        %v2652 = vpop.f32.mrb[0].mxu0
        %v2653 = vpop.f32.mrb[0].mxu0
        %v2654 = vadd.f32 %v2589, %v2653
        %v2655 = vpop.f32.mrb[0].mxu0
        %2656 = vmatprep.mubr.bf16.mxu0 0
        %2657 = vmatmul.mubr.bf16.gmra.mrb[0].mxu0 %v1893
        %v2658 = vpop.f32.mrb[0].mxu0
        %v2659 = vadd.f32 %v2594, %v2658
        %v2660 = vpop.f32.mrb[0].mxu0
        %v2661 = vpop.f32.mrb[0].mxu0
        %v2662 = vadd.f32 %v2597, %v2661
        %v2663 = vpop.f32.mrb[0].mxu0
        %2664 = vmatprep.mubr.bf16.mxu0 0
        %2665 = vmatmul.mubr.bf16.gmra.mrb[0].mxu0 %v1896
        %v2666 = vpop.f32.mrb[0].mxu0
        %v2667 = vadd.f32 %v2602, %v2666
        %v2668 = vpop.f32.mrb[0].mxu0
        %v2669 = vpop.f32.mrb[0].mxu0
        %v2670 = vadd.f32 %v2605, %v2669
        %v2671 = vpop.f32.mrb[0].mxu0
        %2672 = vmatprep.mubr.bf16.mxu0 0
        %2673 = vmatmul.mubr.bf16.gmra.mrb[0].mxu0 %v1899
        %v2674 = vpop.f32.mrb[0].mxu0
        %v2675 = vadd.f32 %v2610, %v2674
        %v2676 = vpop.f32.mrb[0].mxu0
        %v2677 = vpop.f32.mrb[0].mxu0
        %v2678 = vadd.f32 %v2613, %v2677
        %v2679 = vpop.f32.mrb[0].mxu0
        %2680 = vdwg.mxu0
        %s2681 = scalar_lea.vmem %s237, 72
        %v2682 = vld [vmem:[%s2681] sm:$0xf]
        %v2683 = vld [vmem:[%s2681 + $0x4] sm:$0xf]
        %v2684 = vld [vmem:[%s2681 + $0xc] sm:$0xf]
        %v2685 = vld [vmem:[%s2681 + $0x10] sm:$0xf]
        %v2686 = vld [vmem:[%s2681 + $0x18] sm:$0xf]
        %v2687 = vld [vmem:[%s2681 + $0x1c] sm:$0xf]
        %v2688 = vld [vmem:[%s2681 + $0x24] sm:$0xf]
        %v2689 = vld [vmem:[%s2681 + $0x28] sm:$0xf]
        %v2690 = vld [vmem:[%s2681 + $0x8] sm:$0x1]
        %v2691 = vld [vmem:[%s2681 + $0x14] sm:$0x1]
        %v2692 = vld [vmem:[%s2681 + $0x20] sm:$0x1]
        %v2693 = vld [vmem:[%s2681 + $0x2c] sm:$0x1]
        %v2694 = vld [vmem:[%s2681] sm:$0xe]
        %v2695 = vld [vmem:[%s2681 + $0xc] sm:$0xe]
        %v2696 = vld [vmem:[%s2681 + $0x18] sm:$0xe]
        %v2697 = vld [vmem:[%s2681 + $0x24] sm:$0xe]
        %v2706 = vunpack.c.l.b16 %v2682
        %v2707 = vunpack.c.l.b16 %v2683
        %v2708 = vunpack.c.l.b16 %v2684
        %v2709 = vunpack.c.l.b16 %v2685
        %v2710 = vunpack.c.l.b16 %v2686
        %v2711 = vunpack.c.l.b16 %v2687
        %v2712 = vunpack.c.l.b16 %v2688
        %v2713 = vunpack.c.l.b16 %v2689
        %v2714 = vpack.c.b16 %v2707, %v2706
        %v2715 = vpack.c.b16 %v2709, %v2708
        %v2716 = vpack.c.b16 %v2711, %v2710
        %v2717 = vpack.c.b16 %v2713, %v2712
        %v2726 = vunpack.c.l.b16 %v2690
        %v2727 = vunpack.c.l.b16 %v2691
        %v2728 = vunpack.c.l.b16 %v2692
        %v2729 = vunpack.c.l.b16 %v2693
        %v2730 = vpack.c.b16 %v2726, %v2726
        %v2731 = vpack.c.b16 %v2727, %v2727
        %v2732 = vpack.c.b16 %v2728, %v2728
        %v2733 = vpack.c.b16 %v2729, %v2729
        %v2735 = vshrl.u32 %v2714, 16
        %v2737 = vshll.u32 %v2714, 16
        %v2739 = vrot.slane %v2737, 1
        %v2740 = vor.u32 %v2735, %v2739
        %v2742 = vshll.u32 %v2730, 16
        %v2744 = vrot.slane %v2742, 1
        %v2745 = vsel %vm407, %v2740, %v2744
        %v2747 = vshrl.u32 %v2715, 16
        %v2749 = vshll.u32 %v2715, 16
        %v2751 = vrot.slane %v2749, 1
        %v2752 = vor.u32 %v2747, %v2751
        %v2754 = vshll.u32 %v2731, 16
        %v2756 = vrot.slane %v2754, 1
        %v2757 = vsel %vm407, %v2752, %v2756
        %v2759 = vshrl.u32 %v2716, 16
        %v2761 = vshll.u32 %v2716, 16
        %v2763 = vrot.slane %v2761, 1
        %v2764 = vor.u32 %v2759, %v2763
        %v2766 = vshll.u32 %v2732, 16
        %v2768 = vrot.slane %v2766, 1
        %v2769 = vsel %vm407, %v2764, %v2768
        %v2771 = vshrl.u32 %v2717, 16
        %v2773 = vshll.u32 %v2717, 16
        %v2775 = vrot.slane %v2773, 1
        %v2776 = vor.u32 %v2771, %v2775
        %v2778 = vshll.u32 %v2733, 16
        %v2780 = vrot.slane %v2778, 1
        %v2781 = vsel %vm407, %v2776, %v2780
        %v2790 = vunpack.c.l.b16 %v2694
        %v2791 = vunpack.c.l.b16 %v2695
        %v2792 = vunpack.c.l.b16 %v2696
        %v2793 = vunpack.c.l.b16 %v2697
        %v2794 = vpack.c.b16 %v2707, %v2790
        %v2795 = vpack.c.b16 %v2709, %v2791
        %v2796 = vpack.c.b16 %v2711, %v2792
        %v2797 = vpack.c.b16 %v2713, %v2793
        %v2798 = vrot.slane %v2794, 1
        %v2799 = vrot.slane %v2730, 1
        %v2800 = vsel %vm472, %v2798, %v2799
        %v2801 = vrot.slane %v2795, 1
        %v2802 = vrot.slane %v2731, 1
        %v2803 = vsel %vm472, %v2801, %v2802
        %v2804 = vrot.slane %v2796, 1
        %v2805 = vrot.slane %v2732, 1
        %v2806 = vsel %vm472, %v2804, %v2805
        %v2807 = vrot.slane %v2797, 1
        %v2808 = vrot.slane %v2733, 1
        %v2809 = vsel %vm472, %v2807, %v2808
        %v2814 = vld [vmem:[%s1400] sm:$0xf]
        %v2815 = vld [vmem:[%s1400 + $0x4] sm:$0xf]
        %v2816 = vld [vmem:[%s1400 + $0x8] sm:$0xf]
        %v2817 = vld [vmem:[%s1400 + $0xc] sm:$0xf]
        %v2818 = vld [vmem:[%s1400 + $0x10] sm:$0xf]
        %v2819 = vld [vmem:[%s1400 + $0x14] sm:$0xf]
        %v2820 = vld [vmem:[%s1400 + $0x18] sm:$0xf]
        %v2821 = vld [vmem:[%s1400 + $0x1c] sm:$0xf]
        %v2822 = vld [vmem:[%s1400 + $0x20] sm:$0xf]
        %v2823 = vld [vmem:[%s1400 + $0x24] sm:$0xf]
        %v2824 = vld [vmem:[%s1400 + $0x28] sm:$0xf]
        %v2825 = vld [vmem:[%s1400 + $0x2c] sm:$0xf]
        %v2826 = vld [vmem:[%s1400 + $0x30] sm:$0xf]
        %v2827 = vld [vmem:[%s1400 + $0x34] sm:$0xf]
        %v2828 = vld [vmem:[%s1400 + $0x38] sm:$0xf]
        %v2829 = vld [vmem:[%s1400 + $0x3c] sm:$0xf]
        %v2830 = vld [vmem:[%s1400 + $0x40] sm:$0xf]
        %v2831 = vld [vmem:[%s1400 + $0x44] sm:$0xf]
        %v2832 = vld [vmem:[%s1400 + $0x48] sm:$0xf]
        %v2833 = vld [vmem:[%s1400 + $0x4c] sm:$0xf]
        %v2834 = vld [vmem:[%s1400 + $0x50] sm:$0xf]
        %v2835 = vld [vmem:[%s1400 + $0x54] sm:$0xf]
        %v2836 = vld [vmem:[%s1400 + $0x58] sm:$0xf]
        %v2837 = vld [vmem:[%s1400 + $0x5c] sm:$0xf]
        %v2838 = vld [vmem:[%s1400 + $0x60] sm:$0xf]
        %v2839 = vld [vmem:[%s1400 + $0x64] sm:$0xf]
        %v2840 = vld [vmem:[%s1400 + $0x68] sm:$0xf]
        %v2841 = vld [vmem:[%s1400 + $0x6c] sm:$0xf]
        %v2842 = vld [vmem:[%s1400 + $0x70] sm:$0xf]
        %v2843 = vld [vmem:[%s1400 + $0x74] sm:$0xf]
        %v2844 = vld [vmem:[%s1400 + $0x78] sm:$0xf]
        %v2845 = vld [vmem:[%s1400 + $0x7c] sm:$0xf]
        %v2846 = vld [vmem:[%s1400 + $0x80] sm:$0xf]
        %v2847 = vld [vmem:[%s1400 + $0x84] sm:$0xf]
        %v2848 = vld [vmem:[%s1400 + $0x88] sm:$0xf]
        %v2849 = vld [vmem:[%s1400 + $0x8c] sm:$0xf]
        %v2850 = vld [vmem:[%s1400 + $0x90] sm:$0xf]
        %v2851 = vld [vmem:[%s1400 + $0x94] sm:$0xf]
        %v2852 = vld [vmem:[%s1400 + $0x98] sm:$0xf]
        %v2853 = vld [vmem:[%s1400 + $0x9c] sm:$0xf]
        %v2854 = vld [vmem:[%s1400 + $0xa0] sm:$0xf]
        %v2855 = vld [vmem:[%s1400 + $0xa4] sm:$0xf]
        %v2856 = vld [vmem:[%s1400 + $0xa8] sm:$0xf]
        %v2857 = vld [vmem:[%s1400 + $0xac] sm:$0xf]
        %v2858 = vld [vmem:[%s1400 + $0xb0] sm:$0xf]
        %v2859 = vld [vmem:[%s1400 + $0xb4] sm:$0xf]
        %v2860 = vld [vmem:[%s1400 + $0xb8] sm:$0xf]
        %v2861 = vld [vmem:[%s1400 + $0xbc] sm:$0xf]
        %v2910 = vunpack.c.l.b16 %v2814
        %v2911 = vunpack.c.l.b16 %v2815
        %v2912 = vunpack.c.l.b16 %v2816
        %v2913 = vunpack.c.l.b16 %v2817
        %v2914 = vunpack.c.l.b16 %v2818
        %v2915 = vunpack.c.l.b16 %v2819
        %v2916 = vunpack.c.l.b16 %v2820
        %v2917 = vunpack.c.l.b16 %v2821
        %v2918 = vunpack.c.l.b16 %v2822
        %v2919 = vunpack.c.l.b16 %v2823
        %v2920 = vunpack.c.l.b16 %v2824
        %v2921 = vunpack.c.l.b16 %v2825
        %v2922 = vunpack.c.l.b16 %v2826
        %v2923 = vunpack.c.l.b16 %v2827
        %v2924 = vunpack.c.l.b16 %v2828
        %v2925 = vunpack.c.l.b16 %v2829
        %v2926 = vunpack.c.l.b16 %v2830
        %v2927 = vunpack.c.l.b16 %v2831
        %v2928 = vunpack.c.l.b16 %v2832
        %v2929 = vunpack.c.l.b16 %v2833
        %v2930 = vunpack.c.l.b16 %v2834
        %v2931 = vunpack.c.l.b16 %v2835
        %v2932 = vunpack.c.l.b16 %v2836
        %v2933 = vunpack.c.l.b16 %v2837
        %v2934 = vunpack.c.l.b16 %v2838
        %v2935 = vunpack.c.l.b16 %v2839
        %v2936 = vunpack.c.l.b16 %v2840
        %v2937 = vunpack.c.l.b16 %v2841
        %v2938 = vunpack.c.l.b16 %v2842
        %v2939 = vunpack.c.l.b16 %v2843
        %v2940 = vunpack.c.l.b16 %v2844
        %v2941 = vunpack.c.l.b16 %v2845
        %v2942 = vunpack.c.l.b16 %v2846
        %v2943 = vunpack.c.l.b16 %v2847
        %v2944 = vunpack.c.l.b16 %v2848
        %v2945 = vunpack.c.l.b16 %v2849
        %v2946 = vunpack.c.l.b16 %v2850
        %v2947 = vunpack.c.l.b16 %v2851
        %v2948 = vunpack.c.l.b16 %v2852
        %v2949 = vunpack.c.l.b16 %v2853
        %v2950 = vunpack.c.l.b16 %v2854
        %v2951 = vunpack.c.l.b16 %v2855
        %v2952 = vunpack.c.l.b16 %v2856
        %v2953 = vunpack.c.l.b16 %v2857
        %v2954 = vunpack.c.l.b16 %v2858
        %v2955 = vunpack.c.l.b16 %v2859
        %v2956 = vunpack.c.l.b16 %v2860
        %v2957 = vunpack.c.l.b16 %v2861
        %v2958 = vpack.c.b16 %v2911, %v2910
        %v2959 = vpack.c.b16 %v2913, %v2912
        %v2960 = vpack.c.b16 %v2915, %v2914
        %v2961 = vpack.c.b16 %v2917, %v2916
        %v2962 = vpack.c.b16 %v2919, %v2918
        %v2963 = vpack.c.b16 %v2921, %v2920
        %v2964 = vpack.c.b16 %v2923, %v2922
        %v2965 = vpack.c.b16 %v2925, %v2924
        %v2966 = vpack.c.b16 %v2927, %v2926
        %v2967 = vpack.c.b16 %v2929, %v2928
        %v2968 = vpack.c.b16 %v2931, %v2930
        %v2969 = vpack.c.b16 %v2933, %v2932
        %v2970 = vpack.c.b16 %v2935, %v2934
        %v2971 = vpack.c.b16 %v2937, %v2936
        %v2972 = vpack.c.b16 %v2939, %v2938
        %v2973 = vpack.c.b16 %v2941, %v2940
        %v2974 = vpack.c.b16 %v2943, %v2942
        %v2975 = vpack.c.b16 %v2945, %v2944
        %v2976 = vpack.c.b16 %v2947, %v2946
        %v2977 = vpack.c.b16 %v2949, %v2948
        %v2978 = vpack.c.b16 %v2951, %v2950
        %v2979 = vpack.c.b16 %v2953, %v2952
        %v2980 = vpack.c.b16 %v2955, %v2954
        %v2981 = vpack.c.b16 %v2957, %v2956
        %3006 = vmatprep.subr.bf16.mxu0 0
        %3007 = vmatpush1.bf16.msra.mxu0 %v2958
        %3008 = vmatprep.subr.bf16.mxu0 0
        %3009 = vmatpush1.bf16.msra.mxu0 %v2959
        %3010 = vmatprep.subr.bf16.mxu0 0
        %3011 = vmatpush1.bf16.msra.mxu0 %v2960
        %3012 = vmatprep.subr.bf16.mxu0 0
        %3013 = vmatpush1.bf16.msra.mxu0 %v2961
        %3014 = vmatprep.subr.bf16.mxu0 0
        %3015 = vmatpush1.bf16.msra.mxu0 %v2962
        %3016 = vmatprep.subr.bf16.mxu0 0
        %3017 = vmatpush1.bf16.msra.mxu0 %v2963
        %3018 = vmatprep.subr.bf16.mxu0 0
        %3019 = vmatpush1.bf16.msra.mxu0 %v2964
        %3020 = vmatprep.subr.bf16.mxu0 0
        %3021 = vmatpush1.bf16.msra.mxu0 %v2965
        %3022 = vmatprep.subr.bf16.mxu0 0
        %3023 = vmatpush1.bf16.msra.mxu0 %v2966
        %3024 = vmatprep.subr.bf16.mxu0 0
        %3025 = vmatpush1.bf16.msra.mxu0 %v2967
        %3026 = vmatprep.subr.bf16.mxu0 0
        %3027 = vmatpush1.bf16.msra.mxu0 %v2968
        %3028 = vmatprep.subr.bf16.mxu0 0
        %3029 = vmatpush1.bf16.msra.mxu0 %v2969
        %3030 = vmatprep.subr.bf16.mxu0 0
        %3031 = vmatpush1.bf16.msra.mxu0 %v2970
        %3032 = vmatprep.subr.bf16.mxu0 0
        %3033 = vmatpush1.bf16.msra.mxu0 %v2971
        %3034 = vmatprep.subr.bf16.mxu0 0
        %3035 = vmatpush1.bf16.msra.mxu0 %v2972
        %3036 = vmatprep.subr.bf16.mxu0 0
        %3037 = vmatpush1.bf16.msra.mxu0 %v2973
        %3038 = vmatprep.mubr.bf16.mxu0 %v2745
        %3039 = vmatmul.mubr.bf16.gmra.mrb[0].mxu0 %v2714
        %v3040 = vpop.f32.mrb[0].mxu0
        %v3041 = vadd.f32 0.0, %v3040
        %v3042 = vpop.f32.mrb[0].mxu0
        %v3043 = vpop.f32.mrb[0].mxu0
        %v3044 = vadd.f32 0.0, %v3043
        %v3045 = vpop.f32.mrb[0].mxu0
        %3046 = vmatprep.mubr.bf16.mxu0 %v2757
        %3047 = vmatmul.mubr.bf16.gmra.mrb[0].mxu0 %v2715
        %v3048 = vpop.f32.mrb[0].mxu0
        %v3049 = vadd.f32 0.0, %v3048
        %v3050 = vpop.f32.mrb[0].mxu0
        %v3051 = vpop.f32.mrb[0].mxu0
        %v3052 = vadd.f32 0.0, %v3051
        %v3053 = vpop.f32.mrb[0].mxu0
        %3054 = vmatprep.mubr.bf16.mxu0 %v2769
        %3055 = vmatmul.mubr.bf16.gmra.mrb[0].mxu0 %v2716
        %v3056 = vpop.f32.mrb[0].mxu0
        %v3057 = vadd.f32 0.0, %v3056
        %v3058 = vpop.f32.mrb[0].mxu0
        %v3059 = vpop.f32.mrb[0].mxu0
        %v3060 = vadd.f32 0.0, %v3059
        %v3061 = vpop.f32.mrb[0].mxu0
        %3062 = vmatprep.mubr.bf16.mxu0 %v2781
        %3063 = vmatmul.mubr.bf16.gmra.mrb[0].mxu0 %v2717
        %v3064 = vpop.f32.mrb[0].mxu0
        %v3065 = vadd.f32 0.0, %v3064
        %v3066 = vpop.f32.mrb[0].mxu0
        %v3067 = vpop.f32.mrb[0].mxu0
        %v3068 = vadd.f32 0.0, %v3067
        %v3069 = vpop.f32.mrb[0].mxu0
        %3070 = vdwg.mxu0
        %3071 = vmatprep.subr.bf16.mxu0 0
        %3072 = vmatpush1.bf16.msra.mxu0 %v2974
        %3073 = vmatprep.subr.bf16.mxu0 0
        %3074 = vmatpush1.bf16.msra.mxu0 %v2975
        %3075 = vmatprep.subr.bf16.mxu0 0
        %3076 = vmatpush1.bf16.msra.mxu0 %v2976
        %3077 = vmatprep.subr.bf16.mxu0 0
        %3078 = vmatpush1.bf16.msra.mxu0 %v2977
        %3079 = vmatprep.subr.bf16.mxu0 0
        %3080 = vmatpush1.bf16.msra.mxu0 %v2978
        %3081 = vmatprep.subr.bf16.mxu0 0
        %3082 = vmatpush1.bf16.msra.mxu0 %v2979
        %3083 = vmatprep.subr.bf16.mxu0 0
        %3084 = vmatpush1.bf16.msra.mxu0 %v2980
        %3085 = vmatprep.subr.bf16.mxu0 0
        %3086 = vmatpush1.bf16.msra.mxu0 %v2981
        %3087 = vmatprep.subr.bf16.mxu0 0
        %3088 = vmatpush1.bf16.msra.mxu0 0
        %3089 = vmatprep.subr.bf16.mxu0 0
        %3090 = vmatpush1.bf16.msra.mxu0 0
        %3091 = vmatprep.subr.bf16.mxu0 0
        %3092 = vmatpush1.bf16.msra.mxu0 0
        %3093 = vmatprep.subr.bf16.mxu0 0
        %3094 = vmatpush1.bf16.msra.mxu0 0
        %3095 = vmatprep.subr.bf16.mxu0 0
        %3096 = vmatpush1.bf16.msra.mxu0 0
        %3097 = vmatprep.subr.bf16.mxu0 0
        %3098 = vmatpush1.bf16.msra.mxu0 0
        %3099 = vmatprep.subr.bf16.mxu0 0
        %3100 = vmatpush1.bf16.msra.mxu0 0
        %3101 = vmatprep.subr.bf16.mxu0 0
        %3102 = vmatpush1.bf16.msra.mxu0 0
        %3103 = vmatprep.mubr.bf16.mxu0 0
        %3104 = vmatmul.mubr.bf16.gmra.mrb[0].mxu0 %v2800
        %v3105 = vpop.f32.mrb[0].mxu0
        %v3106 = vadd.f32 %v3041, %v3105
        %v3107 = vpop.f32.mrb[0].mxu0
        %v3108 = vpop.f32.mrb[0].mxu0
        %v3109 = vadd.f32 %v3044, %v3108
        %v3110 = vpop.f32.mrb[0].mxu0
        %3111 = vmatprep.mubr.bf16.mxu0 0
        %3112 = vmatmul.mubr.bf16.gmra.mrb[0].mxu0 %v2803
        %v3113 = vpop.f32.mrb[0].mxu0
        %v3114 = vadd.f32 %v3049, %v3113
        %v3115 = vpop.f32.mrb[0].mxu0
        %v3116 = vpop.f32.mrb[0].mxu0
        %v3117 = vadd.f32 %v3052, %v3116
        %v3118 = vpop.f32.mrb[0].mxu0
        %3119 = vmatprep.mubr.bf16.mxu0 0
        %3120 = vmatmul.mubr.bf16.gmra.mrb[0].mxu0 %v2806
        %v3121 = vpop.f32.mrb[0].mxu0
        %v3122 = vadd.f32 %v3057, %v3121
        %v3123 = vpop.f32.mrb[0].mxu0
        %v3124 = vpop.f32.mrb[0].mxu0
        %v3125 = vadd.f32 %v3060, %v3124
        %v3126 = vpop.f32.mrb[0].mxu0
        %3127 = vmatprep.mubr.bf16.mxu0 0
        %3128 = vmatmul.mubr.bf16.gmra.mrb[0].mxu0 %v2809
        %v3129 = vpop.f32.mrb[0].mxu0
        %v3130 = vadd.f32 %v3065, %v3129
        %v3131 = vpop.f32.mrb[0].mxu0
        %v3132 = vpop.f32.mrb[0].mxu0
        %v3133 = vadd.f32 %v3068, %v3132
        %v3134 = vpop.f32.mrb[0].mxu0
        %3135 = vdwg.mxu0
        %v3136 = vadd.f32 %v2651, %v3106
        %v3137 = vadd.f32 %v2654, %v3109
        %v3138 = vadd.f32 %v2659, %v3114
        %v3139 = vadd.f32 %v2662, %v3117
        %v3140 = vadd.f32 %v2667, %v3122
        %v3141 = vadd.f32 %v2670, %v3125
        %v3142 = vadd.f32 %v2675, %v3130
        %v3143 = vadd.f32 %v2678, %v3133
        %v3144 = vmul.f32 %v3136, %v1734
        %v3145 = vmul.f32 %v3137, %v1734
        %v3146 = vmul.f32 %v3138, %v1734
        %v3147 = vmul.f32 %v3139, %v1734
        %v3148 = vmul.f32 %v3140, %v1734
        %v3149 = vmul.f32 %v3141, %v1734
        %v3150 = vmul.f32 %v3142, %v1734
        %v3151 = vmul.f32 %v3143, %v1734
        %v3152 = vadd.f32 %v3144, %v1746
        %v3153 = vadd.f32 %v3145, %v1746
        %v3154 = vadd.f32 %v3146, %v1746
        %v3155 = vadd.f32 %v3147, %v1746
        %v3156 = vadd.f32 %v3148, %v1746
        %v3157 = vadd.f32 %v3149, %v1746
        %v3158 = vadd.f32 %v3150, %v1746
        %v3159 = vadd.f32 %v3151, %v1746
        %v3160 = vmax.f32 %v3152, 0.0
        %v3161 = vmax.f32 %v3153, 0.0
        %v3162 = vmax.f32 %v3154, 0.0
        %v3163 = vmax.f32 %v3155, 0.0
        %v3164 = vmax.f32 %v3156, 0.0
        %v3165 = vmax.f32 %v3157, 0.0
        %v3166 = vmax.f32 %v3158, 0.0
        %v3167 = vmax.f32 %v3159, 0.0
        %v3168 = vmax.f32 %v3160, %v3162
        %v3169 = vmax.f32 %v3161, %v3163
        %3170 = vst [vmem:[#allocation2 + $0x20] sm:$0xff] %v3168
        %3171 = vst [vmem:[#allocation2 + $0x28] sm:$0xff] %v3169
        %v3172 = vmax.f32 %v3164, %v3166
        %v3173 = vmax.f32 %v3165, %v3167
        %3174 = vst [vmem:[#allocation2 + $0x30] sm:$0xff] %v3172
        %3175 = vst [vmem:[#allocation2 + $0x38] sm:$0xff] %v3173
        %s3176 = scalar_lea.vmem %s237, 96
        %v3177 = vld [vmem:[%s3176] sm:$0xf]
        %v3178 = vld [vmem:[%s3176 + $0x4] sm:$0xf]
        %v3179 = vld [vmem:[%s3176 + $0xc] sm:$0xf]
        %v3180 = vld [vmem:[%s3176 + $0x10] sm:$0xf]
        %v3181 = vld [vmem:[%s3176 + $0x18] sm:$0xf]
        %v3182 = vld [vmem:[%s3176 + $0x1c] sm:$0xf]
        %v3183 = vld [vmem:[%s3176 + $0x24] sm:$0xf]
        %v3184 = vld [vmem:[%s3176 + $0x28] sm:$0xf]
        %v3185 = vld [vmem:[%s3176 + $0x8] sm:$0x1]
        %v3186 = vld [vmem:[%s3176 + $0x14] sm:$0x1]
        %v3187 = vld [vmem:[%s3176 + $0x20] sm:$0x1]
        %v3188 = vld [vmem:[%s3176 + $0x2c] sm:$0x1]
        %v3189 = vld [vmem:[%s3176] sm:$0xe]
        %v3190 = vld [vmem:[%s3176 + $0xc] sm:$0xe]
        %v3191 = vld [vmem:[%s3176 + $0x18] sm:$0xe]
        %v3192 = vld [vmem:[%s3176 + $0x24] sm:$0xe]
        %v3201 = vunpack.c.l.b16 %v3177
        %v3202 = vunpack.c.l.b16 %v3178
        %v3203 = vunpack.c.l.b16 %v3179
        %v3204 = vunpack.c.l.b16 %v3180
        %v3205 = vunpack.c.l.b16 %v3181
        %v3206 = vunpack.c.l.b16 %v3182
        %v3207 = vunpack.c.l.b16 %v3183
        %v3208 = vunpack.c.l.b16 %v3184
        %v3209 = vpack.c.b16 %v3202, %v3201
        %v3210 = vpack.c.b16 %v3204, %v3203
        %v3211 = vpack.c.b16 %v3206, %v3205
        %v3212 = vpack.c.b16 %v3208, %v3207
        %v3221 = vunpack.c.l.b16 %v3185
        %v3222 = vunpack.c.l.b16 %v3186
        %v3223 = vunpack.c.l.b16 %v3187
        %v3224 = vunpack.c.l.b16 %v3188
        %v3225 = vpack.c.b16 %v3221, %v3221
        %v3226 = vpack.c.b16 %v3222, %v3222
        %v3227 = vpack.c.b16 %v3223, %v3223
        %v3228 = vpack.c.b16 %v3224, %v3224
        %v3230 = vshrl.u32 %v3209, 16
        %v3232 = vshll.u32 %v3209, 16
        %v3234 = vrot.slane %v3232, 1
        %v3235 = vor.u32 %v3230, %v3234
        %v3237 = vshll.u32 %v3225, 16
        %v3239 = vrot.slane %v3237, 1
        %v3240 = vsel %vm407, %v3235, %v3239
        %v3242 = vshrl.u32 %v3210, 16
        %v3244 = vshll.u32 %v3210, 16
        %v3246 = vrot.slane %v3244, 1
        %v3247 = vor.u32 %v3242, %v3246
        %v3249 = vshll.u32 %v3226, 16
        %v3251 = vrot.slane %v3249, 1
        %v3252 = vsel %vm407, %v3247, %v3251
        %v3254 = vshrl.u32 %v3211, 16
        %v3256 = vshll.u32 %v3211, 16
        %v3258 = vrot.slane %v3256, 1
        %v3259 = vor.u32 %v3254, %v3258
        %v3261 = vshll.u32 %v3227, 16
        %v3263 = vrot.slane %v3261, 1
        %v3264 = vsel %vm407, %v3259, %v3263
        %v3266 = vshrl.u32 %v3212, 16
        %v3268 = vshll.u32 %v3212, 16
        %v3270 = vrot.slane %v3268, 1
        %v3271 = vor.u32 %v3266, %v3270
        %v3273 = vshll.u32 %v3228, 16
        %v3275 = vrot.slane %v3273, 1
        %v3276 = vsel %vm407, %v3271, %v3275
        %v3285 = vunpack.c.l.b16 %v3189
        %v3286 = vunpack.c.l.b16 %v3190
        %v3287 = vunpack.c.l.b16 %v3191
        %v3288 = vunpack.c.l.b16 %v3192
        %v3289 = vpack.c.b16 %v3202, %v3285
        %v3290 = vpack.c.b16 %v3204, %v3286
        %v3291 = vpack.c.b16 %v3206, %v3287
        %v3292 = vpack.c.b16 %v3208, %v3288
        %v3293 = vrot.slane %v3289, 1
        %v3294 = vrot.slane %v3225, 1
        %v3295 = vsel %vm472, %v3293, %v3294
        %v3296 = vrot.slane %v3290, 1
        %v3297 = vrot.slane %v3226, 1
        %v3298 = vsel %vm472, %v3296, %v3297
        %v3299 = vrot.slane %v3291, 1
        %v3300 = vrot.slane %v3227, 1
        %v3301 = vsel %vm472, %v3299, %v3300
        %v3302 = vrot.slane %v3292, 1
        %v3303 = vrot.slane %v3228, 1
        %v3304 = vsel %vm472, %v3302, %v3303
        %v3309 = vld [vmem:[%s1] sm:$0xf]
        %v3310 = vld [vmem:[%s1 + $0x4] sm:$0xf]
        %v3311 = vld [vmem:[%s1 + $0x8] sm:$0xf]
        %v3312 = vld [vmem:[%s1 + $0xc] sm:$0xf]
        %v3313 = vld [vmem:[%s1 + $0x10] sm:$0xf]
        %v3314 = vld [vmem:[%s1 + $0x14] sm:$0xf]
        %v3315 = vld [vmem:[%s1 + $0x18] sm:$0xf]
        %v3316 = vld [vmem:[%s1 + $0x1c] sm:$0xf]
        %v3317 = vld [vmem:[%s1 + $0x20] sm:$0xf]
        %v3318 = vld [vmem:[%s1 + $0x24] sm:$0xf]
        %v3319 = vld [vmem:[%s1 + $0x28] sm:$0xf]
        %v3320 = vld [vmem:[%s1 + $0x2c] sm:$0xf]
        %v3321 = vld [vmem:[%s1 + $0x30] sm:$0xf]
        %v3322 = vld [vmem:[%s1 + $0x34] sm:$0xf]
        %v3323 = vld [vmem:[%s1 + $0x38] sm:$0xf]
        %v3324 = vld [vmem:[%s1 + $0x3c] sm:$0xf]
        %v3325 = vld [vmem:[%s1 + $0x40] sm:$0xf]
        %v3326 = vld [vmem:[%s1 + $0x44] sm:$0xf]
        %v3327 = vld [vmem:[%s1 + $0x48] sm:$0xf]
        %v3328 = vld [vmem:[%s1 + $0x4c] sm:$0xf]
        %v3329 = vld [vmem:[%s1 + $0x50] sm:$0xf]
        %v3330 = vld [vmem:[%s1 + $0x54] sm:$0xf]
        %v3331 = vld [vmem:[%s1 + $0x58] sm:$0xf]
        %v3332 = vld [vmem:[%s1 + $0x5c] sm:$0xf]
        %v3333 = vld [vmem:[%s1 + $0x60] sm:$0xf]
        %v3334 = vld [vmem:[%s1 + $0x64] sm:$0xf]
        %v3335 = vld [vmem:[%s1 + $0x68] sm:$0xf]
        %v3336 = vld [vmem:[%s1 + $0x6c] sm:$0xf]
        %v3337 = vld [vmem:[%s1 + $0x70] sm:$0xf]
        %v3338 = vld [vmem:[%s1 + $0x74] sm:$0xf]
        %v3339 = vld [vmem:[%s1 + $0x78] sm:$0xf]
        %v3340 = vld [vmem:[%s1 + $0x7c] sm:$0xf]
        %v3341 = vld [vmem:[%s1 + $0x80] sm:$0xf]
        %v3342 = vld [vmem:[%s1 + $0x84] sm:$0xf]
        %v3343 = vld [vmem:[%s1 + $0x88] sm:$0xf]
        %v3344 = vld [vmem:[%s1 + $0x8c] sm:$0xf]
        %v3345 = vld [vmem:[%s1 + $0x90] sm:$0xf]
        %v3346 = vld [vmem:[%s1 + $0x94] sm:$0xf]
        %v3347 = vld [vmem:[%s1 + $0x98] sm:$0xf]
        %v3348 = vld [vmem:[%s1 + $0x9c] sm:$0xf]
        %v3349 = vld [vmem:[%s1 + $0xa0] sm:$0xf]
        %v3350 = vld [vmem:[%s1 + $0xa4] sm:$0xf]
        %v3351 = vld [vmem:[%s1 + $0xa8] sm:$0xf]
        %v3352 = vld [vmem:[%s1 + $0xac] sm:$0xf]
        %v3353 = vld [vmem:[%s1 + $0xb0] sm:$0xf]
        %v3354 = vld [vmem:[%s1 + $0xb4] sm:$0xf]
        %v3355 = vld [vmem:[%s1 + $0xb8] sm:$0xf]
        %v3356 = vld [vmem:[%s1 + $0xbc] sm:$0xf]
        %s3357 = scalar_lea.vmem %s237, 108
        %v3358 = vld [vmem:[%s3357] sm:$0xf]
        %v3359 = vld [vmem:[%s3357 + $0x4] sm:$0xf]
        %v3360 = vld [vmem:[%s3357 + $0xc] sm:$0xf]
        %v3361 = vld [vmem:[%s3357 + $0x10] sm:$0xf]
        %v3362 = vld [vmem:[%s3357 + $0x18] sm:$0xf]
        %v3363 = vld [vmem:[%s3357 + $0x1c] sm:$0xf]
        %v3364 = vld [vmem:[%s3357 + $0x24] sm:$0xf]
        %v3365 = vld [vmem:[%s3357 + $0x28] sm:$0xf]
        %v3366 = vld [vmem:[%s3357 + $0x8] sm:$0x1]
        %v3367 = vld [vmem:[%s3357 + $0x14] sm:$0x1]
        %v3368 = vld [vmem:[%s3357 + $0x20] sm:$0x1]
        %v3369 = vld [vmem:[%s3357 + $0x2c] sm:$0x1]
        %v3370 = vld [vmem:[%s3357] sm:$0xe]
        %v3371 = vld [vmem:[%s3357 + $0xc] sm:$0xe]
        %v3372 = vld [vmem:[%s3357 + $0x18] sm:$0xe]
        %v3373 = vld [vmem:[%s3357 + $0x24] sm:$0xe]
        %v3382 = vunpack.c.l.b16 %v3358
        %v3383 = vunpack.c.l.b16 %v3359
        %v3384 = vunpack.c.l.b16 %v3360
        %v3385 = vunpack.c.l.b16 %v3361
        %v3386 = vunpack.c.l.b16 %v3362
        %v3387 = vunpack.c.l.b16 %v3363
        %v3388 = vunpack.c.l.b16 %v3364
        %v3389 = vunpack.c.l.b16 %v3365
        %v3390 = vpack.c.b16 %v3383, %v3382
        %v3391 = vpack.c.b16 %v3385, %v3384
        %v3392 = vpack.c.b16 %v3387, %v3386
        %v3393 = vpack.c.b16 %v3389, %v3388
        %v3402 = vunpack.c.l.b16 %v3366
        %v3403 = vunpack.c.l.b16 %v3367
        %v3404 = vunpack.c.l.b16 %v3368
        %v3405 = vunpack.c.l.b16 %v3369
        %v3406 = vpack.c.b16 %v3402, %v3402
        %v3407 = vpack.c.b16 %v3403, %v3403
        %v3408 = vpack.c.b16 %v3404, %v3404
        %v3409 = vpack.c.b16 %v3405, %v3405
        %v3411 = vshrl.u32 %v3390, 16
        %v3413 = vshll.u32 %v3390, 16
        %v3415 = vrot.slane %v3413, 1
        %v3416 = vor.u32 %v3411, %v3415
        %v3418 = vshll.u32 %v3406, 16
        %v3420 = vrot.slane %v3418, 1
        %v3421 = vsel %vm407, %v3416, %v3420
        %v3423 = vshrl.u32 %v3391, 16
        %v3425 = vshll.u32 %v3391, 16
        %v3427 = vrot.slane %v3425, 1
        %v3428 = vor.u32 %v3423, %v3427
        %v3430 = vshll.u32 %v3407, 16
        %v3432 = vrot.slane %v3430, 1
        %v3433 = vsel %vm407, %v3428, %v3432
        %v3435 = vshrl.u32 %v3392, 16
        %v3437 = vshll.u32 %v3392, 16
        %v3439 = vrot.slane %v3437, 1
        %v3440 = vor.u32 %v3435, %v3439
        %v3442 = vshll.u32 %v3408, 16
        %v3444 = vrot.slane %v3442, 1
        %v3445 = vsel %vm407, %v3440, %v3444
        %v3447 = vshrl.u32 %v3393, 16
        %v3449 = vshll.u32 %v3393, 16
        %v3451 = vrot.slane %v3449, 1
        %v3452 = vor.u32 %v3447, %v3451
        %v3454 = vshll.u32 %v3409, 16
        %v3456 = vrot.slane %v3454, 1
        %v3457 = vsel %vm407, %v3452, %v3456
        %v3466 = vunpack.c.l.b16 %v3370
        %v3467 = vunpack.c.l.b16 %v3371
        %v3468 = vunpack.c.l.b16 %v3372
        %v3469 = vunpack.c.l.b16 %v3373
        %v3470 = vpack.c.b16 %v3383, %v3466
        %v3471 = vpack.c.b16 %v3385, %v3467
        %v3472 = vpack.c.b16 %v3387, %v3468
        %v3473 = vpack.c.b16 %v3389, %v3469
        %v3474 = vrot.slane %v3470, 1
        %v3475 = vrot.slane %v3406, 1
        %v3476 = vsel %vm472, %v3474, %v3475
        %v3477 = vrot.slane %v3471, 1
        %v3478 = vrot.slane %v3407, 1
        %v3479 = vsel %vm472, %v3477, %v3478
        %v3480 = vrot.slane %v3472, 1
        %v3481 = vrot.slane %v3408, 1
        %v3482 = vsel %vm472, %v3480, %v3481
        %v3483 = vrot.slane %v3473, 1
        %v3484 = vrot.slane %v3409, 1
        %v3485 = vsel %vm472, %v3483, %v3484
        %v3490 = vld [vmem:[%s670] sm:$0xf]
        %v3491 = vld [vmem:[%s670 + $0x4] sm:$0xf]
        %v3492 = vld [vmem:[%s670 + $0x8] sm:$0xf]
        %v3493 = vld [vmem:[%s670 + $0xc] sm:$0xf]
        %v3494 = vld [vmem:[%s670 + $0x10] sm:$0xf]
        %v3495 = vld [vmem:[%s670 + $0x14] sm:$0xf]
        %v3496 = vld [vmem:[%s670 + $0x18] sm:$0xf]
        %v3497 = vld [vmem:[%s670 + $0x1c] sm:$0xf]
        %v3498 = vld [vmem:[%s670 + $0x20] sm:$0xf]
        %v3499 = vld [vmem:[%s670 + $0x24] sm:$0xf]
        %v3500 = vld [vmem:[%s670 + $0x28] sm:$0xf]
        %v3501 = vld [vmem:[%s670 + $0x2c] sm:$0xf]
        %v3502 = vld [vmem:[%s670 + $0x30] sm:$0xf]
        %v3503 = vld [vmem:[%s670 + $0x34] sm:$0xf]
        %v3504 = vld [vmem:[%s670 + $0x38] sm:$0xf]
        %v3505 = vld [vmem:[%s670 + $0x3c] sm:$0xf]
        %v3506 = vld [vmem:[%s670 + $0x40] sm:$0xf]
        %v3507 = vld [vmem:[%s670 + $0x44] sm:$0xf]
        %v3508 = vld [vmem:[%s670 + $0x48] sm:$0xf]
        %v3509 = vld [vmem:[%s670 + $0x4c] sm:$0xf]
        %v3510 = vld [vmem:[%s670 + $0x50] sm:$0xf]
        %v3511 = vld [vmem:[%s670 + $0x54] sm:$0xf]
        %v3512 = vld [vmem:[%s670 + $0x58] sm:$0xf]
        %v3513 = vld [vmem:[%s670 + $0x5c] sm:$0xf]
        %v3514 = vld [vmem:[%s670 + $0x60] sm:$0xf]
        %v3515 = vld [vmem:[%s670 + $0x64] sm:$0xf]
        %v3516 = vld [vmem:[%s670 + $0x68] sm:$0xf]
        %v3517 = vld [vmem:[%s670 + $0x6c] sm:$0xf]
        %v3518 = vld [vmem:[%s670 + $0x70] sm:$0xf]
        %v3519 = vld [vmem:[%s670 + $0x74] sm:$0xf]
        %v3520 = vld [vmem:[%s670 + $0x78] sm:$0xf]
        %v3521 = vld [vmem:[%s670 + $0x7c] sm:$0xf]
        %v3522 = vld [vmem:[%s670 + $0x80] sm:$0xf]
        %v3523 = vld [vmem:[%s670 + $0x84] sm:$0xf]
        %v3524 = vld [vmem:[%s670 + $0x88] sm:$0xf]
        %v3525 = vld [vmem:[%s670 + $0x8c] sm:$0xf]
        %v3526 = vld [vmem:[%s670 + $0x90] sm:$0xf]
        %v3527 = vld [vmem:[%s670 + $0x94] sm:$0xf]
        %v3528 = vld [vmem:[%s670 + $0x98] sm:$0xf]
        %v3529 = vld [vmem:[%s670 + $0x9c] sm:$0xf]
        %v3530 = vld [vmem:[%s670 + $0xa0] sm:$0xf]
        %v3531 = vld [vmem:[%s670 + $0xa4] sm:$0xf]
        %v3532 = vld [vmem:[%s670 + $0xa8] sm:$0xf]
        %v3533 = vld [vmem:[%s670 + $0xac] sm:$0xf]
        %v3534 = vld [vmem:[%s670 + $0xb0] sm:$0xf]
        %v3535 = vld [vmem:[%s670 + $0xb4] sm:$0xf]
        %v3536 = vld [vmem:[%s670 + $0xb8] sm:$0xf]
        %v3537 = vld [vmem:[%s670 + $0xbc] sm:$0xf]
        %v3586 = vunpack.c.l.b16 %v3490
        %v3587 = vunpack.c.l.b16 %v3491
        %v3588 = vunpack.c.l.b16 %v3492
        %v3589 = vunpack.c.l.b16 %v3493
        %v3590 = vunpack.c.l.b16 %v3494
        %v3591 = vunpack.c.l.b16 %v3495
        %v3592 = vunpack.c.l.b16 %v3496
        %v3593 = vunpack.c.l.b16 %v3497
        %v3594 = vunpack.c.l.b16 %v3498
        %v3595 = vunpack.c.l.b16 %v3499
        %v3596 = vunpack.c.l.b16 %v3500
        %v3597 = vunpack.c.l.b16 %v3501
        %v3598 = vunpack.c.l.b16 %v3502
        %v3599 = vunpack.c.l.b16 %v3503
        %v3600 = vunpack.c.l.b16 %v3504
        %v3601 = vunpack.c.l.b16 %v3505
        %v3602 = vunpack.c.l.b16 %v3506
        %v3603 = vunpack.c.l.b16 %v3507
        %v3604 = vunpack.c.l.b16 %v3508
        %v3605 = vunpack.c.l.b16 %v3509
        %v3606 = vunpack.c.l.b16 %v3510
        %v3607 = vunpack.c.l.b16 %v3511
        %v3608 = vunpack.c.l.b16 %v3512
        %v3609 = vunpack.c.l.b16 %v3513
        %v3610 = vunpack.c.l.b16 %v3514
        %v3611 = vunpack.c.l.b16 %v3515
        %v3612 = vunpack.c.l.b16 %v3516
        %v3613 = vunpack.c.l.b16 %v3517
        %v3614 = vunpack.c.l.b16 %v3518
        %v3615 = vunpack.c.l.b16 %v3519
        %v3616 = vunpack.c.l.b16 %v3520
        %v3617 = vunpack.c.l.b16 %v3521
        %v3618 = vunpack.c.l.b16 %v3522
        %v3619 = vunpack.c.l.b16 %v3523
        %v3620 = vunpack.c.l.b16 %v3524
        %v3621 = vunpack.c.l.b16 %v3525
        %v3622 = vunpack.c.l.b16 %v3526
        %v3623 = vunpack.c.l.b16 %v3527
        %v3624 = vunpack.c.l.b16 %v3528
        %v3625 = vunpack.c.l.b16 %v3529
        %v3626 = vunpack.c.l.b16 %v3530
        %v3627 = vunpack.c.l.b16 %v3531
        %v3628 = vunpack.c.l.b16 %v3532
        %v3629 = vunpack.c.l.b16 %v3533
        %v3630 = vunpack.c.l.b16 %v3534
        %v3631 = vunpack.c.l.b16 %v3535
        %v3632 = vunpack.c.l.b16 %v3536
        %v3633 = vunpack.c.l.b16 %v3537
        %v3634 = vpack.c.b16 %v3587, %v3586
        %v3635 = vpack.c.b16 %v3589, %v3588
        %v3636 = vpack.c.b16 %v3591, %v3590
        %v3637 = vpack.c.b16 %v3593, %v3592
        %v3638 = vpack.c.b16 %v3595, %v3594
        %v3639 = vpack.c.b16 %v3597, %v3596
        %v3640 = vpack.c.b16 %v3599, %v3598
        %v3641 = vpack.c.b16 %v3601, %v3600
        %v3642 = vpack.c.b16 %v3603, %v3602
        %v3643 = vpack.c.b16 %v3605, %v3604
        %v3644 = vpack.c.b16 %v3607, %v3606
        %v3645 = vpack.c.b16 %v3609, %v3608
        %v3646 = vpack.c.b16 %v3611, %v3610
        %v3647 = vpack.c.b16 %v3613, %v3612
        %v3648 = vpack.c.b16 %v3615, %v3614
        %v3649 = vpack.c.b16 %v3617, %v3616
        %v3650 = vpack.c.b16 %v3619, %v3618
        %v3651 = vpack.c.b16 %v3621, %v3620
        %v3652 = vpack.c.b16 %v3623, %v3622
        %v3653 = vpack.c.b16 %v3625, %v3624
        %v3654 = vpack.c.b16 %v3627, %v3626
        %v3655 = vpack.c.b16 %v3629, %v3628
        %v3656 = vpack.c.b16 %v3631, %v3630
        %v3657 = vpack.c.b16 %v3633, %v3632
        %3682 = vmatprep.subr.bf16.mxu0 0
        %3683 = vmatpush1.bf16.msra.mxu0 %v3634
        %3684 = vmatprep.subr.bf16.mxu0 0
        %3685 = vmatpush1.bf16.msra.mxu0 %v3635
        %3686 = vmatprep.subr.bf16.mxu0 0
        %3687 = vmatpush1.bf16.msra.mxu0 %v3636
        %3688 = vmatprep.subr.bf16.mxu0 0
        %3689 = vmatpush1.bf16.msra.mxu0 %v3637
        %3690 = vmatprep.subr.bf16.mxu0 0
        %3691 = vmatpush1.bf16.msra.mxu0 %v3638
        %3692 = vmatprep.subr.bf16.mxu0 0
        %3693 = vmatpush1.bf16.msra.mxu0 %v3639
        %3694 = vmatprep.subr.bf16.mxu0 0
        %3695 = vmatpush1.bf16.msra.mxu0 %v3640
        %3696 = vmatprep.subr.bf16.mxu0 0
        %3697 = vmatpush1.bf16.msra.mxu0 %v3641
        %3698 = vmatprep.subr.bf16.mxu0 0
        %3699 = vmatpush1.bf16.msra.mxu0 %v3642
        %3700 = vmatprep.subr.bf16.mxu0 0
        %3701 = vmatpush1.bf16.msra.mxu0 %v3643
        %3702 = vmatprep.subr.bf16.mxu0 0
        %3703 = vmatpush1.bf16.msra.mxu0 %v3644
        %3704 = vmatprep.subr.bf16.mxu0 0
        %3705 = vmatpush1.bf16.msra.mxu0 %v3645
        %3706 = vmatprep.subr.bf16.mxu0 0
        %3707 = vmatpush1.bf16.msra.mxu0 %v3646
        %3708 = vmatprep.subr.bf16.mxu0 0
        %3709 = vmatpush1.bf16.msra.mxu0 %v3647
        %3710 = vmatprep.subr.bf16.mxu0 0
        %3711 = vmatpush1.bf16.msra.mxu0 %v3648
        %3712 = vmatprep.subr.bf16.mxu0 0
        %3713 = vmatpush1.bf16.msra.mxu0 %v3649
        %3714 = vmatprep.mubr.bf16.mxu0 %v3421
        %3715 = vmatmul.mubr.bf16.gmra.mrb[0].mxu0 %v3390
        %v3716 = vpop.f32.mrb[0].mxu0
        %v3717 = vadd.f32 0.0, %v3716
        %v3718 = vpop.f32.mrb[0].mxu0
        %v3719 = vpop.f32.mrb[0].mxu0
        %v3720 = vadd.f32 0.0, %v3719
        %v3721 = vpop.f32.mrb[0].mxu0
        %3722 = vmatprep.mubr.bf16.mxu0 %v3433
        %3723 = vmatmul.mubr.bf16.gmra.mrb[0].mxu0 %v3391
        %v3724 = vpop.f32.mrb[0].mxu0
        %v3725 = vadd.f32 0.0, %v3724
        %v3726 = vpop.f32.mrb[0].mxu0
        %v3727 = vpop.f32.mrb[0].mxu0
        %v3728 = vadd.f32 0.0, %v3727
        %v3729 = vpop.f32.mrb[0].mxu0
        %3730 = vmatprep.mubr.bf16.mxu0 %v3445
        %3731 = vmatmul.mubr.bf16.gmra.mrb[0].mxu0 %v3392
        %v3732 = vpop.f32.mrb[0].mxu0
        %v3733 = vadd.f32 0.0, %v3732
        %v3734 = vpop.f32.mrb[0].mxu0
        %v3735 = vpop.f32.mrb[0].mxu0
        %v3736 = vadd.f32 0.0, %v3735
        %v3737 = vpop.f32.mrb[0].mxu0
        %3738 = vmatprep.mubr.bf16.mxu0 %v3457
        %3739 = vmatmul.mubr.bf16.gmra.mrb[0].mxu0 %v3393
        %v3740 = vpop.f32.mrb[0].mxu0
        %v3741 = vadd.f32 0.0, %v3740
        %v3742 = vpop.f32.mrb[0].mxu0
        %v3743 = vpop.f32.mrb[0].mxu0
        %v3744 = vadd.f32 0.0, %v3743
        %v3745 = vpop.f32.mrb[0].mxu0
        %3746 = vdwg.mxu0
        %3747 = vmatprep.subr.bf16.mxu0 0
        %3748 = vmatpush1.bf16.msra.mxu0 %v3650
        %3749 = vmatprep.subr.bf16.mxu0 0
        %3750 = vmatpush1.bf16.msra.mxu0 %v3651
        %3751 = vmatprep.subr.bf16.mxu0 0
        %3752 = vmatpush1.bf16.msra.mxu0 %v3652
        %3753 = vmatprep.subr.bf16.mxu0 0
        %3754 = vmatpush1.bf16.msra.mxu0 %v3653
        %3755 = vmatprep.subr.bf16.mxu0 0
        %3756 = vmatpush1.bf16.msra.mxu0 %v3654
        %3757 = vmatprep.subr.bf16.mxu0 0
        %3758 = vmatpush1.bf16.msra.mxu0 %v3655
        %3759 = vmatprep.subr.bf16.mxu0 0
        %3760 = vmatpush1.bf16.msra.mxu0 %v3656
        %3761 = vmatprep.subr.bf16.mxu0 0
        %3762 = vmatpush1.bf16.msra.mxu0 %v3657
        %3763 = vmatprep.subr.bf16.mxu0 0
        %3764 = vmatpush1.bf16.msra.mxu0 0
        %3765 = vmatprep.subr.bf16.mxu0 0
        %3766 = vmatpush1.bf16.msra.mxu0 0
        %3767 = vmatprep.subr.bf16.mxu0 0
        %3768 = vmatpush1.bf16.msra.mxu0 0
        %3769 = vmatprep.subr.bf16.mxu0 0
        %3770 = vmatpush1.bf16.msra.mxu0 0
        %3771 = vmatprep.subr.bf16.mxu0 0
        %3772 = vmatpush1.bf16.msra.mxu0 0
        %3773 = vmatprep.subr.bf16.mxu0 0
        %3774 = vmatpush1.bf16.msra.mxu0 0
        %3775 = vmatprep.subr.bf16.mxu0 0
        %3776 = vmatpush1.bf16.msra.mxu0 0
        %3777 = vmatprep.subr.bf16.mxu0 0
        %3778 = vmatpush1.bf16.msra.mxu0 0
        %3779 = vmatprep.mubr.bf16.mxu0 0
        %3780 = vmatmul.mubr.bf16.gmra.mrb[0].mxu0 %v3476
        %v3781 = vpop.f32.mrb[0].mxu0
        %v3782 = vadd.f32 %v3717, %v3781
        %v3783 = vpop.f32.mrb[0].mxu0
        %v3784 = vpop.f32.mrb[0].mxu0
        %v3785 = vadd.f32 %v3720, %v3784
        %v3786 = vpop.f32.mrb[0].mxu0
        %3787 = vmatprep.mubr.bf16.mxu0 0
        %3788 = vmatmul.mubr.bf16.gmra.mrb[0].mxu0 %v3479
        %v3789 = vpop.f32.mrb[0].mxu0
        %v3790 = vadd.f32 %v3725, %v3789
        %v3791 = vpop.f32.mrb[0].mxu0
        %v3792 = vpop.f32.mrb[0].mxu0
        %v3793 = vadd.f32 %v3728, %v3792
        %v3794 = vpop.f32.mrb[0].mxu0
        %3795 = vmatprep.mubr.bf16.mxu0 0
        %3796 = vmatmul.mubr.bf16.gmra.mrb[0].mxu0 %v3482
        %v3797 = vpop.f32.mrb[0].mxu0
        %v3798 = vadd.f32 %v3733, %v3797
        %v3799 = vpop.f32.mrb[0].mxu0
        %v3800 = vpop.f32.mrb[0].mxu0
        %v3801 = vadd.f32 %v3736, %v3800
        %v3802 = vpop.f32.mrb[0].mxu0
        %3803 = vmatprep.mubr.bf16.mxu0 0
        %3804 = vmatmul.mubr.bf16.gmra.mrb[0].mxu0 %v3485
        %v3805 = vpop.f32.mrb[0].mxu0
        %v3806 = vadd.f32 %v3741, %v3805
        %v3807 = vpop.f32.mrb[0].mxu0
        %v3808 = vpop.f32.mrb[0].mxu0
        %v3809 = vadd.f32 %v3744, %v3808
        %v3810 = vpop.f32.mrb[0].mxu0
        %3811 = vdwg.mxu0
        %v3860 = vunpack.c.l.b16 %v3309
        %v3861 = vunpack.c.l.b16 %v3310
        %v3862 = vunpack.c.l.b16 %v3311
        %v3863 = vunpack.c.l.b16 %v3312
        %v3864 = vunpack.c.l.b16 %v3313
        %v3865 = vunpack.c.l.b16 %v3314
        %v3866 = vunpack.c.l.b16 %v3315
        %v3867 = vunpack.c.l.b16 %v3316
        %v3868 = vunpack.c.l.b16 %v3317
        %v3869 = vunpack.c.l.b16 %v3318
        %v3870 = vunpack.c.l.b16 %v3319
        %v3871 = vunpack.c.l.b16 %v3320
        %v3872 = vunpack.c.l.b16 %v3321
        %v3873 = vunpack.c.l.b16 %v3322
        %v3874 = vunpack.c.l.b16 %v3323
        %v3875 = vunpack.c.l.b16 %v3324
        %v3876 = vunpack.c.l.b16 %v3325
        %v3877 = vunpack.c.l.b16 %v3326
        %v3878 = vunpack.c.l.b16 %v3327
        %v3879 = vunpack.c.l.b16 %v3328
        %v3880 = vunpack.c.l.b16 %v3329
        %v3881 = vunpack.c.l.b16 %v3330
        %v3882 = vunpack.c.l.b16 %v3331
        %v3883 = vunpack.c.l.b16 %v3332
        %v3884 = vunpack.c.l.b16 %v3333
        %v3885 = vunpack.c.l.b16 %v3334
        %v3886 = vunpack.c.l.b16 %v3335
        %v3887 = vunpack.c.l.b16 %v3336
        %v3888 = vunpack.c.l.b16 %v3337
        %v3889 = vunpack.c.l.b16 %v3338
        %v3890 = vunpack.c.l.b16 %v3339
        %v3891 = vunpack.c.l.b16 %v3340
        %v3892 = vunpack.c.l.b16 %v3341
        %v3893 = vunpack.c.l.b16 %v3342
        %v3894 = vunpack.c.l.b16 %v3343
        %v3895 = vunpack.c.l.b16 %v3344
        %v3896 = vunpack.c.l.b16 %v3345
        %v3897 = vunpack.c.l.b16 %v3346
        %v3898 = vunpack.c.l.b16 %v3347
        %v3899 = vunpack.c.l.b16 %v3348
        %v3900 = vunpack.c.l.b16 %v3349
        %v3901 = vunpack.c.l.b16 %v3350
        %v3902 = vunpack.c.l.b16 %v3351
        %v3903 = vunpack.c.l.b16 %v3352
        %v3904 = vunpack.c.l.b16 %v3353
        %v3905 = vunpack.c.l.b16 %v3354
        %v3906 = vunpack.c.l.b16 %v3355
        %v3907 = vunpack.c.l.b16 %v3356
        %v3908 = vpack.c.b16 %v3861, %v3860
        %v3909 = vpack.c.b16 %v3863, %v3862
        %v3910 = vpack.c.b16 %v3865, %v3864
        %v3911 = vpack.c.b16 %v3867, %v3866
        %v3912 = vpack.c.b16 %v3869, %v3868
        %v3913 = vpack.c.b16 %v3871, %v3870
        %v3914 = vpack.c.b16 %v3873, %v3872
        %v3915 = vpack.c.b16 %v3875, %v3874
        %v3916 = vpack.c.b16 %v3877, %v3876
        %v3917 = vpack.c.b16 %v3879, %v3878
        %v3918 = vpack.c.b16 %v3881, %v3880
        %v3919 = vpack.c.b16 %v3883, %v3882
        %v3920 = vpack.c.b16 %v3885, %v3884
        %v3921 = vpack.c.b16 %v3887, %v3886
        %v3922 = vpack.c.b16 %v3889, %v3888
        %v3923 = vpack.c.b16 %v3891, %v3890
        %v3924 = vpack.c.b16 %v3893, %v3892
        %v3925 = vpack.c.b16 %v3895, %v3894
        %v3926 = vpack.c.b16 %v3897, %v3896
        %v3927 = vpack.c.b16 %v3899, %v3898
        %v3928 = vpack.c.b16 %v3901, %v3900
        %v3929 = vpack.c.b16 %v3903, %v3902
        %v3930 = vpack.c.b16 %v3905, %v3904
        %v3931 = vpack.c.b16 %v3907, %v3906
        %3956 = vmatprep.subr.bf16.mxu0 0
        %3957 = vmatpush1.bf16.msra.mxu0 %v3908
        %3958 = vmatprep.subr.bf16.mxu0 0
        %3959 = vmatpush1.bf16.msra.mxu0 %v3909
        %3960 = vmatprep.subr.bf16.mxu0 0
        %3961 = vmatpush1.bf16.msra.mxu0 %v3910
        %3962 = vmatprep.subr.bf16.mxu0 0
        %3963 = vmatpush1.bf16.msra.mxu0 %v3911
        %3964 = vmatprep.subr.bf16.mxu0 0
        %3965 = vmatpush1.bf16.msra.mxu0 %v3912
        %3966 = vmatprep.subr.bf16.mxu0 0
        %3967 = vmatpush1.bf16.msra.mxu0 %v3913
        %3968 = vmatprep.subr.bf16.mxu0 0
        %3969 = vmatpush1.bf16.msra.mxu0 %v3914
        %3970 = vmatprep.subr.bf16.mxu0 0
        %3971 = vmatpush1.bf16.msra.mxu0 %v3915
        %3972 = vmatprep.subr.bf16.mxu0 0
        %3973 = vmatpush1.bf16.msra.mxu0 %v3916
        %3974 = vmatprep.subr.bf16.mxu0 0
        %3975 = vmatpush1.bf16.msra.mxu0 %v3917
        %3976 = vmatprep.subr.bf16.mxu0 0
        %3977 = vmatpush1.bf16.msra.mxu0 %v3918
        %3978 = vmatprep.subr.bf16.mxu0 0
        %3979 = vmatpush1.bf16.msra.mxu0 %v3919
        %3980 = vmatprep.subr.bf16.mxu0 0
        %3981 = vmatpush1.bf16.msra.mxu0 %v3920
        %3982 = vmatprep.subr.bf16.mxu0 0
        %3983 = vmatpush1.bf16.msra.mxu0 %v3921
        %3984 = vmatprep.subr.bf16.mxu0 0
        %3985 = vmatpush1.bf16.msra.mxu0 %v3922
        %3986 = vmatprep.subr.bf16.mxu0 0
        %3987 = vmatpush1.bf16.msra.mxu0 %v3923
        %3988 = vmatprep.mubr.bf16.mxu0 %v3240
        %3989 = vmatmul.mubr.bf16.gmra.mrb[0].mxu0 %v3209
        %v3990 = vpop.f32.mrb[0].mxu0
        %v3991 = vadd.f32 %v3782, %v3990
        %v3992 = vpop.f32.mrb[0].mxu0
        %v3993 = vpop.f32.mrb[0].mxu0
        %v3994 = vadd.f32 %v3785, %v3993
        %v3995 = vpop.f32.mrb[0].mxu0
        %3996 = vmatprep.mubr.bf16.mxu0 %v3252
        %3997 = vmatmul.mubr.bf16.gmra.mrb[0].mxu0 %v3210
        %v3998 = vpop.f32.mrb[0].mxu0
        %v3999 = vadd.f32 %v3790, %v3998
        %v4000 = vpop.f32.mrb[0].mxu0
        %v4001 = vpop.f32.mrb[0].mxu0
        %v4002 = vadd.f32 %v3793, %v4001
        %v4003 = vpop.f32.mrb[0].mxu0
        %4004 = vmatprep.mubr.bf16.mxu0 %v3264
        %4005 = vmatmul.mubr.bf16.gmra.mrb[0].mxu0 %v3211
        %v4006 = vpop.f32.mrb[0].mxu0
        %v4007 = vadd.f32 %v3798, %v4006
        %v4008 = vpop.f32.mrb[0].mxu0
        %v4009 = vpop.f32.mrb[0].mxu0
        %v4010 = vadd.f32 %v3801, %v4009
        %v4011 = vpop.f32.mrb[0].mxu0
        %4012 = vmatprep.mubr.bf16.mxu0 %v3276
        %4013 = vmatmul.mubr.bf16.gmra.mrb[0].mxu0 %v3212
        %v4014 = vpop.f32.mrb[0].mxu0
        %v4015 = vadd.f32 %v3806, %v4014
        %v4016 = vpop.f32.mrb[0].mxu0
        %v4017 = vpop.f32.mrb[0].mxu0
        %v4018 = vadd.f32 %v3809, %v4017
        %v4019 = vpop.f32.mrb[0].mxu0
        %4020 = vdwg.mxu0
        %4021 = vmatprep.subr.bf16.mxu0 0
        %4022 = vmatpush1.bf16.msra.mxu0 %v3924
        %4023 = vmatprep.subr.bf16.mxu0 0
        %4024 = vmatpush1.bf16.msra.mxu0 %v3925
        %4025 = vmatprep.subr.bf16.mxu0 0
        %4026 = vmatpush1.bf16.msra.mxu0 %v3926
        %4027 = vmatprep.subr.bf16.mxu0 0
        %4028 = vmatpush1.bf16.msra.mxu0 %v3927
        %4029 = vmatprep.subr.bf16.mxu0 0
        %4030 = vmatpush1.bf16.msra.mxu0 %v3928
        %4031 = vmatprep.subr.bf16.mxu0 0
        %4032 = vmatpush1.bf16.msra.mxu0 %v3929
        %4033 = vmatprep.subr.bf16.mxu0 0
        %4034 = vmatpush1.bf16.msra.mxu0 %v3930
        %4035 = vmatprep.subr.bf16.mxu0 0
        %4036 = vmatpush1.bf16.msra.mxu0 %v3931
        %4037 = vmatprep.subr.bf16.mxu0 0
        %4038 = vmatpush1.bf16.msra.mxu0 0
        %4039 = vmatprep.subr.bf16.mxu0 0
        %4040 = vmatpush1.bf16.msra.mxu0 0
        %4041 = vmatprep.subr.bf16.mxu0 0
        %4042 = vmatpush1.bf16.msra.mxu0 0
        %4043 = vmatprep.subr.bf16.mxu0 0
        %4044 = vmatpush1.bf16.msra.mxu0 0
        %4045 = vmatprep.subr.bf16.mxu0 0
        %4046 = vmatpush1.bf16.msra.mxu0 0
        %4047 = vmatprep.subr.bf16.mxu0 0
        %4048 = vmatpush1.bf16.msra.mxu0 0
        %4049 = vmatprep.subr.bf16.mxu0 0
        %4050 = vmatpush1.bf16.msra.mxu0 0
        %4051 = vmatprep.subr.bf16.mxu0 0
        %4052 = vmatpush1.bf16.msra.mxu0 0
        %4053 = vmatprep.mubr.bf16.mxu0 0
        %4054 = vmatmul.mubr.bf16.gmra.mrb[0].mxu0 %v3295
        %v4055 = vpop.f32.mrb[0].mxu0
        %v4056 = vadd.f32 %v3991, %v4055
        %v4057 = vpop.f32.mrb[0].mxu0
        %v4058 = vpop.f32.mrb[0].mxu0
        %v4059 = vadd.f32 %v3994, %v4058
        %v4060 = vpop.f32.mrb[0].mxu0
        %4061 = vmatprep.mubr.bf16.mxu0 0
        %4062 = vmatmul.mubr.bf16.gmra.mrb[0].mxu0 %v3298
        %v4063 = vpop.f32.mrb[0].mxu0
        %v4064 = vadd.f32 %v3999, %v4063
        %v4065 = vpop.f32.mrb[0].mxu0
        %v4066 = vpop.f32.mrb[0].mxu0
        %v4067 = vadd.f32 %v4002, %v4066
        %v4068 = vpop.f32.mrb[0].mxu0
        %4069 = vmatprep.mubr.bf16.mxu0 0
        %4070 = vmatmul.mubr.bf16.gmra.mrb[0].mxu0 %v3301
        %v4071 = vpop.f32.mrb[0].mxu0
        %v4072 = vadd.f32 %v4007, %v4071
        %v4073 = vpop.f32.mrb[0].mxu0
        %v4074 = vpop.f32.mrb[0].mxu0
        %v4075 = vadd.f32 %v4010, %v4074
        %v4076 = vpop.f32.mrb[0].mxu0
        %4077 = vmatprep.mubr.bf16.mxu0 0
        %4078 = vmatmul.mubr.bf16.gmra.mrb[0].mxu0 %v3304
        %v4079 = vpop.f32.mrb[0].mxu0
        %v4080 = vadd.f32 %v4015, %v4079
        %v4081 = vpop.f32.mrb[0].mxu0
        %v4082 = vpop.f32.mrb[0].mxu0
        %v4083 = vadd.f32 %v4018, %v4082
        %v4084 = vpop.f32.mrb[0].mxu0
        %4085 = vdwg.mxu0
        %s4086 = scalar_lea.vmem %s237, 120
        %v4087 = vld [vmem:[%s4086] sm:$0xf]
        %v4088 = vld [vmem:[%s4086 + $0x4] sm:$0xf]
        %v4089 = vld [vmem:[%s4086 + $0xc] sm:$0xf]
        %v4090 = vld [vmem:[%s4086 + $0x10] sm:$0xf]
        %v4091 = vld [vmem:[%s4086 + $0x18] sm:$0xf]
        %v4092 = vld [vmem:[%s4086 + $0x1c] sm:$0xf]
        %v4093 = vld [vmem:[%s4086 + $0x24] sm:$0xf]
        %v4094 = vld [vmem:[%s4086 + $0x28] sm:$0xf]
        %v4095 = vld [vmem:[%s4086 + $0x8] sm:$0x1]
        %v4096 = vld [vmem:[%s4086 + $0x14] sm:$0x1]
        %v4097 = vld [vmem:[%s4086 + $0x20] sm:$0x1]
        %v4098 = vld [vmem:[%s4086 + $0x2c] sm:$0x1]
        %v4099 = vld [vmem:[%s4086] sm:$0xe]
        %v4100 = vld [vmem:[%s4086 + $0xc] sm:$0xe]
        %v4101 = vld [vmem:[%s4086 + $0x18] sm:$0xe]
        %v4102 = vld [vmem:[%s4086 + $0x24] sm:$0xe]
        %v4111 = vunpack.c.l.b16 %v4087
        %v4112 = vunpack.c.l.b16 %v4088
        %v4113 = vunpack.c.l.b16 %v4089
        %v4114 = vunpack.c.l.b16 %v4090
        %v4115 = vunpack.c.l.b16 %v4091
        %v4116 = vunpack.c.l.b16 %v4092
        %v4117 = vunpack.c.l.b16 %v4093
        %v4118 = vunpack.c.l.b16 %v4094
        %v4119 = vpack.c.b16 %v4112, %v4111
        %v4120 = vpack.c.b16 %v4114, %v4113
        %v4121 = vpack.c.b16 %v4116, %v4115
        %v4122 = vpack.c.b16 %v4118, %v4117
        %v4131 = vunpack.c.l.b16 %v4095
        %v4132 = vunpack.c.l.b16 %v4096
        %v4133 = vunpack.c.l.b16 %v4097
        %v4134 = vunpack.c.l.b16 %v4098
        %v4135 = vpack.c.b16 %v4131, %v4131
        %v4136 = vpack.c.b16 %v4132, %v4132
        %v4137 = vpack.c.b16 %v4133, %v4133
        %v4138 = vpack.c.b16 %v4134, %v4134
        %v4140 = vshrl.u32 %v4119, 16
        %v4142 = vshll.u32 %v4119, 16
        %v4144 = vrot.slane %v4142, 1
        %v4145 = vor.u32 %v4140, %v4144
        %v4147 = vshll.u32 %v4135, 16
        %v4149 = vrot.slane %v4147, 1
        %v4150 = vsel %vm407, %v4145, %v4149
        %v4152 = vshrl.u32 %v4120, 16
        %v4154 = vshll.u32 %v4120, 16
        %v4156 = vrot.slane %v4154, 1
        %v4157 = vor.u32 %v4152, %v4156
        %v4159 = vshll.u32 %v4136, 16
        %v4161 = vrot.slane %v4159, 1
        %v4162 = vsel %vm407, %v4157, %v4161
        %v4164 = vshrl.u32 %v4121, 16
        %v4166 = vshll.u32 %v4121, 16
        %v4168 = vrot.slane %v4166, 1
        %v4169 = vor.u32 %v4164, %v4168
        %v4171 = vshll.u32 %v4137, 16
        %v4173 = vrot.slane %v4171, 1
        %v4174 = vsel %vm407, %v4169, %v4173
        %v4176 = vshrl.u32 %v4122, 16
        %v4178 = vshll.u32 %v4122, 16
        %v4180 = vrot.slane %v4178, 1
        %v4181 = vor.u32 %v4176, %v4180
        %v4183 = vshll.u32 %v4138, 16
        %v4185 = vrot.slane %v4183, 1
        %v4186 = vsel %vm407, %v4181, %v4185
        %v4195 = vunpack.c.l.b16 %v4099
        %v4196 = vunpack.c.l.b16 %v4100
        %v4197 = vunpack.c.l.b16 %v4101
        %v4198 = vunpack.c.l.b16 %v4102
        %v4199 = vpack.c.b16 %v4112, %v4195
        %v4200 = vpack.c.b16 %v4114, %v4196
        %v4201 = vpack.c.b16 %v4116, %v4197
        %v4202 = vpack.c.b16 %v4118, %v4198
        %v4203 = vrot.slane %v4199, 1
        %v4204 = vrot.slane %v4135, 1
        %v4205 = vsel %vm472, %v4203, %v4204
        %v4206 = vrot.slane %v4200, 1
        %v4207 = vrot.slane %v4136, 1
        %v4208 = vsel %vm472, %v4206, %v4207
        %v4209 = vrot.slane %v4201, 1
        %v4210 = vrot.slane %v4137, 1
        %v4211 = vsel %vm472, %v4209, %v4210
        %v4212 = vrot.slane %v4202, 1
        %v4213 = vrot.slane %v4138, 1
        %v4214 = vsel %vm472, %v4212, %v4213
        %v4219 = vld [vmem:[%s1400] sm:$0xf]
        %v4220 = vld [vmem:[%s1400 + $0x4] sm:$0xf]
        %v4221 = vld [vmem:[%s1400 + $0x8] sm:$0xf]
        %v4222 = vld [vmem:[%s1400 + $0xc] sm:$0xf]
        %v4223 = vld [vmem:[%s1400 + $0x10] sm:$0xf]
        %v4224 = vld [vmem:[%s1400 + $0x14] sm:$0xf]
        %v4225 = vld [vmem:[%s1400 + $0x18] sm:$0xf]
        %v4226 = vld [vmem:[%s1400 + $0x1c] sm:$0xf]
        %v4227 = vld [vmem:[%s1400 + $0x20] sm:$0xf]
        %v4228 = vld [vmem:[%s1400 + $0x24] sm:$0xf]
        %v4229 = vld [vmem:[%s1400 + $0x28] sm:$0xf]
        %v4230 = vld [vmem:[%s1400 + $0x2c] sm:$0xf]
        %v4231 = vld [vmem:[%s1400 + $0x30] sm:$0xf]
        %v4232 = vld [vmem:[%s1400 + $0x34] sm:$0xf]
        %v4233 = vld [vmem:[%s1400 + $0x38] sm:$0xf]
        %v4234 = vld [vmem:[%s1400 + $0x3c] sm:$0xf]
        %v4235 = vld [vmem:[%s1400 + $0x40] sm:$0xf]
        %v4236 = vld [vmem:[%s1400 + $0x44] sm:$0xf]
        %v4237 = vld [vmem:[%s1400 + $0x48] sm:$0xf]
        %v4238 = vld [vmem:[%s1400 + $0x4c] sm:$0xf]
        %v4239 = vld [vmem:[%s1400 + $0x50] sm:$0xf]
        %v4240 = vld [vmem:[%s1400 + $0x54] sm:$0xf]
        %v4241 = vld [vmem:[%s1400 + $0x58] sm:$0xf]
        %v4242 = vld [vmem:[%s1400 + $0x5c] sm:$0xf]
        %v4243 = vld [vmem:[%s1400 + $0x60] sm:$0xf]
        %v4244 = vld [vmem:[%s1400 + $0x64] sm:$0xf]
        %v4245 = vld [vmem:[%s1400 + $0x68] sm:$0xf]
        %v4246 = vld [vmem:[%s1400 + $0x6c] sm:$0xf]
        %v4247 = vld [vmem:[%s1400 + $0x70] sm:$0xf]
        %v4248 = vld [vmem:[%s1400 + $0x74] sm:$0xf]
        %v4249 = vld [vmem:[%s1400 + $0x78] sm:$0xf]
        %v4250 = vld [vmem:[%s1400 + $0x7c] sm:$0xf]
        %v4251 = vld [vmem:[%s1400 + $0x80] sm:$0xf]
        %v4252 = vld [vmem:[%s1400 + $0x84] sm:$0xf]
        %v4253 = vld [vmem:[%s1400 + $0x88] sm:$0xf]
        %v4254 = vld [vmem:[%s1400 + $0x8c] sm:$0xf]
        %v4255 = vld [vmem:[%s1400 + $0x90] sm:$0xf]
        %v4256 = vld [vmem:[%s1400 + $0x94] sm:$0xf]
        %v4257 = vld [vmem:[%s1400 + $0x98] sm:$0xf]
        %v4258 = vld [vmem:[%s1400 + $0x9c] sm:$0xf]
        %v4259 = vld [vmem:[%s1400 + $0xa0] sm:$0xf]
        %v4260 = vld [vmem:[%s1400 + $0xa4] sm:$0xf]
        %v4261 = vld [vmem:[%s1400 + $0xa8] sm:$0xf]
        %v4262 = vld [vmem:[%s1400 + $0xac] sm:$0xf]
        %v4263 = vld [vmem:[%s1400 + $0xb0] sm:$0xf]
        %v4264 = vld [vmem:[%s1400 + $0xb4] sm:$0xf]
        %v4265 = vld [vmem:[%s1400 + $0xb8] sm:$0xf]
        %v4266 = vld [vmem:[%s1400 + $0xbc] sm:$0xf]
        %v4315 = vunpack.c.l.b16 %v4219
        %v4316 = vunpack.c.l.b16 %v4220
        %v4317 = vunpack.c.l.b16 %v4221
        %v4318 = vunpack.c.l.b16 %v4222
        %v4319 = vunpack.c.l.b16 %v4223
        %v4320 = vunpack.c.l.b16 %v4224
        %v4321 = vunpack.c.l.b16 %v4225
        %v4322 = vunpack.c.l.b16 %v4226
        %v4323 = vunpack.c.l.b16 %v4227
        %v4324 = vunpack.c.l.b16 %v4228
        %v4325 = vunpack.c.l.b16 %v4229
        %v4326 = vunpack.c.l.b16 %v4230
        %v4327 = vunpack.c.l.b16 %v4231
        %v4328 = vunpack.c.l.b16 %v4232
        %v4329 = vunpack.c.l.b16 %v4233
        %v4330 = vunpack.c.l.b16 %v4234
        %v4331 = vunpack.c.l.b16 %v4235
        %v4332 = vunpack.c.l.b16 %v4236
        %v4333 = vunpack.c.l.b16 %v4237
        %v4334 = vunpack.c.l.b16 %v4238
        %v4335 = vunpack.c.l.b16 %v4239
        %v4336 = vunpack.c.l.b16 %v4240
        %v4337 = vunpack.c.l.b16 %v4241
        %v4338 = vunpack.c.l.b16 %v4242
        %v4339 = vunpack.c.l.b16 %v4243
        %v4340 = vunpack.c.l.b16 %v4244
        %v4341 = vunpack.c.l.b16 %v4245
        %v4342 = vunpack.c.l.b16 %v4246
        %v4343 = vunpack.c.l.b16 %v4247
        %v4344 = vunpack.c.l.b16 %v4248
        %v4345 = vunpack.c.l.b16 %v4249
        %v4346 = vunpack.c.l.b16 %v4250
        %v4347 = vunpack.c.l.b16 %v4251
        %v4348 = vunpack.c.l.b16 %v4252
        %v4349 = vunpack.c.l.b16 %v4253
        %v4350 = vunpack.c.l.b16 %v4254
        %v4351 = vunpack.c.l.b16 %v4255
        %v4352 = vunpack.c.l.b16 %v4256
        %v4353 = vunpack.c.l.b16 %v4257
        %v4354 = vunpack.c.l.b16 %v4258
        %v4355 = vunpack.c.l.b16 %v4259
        %v4356 = vunpack.c.l.b16 %v4260
        %v4357 = vunpack.c.l.b16 %v4261
        %v4358 = vunpack.c.l.b16 %v4262
        %v4359 = vunpack.c.l.b16 %v4263
        %v4360 = vunpack.c.l.b16 %v4264
        %v4361 = vunpack.c.l.b16 %v4265
        %v4362 = vunpack.c.l.b16 %v4266
        %v4363 = vpack.c.b16 %v4316, %v4315
        %v4364 = vpack.c.b16 %v4318, %v4317
        %v4365 = vpack.c.b16 %v4320, %v4319
        %v4366 = vpack.c.b16 %v4322, %v4321
        %v4367 = vpack.c.b16 %v4324, %v4323
        %v4368 = vpack.c.b16 %v4326, %v4325
        %v4369 = vpack.c.b16 %v4328, %v4327
        %v4370 = vpack.c.b16 %v4330, %v4329
        %v4371 = vpack.c.b16 %v4332, %v4331
        %v4372 = vpack.c.b16 %v4334, %v4333
        %v4373 = vpack.c.b16 %v4336, %v4335
        %v4374 = vpack.c.b16 %v4338, %v4337
        %v4375 = vpack.c.b16 %v4340, %v4339
        %v4376 = vpack.c.b16 %v4342, %v4341
        %v4377 = vpack.c.b16 %v4344, %v4343
        %v4378 = vpack.c.b16 %v4346, %v4345
        %v4379 = vpack.c.b16 %v4348, %v4347
        %v4380 = vpack.c.b16 %v4350, %v4349
        %v4381 = vpack.c.b16 %v4352, %v4351
        %v4382 = vpack.c.b16 %v4354, %v4353
        %v4383 = vpack.c.b16 %v4356, %v4355
        %v4384 = vpack.c.b16 %v4358, %v4357
        %v4385 = vpack.c.b16 %v4360, %v4359
        %v4386 = vpack.c.b16 %v4362, %v4361
        %4411 = vmatprep.subr.bf16.mxu0 0
        %4412 = vmatpush1.bf16.msra.mxu0 %v4363
        %4413 = vmatprep.subr.bf16.mxu0 0
        %4414 = vmatpush1.bf16.msra.mxu0 %v4364
        %4415 = vmatprep.subr.bf16.mxu0 0
        %4416 = vmatpush1.bf16.msra.mxu0 %v4365
        %4417 = vmatprep.subr.bf16.mxu0 0
        %4418 = vmatpush1.bf16.msra.mxu0 %v4366
        %4419 = vmatprep.subr.bf16.mxu0 0
        %4420 = vmatpush1.bf16.msra.mxu0 %v4367
        %4421 = vmatprep.subr.bf16.mxu0 0
        %4422 = vmatpush1.bf16.msra.mxu0 %v4368
        %4423 = vmatprep.subr.bf16.mxu0 0
        %4424 = vmatpush1.bf16.msra.mxu0 %v4369
        %4425 = vmatprep.subr.bf16.mxu0 0
        %4426 = vmatpush1.bf16.msra.mxu0 %v4370
        %4427 = vmatprep.subr.bf16.mxu0 0
        %4428 = vmatpush1.bf16.msra.mxu0 %v4371
        %4429 = vmatprep.subr.bf16.mxu0 0
        %4430 = vmatpush1.bf16.msra.mxu0 %v4372
        %4431 = vmatprep.subr.bf16.mxu0 0
        %4432 = vmatpush1.bf16.msra.mxu0 %v4373
        %4433 = vmatprep.subr.bf16.mxu0 0
        %4434 = vmatpush1.bf16.msra.mxu0 %v4374
        %4435 = vmatprep.subr.bf16.mxu0 0
        %4436 = vmatpush1.bf16.msra.mxu0 %v4375
        %4437 = vmatprep.subr.bf16.mxu0 0
        %4438 = vmatpush1.bf16.msra.mxu0 %v4376
        %4439 = vmatprep.subr.bf16.mxu0 0
        %4440 = vmatpush1.bf16.msra.mxu0 %v4377
        %4441 = vmatprep.subr.bf16.mxu0 0
        %4442 = vmatpush1.bf16.msra.mxu0 %v4378
        %4443 = vmatprep.mubr.bf16.mxu0 %v4150
        %4444 = vmatmul.mubr.bf16.gmra.mrb[0].mxu0 %v4119
        %v4445 = vpop.f32.mrb[0].mxu0
        %v4446 = vadd.f32 0.0, %v4445
        %v4447 = vpop.f32.mrb[0].mxu0
        %v4448 = vpop.f32.mrb[0].mxu0
        %v4449 = vadd.f32 0.0, %v4448
        %v4450 = vpop.f32.mrb[0].mxu0
        %4451 = vmatprep.mubr.bf16.mxu0 %v4162
        %4452 = vmatmul.mubr.bf16.gmra.mrb[0].mxu0 %v4120
        %v4453 = vpop.f32.mrb[0].mxu0
        %v4454 = vadd.f32 0.0, %v4453
        %v4455 = vpop.f32.mrb[0].mxu0
        %v4456 = vpop.f32.mrb[0].mxu0
        %v4457 = vadd.f32 0.0, %v4456
        %v4458 = vpop.f32.mrb[0].mxu0
        %4459 = vmatprep.mubr.bf16.mxu0 %v4174
        %4460 = vmatmul.mubr.bf16.gmra.mrb[0].mxu0 %v4121
        %v4461 = vpop.f32.mrb[0].mxu0
        %v4462 = vadd.f32 0.0, %v4461
        %v4463 = vpop.f32.mrb[0].mxu0
        %v4464 = vpop.f32.mrb[0].mxu0
        %v4465 = vadd.f32 0.0, %v4464
        %v4466 = vpop.f32.mrb[0].mxu0
        %4467 = vmatprep.mubr.bf16.mxu0 %v4186
        %4468 = vmatmul.mubr.bf16.gmra.mrb[0].mxu0 %v4122
        %v4469 = vpop.f32.mrb[0].mxu0
        %v4470 = vadd.f32 0.0, %v4469
        %v4471 = vpop.f32.mrb[0].mxu0
        %v4472 = vpop.f32.mrb[0].mxu0
        %v4473 = vadd.f32 0.0, %v4472
        %v4474 = vpop.f32.mrb[0].mxu0
        %4475 = vdwg.mxu0
        %4476 = vmatprep.subr.bf16.mxu0 0
        %4477 = vmatpush1.bf16.msra.mxu0 %v4379
        %4478 = vmatprep.subr.bf16.mxu0 0
        %4479 = vmatpush1.bf16.msra.mxu0 %v4380
        %4480 = vmatprep.subr.bf16.mxu0 0
        %4481 = vmatpush1.bf16.msra.mxu0 %v4381
        %4482 = vmatprep.subr.bf16.mxu0 0
        %4483 = vmatpush1.bf16.msra.mxu0 %v4382
        %4484 = vmatprep.subr.bf16.mxu0 0
        %4485 = vmatpush1.bf16.msra.mxu0 %v4383
        %4486 = vmatprep.subr.bf16.mxu0 0
        %4487 = vmatpush1.bf16.msra.mxu0 %v4384
        %4488 = vmatprep.subr.bf16.mxu0 0
        %4489 = vmatpush1.bf16.msra.mxu0 %v4385
        %4490 = vmatprep.subr.bf16.mxu0 0
        %4491 = vmatpush1.bf16.msra.mxu0 %v4386
        %4492 = vmatprep.subr.bf16.mxu0 0
        %4493 = vmatpush1.bf16.msra.mxu0 0
        %4494 = vmatprep.subr.bf16.mxu0 0
        %4495 = vmatpush1.bf16.msra.mxu0 0
        %4496 = vmatprep.subr.bf16.mxu0 0
        %4497 = vmatpush1.bf16.msra.mxu0 0
        %4498 = vmatprep.subr.bf16.mxu0 0
        %4499 = vmatpush1.bf16.msra.mxu0 0
        %4500 = vmatprep.subr.bf16.mxu0 0
        %4501 = vmatpush1.bf16.msra.mxu0 0
        %4502 = vmatprep.subr.bf16.mxu0 0
        %4503 = vmatpush1.bf16.msra.mxu0 0
        %4504 = vmatprep.subr.bf16.mxu0 0
        %4505 = vmatpush1.bf16.msra.mxu0 0
        %4506 = vmatprep.subr.bf16.mxu0 0
        %4507 = vmatpush1.bf16.msra.mxu0 0
        %4508 = vmatprep.mubr.bf16.mxu0 0
        %4509 = vmatmul.mubr.bf16.gmra.mrb[0].mxu0 %v4205
        %v4510 = vpop.f32.mrb[0].mxu0
        %v4511 = vadd.f32 %v4446, %v4510
        %v4512 = vpop.f32.mrb[0].mxu0
        %v4513 = vpop.f32.mrb[0].mxu0
        %v4514 = vadd.f32 %v4449, %v4513
        %v4515 = vpop.f32.mrb[0].mxu0
        %4516 = vmatprep.mubr.bf16.mxu0 0
        %4517 = vmatmul.mubr.bf16.gmra.mrb[0].mxu0 %v4208
        %v4518 = vpop.f32.mrb[0].mxu0
        %v4519 = vadd.f32 %v4454, %v4518
        %v4520 = vpop.f32.mrb[0].mxu0
        %v4521 = vpop.f32.mrb[0].mxu0
        %v4522 = vadd.f32 %v4457, %v4521
        %v4523 = vpop.f32.mrb[0].mxu0
        %4524 = vmatprep.mubr.bf16.mxu0 0
        %4525 = vmatmul.mubr.bf16.gmra.mrb[0].mxu0 %v4211
        %v4526 = vpop.f32.mrb[0].mxu0
        %v4527 = vadd.f32 %v4462, %v4526
        %v4528 = vpop.f32.mrb[0].mxu0
        %v4529 = vpop.f32.mrb[0].mxu0
        %v4530 = vadd.f32 %v4465, %v4529
        %v4531 = vpop.f32.mrb[0].mxu0
        %4532 = vmatprep.mubr.bf16.mxu0 0
        %4533 = vmatmul.mubr.bf16.gmra.mrb[0].mxu0 %v4214
        %v4534 = vpop.f32.mrb[0].mxu0
        %v4535 = vadd.f32 %v4470, %v4534
        %v4536 = vpop.f32.mrb[0].mxu0
        %v4537 = vpop.f32.mrb[0].mxu0
        %v4538 = vadd.f32 %v4473, %v4537
        %v4539 = vpop.f32.mrb[0].mxu0
        %4540 = vdwg.mxu0
        %v4541 = vadd.f32 %v4056, %v4511
        %v4542 = vadd.f32 %v4059, %v4514
        %v4543 = vadd.f32 %v4064, %v4519
        %v4544 = vadd.f32 %v4067, %v4522
        %v4545 = vadd.f32 %v4072, %v4527
        %v4546 = vadd.f32 %v4075, %v4530
        %v4547 = vadd.f32 %v4080, %v4535
        %v4548 = vadd.f32 %v4083, %v4538
        %v4549 = vmul.f32 %v4541, %v1734
        %v4550 = vmul.f32 %v4542, %v1734
        %v4551 = vmul.f32 %v4543, %v1734
        %v4552 = vmul.f32 %v4544, %v1734
        %v4553 = vmul.f32 %v4545, %v1734
        %v4554 = vmul.f32 %v4546, %v1734
        %v4555 = vmul.f32 %v4547, %v1734
        %v4556 = vmul.f32 %v4548, %v1734
        %v4557 = vadd.f32 %v4549, %v1746
        %v4558 = vadd.f32 %v4550, %v1746
        %v4559 = vadd.f32 %v4551, %v1746
        %v4560 = vadd.f32 %v4552, %v1746
        %v4561 = vadd.f32 %v4553, %v1746
        %v4562 = vadd.f32 %v4554, %v1746
        %v4563 = vadd.f32 %v4555, %v1746
        %v4564 = vadd.f32 %v4556, %v1746
        %v4565 = vmax.f32 %v4557, 0.0
        %v4566 = vmax.f32 %v4558, 0.0
        %v4567 = vmax.f32 %v4559, 0.0
        %v4568 = vmax.f32 %v4560, 0.0
        %v4569 = vmax.f32 %v4561, 0.0
        %v4570 = vmax.f32 %v4562, 0.0
        %v4571 = vmax.f32 %v4563, 0.0
        %v4572 = vmax.f32 %v4564, 0.0
        %v4573 = vmax.f32 %v4565, %v4567
        %v4574 = vmax.f32 %v4566, %v4568
        %4575 = vst [vmem:[#allocation2 + $0x40] sm:$0xff] %v4573
        %4576 = vst [vmem:[#allocation2 + $0x48] sm:$0xff] %v4574
        %v4577 = vmax.f32 %v4569, %v4571
        %v4578 = vmax.f32 %v4570, %v4572
        %4579 = vst [vmem:[#allocation2 + $0x50] sm:$0xff] %v4577
        %4580 = vst [vmem:[#allocation2 + $0x58] sm:$0xff] %v4578
        %s4581 = scalar_lea.vmem %s237, 144
        %v4582 = vld [vmem:[%s4581] sm:$0xf]
        %v4583 = vld [vmem:[%s4581 + $0x4] sm:$0xf]
        %v4584 = vld [vmem:[%s4581 + $0xc] sm:$0xf]
        %v4585 = vld [vmem:[%s4581 + $0x10] sm:$0xf]
        %v4586 = vld [vmem:[%s4581 + $0x18] sm:$0xf]
        %v4587 = vld [vmem:[%s4581 + $0x1c] sm:$0xf]
        %v4588 = vld [vmem:[%s4581 + $0x24] sm:$0xf]
        %v4589 = vld [vmem:[%s4581 + $0x28] sm:$0xf]
        %v4590 = vld [vmem:[%s4581 + $0x8] sm:$0x1]
        %v4591 = vld [vmem:[%s4581 + $0x14] sm:$0x1]
        %v4592 = vld [vmem:[%s4581 + $0x20] sm:$0x1]
        %v4593 = vld [vmem:[%s4581 + $0x2c] sm:$0x1]
        %v4594 = vld [vmem:[%s4581] sm:$0xe]
        %v4595 = vld [vmem:[%s4581 + $0xc] sm:$0xe]
        %v4596 = vld [vmem:[%s4581 + $0x18] sm:$0xe]
        %v4597 = vld [vmem:[%s4581 + $0x24] sm:$0xe]
        %v4606 = vunpack.c.l.b16 %v4582
        %v4607 = vunpack.c.l.b16 %v4583
        %v4608 = vunpack.c.l.b16 %v4584
        %v4609 = vunpack.c.l.b16 %v4585
        %v4610 = vunpack.c.l.b16 %v4586
        %v4611 = vunpack.c.l.b16 %v4587
        %v4612 = vunpack.c.l.b16 %v4588
        %v4613 = vunpack.c.l.b16 %v4589
        %v4614 = vpack.c.b16 %v4607, %v4606
        %v4615 = vpack.c.b16 %v4609, %v4608
        %v4616 = vpack.c.b16 %v4611, %v4610
        %v4617 = vpack.c.b16 %v4613, %v4612
        %v4626 = vunpack.c.l.b16 %v4590
        %v4627 = vunpack.c.l.b16 %v4591
        %v4628 = vunpack.c.l.b16 %v4592
        %v4629 = vunpack.c.l.b16 %v4593
        %v4630 = vpack.c.b16 %v4626, %v4626
        %v4631 = vpack.c.b16 %v4627, %v4627
        %v4632 = vpack.c.b16 %v4628, %v4628
        %v4633 = vpack.c.b16 %v4629, %v4629
        %v4635 = vshrl.u32 %v4614, 16
        %v4637 = vshll.u32 %v4614, 16
        %v4639 = vrot.slane %v4637, 1
        %v4640 = vor.u32 %v4635, %v4639
        %v4642 = vshll.u32 %v4630, 16
        %v4644 = vrot.slane %v4642, 1
        %v4645 = vsel %vm407, %v4640, %v4644
        %v4647 = vshrl.u32 %v4615, 16
        %v4649 = vshll.u32 %v4615, 16
        %v4651 = vrot.slane %v4649, 1
        %v4652 = vor.u32 %v4647, %v4651
        %v4654 = vshll.u32 %v4631, 16
        %v4656 = vrot.slane %v4654, 1
        %v4657 = vsel %vm407, %v4652, %v4656
        %v4659 = vshrl.u32 %v4616, 16
        %v4661 = vshll.u32 %v4616, 16
        %v4663 = vrot.slane %v4661, 1
        %v4664 = vor.u32 %v4659, %v4663
        %v4666 = vshll.u32 %v4632, 16
        %v4668 = vrot.slane %v4666, 1
        %v4669 = vsel %vm407, %v4664, %v4668
        %v4671 = vshrl.u32 %v4617, 16
        %v4673 = vshll.u32 %v4617, 16
        %v4675 = vrot.slane %v4673, 1
        %v4676 = vor.u32 %v4671, %v4675
        %v4678 = vshll.u32 %v4633, 16
        %v4680 = vrot.slane %v4678, 1
        %v4681 = vsel %vm407, %v4676, %v4680
        %v4690 = vunpack.c.l.b16 %v4594
        %v4691 = vunpack.c.l.b16 %v4595
        %v4692 = vunpack.c.l.b16 %v4596
        %v4693 = vunpack.c.l.b16 %v4597
        %v4694 = vpack.c.b16 %v4607, %v4690
        %v4695 = vpack.c.b16 %v4609, %v4691
        %v4696 = vpack.c.b16 %v4611, %v4692
        %v4697 = vpack.c.b16 %v4613, %v4693
        %v4698 = vrot.slane %v4694, 1
        %v4699 = vrot.slane %v4630, 1
        %v4700 = vsel %vm472, %v4698, %v4699
        %v4701 = vrot.slane %v4695, 1
        %v4702 = vrot.slane %v4631, 1
        %v4703 = vsel %vm472, %v4701, %v4702
        %v4704 = vrot.slane %v4696, 1
        %v4705 = vrot.slane %v4632, 1
        %v4706 = vsel %vm472, %v4704, %v4705
        %v4707 = vrot.slane %v4697, 1
        %v4708 = vrot.slane %v4633, 1
        %v4709 = vsel %vm472, %v4707, %v4708
        %v4714 = vld [vmem:[%s1] sm:$0xf]
        %v4715 = vld [vmem:[%s1 + $0x4] sm:$0xf]
        %v4716 = vld [vmem:[%s1 + $0x8] sm:$0xf]
        %v4717 = vld [vmem:[%s1 + $0xc] sm:$0xf]
        %v4718 = vld [vmem:[%s1 + $0x10] sm:$0xf]
        %v4719 = vld [vmem:[%s1 + $0x14] sm:$0xf]
        %v4720 = vld [vmem:[%s1 + $0x18] sm:$0xf]
        %v4721 = vld [vmem:[%s1 + $0x1c] sm:$0xf]
        %v4722 = vld [vmem:[%s1 + $0x20] sm:$0xf]
        %v4723 = vld [vmem:[%s1 + $0x24] sm:$0xf]
        %v4724 = vld [vmem:[%s1 + $0x28] sm:$0xf]
        %v4725 = vld [vmem:[%s1 + $0x2c] sm:$0xf]
        %v4726 = vld [vmem:[%s1 + $0x30] sm:$0xf]
        %v4727 = vld [vmem:[%s1 + $0x34] sm:$0xf]
        %v4728 = vld [vmem:[%s1 + $0x38] sm:$0xf]
        %v4729 = vld [vmem:[%s1 + $0x3c] sm:$0xf]
        %v4730 = vld [vmem:[%s1 + $0x40] sm:$0xf]
        %v4731 = vld [vmem:[%s1 + $0x44] sm:$0xf]
        %v4732 = vld [vmem:[%s1 + $0x48] sm:$0xf]
        %v4733 = vld [vmem:[%s1 + $0x4c] sm:$0xf]
        %v4734 = vld [vmem:[%s1 + $0x50] sm:$0xf]
        %v4735 = vld [vmem:[%s1 + $0x54] sm:$0xf]
        %v4736 = vld [vmem:[%s1 + $0x58] sm:$0xf]
        %v4737 = vld [vmem:[%s1 + $0x5c] sm:$0xf]
        %v4738 = vld [vmem:[%s1 + $0x60] sm:$0xf]
        %v4739 = vld [vmem:[%s1 + $0x64] sm:$0xf]
        %v4740 = vld [vmem:[%s1 + $0x68] sm:$0xf]
        %v4741 = vld [vmem:[%s1 + $0x6c] sm:$0xf]
        %v4742 = vld [vmem:[%s1 + $0x70] sm:$0xf]
        %v4743 = vld [vmem:[%s1 + $0x74] sm:$0xf]
        %v4744 = vld [vmem:[%s1 + $0x78] sm:$0xf]
        %v4745 = vld [vmem:[%s1 + $0x7c] sm:$0xf]
        %v4746 = vld [vmem:[%s1 + $0x80] sm:$0xf]
        %v4747 = vld [vmem:[%s1 + $0x84] sm:$0xf]
        %v4748 = vld [vmem:[%s1 + $0x88] sm:$0xf]
        %v4749 = vld [vmem:[%s1 + $0x8c] sm:$0xf]
        %v4750 = vld [vmem:[%s1 + $0x90] sm:$0xf]
        %v4751 = vld [vmem:[%s1 + $0x94] sm:$0xf]
        %v4752 = vld [vmem:[%s1 + $0x98] sm:$0xf]
        %v4753 = vld [vmem:[%s1 + $0x9c] sm:$0xf]
        %v4754 = vld [vmem:[%s1 + $0xa0] sm:$0xf]
        %v4755 = vld [vmem:[%s1 + $0xa4] sm:$0xf]
        %v4756 = vld [vmem:[%s1 + $0xa8] sm:$0xf]
        %v4757 = vld [vmem:[%s1 + $0xac] sm:$0xf]
        %v4758 = vld [vmem:[%s1 + $0xb0] sm:$0xf]
        %v4759 = vld [vmem:[%s1 + $0xb4] sm:$0xf]
        %v4760 = vld [vmem:[%s1 + $0xb8] sm:$0xf]
        %v4761 = vld [vmem:[%s1 + $0xbc] sm:$0xf]
        %s4762 = scalar_lea.vmem %s237, 156
        %v4763 = vld [vmem:[%s4762] sm:$0xf]
        %v4764 = vld [vmem:[%s4762 + $0x4] sm:$0xf]
        %v4765 = vld [vmem:[%s4762 + $0xc] sm:$0xf]
        %v4766 = vld [vmem:[%s4762 + $0x10] sm:$0xf]
        %v4767 = vld [vmem:[%s4762 + $0x18] sm:$0xf]
        %v4768 = vld [vmem:[%s4762 + $0x1c] sm:$0xf]
        %v4769 = vld [vmem:[%s4762 + $0x24] sm:$0xf]
        %v4770 = vld [vmem:[%s4762 + $0x28] sm:$0xf]
        %v4771 = vld [vmem:[%s4762 + $0x8] sm:$0x1]
        %v4772 = vld [vmem:[%s4762 + $0x14] sm:$0x1]
        %v4773 = vld [vmem:[%s4762 + $0x20] sm:$0x1]
        %v4774 = vld [vmem:[%s4762 + $0x2c] sm:$0x1]
        %v4775 = vld [vmem:[%s4762] sm:$0xe]
        %v4776 = vld [vmem:[%s4762 + $0xc] sm:$0xe]
        %v4777 = vld [vmem:[%s4762 + $0x18] sm:$0xe]
        %v4778 = vld [vmem:[%s4762 + $0x24] sm:$0xe]
        %v4787 = vunpack.c.l.b16 %v4763
        %v4788 = vunpack.c.l.b16 %v4764
        %v4789 = vunpack.c.l.b16 %v4765
        %v4790 = vunpack.c.l.b16 %v4766
        %v4791 = vunpack.c.l.b16 %v4767
        %v4792 = vunpack.c.l.b16 %v4768
        %v4793 = vunpack.c.l.b16 %v4769
        %v4794 = vunpack.c.l.b16 %v4770
        %v4795 = vpack.c.b16 %v4788, %v4787
        %v4796 = vpack.c.b16 %v4790, %v4789
        %v4797 = vpack.c.b16 %v4792, %v4791
        %v4798 = vpack.c.b16 %v4794, %v4793
        %v4807 = vunpack.c.l.b16 %v4771
        %v4808 = vunpack.c.l.b16 %v4772
        %v4809 = vunpack.c.l.b16 %v4773
        %v4810 = vunpack.c.l.b16 %v4774
        %v4811 = vpack.c.b16 %v4807, %v4807
        %v4812 = vpack.c.b16 %v4808, %v4808
        %v4813 = vpack.c.b16 %v4809, %v4809
        %v4814 = vpack.c.b16 %v4810, %v4810
        %v4816 = vshrl.u32 %v4795, 16
        %v4818 = vshll.u32 %v4795, 16
        %v4820 = vrot.slane %v4818, 1
        %v4821 = vor.u32 %v4816, %v4820
        %v4823 = vshll.u32 %v4811, 16
        %v4825 = vrot.slane %v4823, 1
        %v4826 = vsel %vm407, %v4821, %v4825
        %v4828 = vshrl.u32 %v4796, 16
        %v4830 = vshll.u32 %v4796, 16
        %v4832 = vrot.slane %v4830, 1
        %v4833 = vor.u32 %v4828, %v4832
        %v4835 = vshll.u32 %v4812, 16
        %v4837 = vrot.slane %v4835, 1
        %v4838 = vsel %vm407, %v4833, %v4837
        %v4840 = vshrl.u32 %v4797, 16
        %v4842 = vshll.u32 %v4797, 16
        %v4844 = vrot.slane %v4842, 1
        %v4845 = vor.u32 %v4840, %v4844
        %v4847 = vshll.u32 %v4813, 16
        %v4849 = vrot.slane %v4847, 1
        %v4850 = vsel %vm407, %v4845, %v4849
        %v4852 = vshrl.u32 %v4798, 16
        %v4854 = vshll.u32 %v4798, 16
        %v4856 = vrot.slane %v4854, 1
        %v4857 = vor.u32 %v4852, %v4856
        %v4859 = vshll.u32 %v4814, 16
        %v4861 = vrot.slane %v4859, 1
        %v4862 = vsel %vm407, %v4857, %v4861
        %v4871 = vunpack.c.l.b16 %v4775
        %v4872 = vunpack.c.l.b16 %v4776
        %v4873 = vunpack.c.l.b16 %v4777
        %v4874 = vunpack.c.l.b16 %v4778
        %v4875 = vpack.c.b16 %v4788, %v4871
        %v4876 = vpack.c.b16 %v4790, %v4872
        %v4877 = vpack.c.b16 %v4792, %v4873
        %v4878 = vpack.c.b16 %v4794, %v4874
        %v4879 = vrot.slane %v4875, 1
        %v4880 = vrot.slane %v4811, 1
        %v4881 = vsel %vm472, %v4879, %v4880
        %v4882 = vrot.slane %v4876, 1
        %v4883 = vrot.slane %v4812, 1
        %v4884 = vsel %vm472, %v4882, %v4883
        %v4885 = vrot.slane %v4877, 1
        %v4886 = vrot.slane %v4813, 1
        %v4887 = vsel %vm472, %v4885, %v4886
        %v4888 = vrot.slane %v4878, 1
        %v4889 = vrot.slane %v4814, 1
        %v4890 = vsel %vm472, %v4888, %v4889
        %v4895 = vld [vmem:[%s670] sm:$0xf]
        %v4896 = vld [vmem:[%s670 + $0x4] sm:$0xf]
        %v4897 = vld [vmem:[%s670 + $0x8] sm:$0xf]
        %v4898 = vld [vmem:[%s670 + $0xc] sm:$0xf]
        %v4899 = vld [vmem:[%s670 + $0x10] sm:$0xf]
        %v4900 = vld [vmem:[%s670 + $0x14] sm:$0xf]
        %v4901 = vld [vmem:[%s670 + $0x18] sm:$0xf]
        %v4902 = vld [vmem:[%s670 + $0x1c] sm:$0xf]
        %v4903 = vld [vmem:[%s670 + $0x20] sm:$0xf]
        %v4904 = vld [vmem:[%s670 + $0x24] sm:$0xf]
        %v4905 = vld [vmem:[%s670 + $0x28] sm:$0xf]
        %v4906 = vld [vmem:[%s670 + $0x2c] sm:$0xf]
        %v4907 = vld [vmem:[%s670 + $0x30] sm:$0xf]
        %v4908 = vld [vmem:[%s670 + $0x34] sm:$0xf]
        %v4909 = vld [vmem:[%s670 + $0x38] sm:$0xf]
        %v4910 = vld [vmem:[%s670 + $0x3c] sm:$0xf]
        %v4911 = vld [vmem:[%s670 + $0x40] sm:$0xf]
        %v4912 = vld [vmem:[%s670 + $0x44] sm:$0xf]
        %v4913 = vld [vmem:[%s670 + $0x48] sm:$0xf]
        %v4914 = vld [vmem:[%s670 + $0x4c] sm:$0xf]
        %v4915 = vld [vmem:[%s670 + $0x50] sm:$0xf]
        %v4916 = vld [vmem:[%s670 + $0x54] sm:$0xf]
        %v4917 = vld [vmem:[%s670 + $0x58] sm:$0xf]
        %v4918 = vld [vmem:[%s670 + $0x5c] sm:$0xf]
        %v4919 = vld [vmem:[%s670 + $0x60] sm:$0xf]
        %v4920 = vld [vmem:[%s670 + $0x64] sm:$0xf]
        %v4921 = vld [vmem:[%s670 + $0x68] sm:$0xf]
        %v4922 = vld [vmem:[%s670 + $0x6c] sm:$0xf]
        %v4923 = vld [vmem:[%s670 + $0x70] sm:$0xf]
        %v4924 = vld [vmem:[%s670 + $0x74] sm:$0xf]
        %v4925 = vld [vmem:[%s670 + $0x78] sm:$0xf]
        %v4926 = vld [vmem:[%s670 + $0x7c] sm:$0xf]
        %v4927 = vld [vmem:[%s670 + $0x80] sm:$0xf]
        %v4928 = vld [vmem:[%s670 + $0x84] sm:$0xf]
        %v4929 = vld [vmem:[%s670 + $0x88] sm:$0xf]
        %v4930 = vld [vmem:[%s670 + $0x8c] sm:$0xf]
        %v4931 = vld [vmem:[%s670 + $0x90] sm:$0xf]
        %v4932 = vld [vmem:[%s670 + $0x94] sm:$0xf]
        %v4933 = vld [vmem:[%s670 + $0x98] sm:$0xf]
        %v4934 = vld [vmem:[%s670 + $0x9c] sm:$0xf]
        %v4935 = vld [vmem:[%s670 + $0xa0] sm:$0xf]
        %v4936 = vld [vmem:[%s670 + $0xa4] sm:$0xf]
        %v4937 = vld [vmem:[%s670 + $0xa8] sm:$0xf]
        %v4938 = vld [vmem:[%s670 + $0xac] sm:$0xf]
        %v4939 = vld [vmem:[%s670 + $0xb0] sm:$0xf]
        %v4940 = vld [vmem:[%s670 + $0xb4] sm:$0xf]
        %v4941 = vld [vmem:[%s670 + $0xb8] sm:$0xf]
        %v4942 = vld [vmem:[%s670 + $0xbc] sm:$0xf]
        %v4991 = vunpack.c.l.b16 %v4895
        %v4992 = vunpack.c.l.b16 %v4896
        %v4993 = vunpack.c.l.b16 %v4897
        %v4994 = vunpack.c.l.b16 %v4898
        %v4995 = vunpack.c.l.b16 %v4899
        %v4996 = vunpack.c.l.b16 %v4900
        %v4997 = vunpack.c.l.b16 %v4901
        %v4998 = vunpack.c.l.b16 %v4902
        %v4999 = vunpack.c.l.b16 %v4903
        %v5000 = vunpack.c.l.b16 %v4904
        %v5001 = vunpack.c.l.b16 %v4905
        %v5002 = vunpack.c.l.b16 %v4906
        %v5003 = vunpack.c.l.b16 %v4907
        %v5004 = vunpack.c.l.b16 %v4908
        %v5005 = vunpack.c.l.b16 %v4909
        %v5006 = vunpack.c.l.b16 %v4910
        %v5007 = vunpack.c.l.b16 %v4911
        %v5008 = vunpack.c.l.b16 %v4912
        %v5009 = vunpack.c.l.b16 %v4913
        %v5010 = vunpack.c.l.b16 %v4914
        %v5011 = vunpack.c.l.b16 %v4915
        %v5012 = vunpack.c.l.b16 %v4916
        %v5013 = vunpack.c.l.b16 %v4917
        %v5014 = vunpack.c.l.b16 %v4918
        %v5015 = vunpack.c.l.b16 %v4919
        %v5016 = vunpack.c.l.b16 %v4920
        %v5017 = vunpack.c.l.b16 %v4921
        %v5018 = vunpack.c.l.b16 %v4922
        %v5019 = vunpack.c.l.b16 %v4923
        %v5020 = vunpack.c.l.b16 %v4924
        %v5021 = vunpack.c.l.b16 %v4925
        %v5022 = vunpack.c.l.b16 %v4926
        %v5023 = vunpack.c.l.b16 %v4927
        %v5024 = vunpack.c.l.b16 %v4928
        %v5025 = vunpack.c.l.b16 %v4929
        %v5026 = vunpack.c.l.b16 %v4930
        %v5027 = vunpack.c.l.b16 %v4931
        %v5028 = vunpack.c.l.b16 %v4932
        %v5029 = vunpack.c.l.b16 %v4933
        %v5030 = vunpack.c.l.b16 %v4934
        %v5031 = vunpack.c.l.b16 %v4935
        %v5032 = vunpack.c.l.b16 %v4936
        %v5033 = vunpack.c.l.b16 %v4937
        %v5034 = vunpack.c.l.b16 %v4938
        %v5035 = vunpack.c.l.b16 %v4939
        %v5036 = vunpack.c.l.b16 %v4940
        %v5037 = vunpack.c.l.b16 %v4941
        %v5038 = vunpack.c.l.b16 %v4942
        %v5039 = vpack.c.b16 %v4992, %v4991
        %v5040 = vpack.c.b16 %v4994, %v4993
        %v5041 = vpack.c.b16 %v4996, %v4995
        %v5042 = vpack.c.b16 %v4998, %v4997
        %v5043 = vpack.c.b16 %v5000, %v4999
        %v5044 = vpack.c.b16 %v5002, %v5001
        %v5045 = vpack.c.b16 %v5004, %v5003
        %v5046 = vpack.c.b16 %v5006, %v5005
        %v5047 = vpack.c.b16 %v5008, %v5007
        %v5048 = vpack.c.b16 %v5010, %v5009
        %v5049 = vpack.c.b16 %v5012, %v5011
        %v5050 = vpack.c.b16 %v5014, %v5013
        %v5051 = vpack.c.b16 %v5016, %v5015
        %v5052 = vpack.c.b16 %v5018, %v5017
        %v5053 = vpack.c.b16 %v5020, %v5019
        %v5054 = vpack.c.b16 %v5022, %v5021
        %v5055 = vpack.c.b16 %v5024, %v5023
        %v5056 = vpack.c.b16 %v5026, %v5025
        %v5057 = vpack.c.b16 %v5028, %v5027
        %v5058 = vpack.c.b16 %v5030, %v5029
        %v5059 = vpack.c.b16 %v5032, %v5031
        %v5060 = vpack.c.b16 %v5034, %v5033
        %v5061 = vpack.c.b16 %v5036, %v5035
        %v5062 = vpack.c.b16 %v5038, %v5037
        %5087 = vmatprep.subr.bf16.mxu0 0
        %5088 = vmatpush1.bf16.msra.mxu0 %v5039
        %5089 = vmatprep.subr.bf16.mxu0 0
        %5090 = vmatpush1.bf16.msra.mxu0 %v5040
        %5091 = vmatprep.subr.bf16.mxu0 0
        %5092 = vmatpush1.bf16.msra.mxu0 %v5041
        %5093 = vmatprep.subr.bf16.mxu0 0
        %5094 = vmatpush1.bf16.msra.mxu0 %v5042
        %5095 = vmatprep.subr.bf16.mxu0 0
        %5096 = vmatpush1.bf16.msra.mxu0 %v5043
        %5097 = vmatprep.subr.bf16.mxu0 0
        %5098 = vmatpush1.bf16.msra.mxu0 %v5044
        %5099 = vmatprep.subr.bf16.mxu0 0
        %5100 = vmatpush1.bf16.msra.mxu0 %v5045
        %5101 = vmatprep.subr.bf16.mxu0 0
        %5102 = vmatpush1.bf16.msra.mxu0 %v5046
        %5103 = vmatprep.subr.bf16.mxu0 0
        %5104 = vmatpush1.bf16.msra.mxu0 %v5047
        %5105 = vmatprep.subr.bf16.mxu0 0
        %5106 = vmatpush1.bf16.msra.mxu0 %v5048
        %5107 = vmatprep.subr.bf16.mxu0 0
        %5108 = vmatpush1.bf16.msra.mxu0 %v5049
        %5109 = vmatprep.subr.bf16.mxu0 0
        %5110 = vmatpush1.bf16.msra.mxu0 %v5050
        %5111 = vmatprep.subr.bf16.mxu0 0
        %5112 = vmatpush1.bf16.msra.mxu0 %v5051
        %5113 = vmatprep.subr.bf16.mxu0 0
        %5114 = vmatpush1.bf16.msra.mxu0 %v5052
        %5115 = vmatprep.subr.bf16.mxu0 0
        %5116 = vmatpush1.bf16.msra.mxu0 %v5053
        %5117 = vmatprep.subr.bf16.mxu0 0
        %5118 = vmatpush1.bf16.msra.mxu0 %v5054
        %5119 = vmatprep.mubr.bf16.mxu0 %v4826
        %5120 = vmatmul.mubr.bf16.gmra.mrb[0].mxu0 %v4795
        %v5121 = vpop.f32.mrb[0].mxu0
        %v5122 = vadd.f32 0.0, %v5121
        %v5123 = vpop.f32.mrb[0].mxu0
        %v5124 = vpop.f32.mrb[0].mxu0
        %v5125 = vadd.f32 0.0, %v5124
        %v5126 = vpop.f32.mrb[0].mxu0
        %5127 = vmatprep.mubr.bf16.mxu0 %v4838
        %5128 = vmatmul.mubr.bf16.gmra.mrb[0].mxu0 %v4796
        %v5129 = vpop.f32.mrb[0].mxu0
        %v5130 = vadd.f32 0.0, %v5129
        %v5131 = vpop.f32.mrb[0].mxu0
        %v5132 = vpop.f32.mrb[0].mxu0
        %v5133 = vadd.f32 0.0, %v5132
        %v5134 = vpop.f32.mrb[0].mxu0
        %5135 = vmatprep.mubr.bf16.mxu0 %v4850
        %5136 = vmatmul.mubr.bf16.gmra.mrb[0].mxu0 %v4797
        %v5137 = vpop.f32.mrb[0].mxu0
        %v5138 = vadd.f32 0.0, %v5137
        %v5139 = vpop.f32.mrb[0].mxu0
        %v5140 = vpop.f32.mrb[0].mxu0
        %v5141 = vadd.f32 0.0, %v5140
        %v5142 = vpop.f32.mrb[0].mxu0
        %5143 = vmatprep.mubr.bf16.mxu0 %v4862
        %5144 = vmatmul.mubr.bf16.gmra.mrb[0].mxu0 %v4798
        %v5145 = vpop.f32.mrb[0].mxu0
        %v5146 = vadd.f32 0.0, %v5145
        %v5147 = vpop.f32.mrb[0].mxu0
        %v5148 = vpop.f32.mrb[0].mxu0
        %v5149 = vadd.f32 0.0, %v5148
        %v5150 = vpop.f32.mrb[0].mxu0
        %5151 = vdwg.mxu0
        %5152 = vmatprep.subr.bf16.mxu0 0
        %5153 = vmatpush1.bf16.msra.mxu0 %v5055
        %5154 = vmatprep.subr.bf16.mxu0 0
        %5155 = vmatpush1.bf16.msra.mxu0 %v5056
        %5156 = vmatprep.subr.bf16.mxu0 0
        %5157 = vmatpush1.bf16.msra.mxu0 %v5057
        %5158 = vmatprep.subr.bf16.mxu0 0
        %5159 = vmatpush1.bf16.msra.mxu0 %v5058
        %5160 = vmatprep.subr.bf16.mxu0 0
        %5161 = vmatpush1.bf16.msra.mxu0 %v5059
        %5162 = vmatprep.subr.bf16.mxu0 0
        %5163 = vmatpush1.bf16.msra.mxu0 %v5060
        %5164 = vmatprep.subr.bf16.mxu0 0
        %5165 = vmatpush1.bf16.msra.mxu0 %v5061
        %5166 = vmatprep.subr.bf16.mxu0 0
        %5167 = vmatpush1.bf16.msra.mxu0 %v5062
        %5168 = vmatprep.subr.bf16.mxu0 0
        %5169 = vmatpush1.bf16.msra.mxu0 0
        %5170 = vmatprep.subr.bf16.mxu0 0
        %5171 = vmatpush1.bf16.msra.mxu0 0
        %5172 = vmatprep.subr.bf16.mxu0 0
        %5173 = vmatpush1.bf16.msra.mxu0 0
        %5174 = vmatprep.subr.bf16.mxu0 0
        %5175 = vmatpush1.bf16.msra.mxu0 0
        %5176 = vmatprep.subr.bf16.mxu0 0
        %5177 = vmatpush1.bf16.msra.mxu0 0
        %5178 = vmatprep.subr.bf16.mxu0 0
        %5179 = vmatpush1.bf16.msra.mxu0 0
        %5180 = vmatprep.subr.bf16.mxu0 0
        %5181 = vmatpush1.bf16.msra.mxu0 0
        %5182 = vmatprep.subr.bf16.mxu0 0
        %5183 = vmatpush1.bf16.msra.mxu0 0
        %5184 = vmatprep.mubr.bf16.mxu0 0
        %5185 = vmatmul.mubr.bf16.gmra.mrb[0].mxu0 %v4881
        %v5186 = vpop.f32.mrb[0].mxu0
        %v5187 = vadd.f32 %v5122, %v5186
        %v5188 = vpop.f32.mrb[0].mxu0
        %v5189 = vpop.f32.mrb[0].mxu0
        %v5190 = vadd.f32 %v5125, %v5189
        %v5191 = vpop.f32.mrb[0].mxu0
        %5192 = vmatprep.mubr.bf16.mxu0 0
        %5193 = vmatmul.mubr.bf16.gmra.mrb[0].mxu0 %v4884
        %v5194 = vpop.f32.mrb[0].mxu0
        %v5195 = vadd.f32 %v5130, %v5194
        %v5196 = vpop.f32.mrb[0].mxu0
        %v5197 = vpop.f32.mrb[0].mxu0
        %v5198 = vadd.f32 %v5133, %v5197
        %v5199 = vpop.f32.mrb[0].mxu0
        %5200 = vmatprep.mubr.bf16.mxu0 0
        %5201 = vmatmul.mubr.bf16.gmra.mrb[0].mxu0 %v4887
        %v5202 = vpop.f32.mrb[0].mxu0
        %v5203 = vadd.f32 %v5138, %v5202
        %v5204 = vpop.f32.mrb[0].mxu0
        %v5205 = vpop.f32.mrb[0].mxu0
        %v5206 = vadd.f32 %v5141, %v5205
        %v5207 = vpop.f32.mrb[0].mxu0
        %5208 = vmatprep.mubr.bf16.mxu0 0
        %5209 = vmatmul.mubr.bf16.gmra.mrb[0].mxu0 %v4890
        %v5210 = vpop.f32.mrb[0].mxu0
        %v5211 = vadd.f32 %v5146, %v5210
        %v5212 = vpop.f32.mrb[0].mxu0
        %v5213 = vpop.f32.mrb[0].mxu0
        %v5214 = vadd.f32 %v5149, %v5213
        %v5215 = vpop.f32.mrb[0].mxu0
        %5216 = vdwg.mxu0
        %v5265 = vunpack.c.l.b16 %v4714
        %v5266 = vunpack.c.l.b16 %v4715
        %v5267 = vunpack.c.l.b16 %v4716
        %v5268 = vunpack.c.l.b16 %v4717
        %v5269 = vunpack.c.l.b16 %v4718
        %v5270 = vunpack.c.l.b16 %v4719
        %v5271 = vunpack.c.l.b16 %v4720
        %v5272 = vunpack.c.l.b16 %v4721
        %v5273 = vunpack.c.l.b16 %v4722
        %v5274 = vunpack.c.l.b16 %v4723
        %v5275 = vunpack.c.l.b16 %v4724
        %v5276 = vunpack.c.l.b16 %v4725
        %v5277 = vunpack.c.l.b16 %v4726
        %v5278 = vunpack.c.l.b16 %v4727
        %v5279 = vunpack.c.l.b16 %v4728
        %v5280 = vunpack.c.l.b16 %v4729
        %v5281 = vunpack.c.l.b16 %v4730
        %v5282 = vunpack.c.l.b16 %v4731
        %v5283 = vunpack.c.l.b16 %v4732
        %v5284 = vunpack.c.l.b16 %v4733
        %v5285 = vunpack.c.l.b16 %v4734
        %v5286 = vunpack.c.l.b16 %v4735
        %v5287 = vunpack.c.l.b16 %v4736
        %v5288 = vunpack.c.l.b16 %v4737
        %v5289 = vunpack.c.l.b16 %v4738
        %v5290 = vunpack.c.l.b16 %v4739
        %v5291 = vunpack.c.l.b16 %v4740
        %v5292 = vunpack.c.l.b16 %v4741
        %v5293 = vunpack.c.l.b16 %v4742
        %v5294 = vunpack.c.l.b16 %v4743
        %v5295 = vunpack.c.l.b16 %v4744
        %v5296 = vunpack.c.l.b16 %v4745
        %v5297 = vunpack.c.l.b16 %v4746
        %v5298 = vunpack.c.l.b16 %v4747
        %v5299 = vunpack.c.l.b16 %v4748
        %v5300 = vunpack.c.l.b16 %v4749
        %v5301 = vunpack.c.l.b16 %v4750
        %v5302 = vunpack.c.l.b16 %v4751
        %v5303 = vunpack.c.l.b16 %v4752
        %v5304 = vunpack.c.l.b16 %v4753
        %v5305 = vunpack.c.l.b16 %v4754
        %v5306 = vunpack.c.l.b16 %v4755
        %v5307 = vunpack.c.l.b16 %v4756
        %v5308 = vunpack.c.l.b16 %v4757
        %v5309 = vunpack.c.l.b16 %v4758
        %v5310 = vunpack.c.l.b16 %v4759
        %v5311 = vunpack.c.l.b16 %v4760
        %v5312 = vunpack.c.l.b16 %v4761
        %v5313 = vpack.c.b16 %v5266, %v5265
        %v5314 = vpack.c.b16 %v5268, %v5267
        %v5315 = vpack.c.b16 %v5270, %v5269
        %v5316 = vpack.c.b16 %v5272, %v5271
        %v5317 = vpack.c.b16 %v5274, %v5273
        %v5318 = vpack.c.b16 %v5276, %v5275
        %v5319 = vpack.c.b16 %v5278, %v5277
        %v5320 = vpack.c.b16 %v5280, %v5279
        %v5321 = vpack.c.b16 %v5282, %v5281
        %v5322 = vpack.c.b16 %v5284, %v5283
        %v5323 = vpack.c.b16 %v5286, %v5285
        %v5324 = vpack.c.b16 %v5288, %v5287
        %v5325 = vpack.c.b16 %v5290, %v5289
        %v5326 = vpack.c.b16 %v5292, %v5291
        %v5327 = vpack.c.b16 %v5294, %v5293
        %v5328 = vpack.c.b16 %v5296, %v5295
        %v5329 = vpack.c.b16 %v5298, %v5297
        %v5330 = vpack.c.b16 %v5300, %v5299
        %v5331 = vpack.c.b16 %v5302, %v5301
        %v5332 = vpack.c.b16 %v5304, %v5303
        %v5333 = vpack.c.b16 %v5306, %v5305
        %v5334 = vpack.c.b16 %v5308, %v5307
        %v5335 = vpack.c.b16 %v5310, %v5309
        %v5336 = vpack.c.b16 %v5312, %v5311
        %5361 = vmatprep.subr.bf16.mxu0 0
        %5362 = vmatpush1.bf16.msra.mxu0 %v5313
        %5363 = vmatprep.subr.bf16.mxu0 0
        %5364 = vmatpush1.bf16.msra.mxu0 %v5314
        %5365 = vmatprep.subr.bf16.mxu0 0
        %5366 = vmatpush1.bf16.msra.mxu0 %v5315
        %5367 = vmatprep.subr.bf16.mxu0 0
        %5368 = vmatpush1.bf16.msra.mxu0 %v5316
        %5369 = vmatprep.subr.bf16.mxu0 0
        %5370 = vmatpush1.bf16.msra.mxu0 %v5317
        %5371 = vmatprep.subr.bf16.mxu0 0
        %5372 = vmatpush1.bf16.msra.mxu0 %v5318
        %5373 = vmatprep.subr.bf16.mxu0 0
        %5374 = vmatpush1.bf16.msra.mxu0 %v5319
        %5375 = vmatprep.subr.bf16.mxu0 0
        %5376 = vmatpush1.bf16.msra.mxu0 %v5320
        %5377 = vmatprep.subr.bf16.mxu0 0
        %5378 = vmatpush1.bf16.msra.mxu0 %v5321
        %5379 = vmatprep.subr.bf16.mxu0 0
        %5380 = vmatpush1.bf16.msra.mxu0 %v5322
        %5381 = vmatprep.subr.bf16.mxu0 0
        %5382 = vmatpush1.bf16.msra.mxu0 %v5323
        %5383 = vmatprep.subr.bf16.mxu0 0
        %5384 = vmatpush1.bf16.msra.mxu0 %v5324
        %5385 = vmatprep.subr.bf16.mxu0 0
        %5386 = vmatpush1.bf16.msra.mxu0 %v5325
        %5387 = vmatprep.subr.bf16.mxu0 0
        %5388 = vmatpush1.bf16.msra.mxu0 %v5326
        %5389 = vmatprep.subr.bf16.mxu0 0
        %5390 = vmatpush1.bf16.msra.mxu0 %v5327
        %5391 = vmatprep.subr.bf16.mxu0 0
        %5392 = vmatpush1.bf16.msra.mxu0 %v5328
        %5393 = vmatprep.mubr.bf16.mxu0 %v4645
        %5394 = vmatmul.mubr.bf16.gmra.mrb[0].mxu0 %v4614
        %v5395 = vpop.f32.mrb[0].mxu0
        %v5396 = vadd.f32 %v5187, %v5395
        %v5397 = vpop.f32.mrb[0].mxu0
        %v5398 = vpop.f32.mrb[0].mxu0
        %v5399 = vadd.f32 %v5190, %v5398
        %v5400 = vpop.f32.mrb[0].mxu0
        %5401 = vmatprep.mubr.bf16.mxu0 %v4657
        %5402 = vmatmul.mubr.bf16.gmra.mrb[0].mxu0 %v4615
        %v5403 = vpop.f32.mrb[0].mxu0
        %v5404 = vadd.f32 %v5195, %v5403
        %v5405 = vpop.f32.mrb[0].mxu0
        %v5406 = vpop.f32.mrb[0].mxu0
        %v5407 = vadd.f32 %v5198, %v5406
        %v5408 = vpop.f32.mrb[0].mxu0
        %5409 = vmatprep.mubr.bf16.mxu0 %v4669
        %5410 = vmatmul.mubr.bf16.gmra.mrb[0].mxu0 %v4616
        %v5411 = vpop.f32.mrb[0].mxu0
        %v5412 = vadd.f32 %v5203, %v5411
        %v5413 = vpop.f32.mrb[0].mxu0
        %v5414 = vpop.f32.mrb[0].mxu0
        %v5415 = vadd.f32 %v5206, %v5414
        %v5416 = vpop.f32.mrb[0].mxu0
        %5417 = vmatprep.mubr.bf16.mxu0 %v4681
        %5418 = vmatmul.mubr.bf16.gmra.mrb[0].mxu0 %v4617
        %v5419 = vpop.f32.mrb[0].mxu0
        %v5420 = vadd.f32 %v5211, %v5419
        %v5421 = vpop.f32.mrb[0].mxu0
        %v5422 = vpop.f32.mrb[0].mxu0
        %v5423 = vadd.f32 %v5214, %v5422
        %v5424 = vpop.f32.mrb[0].mxu0
        %5425 = vdwg.mxu0
        %5426 = vmatprep.subr.bf16.mxu0 0
        %5427 = vmatpush1.bf16.msra.mxu0 %v5329
        %5428 = vmatprep.subr.bf16.mxu0 0
        %5429 = vmatpush1.bf16.msra.mxu0 %v5330
        %5430 = vmatprep.subr.bf16.mxu0 0
        %5431 = vmatpush1.bf16.msra.mxu0 %v5331
        %5432 = vmatprep.subr.bf16.mxu0 0
        %5433 = vmatpush1.bf16.msra.mxu0 %v5332
        %5434 = vmatprep.subr.bf16.mxu0 0
        %5435 = vmatpush1.bf16.msra.mxu0 %v5333
        %5436 = vmatprep.subr.bf16.mxu0 0
        %5437 = vmatpush1.bf16.msra.mxu0 %v5334
        %5438 = vmatprep.subr.bf16.mxu0 0
        %5439 = vmatpush1.bf16.msra.mxu0 %v5335
        %5440 = vmatprep.subr.bf16.mxu0 0
        %5441 = vmatpush1.bf16.msra.mxu0 %v5336
        %5442 = vmatprep.subr.bf16.mxu0 0
        %5443 = vmatpush1.bf16.msra.mxu0 0
        %5444 = vmatprep.subr.bf16.mxu0 0
        %5445 = vmatpush1.bf16.msra.mxu0 0
        %5446 = vmatprep.subr.bf16.mxu0 0
        %5447 = vmatpush1.bf16.msra.mxu0 0
        %5448 = vmatprep.subr.bf16.mxu0 0
        %5449 = vmatpush1.bf16.msra.mxu0 0
        %5450 = vmatprep.subr.bf16.mxu0 0
        %5451 = vmatpush1.bf16.msra.mxu0 0
        %5452 = vmatprep.subr.bf16.mxu0 0
        %5453 = vmatpush1.bf16.msra.mxu0 0
        %5454 = vmatprep.subr.bf16.mxu0 0
        %5455 = vmatpush1.bf16.msra.mxu0 0
        %5456 = vmatprep.subr.bf16.mxu0 0
        %5457 = vmatpush1.bf16.msra.mxu0 0
        %5458 = vmatprep.mubr.bf16.mxu0 0
        %5459 = vmatmul.mubr.bf16.gmra.mrb[0].mxu0 %v4700
        %v5460 = vpop.f32.mrb[0].mxu0
        %v5461 = vadd.f32 %v5396, %v5460
        %v5462 = vpop.f32.mrb[0].mxu0
        %v5463 = vpop.f32.mrb[0].mxu0
        %v5464 = vadd.f32 %v5399, %v5463
        %v5465 = vpop.f32.mrb[0].mxu0
        %5466 = vmatprep.mubr.bf16.mxu0 0
        %5467 = vmatmul.mubr.bf16.gmra.mrb[0].mxu0 %v4703
        %v5468 = vpop.f32.mrb[0].mxu0
        %v5469 = vadd.f32 %v5404, %v5468
        %v5470 = vpop.f32.mrb[0].mxu0
        %v5471 = vpop.f32.mrb[0].mxu0
        %v5472 = vadd.f32 %v5407, %v5471
        %v5473 = vpop.f32.mrb[0].mxu0
        %5474 = vmatprep.mubr.bf16.mxu0 0
        %5475 = vmatmul.mubr.bf16.gmra.mrb[0].mxu0 %v4706
        %v5476 = vpop.f32.mrb[0].mxu0
        %v5477 = vadd.f32 %v5412, %v5476
        %v5478 = vpop.f32.mrb[0].mxu0
        %v5479 = vpop.f32.mrb[0].mxu0
        %v5480 = vadd.f32 %v5415, %v5479
        %v5481 = vpop.f32.mrb[0].mxu0
        %5482 = vmatprep.mubr.bf16.mxu0 0
        %5483 = vmatmul.mubr.bf16.gmra.mrb[0].mxu0 %v4709
        %v5484 = vpop.f32.mrb[0].mxu0
        %v5485 = vadd.f32 %v5420, %v5484
        %v5486 = vpop.f32.mrb[0].mxu0
        %v5487 = vpop.f32.mrb[0].mxu0
        %v5488 = vadd.f32 %v5423, %v5487
        %v5489 = vpop.f32.mrb[0].mxu0
        %5490 = vdwg.mxu0
        %s5491 = scalar_lea.vmem %s237, 168
        %v5492 = vld [vmem:[%s5491] sm:$0xf]
        %v5493 = vld [vmem:[%s5491 + $0x4] sm:$0xf]
        %v5494 = vld [vmem:[%s5491 + $0xc] sm:$0xf]
        %v5495 = vld [vmem:[%s5491 + $0x10] sm:$0xf]
        %v5496 = vld [vmem:[%s5491 + $0x18] sm:$0xf]
        %v5497 = vld [vmem:[%s5491 + $0x1c] sm:$0xf]
        %v5498 = vld [vmem:[%s5491 + $0x24] sm:$0xf]
        %v5499 = vld [vmem:[%s5491 + $0x28] sm:$0xf]
        %v5500 = vld [vmem:[%s5491 + $0x8] sm:$0x1]
        %v5501 = vld [vmem:[%s5491 + $0x14] sm:$0x1]
        %v5502 = vld [vmem:[%s5491 + $0x20] sm:$0x1]
        %v5503 = vld [vmem:[%s5491 + $0x2c] sm:$0x1]
        %v5504 = vld [vmem:[%s5491] sm:$0xe]
        %v5505 = vld [vmem:[%s5491 + $0xc] sm:$0xe]
        %v5506 = vld [vmem:[%s5491 + $0x18] sm:$0xe]
        %v5507 = vld [vmem:[%s5491 + $0x24] sm:$0xe]
        %v5516 = vunpack.c.l.b16 %v5492
        %v5517 = vunpack.c.l.b16 %v5493
        %v5518 = vunpack.c.l.b16 %v5494
        %v5519 = vunpack.c.l.b16 %v5495
        %v5520 = vunpack.c.l.b16 %v5496
        %v5521 = vunpack.c.l.b16 %v5497
        %v5522 = vunpack.c.l.b16 %v5498
        %v5523 = vunpack.c.l.b16 %v5499
        %v5524 = vpack.c.b16 %v5517, %v5516
        %v5525 = vpack.c.b16 %v5519, %v5518
        %v5526 = vpack.c.b16 %v5521, %v5520
        %v5527 = vpack.c.b16 %v5523, %v5522
        %v5536 = vunpack.c.l.b16 %v5500
        %v5537 = vunpack.c.l.b16 %v5501
        %v5538 = vunpack.c.l.b16 %v5502
        %v5539 = vunpack.c.l.b16 %v5503
        %v5540 = vpack.c.b16 %v5536, %v5536
        %v5541 = vpack.c.b16 %v5537, %v5537
        %v5542 = vpack.c.b16 %v5538, %v5538
        %v5543 = vpack.c.b16 %v5539, %v5539
        %v5545 = vshrl.u32 %v5524, 16
        %v5547 = vshll.u32 %v5524, 16
        %v5549 = vrot.slane %v5547, 1
        %v5550 = vor.u32 %v5545, %v5549
        %v5552 = vshll.u32 %v5540, 16
        %v5554 = vrot.slane %v5552, 1
        %v5555 = vsel %vm407, %v5550, %v5554
        %v5557 = vshrl.u32 %v5525, 16
        %v5559 = vshll.u32 %v5525, 16
        %v5561 = vrot.slane %v5559, 1
        %v5562 = vor.u32 %v5557, %v5561
        %v5564 = vshll.u32 %v5541, 16
        %v5566 = vrot.slane %v5564, 1
        %v5567 = vsel %vm407, %v5562, %v5566
        %v5569 = vshrl.u32 %v5526, 16
        %v5571 = vshll.u32 %v5526, 16
        %v5573 = vrot.slane %v5571, 1
        %v5574 = vor.u32 %v5569, %v5573
        %v5576 = vshll.u32 %v5542, 16
        %v5578 = vrot.slane %v5576, 1
        %v5579 = vsel %vm407, %v5574, %v5578
        %v5581 = vshrl.u32 %v5527, 16
        %v5583 = vshll.u32 %v5527, 16
        %v5585 = vrot.slane %v5583, 1
        %v5586 = vor.u32 %v5581, %v5585
        %v5588 = vshll.u32 %v5543, 16
        %v5590 = vrot.slane %v5588, 1
        %v5591 = vsel %vm407, %v5586, %v5590
        %v5600 = vunpack.c.l.b16 %v5504
        %v5601 = vunpack.c.l.b16 %v5505
        %v5602 = vunpack.c.l.b16 %v5506
        %v5603 = vunpack.c.l.b16 %v5507
        %v5604 = vpack.c.b16 %v5517, %v5600
        %v5605 = vpack.c.b16 %v5519, %v5601
        %v5606 = vpack.c.b16 %v5521, %v5602
        %v5607 = vpack.c.b16 %v5523, %v5603
        %v5608 = vrot.slane %v5604, 1
        %v5609 = vrot.slane %v5540, 1
        %v5610 = vsel %vm472, %v5608, %v5609
        %v5611 = vrot.slane %v5605, 1
        %v5612 = vrot.slane %v5541, 1
        %v5613 = vsel %vm472, %v5611, %v5612
        %v5614 = vrot.slane %v5606, 1
        %v5615 = vrot.slane %v5542, 1
        %v5616 = vsel %vm472, %v5614, %v5615
        %v5617 = vrot.slane %v5607, 1
        %v5618 = vrot.slane %v5543, 1
        %v5619 = vsel %vm472, %v5617, %v5618
        %v5624 = vld [vmem:[%s1400] sm:$0xf]
        %v5625 = vld [vmem:[%s1400 + $0x4] sm:$0xf]
        %v5626 = vld [vmem:[%s1400 + $0x8] sm:$0xf]
        %v5627 = vld [vmem:[%s1400 + $0xc] sm:$0xf]
        %v5628 = vld [vmem:[%s1400 + $0x10] sm:$0xf]
        %v5629 = vld [vmem:[%s1400 + $0x14] sm:$0xf]
        %v5630 = vld [vmem:[%s1400 + $0x18] sm:$0xf]
        %v5631 = vld [vmem:[%s1400 + $0x1c] sm:$0xf]
        %v5632 = vld [vmem:[%s1400 + $0x20] sm:$0xf]
        %v5633 = vld [vmem:[%s1400 + $0x24] sm:$0xf]
        %v5634 = vld [vmem:[%s1400 + $0x28] sm:$0xf]
        %v5635 = vld [vmem:[%s1400 + $0x2c] sm:$0xf]
        %v5636 = vld [vmem:[%s1400 + $0x30] sm:$0xf]
        %v5637 = vld [vmem:[%s1400 + $0x34] sm:$0xf]
        %v5638 = vld [vmem:[%s1400 + $0x38] sm:$0xf]
        %v5639 = vld [vmem:[%s1400 + $0x3c] sm:$0xf]
        %v5640 = vld [vmem:[%s1400 + $0x40] sm:$0xf]
        %v5641 = vld [vmem:[%s1400 + $0x44] sm:$0xf]
        %v5642 = vld [vmem:[%s1400 + $0x48] sm:$0xf]
        %v5643 = vld [vmem:[%s1400 + $0x4c] sm:$0xf]
        %v5644 = vld [vmem:[%s1400 + $0x50] sm:$0xf]
        %v5645 = vld [vmem:[%s1400 + $0x54] sm:$0xf]
        %v5646 = vld [vmem:[%s1400 + $0x58] sm:$0xf]
        %v5647 = vld [vmem:[%s1400 + $0x5c] sm:$0xf]
        %v5648 = vld [vmem:[%s1400 + $0x60] sm:$0xf]
        %v5649 = vld [vmem:[%s1400 + $0x64] sm:$0xf]
        %v5650 = vld [vmem:[%s1400 + $0x68] sm:$0xf]
        %v5651 = vld [vmem:[%s1400 + $0x6c] sm:$0xf]
        %v5652 = vld [vmem:[%s1400 + $0x70] sm:$0xf]
        %v5653 = vld [vmem:[%s1400 + $0x74] sm:$0xf]
        %v5654 = vld [vmem:[%s1400 + $0x78] sm:$0xf]
        %v5655 = vld [vmem:[%s1400 + $0x7c] sm:$0xf]
        %v5656 = vld [vmem:[%s1400 + $0x80] sm:$0xf]
        %v5657 = vld [vmem:[%s1400 + $0x84] sm:$0xf]
        %v5658 = vld [vmem:[%s1400 + $0x88] sm:$0xf]
        %v5659 = vld [vmem:[%s1400 + $0x8c] sm:$0xf]
        %v5660 = vld [vmem:[%s1400 + $0x90] sm:$0xf]
        %v5661 = vld [vmem:[%s1400 + $0x94] sm:$0xf]
        %v5662 = vld [vmem:[%s1400 + $0x98] sm:$0xf]
        %v5663 = vld [vmem:[%s1400 + $0x9c] sm:$0xf]
        %v5664 = vld [vmem:[%s1400 + $0xa0] sm:$0xf]
        %v5665 = vld [vmem:[%s1400 + $0xa4] sm:$0xf]
        %v5666 = vld [vmem:[%s1400 + $0xa8] sm:$0xf]
        %v5667 = vld [vmem:[%s1400 + $0xac] sm:$0xf]
        %v5668 = vld [vmem:[%s1400 + $0xb0] sm:$0xf]
        %v5669 = vld [vmem:[%s1400 + $0xb4] sm:$0xf]
        %v5670 = vld [vmem:[%s1400 + $0xb8] sm:$0xf]
        %v5671 = vld [vmem:[%s1400 + $0xbc] sm:$0xf]
        %v5720 = vunpack.c.l.b16 %v5624
        %v5721 = vunpack.c.l.b16 %v5625
        %v5722 = vunpack.c.l.b16 %v5626
        %v5723 = vunpack.c.l.b16 %v5627
        %v5724 = vunpack.c.l.b16 %v5628
        %v5725 = vunpack.c.l.b16 %v5629
        %v5726 = vunpack.c.l.b16 %v5630
        %v5727 = vunpack.c.l.b16 %v5631
        %v5728 = vunpack.c.l.b16 %v5632
        %v5729 = vunpack.c.l.b16 %v5633
        %v5730 = vunpack.c.l.b16 %v5634
        %v5731 = vunpack.c.l.b16 %v5635
        %v5732 = vunpack.c.l.b16 %v5636
        %v5733 = vunpack.c.l.b16 %v5637
        %v5734 = vunpack.c.l.b16 %v5638
        %v5735 = vunpack.c.l.b16 %v5639
        %v5736 = vunpack.c.l.b16 %v5640
        %v5737 = vunpack.c.l.b16 %v5641
        %v5738 = vunpack.c.l.b16 %v5642
        %v5739 = vunpack.c.l.b16 %v5643
        %v5740 = vunpack.c.l.b16 %v5644
        %v5741 = vunpack.c.l.b16 %v5645
        %v5742 = vunpack.c.l.b16 %v5646
        %v5743 = vunpack.c.l.b16 %v5647
        %v5744 = vunpack.c.l.b16 %v5648
        %v5745 = vunpack.c.l.b16 %v5649
        %v5746 = vunpack.c.l.b16 %v5650
        %v5747 = vunpack.c.l.b16 %v5651
        %v5748 = vunpack.c.l.b16 %v5652
        %v5749 = vunpack.c.l.b16 %v5653
        %v5750 = vunpack.c.l.b16 %v5654
        %v5751 = vunpack.c.l.b16 %v5655
        %v5752 = vunpack.c.l.b16 %v5656
        %v5753 = vunpack.c.l.b16 %v5657
        %v5754 = vunpack.c.l.b16 %v5658
        %v5755 = vunpack.c.l.b16 %v5659
        %v5756 = vunpack.c.l.b16 %v5660
        %v5757 = vunpack.c.l.b16 %v5661
        %v5758 = vunpack.c.l.b16 %v5662
        %v5759 = vunpack.c.l.b16 %v5663
        %v5760 = vunpack.c.l.b16 %v5664
        %v5761 = vunpack.c.l.b16 %v5665
        %v5762 = vunpack.c.l.b16 %v5666
        %v5763 = vunpack.c.l.b16 %v5667
        %v5764 = vunpack.c.l.b16 %v5668
        %v5765 = vunpack.c.l.b16 %v5669
        %v5766 = vunpack.c.l.b16 %v5670
        %v5767 = vunpack.c.l.b16 %v5671
        %v5768 = vpack.c.b16 %v5721, %v5720
        %v5769 = vpack.c.b16 %v5723, %v5722
        %v5770 = vpack.c.b16 %v5725, %v5724
        %v5771 = vpack.c.b16 %v5727, %v5726
        %v5772 = vpack.c.b16 %v5729, %v5728
        %v5773 = vpack.c.b16 %v5731, %v5730
        %v5774 = vpack.c.b16 %v5733, %v5732
        %v5775 = vpack.c.b16 %v5735, %v5734
        %v5776 = vpack.c.b16 %v5737, %v5736
        %v5777 = vpack.c.b16 %v5739, %v5738
        %v5778 = vpack.c.b16 %v5741, %v5740
        %v5779 = vpack.c.b16 %v5743, %v5742
        %v5780 = vpack.c.b16 %v5745, %v5744
        %v5781 = vpack.c.b16 %v5747, %v5746
        %v5782 = vpack.c.b16 %v5749, %v5748
        %v5783 = vpack.c.b16 %v5751, %v5750
        %v5784 = vpack.c.b16 %v5753, %v5752
        %v5785 = vpack.c.b16 %v5755, %v5754
        %v5786 = vpack.c.b16 %v5757, %v5756
        %v5787 = vpack.c.b16 %v5759, %v5758
        %v5788 = vpack.c.b16 %v5761, %v5760
        %v5789 = vpack.c.b16 %v5763, %v5762
        %v5790 = vpack.c.b16 %v5765, %v5764
        %v5791 = vpack.c.b16 %v5767, %v5766
        %5816 = vmatprep.subr.bf16.mxu0 0
        %5817 = vmatpush1.bf16.msra.mxu0 %v5768
        %5818 = vmatprep.subr.bf16.mxu0 0
        %5819 = vmatpush1.bf16.msra.mxu0 %v5769
        %5820 = vmatprep.subr.bf16.mxu0 0
        %5821 = vmatpush1.bf16.msra.mxu0 %v5770
        %5822 = vmatprep.subr.bf16.mxu0 0
        %5823 = vmatpush1.bf16.msra.mxu0 %v5771
        %5824 = vmatprep.subr.bf16.mxu0 0
        %5825 = vmatpush1.bf16.msra.mxu0 %v5772
        %5826 = vmatprep.subr.bf16.mxu0 0
        %5827 = vmatpush1.bf16.msra.mxu0 %v5773
        %5828 = vmatprep.subr.bf16.mxu0 0
        %5829 = vmatpush1.bf16.msra.mxu0 %v5774
        %5830 = vmatprep.subr.bf16.mxu0 0
        %5831 = vmatpush1.bf16.msra.mxu0 %v5775
        %5832 = vmatprep.subr.bf16.mxu0 0
        %5833 = vmatpush1.bf16.msra.mxu0 %v5776
        %5834 = vmatprep.subr.bf16.mxu0 0
        %5835 = vmatpush1.bf16.msra.mxu0 %v5777
        %5836 = vmatprep.subr.bf16.mxu0 0
        %5837 = vmatpush1.bf16.msra.mxu0 %v5778
        %5838 = vmatprep.subr.bf16.mxu0 0
        %5839 = vmatpush1.bf16.msra.mxu0 %v5779
        %5840 = vmatprep.subr.bf16.mxu0 0
        %5841 = vmatpush1.bf16.msra.mxu0 %v5780
        %5842 = vmatprep.subr.bf16.mxu0 0
        %5843 = vmatpush1.bf16.msra.mxu0 %v5781
        %5844 = vmatprep.subr.bf16.mxu0 0
        %5845 = vmatpush1.bf16.msra.mxu0 %v5782
        %5846 = vmatprep.subr.bf16.mxu0 0
        %5847 = vmatpush1.bf16.msra.mxu0 %v5783
        %5848 = vmatprep.mubr.bf16.mxu0 %v5555
        %5849 = vmatmul.mubr.bf16.gmra.mrb[0].mxu0 %v5524
        %v5850 = vpop.f32.mrb[0].mxu0
        %v5851 = vadd.f32 0.0, %v5850
        %v5852 = vpop.f32.mrb[0].mxu0
        %v5853 = vpop.f32.mrb[0].mxu0
        %v5854 = vadd.f32 0.0, %v5853
        %v5855 = vpop.f32.mrb[0].mxu0
        %5856 = vmatprep.mubr.bf16.mxu0 %v5567
        %5857 = vmatmul.mubr.bf16.gmra.mrb[0].mxu0 %v5525
        %v5858 = vpop.f32.mrb[0].mxu0
        %v5859 = vadd.f32 0.0, %v5858
        %v5860 = vpop.f32.mrb[0].mxu0
        %v5861 = vpop.f32.mrb[0].mxu0
        %v5862 = vadd.f32 0.0, %v5861
        %v5863 = vpop.f32.mrb[0].mxu0
        %5864 = vmatprep.mubr.bf16.mxu0 %v5579
        %5865 = vmatmul.mubr.bf16.gmra.mrb[0].mxu0 %v5526
        %v5866 = vpop.f32.mrb[0].mxu0
        %v5867 = vadd.f32 0.0, %v5866
        %v5868 = vpop.f32.mrb[0].mxu0
        %v5869 = vpop.f32.mrb[0].mxu0
        %v5870 = vadd.f32 0.0, %v5869
        %v5871 = vpop.f32.mrb[0].mxu0
        %5872 = vmatprep.mubr.bf16.mxu0 %v5591
        %5873 = vmatmul.mubr.bf16.gmra.mrb[0].mxu0 %v5527
        %v5874 = vpop.f32.mrb[0].mxu0
        %v5875 = vadd.f32 0.0, %v5874
        %v5876 = vpop.f32.mrb[0].mxu0
        %v5877 = vpop.f32.mrb[0].mxu0
        %v5878 = vadd.f32 0.0, %v5877
        %v5879 = vpop.f32.mrb[0].mxu0
        %5880 = vdwg.mxu0
        %5881 = vmatprep.subr.bf16.mxu0 0
        %5882 = vmatpush1.bf16.msra.mxu0 %v5784
        %5883 = vmatprep.subr.bf16.mxu0 0
        %5884 = vmatpush1.bf16.msra.mxu0 %v5785
        %5885 = vmatprep.subr.bf16.mxu0 0
        %5886 = vmatpush1.bf16.msra.mxu0 %v5786
        %5887 = vmatprep.subr.bf16.mxu0 0
        %5888 = vmatpush1.bf16.msra.mxu0 %v5787
        %5889 = vmatprep.subr.bf16.mxu0 0
        %5890 = vmatpush1.bf16.msra.mxu0 %v5788
        %5891 = vmatprep.subr.bf16.mxu0 0
        %5892 = vmatpush1.bf16.msra.mxu0 %v5789
        %5893 = vmatprep.subr.bf16.mxu0 0
        %5894 = vmatpush1.bf16.msra.mxu0 %v5790
        %5895 = vmatprep.subr.bf16.mxu0 0
        %5896 = vmatpush1.bf16.msra.mxu0 %v5791
        %5897 = vmatprep.subr.bf16.mxu0 0
        %5898 = vmatpush1.bf16.msra.mxu0 0
        %5899 = vmatprep.subr.bf16.mxu0 0
        %5900 = vmatpush1.bf16.msra.mxu0 0
        %5901 = vmatprep.subr.bf16.mxu0 0
        %5902 = vmatpush1.bf16.msra.mxu0 0
        %5903 = vmatprep.subr.bf16.mxu0 0
        %5904 = vmatpush1.bf16.msra.mxu0 0
        %5905 = vmatprep.subr.bf16.mxu0 0
        %5906 = vmatpush1.bf16.msra.mxu0 0
        %5907 = vmatprep.subr.bf16.mxu0 0
        %5908 = vmatpush1.bf16.msra.mxu0 0
        %5909 = vmatprep.subr.bf16.mxu0 0
        %5910 = vmatpush1.bf16.msra.mxu0 0
        %5911 = vmatprep.subr.bf16.mxu0 0
        %5912 = vmatpush1.bf16.msra.mxu0 0
        %5913 = vmatprep.mubr.bf16.mxu0 0
        %5914 = vmatmul.mubr.bf16.gmra.mrb[0].mxu0 %v5610
        %v5915 = vpop.f32.mrb[0].mxu0
        %v5916 = vadd.f32 %v5851, %v5915
        %v5917 = vpop.f32.mrb[0].mxu0
        %v5918 = vpop.f32.mrb[0].mxu0
        %v5919 = vadd.f32 %v5854, %v5918
        %v5920 = vpop.f32.mrb[0].mxu0
        %5921 = vmatprep.mubr.bf16.mxu0 0
        %5922 = vmatmul.mubr.bf16.gmra.mrb[0].mxu0 %v5613
        %v5923 = vpop.f32.mrb[0].mxu0
        %v5924 = vadd.f32 %v5859, %v5923
        %v5925 = vpop.f32.mrb[0].mxu0
        %v5926 = vpop.f32.mrb[0].mxu0
        %v5927 = vadd.f32 %v5862, %v5926
        %v5928 = vpop.f32.mrb[0].mxu0
        %5929 = vmatprep.mubr.bf16.mxu0 0
        %5930 = vmatmul.mubr.bf16.gmra.mrb[0].mxu0 %v5616
        %v5931 = vpop.f32.mrb[0].mxu0
        %v5932 = vadd.f32 %v5867, %v5931
        %v5933 = vpop.f32.mrb[0].mxu0
        %v5934 = vpop.f32.mrb[0].mxu0
        %v5935 = vadd.f32 %v5870, %v5934
        %v5936 = vpop.f32.mrb[0].mxu0
        %5937 = vmatprep.mubr.bf16.mxu0 0
        %5938 = vmatmul.mubr.bf16.gmra.mrb[0].mxu0 %v5619
        %v5939 = vpop.f32.mrb[0].mxu0
        %v5940 = vadd.f32 %v5875, %v5939
        %v5941 = vpop.f32.mrb[0].mxu0
        %v5942 = vpop.f32.mrb[0].mxu0
        %v5943 = vadd.f32 %v5878, %v5942
        %v5944 = vpop.f32.mrb[0].mxu0
        %5945 = vdwg.mxu0
        %v5946 = vadd.f32 %v5461, %v5916
        %v5947 = vadd.f32 %v5464, %v5919
        %v5948 = vadd.f32 %v5469, %v5924
        %v5949 = vadd.f32 %v5472, %v5927
        %v5950 = vadd.f32 %v5477, %v5932
        %v5951 = vadd.f32 %v5480, %v5935
        %v5952 = vadd.f32 %v5485, %v5940
        %v5953 = vadd.f32 %v5488, %v5943
        %v5954 = vmul.f32 %v5946, %v1734
        %v5955 = vmul.f32 %v5947, %v1734
        %v5956 = vmul.f32 %v5948, %v1734
        %v5957 = vmul.f32 %v5949, %v1734
        %v5958 = vmul.f32 %v5950, %v1734
        %v5959 = vmul.f32 %v5951, %v1734
        %v5960 = vmul.f32 %v5952, %v1734
        %v5961 = vmul.f32 %v5953, %v1734
        %v5962 = vadd.f32 %v5954, %v1746
        %v5963 = vadd.f32 %v5955, %v1746
        %v5964 = vadd.f32 %v5956, %v1746
        %v5965 = vadd.f32 %v5957, %v1746
        %v5966 = vadd.f32 %v5958, %v1746
        %v5967 = vadd.f32 %v5959, %v1746
        %v5968 = vadd.f32 %v5960, %v1746
        %v5969 = vadd.f32 %v5961, %v1746
        %v5970 = vmax.f32 %v5962, 0.0
        %v5971 = vmax.f32 %v5963, 0.0
        %v5972 = vmax.f32 %v5964, 0.0
        %v5973 = vmax.f32 %v5965, 0.0
        %v5974 = vmax.f32 %v5966, 0.0
        %v5975 = vmax.f32 %v5967, 0.0
        %v5976 = vmax.f32 %v5968, 0.0
        %v5977 = vmax.f32 %v5969, 0.0
        %v5978 = vmax.f32 %v5970, %v5972
        %v5979 = vmax.f32 %v5971, %v5973
        %5980 = vst [vmem:[#allocation2 + $0x60] sm:$0xff] %v5978
        %5981 = vst [vmem:[#allocation2 + $0x68] sm:$0xff] %v5979
        %v5982 = vmax.f32 %v5974, %v5976
        %v5983 = vmax.f32 %v5975, %v5977
        %5984 = vst [vmem:[#allocation2 + $0x70] sm:$0xff] %v5982
        %5985 = vst [vmem:[#allocation2 + $0x78] sm:$0xff] %v5983
        %v5986 = vld [vmem:[#allocation2] ss:$2 sm:$0xff]
        %s5987 = scalar_lea.vmem [#allocation2], 16
        %v5988 = vld [vmem:[%s5987] ss:$2 sm:$0xff]
        %s5989 = scalar_lea.vmem [#allocation2], 32
        %v5990 = vld [vmem:[%s5989] ss:$2 sm:$0xff]
        %s5991 = scalar_lea.vmem [#allocation2], 48
        %v5992 = vld [vmem:[%s5991] ss:$2 sm:$0xff]
        %s5993 = scalar_lea.vmem [#allocation2], 64
        %v5994 = vld [vmem:[%s5993] ss:$2 sm:$0xff]
        %s5995 = scalar_lea.vmem [#allocation2], 80
        %v5996 = vld [vmem:[%s5995] ss:$2 sm:$0xff]
        %s5997 = scalar_lea.vmem [#allocation2], 96
        %v5998 = vld [vmem:[%s5997] ss:$2 sm:$0xff]
        %s5999 = scalar_lea.vmem [#allocation2], 112
        %v6000 = vld [vmem:[%s5999] ss:$2 sm:$0xff]
        %s6001 = scalar_lea.vmem [#allocation2], 1
        %v6002 = vld [vmem:[%s6001] ss:$2 sm:$0xff]
        %s6003 = scalar_lea.vmem [#allocation2], 17
        %v6004 = vld [vmem:[%s6003] ss:$2 sm:$0xff]
        %s6005 = scalar_lea.vmem [#allocation2], 33
        %v6006 = vld [vmem:[%s6005] ss:$2 sm:$0xff]
        %s6007 = scalar_lea.vmem [#allocation2], 49
        %v6008 = vld [vmem:[%s6007] ss:$2 sm:$0xff]
        %s6009 = scalar_lea.vmem [#allocation2], 65
        %v6010 = vld [vmem:[%s6009] ss:$2 sm:$0xff]
        %s6011 = scalar_lea.vmem [#allocation2], 81
        %v6012 = vld [vmem:[%s6011] ss:$2 sm:$0xff]
        %s6013 = scalar_lea.vmem [#allocation2], 97
        %v6014 = vld [vmem:[%s6013] ss:$2 sm:$0xff]
        %s6015 = scalar_lea.vmem [#allocation2], 113
        %v6016 = vld [vmem:[%s6015] ss:$2 sm:$0xff]
        %v6017 = vmax.f32 %v5986, %v6002
        %v6018 = vmax.f32 %v5988, %v6004
        %v6019 = vmax.f32 %v5990, %v6006
        %v6020 = vmax.f32 %v5992, %v6008
        %v6021 = vmax.f32 %v5994, %v6010
        %v6022 = vmax.f32 %v5996, %v6012
        %v6023 = vmax.f32 %v5998, %v6014
        %v6024 = vmax.f32 %v6000, %v6016
        %v6025 = vpack.c.bf16 %v6017, %v6017
        %v6026 = vpack.c.bf16 %v6018, %v6018
        %v6027 = vpack.c.bf16 %v6019, %v6019
        %v6028 = vpack.c.bf16 %v6020, %v6020
        %v6029 = vpack.c.bf16 %v6021, %v6021
        %v6030 = vpack.c.bf16 %v6022, %v6022
        %v6031 = vpack.c.bf16 %v6023, %v6023
        %v6032 = vpack.c.bf16 %v6024, %v6024
        %v6034 = vshrl.u32 %v6025, 16
        %v6036 = vrot.slane %v6034, 7
        %v6037 = vshll.u32 %v6025, 16
        %v6039 = vor.u32 %v6036, %v6037
        %v6041 = vshrl.u32 %v6026, 16
        %v6043 = vrot.slane %v6041, 7
        %v6044 = vshll.u32 %v6026, 16
        %v6046 = vor.u32 %v6043, %v6044
        %v6048 = vshrl.u32 %v6027, 16
        %v6050 = vrot.slane %v6048, 7
        %v6051 = vshll.u32 %v6027, 16
        %v6053 = vor.u32 %v6050, %v6051
        %v6055 = vshrl.u32 %v6028, 16
        %v6057 = vrot.slane %v6055, 7
        %v6058 = vshll.u32 %v6028, 16
        %v6060 = vor.u32 %v6057, %v6058
        %v6062 = vshrl.u32 %v6029, 16
        %v6064 = vrot.slane %v6062, 7
        %v6065 = vshll.u32 %v6029, 16
        %v6067 = vor.u32 %v6064, %v6065
        %v6069 = vshrl.u32 %v6030, 16
        %v6071 = vrot.slane %v6069, 7
        %v6072 = vshll.u32 %v6030, 16
        %v6074 = vor.u32 %v6071, %v6072
        %v6076 = vshrl.u32 %v6031, 16
        %v6078 = vrot.slane %v6076, 7
        %v6079 = vshll.u32 %v6031, 16
        %v6081 = vor.u32 %v6078, %v6079
        %v6083 = vshrl.u32 %v6032, 16
        %v6085 = vrot.slane %v6083, 7
        %v6086 = vshll.u32 %v6032, 16
        %v6088 = vor.u32 %v6085, %v6086
        %vm6097 = vcmask 1044480
        %vm6098 = vsmask.f32 4354
        %vm6099 = vmand %vm6097, %vm6098
        %v6100 = vld [vmem:[%s242] sm:$0x1f]
        %v6101 = vsel %vm6099, %v6039, %v6100
        %6102 = vst [vmem:[%s242] sm:$0x1f] %v6101
        %v6103 = vld [vmem:[%s242 + $0x8] sm:$0x1f]
        %v6104 = vsel %vm6099, %v6046, %v6103
        %6105 = vst [vmem:[%s242 + $0x8] sm:$0x1f] %v6104
        %v6106 = vld [vmem:[%s242 + $0x10] sm:$0x1f]
        %v6107 = vsel %vm6099, %v6053, %v6106
        %6108 = vst [vmem:[%s242 + $0x10] sm:$0x1f] %v6107
        %v6109 = vld [vmem:[%s242 + $0x18] sm:$0x1f]
        %v6110 = vsel %vm6099, %v6060, %v6109
        %6111 = vst [vmem:[%s242 + $0x18] sm:$0x1f] %v6110
        %v6112 = vld [vmem:[%s242 + $0x20] sm:$0x1f]
        %v6113 = vsel %vm6099, %v6067, %v6112
        %6114 = vst [vmem:[%s242 + $0x20] sm:$0x1f] %v6113
        %v6115 = vld [vmem:[%s242 + $0x28] sm:$0x1f]
        %v6116 = vsel %vm6099, %v6074, %v6115
        %6117 = vst [vmem:[%s242 + $0x28] sm:$0x1f] %v6116
        %v6118 = vld [vmem:[%s242 + $0x30] sm:$0x1f]
        %v6119 = vsel %vm6099, %v6081, %v6118
        %6120 = vst [vmem:[%s242 + $0x30] sm:$0x1f] %v6119
        %v6121 = vld [vmem:[%s242 + $0x38] sm:$0x1f]
        %v6122 = vsel %vm6099, %v6088, %v6121
        %6123 = vst [vmem:[%s242 + $0x38] sm:$0x1f] %v6122
        %v6124 = vld [vmem:[#allocation3] sm:$0xf]
        %v6125 = vld [vmem:[#allocation3 + $0x8] sm:$0xf]
        %v6126 = vld [vmem:[#allocation3 + $0x10] sm:$0xf]
        %v6127 = vld [vmem:[#allocation3 + $0x18] sm:$0xf]
        %v6128 = vld [vmem:[#allocation3 + $0x20] sm:$0xf]
        %v6129 = vld [vmem:[#allocation3 + $0x28] sm:$0xf]
        %v6130 = vld [vmem:[#allocation3 + $0x30] sm:$0xf]
        %v6131 = vld [vmem:[#allocation3 + $0x38] sm:$0xf]
        %v6132 = vld [vmem:[#allocation3] sm:$0x1f]
        %v6133 = vld [vmem:[#allocation3 + $0x8] sm:$0x1f]
        %v6134 = vld [vmem:[#allocation3 + $0x10] sm:$0x1f]
        %v6135 = vld [vmem:[#allocation3 + $0x18] sm:$0x1f]
        %v6136 = vld [vmem:[#allocation3 + $0x20] sm:$0x1f]
        %v6137 = vld [vmem:[#allocation3 + $0x28] sm:$0x1f]
        %v6138 = vld [vmem:[#allocation3 + $0x30] sm:$0x1f]
        %v6139 = vld [vmem:[#allocation3 + $0x38] sm:$0x1f]
        %v6140 = vld [vmem:[#allocation3] sm:$0x1e]
        %v6141 = vld [vmem:[#allocation3 + $0x8] sm:$0x1e]
        %v6142 = vld [vmem:[#allocation3 + $0x10] sm:$0x1e]
        %v6143 = vld [vmem:[#allocation3 + $0x18] sm:$0x1e]
        %v6144 = vld [vmem:[#allocation3 + $0x20] sm:$0x1e]
        %v6145 = vld [vmem:[#allocation3 + $0x28] sm:$0x1e]
        %v6146 = vld [vmem:[#allocation3 + $0x30] sm:$0x1e]
        %v6147 = vld [vmem:[#allocation3 + $0x38] sm:$0x1e]
        %v6149 = vshrl.u32 %v6132, 16
        %v6151 = vshll.u32 %v6132, 16
        %v6153 = vrot.slane %v6151, 1
        %v6154 = vor.u32 %v6149, %v6153
        %v6156 = vshrl.u32 %v6133, 16
        %v6158 = vshll.u32 %v6133, 16
        %v6160 = vrot.slane %v6158, 1
        %v6161 = vor.u32 %v6156, %v6160
        %v6163 = vshrl.u32 %v6134, 16
        %v6165 = vshll.u32 %v6134, 16
        %v6167 = vrot.slane %v6165, 1
        %v6168 = vor.u32 %v6163, %v6167
        %v6170 = vshrl.u32 %v6135, 16
        %v6172 = vshll.u32 %v6135, 16
        %v6174 = vrot.slane %v6172, 1
        %v6175 = vor.u32 %v6170, %v6174
        %v6177 = vshrl.u32 %v6136, 16
        %v6179 = vshll.u32 %v6136, 16
        %v6181 = vrot.slane %v6179, 1
        %v6182 = vor.u32 %v6177, %v6181
        %v6184 = vshrl.u32 %v6137, 16
        %v6186 = vshll.u32 %v6137, 16
        %v6188 = vrot.slane %v6186, 1
        %v6189 = vor.u32 %v6184, %v6188
        %v6191 = vshrl.u32 %v6138, 16
        %v6193 = vshll.u32 %v6138, 16
        %v6195 = vrot.slane %v6193, 1
        %v6196 = vor.u32 %v6191, %v6195
        %v6198 = vshrl.u32 %v6139, 16
        %v6200 = vshll.u32 %v6139, 16
        %v6202 = vrot.slane %v6200, 1
        %v6203 = vor.u32 %v6198, %v6202
        %v6212 = vrot.slane %v6140, 1
        %v6213 = vrot.slane %v6141, 1
        %v6214 = vrot.slane %v6142, 1
        %v6215 = vrot.slane %v6143, 1
        %v6216 = vrot.slane %v6144, 1
        %v6217 = vrot.slane %v6145, 1
        %v6218 = vrot.slane %v6146, 1
        %v6219 = vrot.slane %v6147, 1
        %v6228 = vunpack.c.l.b16 %v6124
        %v6229 = vunpack.c.l.b16 %v6154
        %v6230 = vunpack.c.l.b16 %v6212
        %v6231 = vunpack.c.l.b16 %v6125
        %v6232 = vunpack.c.l.b16 %v6161
        %v6233 = vunpack.c.l.b16 %v6213
        %v6234 = vunpack.c.l.b16 %v6126
        %v6235 = vunpack.c.l.b16 %v6168
        %v6236 = vunpack.c.l.b16 %v6214
        %v6237 = vunpack.c.l.b16 %v6127
        %v6238 = vunpack.c.l.b16 %v6175
        %v6239 = vunpack.c.l.b16 %v6215
        %v6240 = vunpack.c.l.b16 %v6128
        %v6241 = vunpack.c.l.b16 %v6182
        %v6242 = vunpack.c.l.b16 %v6216
        %v6243 = vunpack.c.l.b16 %v6129
        %v6244 = vunpack.c.l.b16 %v6189
        %v6245 = vunpack.c.l.b16 %v6217
        %v6246 = vunpack.c.l.b16 %v6130
        %v6247 = vunpack.c.l.b16 %v6196
        %v6248 = vunpack.c.l.b16 %v6218
        %v6249 = vunpack.c.l.b16 %v6131
        %v6250 = vunpack.c.l.b16 %v6203
        %v6251 = vunpack.c.l.b16 %v6219
        %v6252 = vld [vmem:[%s2] sm:$0xf]
        %v6253 = vld [vmem:[%s2 + $0x4] sm:$0xf]
        %v6254 = vld [vmem:[%s2 + $0x8] sm:$0xf]
        %v6255 = vld [vmem:[%s2 + $0xc] sm:$0xf]
        %v6256 = vld [vmem:[%s2 + $0x10] sm:$0xf]
        %v6257 = vld [vmem:[%s2 + $0x14] sm:$0xf]
        %v6258 = vld [vmem:[%s2 + $0x18] sm:$0xf]
        %v6259 = vld [vmem:[%s2 + $0x1c] sm:$0xf]
        %v6260 = vld [vmem:[%s2 + $0x20] sm:$0xf]
        %v6261 = vld [vmem:[%s2 + $0x24] sm:$0xf]
        %v6262 = vld [vmem:[%s2 + $0x28] sm:$0xf]
        %v6263 = vld [vmem:[%s2 + $0x2c] sm:$0xf]
        %v6264 = vld [vmem:[%s2 + $0x30] sm:$0xf]
        %v6265 = vld [vmem:[%s2 + $0x34] sm:$0xf]
        %v6266 = vld [vmem:[%s2 + $0x38] sm:$0xf]
        %v6267 = vld [vmem:[%s2 + $0x3c] sm:$0xf]
        %v6268 = vld [vmem:[%s2 + $0x40] sm:$0xf]
        %v6269 = vld [vmem:[%s2 + $0x44] sm:$0xf]
        %v6270 = vld [vmem:[%s2 + $0x48] sm:$0xf]
        %v6271 = vld [vmem:[%s2 + $0x4c] sm:$0xf]
        %v6272 = vld [vmem:[%s2 + $0x50] sm:$0xf]
        %v6273 = vld [vmem:[%s2 + $0x54] sm:$0xf]
        %v6274 = vld [vmem:[%s2 + $0x58] sm:$0xf]
        %v6275 = vld [vmem:[%s2 + $0x5c] sm:$0xf]
        %v6276 = vld [vmem:[%s2 + $0x60] sm:$0xf]
        %v6277 = vld [vmem:[%s2 + $0x64] sm:$0xf]
        %v6278 = vld [vmem:[%s2 + $0x68] sm:$0xf]
        %v6279 = vld [vmem:[%s2 + $0x6c] sm:$0xf]
        %v6280 = vld [vmem:[%s2 + $0x70] sm:$0xf]
        %v6281 = vld [vmem:[%s2 + $0x74] sm:$0xf]
        %v6282 = vld [vmem:[%s2 + $0x78] sm:$0xf]
        %v6283 = vld [vmem:[%s2 + $0x7c] sm:$0xf]
        %v6284 = vld [vmem:[%s2 + $0x80] sm:$0xf]
        %v6285 = vld [vmem:[%s2 + $0x84] sm:$0xf]
        %v6286 = vld [vmem:[%s2 + $0x88] sm:$0xf]
        %v6287 = vld [vmem:[%s2 + $0x8c] sm:$0xf]
        %v6288 = vld [vmem:[%s2 + $0x90] sm:$0xf]
        %v6289 = vld [vmem:[%s2 + $0x94] sm:$0xf]
        %v6290 = vld [vmem:[%s2 + $0x98] sm:$0xf]
        %v6291 = vld [vmem:[%s2 + $0x9c] sm:$0xf]
        %v6292 = vld [vmem:[%s2 + $0xa0] sm:$0xf]
        %v6293 = vld [vmem:[%s2 + $0xa4] sm:$0xf]
        %v6294 = vld [vmem:[%s2 + $0xa8] sm:$0xf]
        %v6295 = vld [vmem:[%s2 + $0xac] sm:$0xf]
        %v6296 = vld [vmem:[%s2 + $0xb0] sm:$0xf]
        %v6297 = vld [vmem:[%s2 + $0xb4] sm:$0xf]
        %v6298 = vld [vmem:[%s2 + $0xb8] sm:$0xf]
        %v6299 = vld [vmem:[%s2 + $0xbc] sm:$0xf]
        %v6300 = vld [vmem:[%s242] sm:$0xf]
        %v6301 = vld [vmem:[%s242 + $0x8] sm:$0xf]
        %v6302 = vld [vmem:[%s242 + $0x10] sm:$0xf]
        %v6303 = vld [vmem:[%s242 + $0x18] sm:$0xf]
        %v6304 = vld [vmem:[%s242 + $0x20] sm:$0xf]
        %v6305 = vld [vmem:[%s242 + $0x28] sm:$0xf]
        %v6306 = vld [vmem:[%s242 + $0x30] sm:$0xf]
        %v6307 = vld [vmem:[%s242 + $0x38] sm:$0xf]
        %v6308 = vld [vmem:[%s242] sm:$0x1f]
        %v6309 = vld [vmem:[%s242 + $0x8] sm:$0x1f]
        %v6310 = vld [vmem:[%s242 + $0x10] sm:$0x1f]
        %v6311 = vld [vmem:[%s242 + $0x18] sm:$0x1f]
        %v6312 = vld [vmem:[%s242 + $0x20] sm:$0x1f]
        %v6313 = vld [vmem:[%s242 + $0x28] sm:$0x1f]
        %v6314 = vld [vmem:[%s242 + $0x30] sm:$0x1f]
        %v6315 = vld [vmem:[%s242 + $0x38] sm:$0x1f]
        %v6316 = vld [vmem:[%s242] sm:$0x1e]
        %v6317 = vld [vmem:[%s242 + $0x8] sm:$0x1e]
        %v6318 = vld [vmem:[%s242 + $0x10] sm:$0x1e]
        %v6319 = vld [vmem:[%s242 + $0x18] sm:$0x1e]
        %v6320 = vld [vmem:[%s242 + $0x20] sm:$0x1e]
        %v6321 = vld [vmem:[%s242 + $0x28] sm:$0x1e]
        %v6322 = vld [vmem:[%s242 + $0x30] sm:$0x1e]
        %v6323 = vld [vmem:[%s242 + $0x38] sm:$0x1e]
        %v6325 = vshrl.u32 %v6308, 16
        %v6327 = vshll.u32 %v6308, 16
        %v6329 = vrot.slane %v6327, 1
        %v6330 = vor.u32 %v6325, %v6329
        %v6332 = vshrl.u32 %v6309, 16
        %v6334 = vshll.u32 %v6309, 16
        %v6336 = vrot.slane %v6334, 1
        %v6337 = vor.u32 %v6332, %v6336
        %v6339 = vshrl.u32 %v6310, 16
        %v6341 = vshll.u32 %v6310, 16
        %v6343 = vrot.slane %v6341, 1
        %v6344 = vor.u32 %v6339, %v6343
        %v6346 = vshrl.u32 %v6311, 16
        %v6348 = vshll.u32 %v6311, 16
        %v6350 = vrot.slane %v6348, 1
        %v6351 = vor.u32 %v6346, %v6350
        %v6353 = vshrl.u32 %v6312, 16
        %v6355 = vshll.u32 %v6312, 16
        %v6357 = vrot.slane %v6355, 1
        %v6358 = vor.u32 %v6353, %v6357
        %v6360 = vshrl.u32 %v6313, 16
        %v6362 = vshll.u32 %v6313, 16
        %v6364 = vrot.slane %v6362, 1
        %v6365 = vor.u32 %v6360, %v6364
        %v6367 = vshrl.u32 %v6314, 16
        %v6369 = vshll.u32 %v6314, 16
        %v6371 = vrot.slane %v6369, 1
        %v6372 = vor.u32 %v6367, %v6371
        %v6374 = vshrl.u32 %v6315, 16
        %v6376 = vshll.u32 %v6315, 16
        %v6378 = vrot.slane %v6376, 1
        %v6379 = vor.u32 %v6374, %v6378
        %v6388 = vrot.slane %v6316, 1
        %v6389 = vrot.slane %v6317, 1
        %v6390 = vrot.slane %v6318, 1
        %v6391 = vrot.slane %v6319, 1
        %v6392 = vrot.slane %v6320, 1
        %v6393 = vrot.slane %v6321, 1
        %v6394 = vrot.slane %v6322, 1
        %v6395 = vrot.slane %v6323, 1
        %v6404 = vunpack.c.l.b16 %v6300
        %v6405 = vunpack.c.l.b16 %v6330
        %v6406 = vunpack.c.l.b16 %v6388
        %v6407 = vunpack.c.l.b16 %v6301
        %v6408 = vunpack.c.l.b16 %v6337
        %v6409 = vunpack.c.l.b16 %v6389
        %v6410 = vunpack.c.l.b16 %v6302
        %v6411 = vunpack.c.l.b16 %v6344
        %v6412 = vunpack.c.l.b16 %v6390
        %v6413 = vunpack.c.l.b16 %v6303
        %v6414 = vunpack.c.l.b16 %v6351
        %v6415 = vunpack.c.l.b16 %v6391
        %v6416 = vunpack.c.l.b16 %v6304
        %v6417 = vunpack.c.l.b16 %v6358
        %v6418 = vunpack.c.l.b16 %v6392
        %v6419 = vunpack.c.l.b16 %v6305
        %v6420 = vunpack.c.l.b16 %v6365
        %v6421 = vunpack.c.l.b16 %v6393
        %v6422 = vunpack.c.l.b16 %v6306
        %v6423 = vunpack.c.l.b16 %v6372
        %v6424 = vunpack.c.l.b16 %v6394
        %v6425 = vunpack.c.l.b16 %v6307
        %v6426 = vunpack.c.l.b16 %v6379
        %v6427 = vunpack.c.l.b16 %v6395
        %s6428 = scalar_lea.vmem %s2, 192
        %v6429 = vld [vmem:[%s6428] sm:$0xf]
        %v6430 = vld [vmem:[%s6428 + $0x4] sm:$0xf]
        %v6431 = vld [vmem:[%s6428 + $0x8] sm:$0xf]
        %v6432 = vld [vmem:[%s6428 + $0xc] sm:$0xf]
        %v6433 = vld [vmem:[%s6428 + $0x10] sm:$0xf]
        %v6434 = vld [vmem:[%s6428 + $0x14] sm:$0xf]
        %v6435 = vld [vmem:[%s6428 + $0x18] sm:$0xf]
        %v6436 = vld [vmem:[%s6428 + $0x1c] sm:$0xf]
        %v6437 = vld [vmem:[%s6428 + $0x20] sm:$0xf]
        %v6438 = vld [vmem:[%s6428 + $0x24] sm:$0xf]
        %v6439 = vld [vmem:[%s6428 + $0x28] sm:$0xf]
        %v6440 = vld [vmem:[%s6428 + $0x2c] sm:$0xf]
        %v6441 = vld [vmem:[%s6428 + $0x30] sm:$0xf]
        %v6442 = vld [vmem:[%s6428 + $0x34] sm:$0xf]
        %v6443 = vld [vmem:[%s6428 + $0x38] sm:$0xf]
        %v6444 = vld [vmem:[%s6428 + $0x3c] sm:$0xf]
        %v6445 = vld [vmem:[%s6428 + $0x40] sm:$0xf]
        %v6446 = vld [vmem:[%s6428 + $0x44] sm:$0xf]
        %v6447 = vld [vmem:[%s6428 + $0x48] sm:$0xf]
        %v6448 = vld [vmem:[%s6428 + $0x4c] sm:$0xf]
        %v6449 = vld [vmem:[%s6428 + $0x50] sm:$0xf]
        %v6450 = vld [vmem:[%s6428 + $0x54] sm:$0xf]
        %v6451 = vld [vmem:[%s6428 + $0x58] sm:$0xf]
        %v6452 = vld [vmem:[%s6428 + $0x5c] sm:$0xf]
        %v6453 = vld [vmem:[%s6428 + $0x60] sm:$0xf]
        %v6454 = vld [vmem:[%s6428 + $0x64] sm:$0xf]
        %v6455 = vld [vmem:[%s6428 + $0x68] sm:$0xf]
        %v6456 = vld [vmem:[%s6428 + $0x6c] sm:$0xf]
        %v6457 = vld [vmem:[%s6428 + $0x70] sm:$0xf]
        %v6458 = vld [vmem:[%s6428 + $0x74] sm:$0xf]
        %v6459 = vld [vmem:[%s6428 + $0x78] sm:$0xf]
        %v6460 = vld [vmem:[%s6428 + $0x7c] sm:$0xf]
        %v6461 = vld [vmem:[%s6428 + $0x80] sm:$0xf]
        %v6462 = vld [vmem:[%s6428 + $0x84] sm:$0xf]
        %v6463 = vld [vmem:[%s6428 + $0x88] sm:$0xf]
        %v6464 = vld [vmem:[%s6428 + $0x8c] sm:$0xf]
        %v6465 = vld [vmem:[%s6428 + $0x90] sm:$0xf]
        %v6466 = vld [vmem:[%s6428 + $0x94] sm:$0xf]
        %v6467 = vld [vmem:[%s6428 + $0x98] sm:$0xf]
        %v6468 = vld [vmem:[%s6428 + $0x9c] sm:$0xf]
        %v6469 = vld [vmem:[%s6428 + $0xa0] sm:$0xf]
        %v6470 = vld [vmem:[%s6428 + $0xa4] sm:$0xf]
        %v6471 = vld [vmem:[%s6428 + $0xa8] sm:$0xf]
        %v6472 = vld [vmem:[%s6428 + $0xac] sm:$0xf]
        %v6473 = vld [vmem:[%s6428 + $0xb0] sm:$0xf]
        %v6474 = vld [vmem:[%s6428 + $0xb4] sm:$0xf]
        %v6475 = vld [vmem:[%s6428 + $0xb8] sm:$0xf]
        %v6476 = vld [vmem:[%s6428 + $0xbc] sm:$0xf]
        %v6477 = vpack.c.b16 %v6407, %v6404
        %v6478 = vpack.c.b16 %v6408, %v6405
        %v6479 = vpack.c.b16 %v6409, %v6406
        %v6480 = vpack.c.b16 %v6413, %v6410
        %v6481 = vpack.c.b16 %v6414, %v6411
        %v6482 = vpack.c.b16 %v6415, %v6412
        %v6483 = vpack.c.b16 %v6419, %v6416
        %v6484 = vpack.c.b16 %v6420, %v6417
        %v6485 = vpack.c.b16 %v6421, %v6418
        %v6486 = vpack.c.b16 %v6425, %v6422
        %v6487 = vpack.c.b16 %v6426, %v6423
        %v6488 = vpack.c.b16 %v6427, %v6424
        %v6549 = vunpack.c.l.b16 %v6429
        %v6550 = vunpack.c.l.b16 %v6430
        %v6551 = vunpack.c.l.b16 %v6431
        %v6552 = vunpack.c.l.b16 %v6432
        %v6553 = vunpack.c.l.b16 %v6433
        %v6554 = vunpack.c.l.b16 %v6434
        %v6555 = vunpack.c.l.b16 %v6435
        %v6556 = vunpack.c.l.b16 %v6436
        %v6557 = vunpack.c.l.b16 %v6437
        %v6558 = vunpack.c.l.b16 %v6438
        %v6559 = vunpack.c.l.b16 %v6439
        %v6560 = vunpack.c.l.b16 %v6440
        %v6561 = vunpack.c.l.b16 %v6441
        %v6562 = vunpack.c.l.b16 %v6442
        %v6563 = vunpack.c.l.b16 %v6443
        %v6564 = vunpack.c.l.b16 %v6444
        %v6565 = vunpack.c.l.b16 %v6445
        %v6566 = vunpack.c.l.b16 %v6446
        %v6567 = vunpack.c.l.b16 %v6447
        %v6568 = vunpack.c.l.b16 %v6448
        %v6569 = vunpack.c.l.b16 %v6449
        %v6570 = vunpack.c.l.b16 %v6450
        %v6571 = vunpack.c.l.b16 %v6451
        %v6572 = vunpack.c.l.b16 %v6452
        %v6573 = vunpack.c.l.b16 %v6453
        %v6574 = vunpack.c.l.b16 %v6454
        %v6575 = vunpack.c.l.b16 %v6455
        %v6576 = vunpack.c.l.b16 %v6456
        %v6577 = vunpack.c.l.b16 %v6457
        %v6578 = vunpack.c.l.b16 %v6458
        %v6579 = vunpack.c.l.b16 %v6459
        %v6580 = vunpack.c.l.b16 %v6460
        %v6581 = vunpack.c.l.b16 %v6461
        %v6582 = vunpack.c.l.b16 %v6462
        %v6583 = vunpack.c.l.b16 %v6463
        %v6584 = vunpack.c.l.b16 %v6464
        %v6585 = vunpack.c.l.b16 %v6465
        %v6586 = vunpack.c.l.b16 %v6466
        %v6587 = vunpack.c.l.b16 %v6467
        %v6588 = vunpack.c.l.b16 %v6468
        %v6589 = vunpack.c.l.b16 %v6469
        %v6590 = vunpack.c.l.b16 %v6470
        %v6591 = vunpack.c.l.b16 %v6471
        %v6592 = vunpack.c.l.b16 %v6472
        %v6593 = vunpack.c.l.b16 %v6473
        %v6594 = vunpack.c.l.b16 %v6474
        %v6595 = vunpack.c.l.b16 %v6475
        %v6596 = vunpack.c.l.b16 %v6476
        %v6597 = vpack.c.b16 %v6550, %v6549
        %v6598 = vpack.c.b16 %v6552, %v6551
        %v6599 = vpack.c.b16 %v6554, %v6553
        %v6600 = vpack.c.b16 %v6556, %v6555
        %v6601 = vpack.c.b16 %v6558, %v6557
        %v6602 = vpack.c.b16 %v6560, %v6559
        %v6603 = vpack.c.b16 %v6562, %v6561
        %v6604 = vpack.c.b16 %v6564, %v6563
        %v6605 = vpack.c.b16 %v6566, %v6565
        %v6606 = vpack.c.b16 %v6568, %v6567
        %v6607 = vpack.c.b16 %v6570, %v6569
        %v6608 = vpack.c.b16 %v6572, %v6571
        %v6609 = vpack.c.b16 %v6574, %v6573
        %v6610 = vpack.c.b16 %v6576, %v6575
        %v6611 = vpack.c.b16 %v6578, %v6577
        %v6612 = vpack.c.b16 %v6580, %v6579
        %v6613 = vpack.c.b16 %v6582, %v6581
        %v6614 = vpack.c.b16 %v6584, %v6583
        %v6615 = vpack.c.b16 %v6586, %v6585
        %v6616 = vpack.c.b16 %v6588, %v6587
        %v6617 = vpack.c.b16 %v6590, %v6589
        %v6618 = vpack.c.b16 %v6592, %v6591
        %v6619 = vpack.c.b16 %v6594, %v6593
        %v6620 = vpack.c.b16 %v6596, %v6595
        %6645 = vmatprep.subr.bf16.mxu0 0
        %6646 = vmatpush1.bf16.msra.mxu0 %v6597
        %6647 = vmatprep.subr.bf16.mxu0 0
        %6648 = vmatpush1.bf16.msra.mxu0 %v6598
        %6649 = vmatprep.subr.bf16.mxu0 0
        %6650 = vmatpush1.bf16.msra.mxu0 %v6599
        %6651 = vmatprep.subr.bf16.mxu0 0
        %6652 = vmatpush1.bf16.msra.mxu0 %v6600
        %6653 = vmatprep.subr.bf16.mxu0 0
        %6654 = vmatpush1.bf16.msra.mxu0 %v6601
        %6655 = vmatprep.subr.bf16.mxu0 0
        %6656 = vmatpush1.bf16.msra.mxu0 %v6602
        %6657 = vmatprep.subr.bf16.mxu0 0
        %6658 = vmatpush1.bf16.msra.mxu0 %v6603
        %6659 = vmatprep.subr.bf16.mxu0 0
        %6660 = vmatpush1.bf16.msra.mxu0 %v6604
        %6661 = vmatprep.subr.bf16.mxu0 0
        %6662 = vmatpush1.bf16.msra.mxu0 %v6605
        %6663 = vmatprep.subr.bf16.mxu0 0
        %6664 = vmatpush1.bf16.msra.mxu0 %v6606
        %6665 = vmatprep.subr.bf16.mxu0 0
        %6666 = vmatpush1.bf16.msra.mxu0 %v6607
        %6667 = vmatprep.subr.bf16.mxu0 0
        %6668 = vmatpush1.bf16.msra.mxu0 %v6608
        %6669 = vmatprep.subr.bf16.mxu0 0
        %6670 = vmatpush1.bf16.msra.mxu0 %v6609
        %6671 = vmatprep.subr.bf16.mxu0 0
        %6672 = vmatpush1.bf16.msra.mxu0 %v6610
        %6673 = vmatprep.subr.bf16.mxu0 0
        %6674 = vmatpush1.bf16.msra.mxu0 %v6611
        %6675 = vmatprep.subr.bf16.mxu0 0
        %6676 = vmatpush1.bf16.msra.mxu0 %v6612
        %6677 = vmatprep.mubr.bf16.mxu0 %v6478
        %6678 = vmatmul.mubr.bf16.gmra.mrb[0].mxu0 %v6477
        %v6679 = vpop.f32.mrb[0].mxu0
        %v6680 = vadd.f32 0.0, %v6679
        %v6681 = vpop.f32.mrb[0].mxu0
        %v6682 = vpop.f32.mrb[0].mxu0
        %v6683 = vadd.f32 0.0, %v6682
        %v6684 = vpop.f32.mrb[0].mxu0
        %6685 = vmatprep.mubr.bf16.mxu0 %v6481
        %6686 = vmatmul.mubr.bf16.gmra.mrb[0].mxu0 %v6480
        %v6687 = vpop.f32.mrb[0].mxu0
        %v6688 = vadd.f32 0.0, %v6687
        %v6689 = vpop.f32.mrb[0].mxu0
        %v6690 = vpop.f32.mrb[0].mxu0
        %v6691 = vadd.f32 0.0, %v6690
        %v6692 = vpop.f32.mrb[0].mxu0
        %6693 = vmatprep.mubr.bf16.mxu0 %v6484
        %6694 = vmatmul.mubr.bf16.gmra.mrb[0].mxu0 %v6483
        %v6695 = vpop.f32.mrb[0].mxu0
        %v6696 = vadd.f32 0.0, %v6695
        %v6697 = vpop.f32.mrb[0].mxu0
        %v6698 = vpop.f32.mrb[0].mxu0
        %v6699 = vadd.f32 0.0, %v6698
        %v6700 = vpop.f32.mrb[0].mxu0
        %6701 = vmatprep.mubr.bf16.mxu0 %v6487
        %6702 = vmatmul.mubr.bf16.gmra.mrb[0].mxu0 %v6486
        %v6703 = vpop.f32.mrb[0].mxu0
        %v6704 = vadd.f32 0.0, %v6703
        %v6705 = vpop.f32.mrb[0].mxu0
        %v6706 = vpop.f32.mrb[0].mxu0
        %v6707 = vadd.f32 0.0, %v6706
        %v6708 = vpop.f32.mrb[0].mxu0
        %6709 = vdwg.mxu0
        %6710 = vmatprep.subr.bf16.mxu0 0
        %6711 = vmatpush1.bf16.msra.mxu0 %v6613
        %6712 = vmatprep.subr.bf16.mxu0 0
        %6713 = vmatpush1.bf16.msra.mxu0 %v6614
        %6714 = vmatprep.subr.bf16.mxu0 0
        %6715 = vmatpush1.bf16.msra.mxu0 %v6615
        %6716 = vmatprep.subr.bf16.mxu0 0
        %6717 = vmatpush1.bf16.msra.mxu0 %v6616
        %6718 = vmatprep.subr.bf16.mxu0 0
        %6719 = vmatpush1.bf16.msra.mxu0 %v6617
        %6720 = vmatprep.subr.bf16.mxu0 0
        %6721 = vmatpush1.bf16.msra.mxu0 %v6618
        %6722 = vmatprep.subr.bf16.mxu0 0
        %6723 = vmatpush1.bf16.msra.mxu0 %v6619
        %6724 = vmatprep.subr.bf16.mxu0 0
        %6725 = vmatpush1.bf16.msra.mxu0 %v6620
        %6726 = vmatprep.subr.bf16.mxu0 0
        %6727 = vmatpush1.bf16.msra.mxu0 0
        %6728 = vmatprep.subr.bf16.mxu0 0
        %6729 = vmatpush1.bf16.msra.mxu0 0
        %6730 = vmatprep.subr.bf16.mxu0 0
        %6731 = vmatpush1.bf16.msra.mxu0 0
        %6732 = vmatprep.subr.bf16.mxu0 0
        %6733 = vmatpush1.bf16.msra.mxu0 0
        %6734 = vmatprep.subr.bf16.mxu0 0
        %6735 = vmatpush1.bf16.msra.mxu0 0
        %6736 = vmatprep.subr.bf16.mxu0 0
        %6737 = vmatpush1.bf16.msra.mxu0 0
        %6738 = vmatprep.subr.bf16.mxu0 0
        %6739 = vmatpush1.bf16.msra.mxu0 0
        %6740 = vmatprep.subr.bf16.mxu0 0
        %6741 = vmatpush1.bf16.msra.mxu0 0
        %6742 = vmatprep.mubr.bf16.mxu0 0
        %6743 = vmatmul.mubr.bf16.gmra.mrb[0].mxu0 %v6479
        %v6744 = vpop.f32.mrb[0].mxu0
        %v6745 = vadd.f32 %v6680, %v6744
        %v6746 = vpop.f32.mrb[0].mxu0
        %v6747 = vpop.f32.mrb[0].mxu0
        %v6748 = vadd.f32 %v6683, %v6747
        %v6749 = vpop.f32.mrb[0].mxu0
        %6750 = vmatprep.mubr.bf16.mxu0 0
        %6751 = vmatmul.mubr.bf16.gmra.mrb[0].mxu0 %v6482
        %v6752 = vpop.f32.mrb[0].mxu0
        %v6753 = vadd.f32 %v6688, %v6752
        %v6754 = vpop.f32.mrb[0].mxu0
        %v6755 = vpop.f32.mrb[0].mxu0
        %v6756 = vadd.f32 %v6691, %v6755
        %v6757 = vpop.f32.mrb[0].mxu0
        %6758 = vmatprep.mubr.bf16.mxu0 0
        %6759 = vmatmul.mubr.bf16.gmra.mrb[0].mxu0 %v6485
        %v6760 = vpop.f32.mrb[0].mxu0
        %v6761 = vadd.f32 %v6696, %v6760
        %v6762 = vpop.f32.mrb[0].mxu0
        %v6763 = vpop.f32.mrb[0].mxu0
        %v6764 = vadd.f32 %v6699, %v6763
        %v6765 = vpop.f32.mrb[0].mxu0
        %6766 = vmatprep.mubr.bf16.mxu0 0
        %6767 = vmatmul.mubr.bf16.gmra.mrb[0].mxu0 %v6488
        %v6768 = vpop.f32.mrb[0].mxu0
        %v6769 = vadd.f32 %v6704, %v6768
        %v6770 = vpop.f32.mrb[0].mxu0
        %v6771 = vpop.f32.mrb[0].mxu0
        %v6772 = vadd.f32 %v6707, %v6771
        %v6773 = vpop.f32.mrb[0].mxu0
        %6774 = vdwg.mxu0
        %v6775 = vpack.c.b16 %v6231, %v6228
        %v6776 = vpack.c.b16 %v6232, %v6229
        %v6777 = vpack.c.b16 %v6233, %v6230
        %v6778 = vpack.c.b16 %v6237, %v6234
        %v6779 = vpack.c.b16 %v6238, %v6235
        %v6780 = vpack.c.b16 %v6239, %v6236
        %v6781 = vpack.c.b16 %v6243, %v6240
        %v6782 = vpack.c.b16 %v6244, %v6241
        %v6783 = vpack.c.b16 %v6245, %v6242
        %v6784 = vpack.c.b16 %v6249, %v6246
        %v6785 = vpack.c.b16 %v6250, %v6247
        %v6786 = vpack.c.b16 %v6251, %v6248
        %v6847 = vunpack.c.l.b16 %v6252
        %v6848 = vunpack.c.l.b16 %v6253
        %v6849 = vunpack.c.l.b16 %v6254
        %v6850 = vunpack.c.l.b16 %v6255
        %v6851 = vunpack.c.l.b16 %v6256
        %v6852 = vunpack.c.l.b16 %v6257
        %v6853 = vunpack.c.l.b16 %v6258
        %v6854 = vunpack.c.l.b16 %v6259
        %v6855 = vunpack.c.l.b16 %v6260
        %v6856 = vunpack.c.l.b16 %v6261
        %v6857 = vunpack.c.l.b16 %v6262
        %v6858 = vunpack.c.l.b16 %v6263
        %v6859 = vunpack.c.l.b16 %v6264
        %v6860 = vunpack.c.l.b16 %v6265
        %v6861 = vunpack.c.l.b16 %v6266
        %v6862 = vunpack.c.l.b16 %v6267
        %v6863 = vunpack.c.l.b16 %v6268
        %v6864 = vunpack.c.l.b16 %v6269
        %v6865 = vunpack.c.l.b16 %v6270
        %v6866 = vunpack.c.l.b16 %v6271
        %v6867 = vunpack.c.l.b16 %v6272
        %v6868 = vunpack.c.l.b16 %v6273
        %v6869 = vunpack.c.l.b16 %v6274
        %v6870 = vunpack.c.l.b16 %v6275
        %v6871 = vunpack.c.l.b16 %v6276
        %v6872 = vunpack.c.l.b16 %v6277
        %v6873 = vunpack.c.l.b16 %v6278
        %v6874 = vunpack.c.l.b16 %v6279
        %v6875 = vunpack.c.l.b16 %v6280
        %v6876 = vunpack.c.l.b16 %v6281
        %v6877 = vunpack.c.l.b16 %v6282
        %v6878 = vunpack.c.l.b16 %v6283
        %v6879 = vunpack.c.l.b16 %v6284
        %v6880 = vunpack.c.l.b16 %v6285
        %v6881 = vunpack.c.l.b16 %v6286
        %v6882 = vunpack.c.l.b16 %v6287
        %v6883 = vunpack.c.l.b16 %v6288
        %v6884 = vunpack.c.l.b16 %v6289
        %v6885 = vunpack.c.l.b16 %v6290
        %v6886 = vunpack.c.l.b16 %v6291
        %v6887 = vunpack.c.l.b16 %v6292
        %v6888 = vunpack.c.l.b16 %v6293
        %v6889 = vunpack.c.l.b16 %v6294
        %v6890 = vunpack.c.l.b16 %v6295
        %v6891 = vunpack.c.l.b16 %v6296
        %v6892 = vunpack.c.l.b16 %v6297
        %v6893 = vunpack.c.l.b16 %v6298
        %v6894 = vunpack.c.l.b16 %v6299
        %v6895 = vpack.c.b16 %v6848, %v6847
        %v6896 = vpack.c.b16 %v6850, %v6849
        %v6897 = vpack.c.b16 %v6852, %v6851
        %v6898 = vpack.c.b16 %v6854, %v6853
        %v6899 = vpack.c.b16 %v6856, %v6855
        %v6900 = vpack.c.b16 %v6858, %v6857
        %v6901 = vpack.c.b16 %v6860, %v6859
        %v6902 = vpack.c.b16 %v6862, %v6861
        %v6903 = vpack.c.b16 %v6864, %v6863
        %v6904 = vpack.c.b16 %v6866, %v6865
        %v6905 = vpack.c.b16 %v6868, %v6867
        %v6906 = vpack.c.b16 %v6870, %v6869
        %v6907 = vpack.c.b16 %v6872, %v6871
        %v6908 = vpack.c.b16 %v6874, %v6873
        %v6909 = vpack.c.b16 %v6876, %v6875
        %v6910 = vpack.c.b16 %v6878, %v6877
        %v6911 = vpack.c.b16 %v6880, %v6879
        %v6912 = vpack.c.b16 %v6882, %v6881
        %v6913 = vpack.c.b16 %v6884, %v6883
        %v6914 = vpack.c.b16 %v6886, %v6885
        %v6915 = vpack.c.b16 %v6888, %v6887
        %v6916 = vpack.c.b16 %v6890, %v6889
        %v6917 = vpack.c.b16 %v6892, %v6891
        %v6918 = vpack.c.b16 %v6894, %v6893
        %6943 = vmatprep.subr.bf16.mxu0 0
        %6944 = vmatpush1.bf16.msra.mxu0 %v6895
        %6945 = vmatprep.subr.bf16.mxu0 0
        %6946 = vmatpush1.bf16.msra.mxu0 %v6896
        %6947 = vmatprep.subr.bf16.mxu0 0
        %6948 = vmatpush1.bf16.msra.mxu0 %v6897
        %6949 = vmatprep.subr.bf16.mxu0 0
        %6950 = vmatpush1.bf16.msra.mxu0 %v6898
        %6951 = vmatprep.subr.bf16.mxu0 0
        %6952 = vmatpush1.bf16.msra.mxu0 %v6899
        %6953 = vmatprep.subr.bf16.mxu0 0
        %6954 = vmatpush1.bf16.msra.mxu0 %v6900
        %6955 = vmatprep.subr.bf16.mxu0 0
        %6956 = vmatpush1.bf16.msra.mxu0 %v6901
        %6957 = vmatprep.subr.bf16.mxu0 0
        %6958 = vmatpush1.bf16.msra.mxu0 %v6902
        %6959 = vmatprep.subr.bf16.mxu0 0
        %6960 = vmatpush1.bf16.msra.mxu0 %v6903
        %6961 = vmatprep.subr.bf16.mxu0 0
        %6962 = vmatpush1.bf16.msra.mxu0 %v6904
        %6963 = vmatprep.subr.bf16.mxu0 0
        %6964 = vmatpush1.bf16.msra.mxu0 %v6905
        %6965 = vmatprep.subr.bf16.mxu0 0
        %6966 = vmatpush1.bf16.msra.mxu0 %v6906
        %6967 = vmatprep.subr.bf16.mxu0 0
        %6968 = vmatpush1.bf16.msra.mxu0 %v6907
        %6969 = vmatprep.subr.bf16.mxu0 0
        %6970 = vmatpush1.bf16.msra.mxu0 %v6908
        %6971 = vmatprep.subr.bf16.mxu0 0
        %6972 = vmatpush1.bf16.msra.mxu0 %v6909
        %6973 = vmatprep.subr.bf16.mxu0 0
        %6974 = vmatpush1.bf16.msra.mxu0 %v6910
        %6975 = vmatprep.mubr.bf16.mxu0 %v6776
        %6976 = vmatmul.mubr.bf16.gmra.mrb[0].mxu0 %v6775
        %v6977 = vpop.f32.mrb[0].mxu0
        %v6978 = vadd.f32 %v6745, %v6977
        %v6979 = vpop.f32.mrb[0].mxu0
        %v6980 = vpop.f32.mrb[0].mxu0
        %v6981 = vadd.f32 %v6748, %v6980
        %v6982 = vpop.f32.mrb[0].mxu0
        %6983 = vmatprep.mubr.bf16.mxu0 %v6779
        %6984 = vmatmul.mubr.bf16.gmra.mrb[0].mxu0 %v6778
        %v6985 = vpop.f32.mrb[0].mxu0
        %v6986 = vadd.f32 %v6753, %v6985
        %v6987 = vpop.f32.mrb[0].mxu0
        %v6988 = vpop.f32.mrb[0].mxu0
        %v6989 = vadd.f32 %v6756, %v6988
        %v6990 = vpop.f32.mrb[0].mxu0
        %6991 = vmatprep.mubr.bf16.mxu0 %v6782
        %6992 = vmatmul.mubr.bf16.gmra.mrb[0].mxu0 %v6781
        %v6993 = vpop.f32.mrb[0].mxu0
        %v6994 = vadd.f32 %v6761, %v6993
        %v6995 = vpop.f32.mrb[0].mxu0
        %v6996 = vpop.f32.mrb[0].mxu0
        %v6997 = vadd.f32 %v6764, %v6996
        %v6998 = vpop.f32.mrb[0].mxu0
        %6999 = vmatprep.mubr.bf16.mxu0 %v6785
        %7000 = vmatmul.mubr.bf16.gmra.mrb[0].mxu0 %v6784
        %v7001 = vpop.f32.mrb[0].mxu0
        %v7002 = vadd.f32 %v6769, %v7001
        %v7003 = vpop.f32.mrb[0].mxu0
        %v7004 = vpop.f32.mrb[0].mxu0
        %v7005 = vadd.f32 %v6772, %v7004
        %v7006 = vpop.f32.mrb[0].mxu0
        %7007 = vdwg.mxu0
        %7008 = vmatprep.subr.bf16.mxu0 0
        %7009 = vmatpush1.bf16.msra.mxu0 %v6911
        %7010 = vmatprep.subr.bf16.mxu0 0
        %7011 = vmatpush1.bf16.msra.mxu0 %v6912
        %7012 = vmatprep.subr.bf16.mxu0 0
        %7013 = vmatpush1.bf16.msra.mxu0 %v6913
        %7014 = vmatprep.subr.bf16.mxu0 0
        %7015 = vmatpush1.bf16.msra.mxu0 %v6914
        %7016 = vmatprep.subr.bf16.mxu0 0
        %7017 = vmatpush1.bf16.msra.mxu0 %v6915
        %7018 = vmatprep.subr.bf16.mxu0 0
        %7019 = vmatpush1.bf16.msra.mxu0 %v6916
        %7020 = vmatprep.subr.bf16.mxu0 0
        %7021 = vmatpush1.bf16.msra.mxu0 %v6917
        %7022 = vmatprep.subr.bf16.mxu0 0
        %7023 = vmatpush1.bf16.msra.mxu0 %v6918
        %7024 = vmatprep.subr.bf16.mxu0 0
        %7025 = vmatpush1.bf16.msra.mxu0 0
        %7026 = vmatprep.subr.bf16.mxu0 0
        %7027 = vmatpush1.bf16.msra.mxu0 0
        %7028 = vmatprep.subr.bf16.mxu0 0
        %7029 = vmatpush1.bf16.msra.mxu0 0
        %7030 = vmatprep.subr.bf16.mxu0 0
        %7031 = vmatpush1.bf16.msra.mxu0 0
        %7032 = vmatprep.subr.bf16.mxu0 0
        %7033 = vmatpush1.bf16.msra.mxu0 0
        %7034 = vmatprep.subr.bf16.mxu0 0
        %7035 = vmatpush1.bf16.msra.mxu0 0
        %7036 = vmatprep.subr.bf16.mxu0 0
        %7037 = vmatpush1.bf16.msra.mxu0 0
        %7038 = vmatprep.subr.bf16.mxu0 0
        %7039 = vmatpush1.bf16.msra.mxu0 0
        %7040 = vmatprep.mubr.bf16.mxu0 0
        %7041 = vmatmul.mubr.bf16.gmra.mrb[0].mxu0 %v6777
        %v7042 = vpop.f32.mrb[0].mxu0
        %v7043 = vadd.f32 %v6978, %v7042
        %v7044 = vpop.f32.mrb[0].mxu0
        %v7045 = vpop.f32.mrb[0].mxu0
        %v7046 = vadd.f32 %v6981, %v7045
        %v7047 = vpop.f32.mrb[0].mxu0
        %7048 = vmatprep.mubr.bf16.mxu0 0
        %7049 = vmatmul.mubr.bf16.gmra.mrb[0].mxu0 %v6780
        %v7050 = vpop.f32.mrb[0].mxu0
        %v7051 = vadd.f32 %v6986, %v7050
        %v7052 = vpop.f32.mrb[0].mxu0
        %v7053 = vpop.f32.mrb[0].mxu0
        %v7054 = vadd.f32 %v6989, %v7053
        %v7055 = vpop.f32.mrb[0].mxu0
        %7056 = vmatprep.mubr.bf16.mxu0 0
        %7057 = vmatmul.mubr.bf16.gmra.mrb[0].mxu0 %v6783
        %v7058 = vpop.f32.mrb[0].mxu0
        %v7059 = vadd.f32 %v6994, %v7058
        %v7060 = vpop.f32.mrb[0].mxu0
        %v7061 = vpop.f32.mrb[0].mxu0
        %v7062 = vadd.f32 %v6997, %v7061
        %v7063 = vpop.f32.mrb[0].mxu0
        %7064 = vmatprep.mubr.bf16.mxu0 0
        %7065 = vmatmul.mubr.bf16.gmra.mrb[0].mxu0 %v6786
        %v7066 = vpop.f32.mrb[0].mxu0
        %v7067 = vadd.f32 %v7002, %v7066
        %v7068 = vpop.f32.mrb[0].mxu0
        %v7069 = vpop.f32.mrb[0].mxu0
        %v7070 = vadd.f32 %v7005, %v7069
        %v7071 = vpop.f32.mrb[0].mxu0
        %7072 = vdwg.mxu0
        %s7073 = scalar_lea.vmem [#allocation3], 16
        %v7074 = vld [vmem:[%s7073] sm:$0xf]
        %v7075 = vld [vmem:[%s7073 + $0x8] sm:$0xf]
        %v7076 = vld [vmem:[%s7073 + $0x10] sm:$0xf]
        %v7077 = vld [vmem:[%s7073 + $0x18] sm:$0xf]
        %v7078 = vld [vmem:[%s7073 + $0x20] sm:$0xf]
        %v7079 = vld [vmem:[%s7073 + $0x28] sm:$0xf]
        %v7080 = vld [vmem:[%s7073 + $0x30] sm:$0xf]
        %v7081 = vld [vmem:[%s7073 + $0x38] sm:$0xf]
        %v7082 = vld [vmem:[%s7073] sm:$0x1f]
        %v7083 = vld [vmem:[%s7073 + $0x8] sm:$0x1f]
        %v7084 = vld [vmem:[%s7073 + $0x10] sm:$0x1f]
        %v7085 = vld [vmem:[%s7073 + $0x18] sm:$0x1f]
        %v7086 = vld [vmem:[%s7073 + $0x20] sm:$0x1f]
        %v7087 = vld [vmem:[%s7073 + $0x28] sm:$0x1f]
        %v7088 = vld [vmem:[%s7073 + $0x30] sm:$0x1f]
        %v7089 = vld [vmem:[%s7073 + $0x38] sm:$0x1f]
        %v7090 = vld [vmem:[%s7073] sm:$0x1e]
        %v7091 = vld [vmem:[%s7073 + $0x8] sm:$0x1e]
        %v7092 = vld [vmem:[%s7073 + $0x10] sm:$0x1e]
        %v7093 = vld [vmem:[%s7073 + $0x18] sm:$0x1e]
        %v7094 = vld [vmem:[%s7073 + $0x20] sm:$0x1e]
        %v7095 = vld [vmem:[%s7073 + $0x28] sm:$0x1e]
        %v7096 = vld [vmem:[%s7073 + $0x30] sm:$0x1e]
        %v7097 = vld [vmem:[%s7073 + $0x38] sm:$0x1e]
        %v7099 = vshrl.u32 %v7082, 16
        %v7101 = vshll.u32 %v7082, 16
        %v7103 = vrot.slane %v7101, 1
        %v7104 = vor.u32 %v7099, %v7103
        %v7106 = vshrl.u32 %v7083, 16
        %v7108 = vshll.u32 %v7083, 16
        %v7110 = vrot.slane %v7108, 1
        %v7111 = vor.u32 %v7106, %v7110
        %v7113 = vshrl.u32 %v7084, 16
        %v7115 = vshll.u32 %v7084, 16
        %v7117 = vrot.slane %v7115, 1
        %v7118 = vor.u32 %v7113, %v7117
        %v7120 = vshrl.u32 %v7085, 16
        %v7122 = vshll.u32 %v7085, 16
        %v7124 = vrot.slane %v7122, 1
        %v7125 = vor.u32 %v7120, %v7124
        %v7127 = vshrl.u32 %v7086, 16
        %v7129 = vshll.u32 %v7086, 16
        %v7131 = vrot.slane %v7129, 1
        %v7132 = vor.u32 %v7127, %v7131
        %v7134 = vshrl.u32 %v7087, 16
        %v7136 = vshll.u32 %v7087, 16
        %v7138 = vrot.slane %v7136, 1
        %v7139 = vor.u32 %v7134, %v7138
        %v7141 = vshrl.u32 %v7088, 16
        %v7143 = vshll.u32 %v7088, 16
        %v7145 = vrot.slane %v7143, 1
        %v7146 = vor.u32 %v7141, %v7145
        %v7148 = vshrl.u32 %v7089, 16
        %v7150 = vshll.u32 %v7089, 16
        %v7152 = vrot.slane %v7150, 1
        %v7153 = vor.u32 %v7148, %v7152
        %v7162 = vrot.slane %v7090, 1
        %v7163 = vrot.slane %v7091, 1
        %v7164 = vrot.slane %v7092, 1
        %v7165 = vrot.slane %v7093, 1
        %v7166 = vrot.slane %v7094, 1
        %v7167 = vrot.slane %v7095, 1
        %v7168 = vrot.slane %v7096, 1
        %v7169 = vrot.slane %v7097, 1
        %v7178 = vunpack.c.l.b16 %v7074
        %v7179 = vunpack.c.l.b16 %v7104
        %v7180 = vunpack.c.l.b16 %v7162
        %v7181 = vunpack.c.l.b16 %v7075
        %v7182 = vunpack.c.l.b16 %v7111
        %v7183 = vunpack.c.l.b16 %v7163
        %v7184 = vunpack.c.l.b16 %v7076
        %v7185 = vunpack.c.l.b16 %v7118
        %v7186 = vunpack.c.l.b16 %v7164
        %v7187 = vunpack.c.l.b16 %v7077
        %v7188 = vunpack.c.l.b16 %v7125
        %v7189 = vunpack.c.l.b16 %v7165
        %v7190 = vunpack.c.l.b16 %v7078
        %v7191 = vunpack.c.l.b16 %v7132
        %v7192 = vunpack.c.l.b16 %v7166
        %v7193 = vunpack.c.l.b16 %v7079
        %v7194 = vunpack.c.l.b16 %v7139
        %v7195 = vunpack.c.l.b16 %v7167
        %v7196 = vunpack.c.l.b16 %v7080
        %v7197 = vunpack.c.l.b16 %v7146
        %v7198 = vunpack.c.l.b16 %v7168
        %v7199 = vunpack.c.l.b16 %v7081
        %v7200 = vunpack.c.l.b16 %v7153
        %v7201 = vunpack.c.l.b16 %v7169
        %s7202 = scalar_lea.vmem %s2, 384
        %v7203 = vld [vmem:[%s7202] sm:$0xf]
        %v7204 = vld [vmem:[%s7202 + $0x4] sm:$0xf]
        %v7205 = vld [vmem:[%s7202 + $0x8] sm:$0xf]
        %v7206 = vld [vmem:[%s7202 + $0xc] sm:$0xf]
        %v7207 = vld [vmem:[%s7202 + $0x10] sm:$0xf]
        %v7208 = vld [vmem:[%s7202 + $0x14] sm:$0xf]
        %v7209 = vld [vmem:[%s7202 + $0x18] sm:$0xf]
        %v7210 = vld [vmem:[%s7202 + $0x1c] sm:$0xf]
        %v7211 = vld [vmem:[%s7202 + $0x20] sm:$0xf]
        %v7212 = vld [vmem:[%s7202 + $0x24] sm:$0xf]
        %v7213 = vld [vmem:[%s7202 + $0x28] sm:$0xf]
        %v7214 = vld [vmem:[%s7202 + $0x2c] sm:$0xf]
        %v7215 = vld [vmem:[%s7202 + $0x30] sm:$0xf]
        %v7216 = vld [vmem:[%s7202 + $0x34] sm:$0xf]
        %v7217 = vld [vmem:[%s7202 + $0x38] sm:$0xf]
        %v7218 = vld [vmem:[%s7202 + $0x3c] sm:$0xf]
        %v7219 = vld [vmem:[%s7202 + $0x40] sm:$0xf]
        %v7220 = vld [vmem:[%s7202 + $0x44] sm:$0xf]
        %v7221 = vld [vmem:[%s7202 + $0x48] sm:$0xf]
        %v7222 = vld [vmem:[%s7202 + $0x4c] sm:$0xf]
        %v7223 = vld [vmem:[%s7202 + $0x50] sm:$0xf]
        %v7224 = vld [vmem:[%s7202 + $0x54] sm:$0xf]
        %v7225 = vld [vmem:[%s7202 + $0x58] sm:$0xf]
        %v7226 = vld [vmem:[%s7202 + $0x5c] sm:$0xf]
        %v7227 = vld [vmem:[%s7202 + $0x60] sm:$0xf]
        %v7228 = vld [vmem:[%s7202 + $0x64] sm:$0xf]
        %v7229 = vld [vmem:[%s7202 + $0x68] sm:$0xf]
        %v7230 = vld [vmem:[%s7202 + $0x6c] sm:$0xf]
        %v7231 = vld [vmem:[%s7202 + $0x70] sm:$0xf]
        %v7232 = vld [vmem:[%s7202 + $0x74] sm:$0xf]
        %v7233 = vld [vmem:[%s7202 + $0x78] sm:$0xf]
        %v7234 = vld [vmem:[%s7202 + $0x7c] sm:$0xf]
        %v7235 = vld [vmem:[%s7202 + $0x80] sm:$0xf]
        %v7236 = vld [vmem:[%s7202 + $0x84] sm:$0xf]
        %v7237 = vld [vmem:[%s7202 + $0x88] sm:$0xf]
        %v7238 = vld [vmem:[%s7202 + $0x8c] sm:$0xf]
        %v7239 = vld [vmem:[%s7202 + $0x90] sm:$0xf]
        %v7240 = vld [vmem:[%s7202 + $0x94] sm:$0xf]
        %v7241 = vld [vmem:[%s7202 + $0x98] sm:$0xf]
        %v7242 = vld [vmem:[%s7202 + $0x9c] sm:$0xf]
        %v7243 = vld [vmem:[%s7202 + $0xa0] sm:$0xf]
        %v7244 = vld [vmem:[%s7202 + $0xa4] sm:$0xf]
        %v7245 = vld [vmem:[%s7202 + $0xa8] sm:$0xf]
        %v7246 = vld [vmem:[%s7202 + $0xac] sm:$0xf]
        %v7247 = vld [vmem:[%s7202 + $0xb0] sm:$0xf]
        %v7248 = vld [vmem:[%s7202 + $0xb4] sm:$0xf]
        %v7249 = vld [vmem:[%s7202 + $0xb8] sm:$0xf]
        %v7250 = vld [vmem:[%s7202 + $0xbc] sm:$0xf]
        %v7251 = vpack.c.b16 %v7181, %v7178
        %v7252 = vpack.c.b16 %v7182, %v7179
        %v7253 = vpack.c.b16 %v7183, %v7180
        %v7254 = vpack.c.b16 %v7187, %v7184
        %v7255 = vpack.c.b16 %v7188, %v7185
        %v7256 = vpack.c.b16 %v7189, %v7186
        %v7257 = vpack.c.b16 %v7193, %v7190
        %v7258 = vpack.c.b16 %v7194, %v7191
        %v7259 = vpack.c.b16 %v7195, %v7192
        %v7260 = vpack.c.b16 %v7199, %v7196
        %v7261 = vpack.c.b16 %v7200, %v7197
        %v7262 = vpack.c.b16 %v7201, %v7198
        %v7323 = vunpack.c.l.b16 %v7203
        %v7324 = vunpack.c.l.b16 %v7204
        %v7325 = vunpack.c.l.b16 %v7205
        %v7326 = vunpack.c.l.b16 %v7206
        %v7327 = vunpack.c.l.b16 %v7207
        %v7328 = vunpack.c.l.b16 %v7208
        %v7329 = vunpack.c.l.b16 %v7209
        %v7330 = vunpack.c.l.b16 %v7210
        %v7331 = vunpack.c.l.b16 %v7211
        %v7332 = vunpack.c.l.b16 %v7212
        %v7333 = vunpack.c.l.b16 %v7213
        %v7334 = vunpack.c.l.b16 %v7214
        %v7335 = vunpack.c.l.b16 %v7215
        %v7336 = vunpack.c.l.b16 %v7216
        %v7337 = vunpack.c.l.b16 %v7217
        %v7338 = vunpack.c.l.b16 %v7218
        %v7339 = vunpack.c.l.b16 %v7219
        %v7340 = vunpack.c.l.b16 %v7220
        %v7341 = vunpack.c.l.b16 %v7221
        %v7342 = vunpack.c.l.b16 %v7222
        %v7343 = vunpack.c.l.b16 %v7223
        %v7344 = vunpack.c.l.b16 %v7224
        %v7345 = vunpack.c.l.b16 %v7225
        %v7346 = vunpack.c.l.b16 %v7226
        %v7347 = vunpack.c.l.b16 %v7227
        %v7348 = vunpack.c.l.b16 %v7228
        %v7349 = vunpack.c.l.b16 %v7229
        %v7350 = vunpack.c.l.b16 %v7230
        %v7351 = vunpack.c.l.b16 %v7231
        %v7352 = vunpack.c.l.b16 %v7232
        %v7353 = vunpack.c.l.b16 %v7233
        %v7354 = vunpack.c.l.b16 %v7234
        %v7355 = vunpack.c.l.b16 %v7235
        %v7356 = vunpack.c.l.b16 %v7236
        %v7357 = vunpack.c.l.b16 %v7237
        %v7358 = vunpack.c.l.b16 %v7238
        %v7359 = vunpack.c.l.b16 %v7239
        %v7360 = vunpack.c.l.b16 %v7240
        %v7361 = vunpack.c.l.b16 %v7241
        %v7362 = vunpack.c.l.b16 %v7242
        %v7363 = vunpack.c.l.b16 %v7243
        %v7364 = vunpack.c.l.b16 %v7244
        %v7365 = vunpack.c.l.b16 %v7245
        %v7366 = vunpack.c.l.b16 %v7246
        %v7367 = vunpack.c.l.b16 %v7247
        %v7368 = vunpack.c.l.b16 %v7248
        %v7369 = vunpack.c.l.b16 %v7249
        %v7370 = vunpack.c.l.b16 %v7250
        %v7371 = vpack.c.b16 %v7324, %v7323
        %v7372 = vpack.c.b16 %v7326, %v7325
        %v7373 = vpack.c.b16 %v7328, %v7327
        %v7374 = vpack.c.b16 %v7330, %v7329
        %v7375 = vpack.c.b16 %v7332, %v7331
        %v7376 = vpack.c.b16 %v7334, %v7333
        %v7377 = vpack.c.b16 %v7336, %v7335
        %v7378 = vpack.c.b16 %v7338, %v7337
        %v7379 = vpack.c.b16 %v7340, %v7339
        %v7380 = vpack.c.b16 %v7342, %v7341
        %v7381 = vpack.c.b16 %v7344, %v7343
        %v7382 = vpack.c.b16 %v7346, %v7345
        %v7383 = vpack.c.b16 %v7348, %v7347
        %v7384 = vpack.c.b16 %v7350, %v7349
        %v7385 = vpack.c.b16 %v7352, %v7351
        %v7386 = vpack.c.b16 %v7354, %v7353
        %v7387 = vpack.c.b16 %v7356, %v7355
        %v7388 = vpack.c.b16 %v7358, %v7357
        %v7389 = vpack.c.b16 %v7360, %v7359
        %v7390 = vpack.c.b16 %v7362, %v7361
        %v7391 = vpack.c.b16 %v7364, %v7363
        %v7392 = vpack.c.b16 %v7366, %v7365
        %v7393 = vpack.c.b16 %v7368, %v7367
        %v7394 = vpack.c.b16 %v7370, %v7369
        %7419 = vmatprep.subr.bf16.mxu0 0
        %7420 = vmatpush1.bf16.msra.mxu0 %v7371
        %7421 = vmatprep.subr.bf16.mxu0 0
        %7422 = vmatpush1.bf16.msra.mxu0 %v7372
        %7423 = vmatprep.subr.bf16.mxu0 0
        %7424 = vmatpush1.bf16.msra.mxu0 %v7373
        %7425 = vmatprep.subr.bf16.mxu0 0
        %7426 = vmatpush1.bf16.msra.mxu0 %v7374
        %7427 = vmatprep.subr.bf16.mxu0 0
        %7428 = vmatpush1.bf16.msra.mxu0 %v7375
        %7429 = vmatprep.subr.bf16.mxu0 0
        %7430 = vmatpush1.bf16.msra.mxu0 %v7376
        %7431 = vmatprep.subr.bf16.mxu0 0
        %7432 = vmatpush1.bf16.msra.mxu0 %v7377
        %7433 = vmatprep.subr.bf16.mxu0 0
        %7434 = vmatpush1.bf16.msra.mxu0 %v7378
        %7435 = vmatprep.subr.bf16.mxu0 0
        %7436 = vmatpush1.bf16.msra.mxu0 %v7379
        %7437 = vmatprep.subr.bf16.mxu0 0
        %7438 = vmatpush1.bf16.msra.mxu0 %v7380
        %7439 = vmatprep.subr.bf16.mxu0 0
        %7440 = vmatpush1.bf16.msra.mxu0 %v7381
        %7441 = vmatprep.subr.bf16.mxu0 0
        %7442 = vmatpush1.bf16.msra.mxu0 %v7382
        %7443 = vmatprep.subr.bf16.mxu0 0
        %7444 = vmatpush1.bf16.msra.mxu0 %v7383
        %7445 = vmatprep.subr.bf16.mxu0 0
        %7446 = vmatpush1.bf16.msra.mxu0 %v7384
        %7447 = vmatprep.subr.bf16.mxu0 0
        %7448 = vmatpush1.bf16.msra.mxu0 %v7385
        %7449 = vmatprep.subr.bf16.mxu0 0
        %7450 = vmatpush1.bf16.msra.mxu0 %v7386
        %7451 = vmatprep.mubr.bf16.mxu0 %v7252
        %7452 = vmatmul.mubr.bf16.gmra.mrb[0].mxu0 %v7251
        %v7453 = vpop.f32.mrb[0].mxu0
        %v7454 = vadd.f32 0.0, %v7453
        %v7455 = vpop.f32.mrb[0].mxu0
        %v7456 = vpop.f32.mrb[0].mxu0
        %v7457 = vadd.f32 0.0, %v7456
        %v7458 = vpop.f32.mrb[0].mxu0
        %7459 = vmatprep.mubr.bf16.mxu0 %v7255
        %7460 = vmatmul.mubr.bf16.gmra.mrb[0].mxu0 %v7254
        %v7461 = vpop.f32.mrb[0].mxu0
        %v7462 = vadd.f32 0.0, %v7461
        %v7463 = vpop.f32.mrb[0].mxu0
        %v7464 = vpop.f32.mrb[0].mxu0
        %v7465 = vadd.f32 0.0, %v7464
        %v7466 = vpop.f32.mrb[0].mxu0
        %7467 = vmatprep.mubr.bf16.mxu0 %v7258
        %7468 = vmatmul.mubr.bf16.gmra.mrb[0].mxu0 %v7257
        %v7469 = vpop.f32.mrb[0].mxu0
        %v7470 = vadd.f32 0.0, %v7469
        %v7471 = vpop.f32.mrb[0].mxu0
        %v7472 = vpop.f32.mrb[0].mxu0
        %v7473 = vadd.f32 0.0, %v7472
        %v7474 = vpop.f32.mrb[0].mxu0
        %7475 = vmatprep.mubr.bf16.mxu0 %v7261
        %7476 = vmatmul.mubr.bf16.gmra.mrb[0].mxu0 %v7260
        %v7477 = vpop.f32.mrb[0].mxu0
        %v7478 = vadd.f32 0.0, %v7477
        %v7479 = vpop.f32.mrb[0].mxu0
        %v7480 = vpop.f32.mrb[0].mxu0
        %v7481 = vadd.f32 0.0, %v7480
        %v7482 = vpop.f32.mrb[0].mxu0
        %7483 = vdwg.mxu0
        %7484 = vmatprep.subr.bf16.mxu0 0
        %7485 = vmatpush1.bf16.msra.mxu0 %v7387
        %7486 = vmatprep.subr.bf16.mxu0 0
        %7487 = vmatpush1.bf16.msra.mxu0 %v7388
        %7488 = vmatprep.subr.bf16.mxu0 0
        %7489 = vmatpush1.bf16.msra.mxu0 %v7389
        %7490 = vmatprep.subr.bf16.mxu0 0
        %7491 = vmatpush1.bf16.msra.mxu0 %v7390
        %7492 = vmatprep.subr.bf16.mxu0 0
        %7493 = vmatpush1.bf16.msra.mxu0 %v7391
        %7494 = vmatprep.subr.bf16.mxu0 0
        %7495 = vmatpush1.bf16.msra.mxu0 %v7392
        %7496 = vmatprep.subr.bf16.mxu0 0
        %7497 = vmatpush1.bf16.msra.mxu0 %v7393
        %7498 = vmatprep.subr.bf16.mxu0 0
        %7499 = vmatpush1.bf16.msra.mxu0 %v7394
        %7500 = vmatprep.subr.bf16.mxu0 0
        %7501 = vmatpush1.bf16.msra.mxu0 0
        %7502 = vmatprep.subr.bf16.mxu0 0
        %7503 = vmatpush1.bf16.msra.mxu0 0
        %7504 = vmatprep.subr.bf16.mxu0 0
        %7505 = vmatpush1.bf16.msra.mxu0 0
        %7506 = vmatprep.subr.bf16.mxu0 0
        %7507 = vmatpush1.bf16.msra.mxu0 0
        %7508 = vmatprep.subr.bf16.mxu0 0
        %7509 = vmatpush1.bf16.msra.mxu0 0
        %7510 = vmatprep.subr.bf16.mxu0 0
        %7511 = vmatpush1.bf16.msra.mxu0 0
        %7512 = vmatprep.subr.bf16.mxu0 0
        %7513 = vmatpush1.bf16.msra.mxu0 0
        %7514 = vmatprep.subr.bf16.mxu0 0
        %7515 = vmatpush1.bf16.msra.mxu0 0
        %7516 = vmatprep.mubr.bf16.mxu0 0
        %7517 = vmatmul.mubr.bf16.gmra.mrb[0].mxu0 %v7253
        %v7518 = vpop.f32.mrb[0].mxu0
        %v7519 = vadd.f32 %v7454, %v7518
        %v7520 = vpop.f32.mrb[0].mxu0
        %v7521 = vpop.f32.mrb[0].mxu0
        %v7522 = vadd.f32 %v7457, %v7521
        %v7523 = vpop.f32.mrb[0].mxu0
        %7524 = vmatprep.mubr.bf16.mxu0 0
        %7525 = vmatmul.mubr.bf16.gmra.mrb[0].mxu0 %v7256
        %v7526 = vpop.f32.mrb[0].mxu0
        %v7527 = vadd.f32 %v7462, %v7526
        %v7528 = vpop.f32.mrb[0].mxu0
        %v7529 = vpop.f32.mrb[0].mxu0
        %v7530 = vadd.f32 %v7465, %v7529
        %v7531 = vpop.f32.mrb[0].mxu0
        %7532 = vmatprep.mubr.bf16.mxu0 0
        %7533 = vmatmul.mubr.bf16.gmra.mrb[0].mxu0 %v7259
        %v7534 = vpop.f32.mrb[0].mxu0
        %v7535 = vadd.f32 %v7470, %v7534
        %v7536 = vpop.f32.mrb[0].mxu0
        %v7537 = vpop.f32.mrb[0].mxu0
        %v7538 = vadd.f32 %v7473, %v7537
        %v7539 = vpop.f32.mrb[0].mxu0
        %7540 = vmatprep.mubr.bf16.mxu0 0
        %7541 = vmatmul.mubr.bf16.gmra.mrb[0].mxu0 %v7262
        %v7542 = vpop.f32.mrb[0].mxu0
        %v7543 = vadd.f32 %v7478, %v7542
        %v7544 = vpop.f32.mrb[0].mxu0
        %v7545 = vpop.f32.mrb[0].mxu0
        %v7546 = vadd.f32 %v7481, %v7545
        %v7547 = vpop.f32.mrb[0].mxu0
        %7548 = vdwg.mxu0
        %v7549 = vadd.f32 %v7043, %v7519
        %v7550 = vadd.f32 %v7046, %v7522
        %v7551 = vadd.f32 %v7051, %v7527
        %v7552 = vadd.f32 %v7054, %v7530
        %v7553 = vadd.f32 %v7059, %v7535
        %v7554 = vadd.f32 %v7062, %v7538
        %v7555 = vadd.f32 %v7067, %v7543
        %v7556 = vadd.f32 %v7070, %v7546
        %v7557 = vlaneseq
        %v7558 = vshrl.u32 %v7557, 7
        %v7559 = vsub.s32 0, %v7558
        %v7560 = vrot.slane %v351, %v7559
        %v7561 = vmul.f32 %v7549, %v7560
        %v7562 = vmul.f32 %v7550, %v7560
        %v7563 = vmul.f32 %v7551, %v7560
        %v7564 = vmul.f32 %v7552, %v7560
        %v7565 = vmul.f32 %v7553, %v7560
        %v7566 = vmul.f32 %v7554, %v7560
        %v7567 = vmul.f32 %v7555, %v7560
        %v7568 = vmul.f32 %v7556, %v7560
        %v7569 = vlaneseq
        %v7570 = vshrl.u32 %v7569, 7
        %v7571 = vsub.s32 0, %v7570
        %v7572 = vrot.slane %v352, %v7571
        %v7573 = vadd.f32 %v7561, %v7572
        %v7574 = vadd.f32 %v7562, %v7572
        %v7575 = vadd.f32 %v7563, %v7572
        %v7576 = vadd.f32 %v7564, %v7572
        %v7577 = vadd.f32 %v7565, %v7572
        %v7578 = vadd.f32 %v7566, %v7572
        %v7579 = vadd.f32 %v7567, %v7572
        %v7580 = vadd.f32 %v7568, %v7572
        %v7581 = vmax.f32 %v7573, 0.0
        %v7582 = vmax.f32 %v7574, 0.0
        %v7583 = vmax.f32 %v7575, 0.0
        %v7584 = vmax.f32 %v7576, 0.0
        %v7585 = vmax.f32 %v7577, 0.0
        %v7586 = vmax.f32 %v7578, 0.0
        %v7587 = vmax.f32 %v7579, 0.0
        %v7588 = vmax.f32 %v7580, 0.0
        %v7589 = vpack.c.bf16 %v7581, %v7581
        %v7590 = vpack.c.bf16 %v7582, %v7582
        %v7591 = vpack.c.bf16 %v7583, %v7583
        %v7592 = vpack.c.bf16 %v7584, %v7584
        %v7593 = vpack.c.bf16 %v7585, %v7585
        %v7594 = vpack.c.bf16 %v7586, %v7586
        %v7595 = vpack.c.bf16 %v7587, %v7587
        %v7596 = vpack.c.bf16 %v7588, %v7588
        %v7598 = vshrl.u32 %v7589, 16
        %v7600 = vrot.slane %v7598, 7
        %v7601 = vshll.u32 %v7589, 16
        %v7603 = vor.u32 %v7600, %v7601
        %v7605 = vshrl.u32 %v7590, 16
        %v7607 = vrot.slane %v7605, 7
        %v7608 = vshll.u32 %v7590, 16
        %v7610 = vor.u32 %v7607, %v7608
        %v7612 = vshrl.u32 %v7591, 16
        %v7614 = vrot.slane %v7612, 7
        %v7615 = vshll.u32 %v7591, 16
        %v7617 = vor.u32 %v7614, %v7615
        %v7619 = vshrl.u32 %v7592, 16
        %v7621 = vrot.slane %v7619, 7
        %v7622 = vshll.u32 %v7592, 16
        %v7624 = vor.u32 %v7621, %v7622
        %v7626 = vshrl.u32 %v7593, 16
        %v7628 = vrot.slane %v7626, 7
        %v7629 = vshll.u32 %v7593, 16
        %v7631 = vor.u32 %v7628, %v7629
        %v7633 = vshrl.u32 %v7594, 16
        %v7635 = vrot.slane %v7633, 7
        %v7636 = vshll.u32 %v7594, 16
        %v7638 = vor.u32 %v7635, %v7636
        %v7640 = vshrl.u32 %v7595, 16
        %v7642 = vrot.slane %v7640, 7
        %v7643 = vshll.u32 %v7595, 16
        %v7645 = vor.u32 %v7642, %v7643
        %v7647 = vshrl.u32 %v7596, 16
        %v7649 = vrot.slane %v7647, 7
        %v7650 = vshll.u32 %v7596, 16
        %v7652 = vor.u32 %v7649, %v7650
        %v7661 = vld [vmem:[%s300] sm:$0x1f]
        %v7662 = vsel %vm6099, %v7603, %v7661
        %7663 = vst [vmem:[%s300] sm:$0x1f] %v7662
        %v7664 = vld [vmem:[%s300 + $0x8] sm:$0x1f]
        %v7665 = vsel %vm6099, %v7610, %v7664
        %7666 = vst [vmem:[%s300 + $0x8] sm:$0x1f] %v7665
        %v7667 = vld [vmem:[%s300 + $0x10] sm:$0x1f]
        %v7668 = vsel %vm6099, %v7617, %v7667
        %7669 = vst [vmem:[%s300 + $0x10] sm:$0x1f] %v7668
        %v7670 = vld [vmem:[%s300 + $0x18] sm:$0x1f]
        %v7671 = vsel %vm6099, %v7624, %v7670
        %7672 = vst [vmem:[%s300 + $0x18] sm:$0x1f] %v7671
        %v7673 = vld [vmem:[%s300 + $0x20] sm:$0x1f]
        %v7674 = vsel %vm6099, %v7631, %v7673
        %7675 = vst [vmem:[%s300 + $0x20] sm:$0x1f] %v7674
        %v7676 = vld [vmem:[%s300 + $0x28] sm:$0x1f]
        %v7677 = vsel %vm6099, %v7638, %v7676
        %7678 = vst [vmem:[%s300 + $0x28] sm:$0x1f] %v7677
        %v7679 = vld [vmem:[%s300 + $0x30] sm:$0x1f]
        %v7680 = vsel %vm6099, %v7645, %v7679
        %7681 = vst [vmem:[%s300 + $0x30] sm:$0x1f] %v7680
        %v7682 = vld [vmem:[%s300 + $0x38] sm:$0x1f]
        %v7683 = vsel %vm6099, %v7652, %v7682
        %7684 = vst [vmem:[%s300 + $0x38] sm:$0x1f] %v7683
        %v7685 = vld [vmem:[#allocation4] sm:$0xf]
        %v7686 = vld [vmem:[#allocation4 + $0x8] sm:$0xf]
        %v7687 = vld [vmem:[#allocation4 + $0x10] sm:$0xf]
        %v7688 = vld [vmem:[#allocation4 + $0x18] sm:$0xf]
        %v7689 = vld [vmem:[#allocation4 + $0x20] sm:$0xf]
        %v7690 = vld [vmem:[#allocation4 + $0x28] sm:$0xf]
        %v7691 = vld [vmem:[#allocation4 + $0x30] sm:$0xf]
        %v7692 = vld [vmem:[#allocation4 + $0x38] sm:$0xf]
        %v7693 = vld [vmem:[#allocation4] sm:$0x1f]
        %v7694 = vld [vmem:[#allocation4 + $0x8] sm:$0x1f]
        %v7695 = vld [vmem:[#allocation4 + $0x10] sm:$0x1f]
        %v7696 = vld [vmem:[#allocation4 + $0x18] sm:$0x1f]
        %v7697 = vld [vmem:[#allocation4 + $0x20] sm:$0x1f]
        %v7698 = vld [vmem:[#allocation4 + $0x28] sm:$0x1f]
        %v7699 = vld [vmem:[#allocation4 + $0x30] sm:$0x1f]
        %v7700 = vld [vmem:[#allocation4 + $0x38] sm:$0x1f]
        %v7701 = vld [vmem:[#allocation4] sm:$0x1e]
        %v7702 = vld [vmem:[#allocation4 + $0x8] sm:$0x1e]
        %v7703 = vld [vmem:[#allocation4 + $0x10] sm:$0x1e]
        %v7704 = vld [vmem:[#allocation4 + $0x18] sm:$0x1e]
        %v7705 = vld [vmem:[#allocation4 + $0x20] sm:$0x1e]
        %v7706 = vld [vmem:[#allocation4 + $0x28] sm:$0x1e]
        %v7707 = vld [vmem:[#allocation4 + $0x30] sm:$0x1e]
        %v7708 = vld [vmem:[#allocation4 + $0x38] sm:$0x1e]
        %v7710 = vshrl.u32 %v7693, 16
        %v7712 = vshll.u32 %v7693, 16
        %v7714 = vrot.slane %v7712, 1
        %v7715 = vor.u32 %v7710, %v7714
        %v7717 = vshrl.u32 %v7694, 16
        %v7719 = vshll.u32 %v7694, 16
        %v7721 = vrot.slane %v7719, 1
        %v7722 = vor.u32 %v7717, %v7721
        %v7724 = vshrl.u32 %v7695, 16
        %v7726 = vshll.u32 %v7695, 16
        %v7728 = vrot.slane %v7726, 1
        %v7729 = vor.u32 %v7724, %v7728
        %v7731 = vshrl.u32 %v7696, 16
        %v7733 = vshll.u32 %v7696, 16
        %v7735 = vrot.slane %v7733, 1
        %v7736 = vor.u32 %v7731, %v7735
        %v7738 = vshrl.u32 %v7697, 16
        %v7740 = vshll.u32 %v7697, 16
        %v7742 = vrot.slane %v7740, 1
        %v7743 = vor.u32 %v7738, %v7742
        %v7745 = vshrl.u32 %v7698, 16
        %v7747 = vshll.u32 %v7698, 16
        %v7749 = vrot.slane %v7747, 1
        %v7750 = vor.u32 %v7745, %v7749
        %v7752 = vshrl.u32 %v7699, 16
        %v7754 = vshll.u32 %v7699, 16
        %v7756 = vrot.slane %v7754, 1
        %v7757 = vor.u32 %v7752, %v7756
        %v7759 = vshrl.u32 %v7700, 16
        %v7761 = vshll.u32 %v7700, 16
        %v7763 = vrot.slane %v7761, 1
        %v7764 = vor.u32 %v7759, %v7763
        %v7773 = vrot.slane %v7701, 1
        %v7774 = vrot.slane %v7702, 1
        %v7775 = vrot.slane %v7703, 1
        %v7776 = vrot.slane %v7704, 1
        %v7777 = vrot.slane %v7705, 1
        %v7778 = vrot.slane %v7706, 1
        %v7779 = vrot.slane %v7707, 1
        %v7780 = vrot.slane %v7708, 1
        %v7789 = vunpack.c.l.b16 %v7685
        %v7790 = vunpack.c.l.b16 %v7715
        %v7791 = vunpack.c.l.b16 %v7773
        %v7792 = vunpack.c.l.b16 %v7686
        %v7793 = vunpack.c.l.b16 %v7722
        %v7794 = vunpack.c.l.b16 %v7774
        %v7795 = vunpack.c.l.b16 %v7687
        %v7796 = vunpack.c.l.b16 %v7729
        %v7797 = vunpack.c.l.b16 %v7775
        %v7798 = vunpack.c.l.b16 %v7688
        %v7799 = vunpack.c.l.b16 %v7736
        %v7800 = vunpack.c.l.b16 %v7776
        %v7801 = vunpack.c.l.b16 %v7689
        %v7802 = vunpack.c.l.b16 %v7743
        %v7803 = vunpack.c.l.b16 %v7777
        %v7804 = vunpack.c.l.b16 %v7690
        %v7805 = vunpack.c.l.b16 %v7750
        %v7806 = vunpack.c.l.b16 %v7778
        %v7807 = vunpack.c.l.b16 %v7691
        %v7808 = vunpack.c.l.b16 %v7757
        %v7809 = vunpack.c.l.b16 %v7779
        %v7810 = vunpack.c.l.b16 %v7692
        %v7811 = vunpack.c.l.b16 %v7764
        %v7812 = vunpack.c.l.b16 %v7780
        %v7813 = vld [vmem:[#allocation5] sm:$0xf]
        %v7814 = vld [vmem:[#allocation5 + $0x4] sm:$0xf]
        %v7815 = vld [vmem:[#allocation5 + $0x8] sm:$0xf]
        %v7816 = vld [vmem:[#allocation5 + $0xc] sm:$0xf]
        %v7817 = vld [vmem:[#allocation5 + $0x10] sm:$0xf]
        %v7818 = vld [vmem:[#allocation5 + $0x14] sm:$0xf]
        %v7819 = vld [vmem:[#allocation5 + $0x18] sm:$0xf]
        %v7820 = vld [vmem:[#allocation5 + $0x1c] sm:$0xf]
        %v7821 = vld [vmem:[#allocation5 + $0x20] sm:$0xf]
        %v7822 = vld [vmem:[#allocation5 + $0x24] sm:$0xf]
        %v7823 = vld [vmem:[#allocation5 + $0x28] sm:$0xf]
        %v7824 = vld [vmem:[#allocation5 + $0x2c] sm:$0xf]
        %v7825 = vld [vmem:[#allocation5 + $0x30] sm:$0xf]
        %v7826 = vld [vmem:[#allocation5 + $0x34] sm:$0xf]
        %v7827 = vld [vmem:[#allocation5 + $0x38] sm:$0xf]
        %v7828 = vld [vmem:[#allocation5 + $0x3c] sm:$0xf]
        %v7829 = vld [vmem:[#allocation5 + $0x40] sm:$0xf]
        %v7830 = vld [vmem:[#allocation5 + $0x44] sm:$0xf]
        %v7831 = vld [vmem:[#allocation5 + $0x48] sm:$0xf]
        %v7832 = vld [vmem:[#allocation5 + $0x4c] sm:$0xf]
        %v7833 = vld [vmem:[#allocation5 + $0x50] sm:$0xf]
        %v7834 = vld [vmem:[#allocation5 + $0x54] sm:$0xf]
        %v7835 = vld [vmem:[#allocation5 + $0x58] sm:$0xf]
        %v7836 = vld [vmem:[#allocation5 + $0x5c] sm:$0xf]
        %v7837 = vld [vmem:[#allocation5 + $0x60] sm:$0xf]
        %v7838 = vld [vmem:[#allocation5 + $0x64] sm:$0xf]
        %v7839 = vld [vmem:[#allocation5 + $0x68] sm:$0xf]
        %v7840 = vld [vmem:[#allocation5 + $0x6c] sm:$0xf]
        %v7841 = vld [vmem:[#allocation5 + $0x70] sm:$0xf]
        %v7842 = vld [vmem:[#allocation5 + $0x74] sm:$0xf]
        %v7843 = vld [vmem:[#allocation5 + $0x78] sm:$0xf]
        %v7844 = vld [vmem:[#allocation5 + $0x7c] sm:$0xf]
        %v7845 = vld [vmem:[#allocation5 + $0x80] sm:$0xf]
        %v7846 = vld [vmem:[#allocation5 + $0x84] sm:$0xf]
        %v7847 = vld [vmem:[#allocation5 + $0x88] sm:$0xf]
        %v7848 = vld [vmem:[#allocation5 + $0x8c] sm:$0xf]
        %v7849 = vld [vmem:[#allocation5 + $0x90] sm:$0xf]
        %v7850 = vld [vmem:[#allocation5 + $0x94] sm:$0xf]
        %v7851 = vld [vmem:[#allocation5 + $0x98] sm:$0xf]
        %v7852 = vld [vmem:[#allocation5 + $0x9c] sm:$0xf]
        %v7853 = vld [vmem:[#allocation5 + $0xa0] sm:$0xf]
        %v7854 = vld [vmem:[#allocation5 + $0xa4] sm:$0xf]
        %v7855 = vld [vmem:[#allocation5 + $0xa8] sm:$0xf]
        %v7856 = vld [vmem:[#allocation5 + $0xac] sm:$0xf]
        %v7857 = vld [vmem:[#allocation5 + $0xb0] sm:$0xf]
        %v7858 = vld [vmem:[#allocation5 + $0xb4] sm:$0xf]
        %v7859 = vld [vmem:[#allocation5 + $0xb8] sm:$0xf]
        %v7860 = vld [vmem:[#allocation5 + $0xbc] sm:$0xf]
        %v7861 = vld [vmem:[%s300] sm:$0xf]
        %v7862 = vld [vmem:[%s300 + $0x8] sm:$0xf]
        %v7863 = vld [vmem:[%s300 + $0x10] sm:$0xf]
        %v7864 = vld [vmem:[%s300 + $0x18] sm:$0xf]
        %v7865 = vld [vmem:[%s300 + $0x20] sm:$0xf]
        %v7866 = vld [vmem:[%s300 + $0x28] sm:$0xf]
        %v7867 = vld [vmem:[%s300 + $0x30] sm:$0xf]
        %v7868 = vld [vmem:[%s300 + $0x38] sm:$0xf]
        %v7869 = vld [vmem:[%s300] sm:$0x1f]
        %v7870 = vld [vmem:[%s300 + $0x8] sm:$0x1f]
        %v7871 = vld [vmem:[%s300 + $0x10] sm:$0x1f]
        %v7872 = vld [vmem:[%s300 + $0x18] sm:$0x1f]
        %v7873 = vld [vmem:[%s300 + $0x20] sm:$0x1f]
        %v7874 = vld [vmem:[%s300 + $0x28] sm:$0x1f]
        %v7875 = vld [vmem:[%s300 + $0x30] sm:$0x1f]
        %v7876 = vld [vmem:[%s300 + $0x38] sm:$0x1f]
        %v7877 = vld [vmem:[%s300] sm:$0x1e]
        %v7878 = vld [vmem:[%s300 + $0x8] sm:$0x1e]
        %v7879 = vld [vmem:[%s300 + $0x10] sm:$0x1e]
        %v7880 = vld [vmem:[%s300 + $0x18] sm:$0x1e]
        %v7881 = vld [vmem:[%s300 + $0x20] sm:$0x1e]
        %v7882 = vld [vmem:[%s300 + $0x28] sm:$0x1e]
        %v7883 = vld [vmem:[%s300 + $0x30] sm:$0x1e]
        %v7884 = vld [vmem:[%s300 + $0x38] sm:$0x1e]
        %v7886 = vshrl.u32 %v7869, 16
        %v7888 = vshll.u32 %v7869, 16
        %v7890 = vrot.slane %v7888, 1
        %v7891 = vor.u32 %v7886, %v7890
        %v7893 = vshrl.u32 %v7870, 16
        %v7895 = vshll.u32 %v7870, 16
        %v7897 = vrot.slane %v7895, 1
        %v7898 = vor.u32 %v7893, %v7897
        %v7900 = vshrl.u32 %v7871, 16
        %v7902 = vshll.u32 %v7871, 16
        %v7904 = vrot.slane %v7902, 1
        %v7905 = vor.u32 %v7900, %v7904
        %v7907 = vshrl.u32 %v7872, 16
        %v7909 = vshll.u32 %v7872, 16
        %v7911 = vrot.slane %v7909, 1
        %v7912 = vor.u32 %v7907, %v7911
        %v7914 = vshrl.u32 %v7873, 16
        %v7916 = vshll.u32 %v7873, 16
        %v7918 = vrot.slane %v7916, 1
        %v7919 = vor.u32 %v7914, %v7918
        %v7921 = vshrl.u32 %v7874, 16
        %v7923 = vshll.u32 %v7874, 16
        %v7925 = vrot.slane %v7923, 1
        %v7926 = vor.u32 %v7921, %v7925
        %v7928 = vshrl.u32 %v7875, 16
        %v7930 = vshll.u32 %v7875, 16
        %v7932 = vrot.slane %v7930, 1
        %v7933 = vor.u32 %v7928, %v7932
        %v7935 = vshrl.u32 %v7876, 16
        %v7937 = vshll.u32 %v7876, 16
        %v7939 = vrot.slane %v7937, 1
        %v7940 = vor.u32 %v7935, %v7939
        %v7949 = vrot.slane %v7877, 1
        %v7950 = vrot.slane %v7878, 1
        %v7951 = vrot.slane %v7879, 1
        %v7952 = vrot.slane %v7880, 1
        %v7953 = vrot.slane %v7881, 1
        %v7954 = vrot.slane %v7882, 1
        %v7955 = vrot.slane %v7883, 1
        %v7956 = vrot.slane %v7884, 1
        %v7965 = vunpack.c.l.b16 %v7861
        %v7966 = vunpack.c.l.b16 %v7891
        %v7967 = vunpack.c.l.b16 %v7949
        %v7968 = vunpack.c.l.b16 %v7862
        %v7969 = vunpack.c.l.b16 %v7898
        %v7970 = vunpack.c.l.b16 %v7950
        %v7971 = vunpack.c.l.b16 %v7863
        %v7972 = vunpack.c.l.b16 %v7905
        %v7973 = vunpack.c.l.b16 %v7951
        %v7974 = vunpack.c.l.b16 %v7864
        %v7975 = vunpack.c.l.b16 %v7912
        %v7976 = vunpack.c.l.b16 %v7952
        %v7977 = vunpack.c.l.b16 %v7865
        %v7978 = vunpack.c.l.b16 %v7919
        %v7979 = vunpack.c.l.b16 %v7953
        %v7980 = vunpack.c.l.b16 %v7866
        %v7981 = vunpack.c.l.b16 %v7926
        %v7982 = vunpack.c.l.b16 %v7954
        %v7983 = vunpack.c.l.b16 %v7867
        %v7984 = vunpack.c.l.b16 %v7933
        %v7985 = vunpack.c.l.b16 %v7955
        %v7986 = vunpack.c.l.b16 %v7868
        %v7987 = vunpack.c.l.b16 %v7940
        %v7988 = vunpack.c.l.b16 %v7956
        %s7989 = scalar_lea.vmem [#allocation5], 192
        %v7990 = vld [vmem:[%s7989] sm:$0xf]
        %v7991 = vld [vmem:[%s7989 + $0x4] sm:$0xf]
        %v7992 = vld [vmem:[%s7989 + $0x8] sm:$0xf]
        %v7993 = vld [vmem:[%s7989 + $0xc] sm:$0xf]
        %v7994 = vld [vmem:[%s7989 + $0x10] sm:$0xf]
        %v7995 = vld [vmem:[%s7989 + $0x14] sm:$0xf]
        %v7996 = vld [vmem:[%s7989 + $0x18] sm:$0xf]
        %v7997 = vld [vmem:[%s7989 + $0x1c] sm:$0xf]
        %v7998 = vld [vmem:[%s7989 + $0x20] sm:$0xf]
        %v7999 = vld [vmem:[%s7989 + $0x24] sm:$0xf]
        %v8000 = vld [vmem:[%s7989 + $0x28] sm:$0xf]
        %v8001 = vld [vmem:[%s7989 + $0x2c] sm:$0xf]
        %v8002 = vld [vmem:[%s7989 + $0x30] sm:$0xf]
        %v8003 = vld [vmem:[%s7989 + $0x34] sm:$0xf]
        %v8004 = vld [vmem:[%s7989 + $0x38] sm:$0xf]
        %v8005 = vld [vmem:[%s7989 + $0x3c] sm:$0xf]
        %v8006 = vld [vmem:[%s7989 + $0x40] sm:$0xf]
        %v8007 = vld [vmem:[%s7989 + $0x44] sm:$0xf]
        %v8008 = vld [vmem:[%s7989 + $0x48] sm:$0xf]
        %v8009 = vld [vmem:[%s7989 + $0x4c] sm:$0xf]
        %v8010 = vld [vmem:[%s7989 + $0x50] sm:$0xf]
        %v8011 = vld [vmem:[%s7989 + $0x54] sm:$0xf]
        %v8012 = vld [vmem:[%s7989 + $0x58] sm:$0xf]
        %v8013 = vld [vmem:[%s7989 + $0x5c] sm:$0xf]
        %v8014 = vld [vmem:[%s7989 + $0x60] sm:$0xf]
        %v8015 = vld [vmem:[%s7989 + $0x64] sm:$0xf]
        %v8016 = vld [vmem:[%s7989 + $0x68] sm:$0xf]
        %v8017 = vld [vmem:[%s7989 + $0x6c] sm:$0xf]
        %v8018 = vld [vmem:[%s7989 + $0x70] sm:$0xf]
        %v8019 = vld [vmem:[%s7989 + $0x74] sm:$0xf]
        %v8020 = vld [vmem:[%s7989 + $0x78] sm:$0xf]
        %v8021 = vld [vmem:[%s7989 + $0x7c] sm:$0xf]
        %v8022 = vld [vmem:[%s7989 + $0x80] sm:$0xf]
        %v8023 = vld [vmem:[%s7989 + $0x84] sm:$0xf]
        %v8024 = vld [vmem:[%s7989 + $0x88] sm:$0xf]
        %v8025 = vld [vmem:[%s7989 + $0x8c] sm:$0xf]
        %v8026 = vld [vmem:[%s7989 + $0x90] sm:$0xf]
        %v8027 = vld [vmem:[%s7989 + $0x94] sm:$0xf]
        %v8028 = vld [vmem:[%s7989 + $0x98] sm:$0xf]
        %v8029 = vld [vmem:[%s7989 + $0x9c] sm:$0xf]
        %v8030 = vld [vmem:[%s7989 + $0xa0] sm:$0xf]
        %v8031 = vld [vmem:[%s7989 + $0xa4] sm:$0xf]
        %v8032 = vld [vmem:[%s7989 + $0xa8] sm:$0xf]
        %v8033 = vld [vmem:[%s7989 + $0xac] sm:$0xf]
        %v8034 = vld [vmem:[%s7989 + $0xb0] sm:$0xf]
        %v8035 = vld [vmem:[%s7989 + $0xb4] sm:$0xf]
        %v8036 = vld [vmem:[%s7989 + $0xb8] sm:$0xf]
        %v8037 = vld [vmem:[%s7989 + $0xbc] sm:$0xf]
        %v8038 = vpack.c.b16 %v7968, %v7965
        %v8039 = vpack.c.b16 %v7969, %v7966
        %v8040 = vpack.c.b16 %v7970, %v7967
        %v8041 = vpack.c.b16 %v7974, %v7971
        %v8042 = vpack.c.b16 %v7975, %v7972
        %v8043 = vpack.c.b16 %v7976, %v7973
        %v8044 = vpack.c.b16 %v7980, %v7977
        %v8045 = vpack.c.b16 %v7981, %v7978
        %v8046 = vpack.c.b16 %v7982, %v7979
        %v8047 = vpack.c.b16 %v7986, %v7983
        %v8048 = vpack.c.b16 %v7987, %v7984
        %v8049 = vpack.c.b16 %v7988, %v7985
        %v8110 = vunpack.c.l.b16 %v7990
        %v8111 = vunpack.c.l.b16 %v7991
        %v8112 = vunpack.c.l.b16 %v7992
        %v8113 = vunpack.c.l.b16 %v7993
        %v8114 = vunpack.c.l.b16 %v7994
        %v8115 = vunpack.c.l.b16 %v7995
        %v8116 = vunpack.c.l.b16 %v7996
        %v8117 = vunpack.c.l.b16 %v7997
        %v8118 = vunpack.c.l.b16 %v7998
        %v8119 = vunpack.c.l.b16 %v7999
        %v8120 = vunpack.c.l.b16 %v8000
        %v8121 = vunpack.c.l.b16 %v8001
        %v8122 = vunpack.c.l.b16 %v8002
        %v8123 = vunpack.c.l.b16 %v8003
        %v8124 = vunpack.c.l.b16 %v8004
        %v8125 = vunpack.c.l.b16 %v8005
        %v8126 = vunpack.c.l.b16 %v8006
        %v8127 = vunpack.c.l.b16 %v8007
        %v8128 = vunpack.c.l.b16 %v8008
        %v8129 = vunpack.c.l.b16 %v8009
        %v8130 = vunpack.c.l.b16 %v8010
        %v8131 = vunpack.c.l.b16 %v8011
        %v8132 = vunpack.c.l.b16 %v8012
        %v8133 = vunpack.c.l.b16 %v8013
        %v8134 = vunpack.c.l.b16 %v8014
        %v8135 = vunpack.c.l.b16 %v8015
        %v8136 = vunpack.c.l.b16 %v8016
        %v8137 = vunpack.c.l.b16 %v8017
        %v8138 = vunpack.c.l.b16 %v8018
        %v8139 = vunpack.c.l.b16 %v8019
        %v8140 = vunpack.c.l.b16 %v8020
        %v8141 = vunpack.c.l.b16 %v8021
        %v8142 = vunpack.c.l.b16 %v8022
        %v8143 = vunpack.c.l.b16 %v8023
        %v8144 = vunpack.c.l.b16 %v8024
        %v8145 = vunpack.c.l.b16 %v8025
        %v8146 = vunpack.c.l.b16 %v8026
        %v8147 = vunpack.c.l.b16 %v8027
        %v8148 = vunpack.c.l.b16 %v8028
        %v8149 = vunpack.c.l.b16 %v8029
        %v8150 = vunpack.c.l.b16 %v8030
        %v8151 = vunpack.c.l.b16 %v8031
        %v8152 = vunpack.c.l.b16 %v8032
        %v8153 = vunpack.c.l.b16 %v8033
        %v8154 = vunpack.c.l.b16 %v8034
        %v8155 = vunpack.c.l.b16 %v8035
        %v8156 = vunpack.c.l.b16 %v8036
        %v8157 = vunpack.c.l.b16 %v8037
        %v8158 = vpack.c.b16 %v8111, %v8110
        %v8159 = vpack.c.b16 %v8113, %v8112
        %v8160 = vpack.c.b16 %v8115, %v8114
        %v8161 = vpack.c.b16 %v8117, %v8116
        %v8162 = vpack.c.b16 %v8119, %v8118
        %v8163 = vpack.c.b16 %v8121, %v8120
        %v8164 = vpack.c.b16 %v8123, %v8122
        %v8165 = vpack.c.b16 %v8125, %v8124
        %v8166 = vpack.c.b16 %v8127, %v8126
        %v8167 = vpack.c.b16 %v8129, %v8128
        %v8168 = vpack.c.b16 %v8131, %v8130
        %v8169 = vpack.c.b16 %v8133, %v8132
        %v8170 = vpack.c.b16 %v8135, %v8134
        %v8171 = vpack.c.b16 %v8137, %v8136
        %v8172 = vpack.c.b16 %v8139, %v8138
        %v8173 = vpack.c.b16 %v8141, %v8140
        %v8174 = vpack.c.b16 %v8143, %v8142
        %v8175 = vpack.c.b16 %v8145, %v8144
        %v8176 = vpack.c.b16 %v8147, %v8146
        %v8177 = vpack.c.b16 %v8149, %v8148
        %v8178 = vpack.c.b16 %v8151, %v8150
        %v8179 = vpack.c.b16 %v8153, %v8152
        %v8180 = vpack.c.b16 %v8155, %v8154
        %v8181 = vpack.c.b16 %v8157, %v8156
        %8206 = vmatprep.subr.bf16.mxu0 0
        %8207 = vmatpush1.bf16.msra.mxu0 %v8158
        %8208 = vmatprep.subr.bf16.mxu0 0
        %8209 = vmatpush1.bf16.msra.mxu0 %v8159
        %8210 = vmatprep.subr.bf16.mxu0 0
        %8211 = vmatpush1.bf16.msra.mxu0 %v8160
        %8212 = vmatprep.subr.bf16.mxu0 0
        %8213 = vmatpush1.bf16.msra.mxu0 %v8161
        %8214 = vmatprep.subr.bf16.mxu0 0
        %8215 = vmatpush1.bf16.msra.mxu0 %v8162
        %8216 = vmatprep.subr.bf16.mxu0 0
        %8217 = vmatpush1.bf16.msra.mxu0 %v8163
        %8218 = vmatprep.subr.bf16.mxu0 0
        %8219 = vmatpush1.bf16.msra.mxu0 %v8164
        %8220 = vmatprep.subr.bf16.mxu0 0
        %8221 = vmatpush1.bf16.msra.mxu0 %v8165
        %8222 = vmatprep.subr.bf16.mxu0 0
        %8223 = vmatpush1.bf16.msra.mxu0 %v8166
        %8224 = vmatprep.subr.bf16.mxu0 0
        %8225 = vmatpush1.bf16.msra.mxu0 %v8167
        %8226 = vmatprep.subr.bf16.mxu0 0
        %8227 = vmatpush1.bf16.msra.mxu0 %v8168
        %8228 = vmatprep.subr.bf16.mxu0 0
        %8229 = vmatpush1.bf16.msra.mxu0 %v8169
        %8230 = vmatprep.subr.bf16.mxu0 0
        %8231 = vmatpush1.bf16.msra.mxu0 %v8170
        %8232 = vmatprep.subr.bf16.mxu0 0
        %8233 = vmatpush1.bf16.msra.mxu0 %v8171
        %8234 = vmatprep.subr.bf16.mxu0 0
        %8235 = vmatpush1.bf16.msra.mxu0 %v8172
        %8236 = vmatprep.subr.bf16.mxu0 0
        %8237 = vmatpush1.bf16.msra.mxu0 %v8173
        %8238 = vmatprep.mubr.bf16.mxu0 %v8039
        %8239 = vmatmul.mubr.bf16.gmra.mrb[0].mxu0 %v8038
        %v8240 = vpop.f32.mrb[0].mxu0
        %v8241 = vadd.f32 0.0, %v8240
        %v8242 = vpop.f32.mrb[0].mxu0
        %v8243 = vpop.f32.mrb[0].mxu0
        %v8244 = vadd.f32 0.0, %v8243
        %v8245 = vpop.f32.mrb[0].mxu0
        %8246 = vmatprep.mubr.bf16.mxu0 %v8042
        %8247 = vmatmul.mubr.bf16.gmra.mrb[0].mxu0 %v8041
        %v8248 = vpop.f32.mrb[0].mxu0
        %v8249 = vadd.f32 0.0, %v8248
        %v8250 = vpop.f32.mrb[0].mxu0
        %v8251 = vpop.f32.mrb[0].mxu0
        %v8252 = vadd.f32 0.0, %v8251
        %v8253 = vpop.f32.mrb[0].mxu0
        %8254 = vmatprep.mubr.bf16.mxu0 %v8045
        %8255 = vmatmul.mubr.bf16.gmra.mrb[0].mxu0 %v8044
        %v8256 = vpop.f32.mrb[0].mxu0
        %v8257 = vadd.f32 0.0, %v8256
        %v8258 = vpop.f32.mrb[0].mxu0
        %v8259 = vpop.f32.mrb[0].mxu0
        %v8260 = vadd.f32 0.0, %v8259
        %v8261 = vpop.f32.mrb[0].mxu0
        %8262 = vmatprep.mubr.bf16.mxu0 %v8048
        %8263 = vmatmul.mubr.bf16.gmra.mrb[0].mxu0 %v8047
        %v8264 = vpop.f32.mrb[0].mxu0
        %v8265 = vadd.f32 0.0, %v8264
        %v8266 = vpop.f32.mrb[0].mxu0
        %v8267 = vpop.f32.mrb[0].mxu0
        %v8268 = vadd.f32 0.0, %v8267
        %v8269 = vpop.f32.mrb[0].mxu0
        %8270 = vdwg.mxu0
        %8271 = vmatprep.subr.bf16.mxu0 0
        %8272 = vmatpush1.bf16.msra.mxu0 %v8174
        %8273 = vmatprep.subr.bf16.mxu0 0
        %8274 = vmatpush1.bf16.msra.mxu0 %v8175
        %8275 = vmatprep.subr.bf16.mxu0 0
        %8276 = vmatpush1.bf16.msra.mxu0 %v8176
        %8277 = vmatprep.subr.bf16.mxu0 0
        %8278 = vmatpush1.bf16.msra.mxu0 %v8177
        %8279 = vmatprep.subr.bf16.mxu0 0
        %8280 = vmatpush1.bf16.msra.mxu0 %v8178
        %8281 = vmatprep.subr.bf16.mxu0 0
        %8282 = vmatpush1.bf16.msra.mxu0 %v8179
        %8283 = vmatprep.subr.bf16.mxu0 0
        %8284 = vmatpush1.bf16.msra.mxu0 %v8180
        %8285 = vmatprep.subr.bf16.mxu0 0
        %8286 = vmatpush1.bf16.msra.mxu0 %v8181
        %8287 = vmatprep.subr.bf16.mxu0 0
        %8288 = vmatpush1.bf16.msra.mxu0 0
        %8289 = vmatprep.subr.bf16.mxu0 0
        %8290 = vmatpush1.bf16.msra.mxu0 0
        %8291 = vmatprep.subr.bf16.mxu0 0
        %8292 = vmatpush1.bf16.msra.mxu0 0
        %8293 = vmatprep.subr.bf16.mxu0 0
        %8294 = vmatpush1.bf16.msra.mxu0 0
        %8295 = vmatprep.subr.bf16.mxu0 0
        %8296 = vmatpush1.bf16.msra.mxu0 0
        %8297 = vmatprep.subr.bf16.mxu0 0
        %8298 = vmatpush1.bf16.msra.mxu0 0
        %8299 = vmatprep.subr.bf16.mxu0 0
        %8300 = vmatpush1.bf16.msra.mxu0 0
        %8301 = vmatprep.subr.bf16.mxu0 0
        %8302 = vmatpush1.bf16.msra.mxu0 0
        %8303 = vmatprep.mubr.bf16.mxu0 0
        %8304 = vmatmul.mubr.bf16.gmra.mrb[0].mxu0 %v8040
        %v8305 = vpop.f32.mrb[0].mxu0
        %v8306 = vadd.f32 %v8241, %v8305
        %v8307 = vpop.f32.mrb[0].mxu0
        %v8308 = vpop.f32.mrb[0].mxu0
        %v8309 = vadd.f32 %v8244, %v8308
        %v8310 = vpop.f32.mrb[0].mxu0
        %8311 = vmatprep.mubr.bf16.mxu0 0
        %8312 = vmatmul.mubr.bf16.gmra.mrb[0].mxu0 %v8043
        %v8313 = vpop.f32.mrb[0].mxu0
        %v8314 = vadd.f32 %v8249, %v8313
        %v8315 = vpop.f32.mrb[0].mxu0
        %v8316 = vpop.f32.mrb[0].mxu0
        %v8317 = vadd.f32 %v8252, %v8316
        %v8318 = vpop.f32.mrb[0].mxu0
        %8319 = vmatprep.mubr.bf16.mxu0 0
        %8320 = vmatmul.mubr.bf16.gmra.mrb[0].mxu0 %v8046
        %v8321 = vpop.f32.mrb[0].mxu0
        %v8322 = vadd.f32 %v8257, %v8321
        %v8323 = vpop.f32.mrb[0].mxu0
        %v8324 = vpop.f32.mrb[0].mxu0
        %v8325 = vadd.f32 %v8260, %v8324
        %v8326 = vpop.f32.mrb[0].mxu0
        %8327 = vmatprep.mubr.bf16.mxu0 0
        %8328 = vmatmul.mubr.bf16.gmra.mrb[0].mxu0 %v8049
        %v8329 = vpop.f32.mrb[0].mxu0
        %v8330 = vadd.f32 %v8265, %v8329
        %v8331 = vpop.f32.mrb[0].mxu0
        %v8332 = vpop.f32.mrb[0].mxu0
        %v8333 = vadd.f32 %v8268, %v8332
        %v8334 = vpop.f32.mrb[0].mxu0
        %8335 = vdwg.mxu0
        %v8336 = vpack.c.b16 %v7792, %v7789
        %v8337 = vpack.c.b16 %v7793, %v7790
        %v8338 = vpack.c.b16 %v7794, %v7791
        %v8339 = vpack.c.b16 %v7798, %v7795
        %v8340 = vpack.c.b16 %v7799, %v7796
        %v8341 = vpack.c.b16 %v7800, %v7797
        %v8342 = vpack.c.b16 %v7804, %v7801
        %v8343 = vpack.c.b16 %v7805, %v7802
        %v8344 = vpack.c.b16 %v7806, %v7803
        %v8345 = vpack.c.b16 %v7810, %v7807
        %v8346 = vpack.c.b16 %v7811, %v7808
        %v8347 = vpack.c.b16 %v7812, %v7809
        %v8408 = vunpack.c.l.b16 %v7813
        %v8409 = vunpack.c.l.b16 %v7814
        %v8410 = vunpack.c.l.b16 %v7815
        %v8411 = vunpack.c.l.b16 %v7816
        %v8412 = vunpack.c.l.b16 %v7817
        %v8413 = vunpack.c.l.b16 %v7818
        %v8414 = vunpack.c.l.b16 %v7819
        %v8415 = vunpack.c.l.b16 %v7820
        %v8416 = vunpack.c.l.b16 %v7821
        %v8417 = vunpack.c.l.b16 %v7822
        %v8418 = vunpack.c.l.b16 %v7823
        %v8419 = vunpack.c.l.b16 %v7824
        %v8420 = vunpack.c.l.b16 %v7825
        %v8421 = vunpack.c.l.b16 %v7826
        %v8422 = vunpack.c.l.b16 %v7827
        %v8423 = vunpack.c.l.b16 %v7828
        %v8424 = vunpack.c.l.b16 %v7829
        %v8425 = vunpack.c.l.b16 %v7830
        %v8426 = vunpack.c.l.b16 %v7831
        %v8427 = vunpack.c.l.b16 %v7832
        %v8428 = vunpack.c.l.b16 %v7833
        %v8429 = vunpack.c.l.b16 %v7834
        %v8430 = vunpack.c.l.b16 %v7835
        %v8431 = vunpack.c.l.b16 %v7836
        %v8432 = vunpack.c.l.b16 %v7837
        %v8433 = vunpack.c.l.b16 %v7838
        %v8434 = vunpack.c.l.b16 %v7839
        %v8435 = vunpack.c.l.b16 %v7840
        %v8436 = vunpack.c.l.b16 %v7841
        %v8437 = vunpack.c.l.b16 %v7842
        %v8438 = vunpack.c.l.b16 %v7843
        %v8439 = vunpack.c.l.b16 %v7844
        %v8440 = vunpack.c.l.b16 %v7845
        %v8441 = vunpack.c.l.b16 %v7846
        %v8442 = vunpack.c.l.b16 %v7847
        %v8443 = vunpack.c.l.b16 %v7848
        %v8444 = vunpack.c.l.b16 %v7849
        %v8445 = vunpack.c.l.b16 %v7850
        %v8446 = vunpack.c.l.b16 %v7851
        %v8447 = vunpack.c.l.b16 %v7852
        %v8448 = vunpack.c.l.b16 %v7853
        %v8449 = vunpack.c.l.b16 %v7854
        %v8450 = vunpack.c.l.b16 %v7855
        %v8451 = vunpack.c.l.b16 %v7856
        %v8452 = vunpack.c.l.b16 %v7857
        %v8453 = vunpack.c.l.b16 %v7858
        %v8454 = vunpack.c.l.b16 %v7859
        %v8455 = vunpack.c.l.b16 %v7860
        %v8456 = vpack.c.b16 %v8409, %v8408
        %v8457 = vpack.c.b16 %v8411, %v8410
        %v8458 = vpack.c.b16 %v8413, %v8412
        %v8459 = vpack.c.b16 %v8415, %v8414
        %v8460 = vpack.c.b16 %v8417, %v8416
        %v8461 = vpack.c.b16 %v8419, %v8418
        %v8462 = vpack.c.b16 %v8421, %v8420
        %v8463 = vpack.c.b16 %v8423, %v8422
        %v8464 = vpack.c.b16 %v8425, %v8424
        %v8465 = vpack.c.b16 %v8427, %v8426
        %v8466 = vpack.c.b16 %v8429, %v8428
        %v8467 = vpack.c.b16 %v8431, %v8430
        %v8468 = vpack.c.b16 %v8433, %v8432
        %v8469 = vpack.c.b16 %v8435, %v8434
        %v8470 = vpack.c.b16 %v8437, %v8436
        %v8471 = vpack.c.b16 %v8439, %v8438
        %v8472 = vpack.c.b16 %v8441, %v8440
        %v8473 = vpack.c.b16 %v8443, %v8442
        %v8474 = vpack.c.b16 %v8445, %v8444
        %v8475 = vpack.c.b16 %v8447, %v8446
        %v8476 = vpack.c.b16 %v8449, %v8448
        %v8477 = vpack.c.b16 %v8451, %v8450
        %v8478 = vpack.c.b16 %v8453, %v8452
        %v8479 = vpack.c.b16 %v8455, %v8454
        %8504 = vmatprep.subr.bf16.mxu0 0
        %8505 = vmatpush1.bf16.msra.mxu0 %v8456
        %8506 = vmatprep.subr.bf16.mxu0 0
        %8507 = vmatpush1.bf16.msra.mxu0 %v8457
        %8508 = vmatprep.subr.bf16.mxu0 0
        %8509 = vmatpush1.bf16.msra.mxu0 %v8458
        %8510 = vmatprep.subr.bf16.mxu0 0
        %8511 = vmatpush1.bf16.msra.mxu0 %v8459
        %8512 = vmatprep.subr.bf16.mxu0 0
        %8513 = vmatpush1.bf16.msra.mxu0 %v8460
        %8514 = vmatprep.subr.bf16.mxu0 0
        %8515 = vmatpush1.bf16.msra.mxu0 %v8461
        %8516 = vmatprep.subr.bf16.mxu0 0
        %8517 = vmatpush1.bf16.msra.mxu0 %v8462
        %8518 = vmatprep.subr.bf16.mxu0 0
        %8519 = vmatpush1.bf16.msra.mxu0 %v8463
        %8520 = vmatprep.subr.bf16.mxu0 0
        %8521 = vmatpush1.bf16.msra.mxu0 %v8464
        %8522 = vmatprep.subr.bf16.mxu0 0
        %8523 = vmatpush1.bf16.msra.mxu0 %v8465
        %8524 = vmatprep.subr.bf16.mxu0 0
        %8525 = vmatpush1.bf16.msra.mxu0 %v8466
        %8526 = vmatprep.subr.bf16.mxu0 0
        %8527 = vmatpush1.bf16.msra.mxu0 %v8467
        %8528 = vmatprep.subr.bf16.mxu0 0
        %8529 = vmatpush1.bf16.msra.mxu0 %v8468
        %8530 = vmatprep.subr.bf16.mxu0 0
        %8531 = vmatpush1.bf16.msra.mxu0 %v8469
        %8532 = vmatprep.subr.bf16.mxu0 0
        %8533 = vmatpush1.bf16.msra.mxu0 %v8470
        %8534 = vmatprep.subr.bf16.mxu0 0
        %8535 = vmatpush1.bf16.msra.mxu0 %v8471
        %8536 = vmatprep.mubr.bf16.mxu0 %v8337
        %8537 = vmatmul.mubr.bf16.gmra.mrb[0].mxu0 %v8336
        %v8538 = vpop.f32.mrb[0].mxu0
        %v8539 = vadd.f32 %v8306, %v8538
        %v8540 = vpop.f32.mrb[0].mxu0
        %v8541 = vpop.f32.mrb[0].mxu0
        %v8542 = vadd.f32 %v8309, %v8541
        %v8543 = vpop.f32.mrb[0].mxu0
        %8544 = vmatprep.mubr.bf16.mxu0 %v8340
        %8545 = vmatmul.mubr.bf16.gmra.mrb[0].mxu0 %v8339
        %v8546 = vpop.f32.mrb[0].mxu0
        %v8547 = vadd.f32 %v8314, %v8546
        %v8548 = vpop.f32.mrb[0].mxu0
        %v8549 = vpop.f32.mrb[0].mxu0
        %v8550 = vadd.f32 %v8317, %v8549
        %v8551 = vpop.f32.mrb[0].mxu0
        %8552 = vmatprep.mubr.bf16.mxu0 %v8343
        %8553 = vmatmul.mubr.bf16.gmra.mrb[0].mxu0 %v8342
        %v8554 = vpop.f32.mrb[0].mxu0
        %v8555 = vadd.f32 %v8322, %v8554
        %v8556 = vpop.f32.mrb[0].mxu0
        %v8557 = vpop.f32.mrb[0].mxu0
        %v8558 = vadd.f32 %v8325, %v8557
        %v8559 = vpop.f32.mrb[0].mxu0
        %8560 = vmatprep.mubr.bf16.mxu0 %v8346
        %8561 = vmatmul.mubr.bf16.gmra.mrb[0].mxu0 %v8345
        %v8562 = vpop.f32.mrb[0].mxu0
        %v8563 = vadd.f32 %v8330, %v8562
        %v8564 = vpop.f32.mrb[0].mxu0
        %v8565 = vpop.f32.mrb[0].mxu0
        %v8566 = vadd.f32 %v8333, %v8565
        %v8567 = vpop.f32.mrb[0].mxu0
        %8568 = vdwg.mxu0
        %8569 = vmatprep.subr.bf16.mxu0 0
        %8570 = vmatpush1.bf16.msra.mxu0 %v8472
        %8571 = vmatprep.subr.bf16.mxu0 0
        %8572 = vmatpush1.bf16.msra.mxu0 %v8473
        %8573 = vmatprep.subr.bf16.mxu0 0
        %8574 = vmatpush1.bf16.msra.mxu0 %v8474
        %8575 = vmatprep.subr.bf16.mxu0 0
        %8576 = vmatpush1.bf16.msra.mxu0 %v8475
        %8577 = vmatprep.subr.bf16.mxu0 0
        %8578 = vmatpush1.bf16.msra.mxu0 %v8476
        %8579 = vmatprep.subr.bf16.mxu0 0
        %8580 = vmatpush1.bf16.msra.mxu0 %v8477
        %8581 = vmatprep.subr.bf16.mxu0 0
        %8582 = vmatpush1.bf16.msra.mxu0 %v8478
        %8583 = vmatprep.subr.bf16.mxu0 0
        %8584 = vmatpush1.bf16.msra.mxu0 %v8479
        %8585 = vmatprep.subr.bf16.mxu0 0
        %8586 = vmatpush1.bf16.msra.mxu0 0
        %8587 = vmatprep.subr.bf16.mxu0 0
        %8588 = vmatpush1.bf16.msra.mxu0 0
        %8589 = vmatprep.subr.bf16.mxu0 0
        %8590 = vmatpush1.bf16.msra.mxu0 0
        %8591 = vmatprep.subr.bf16.mxu0 0
        %8592 = vmatpush1.bf16.msra.mxu0 0
        %8593 = vmatprep.subr.bf16.mxu0 0
        %8594 = vmatpush1.bf16.msra.mxu0 0
        %8595 = vmatprep.subr.bf16.mxu0 0
        %8596 = vmatpush1.bf16.msra.mxu0 0
        %8597 = vmatprep.subr.bf16.mxu0 0
        %8598 = vmatpush1.bf16.msra.mxu0 0
        %8599 = vmatprep.subr.bf16.mxu0 0
        %8600 = vmatpush1.bf16.msra.mxu0 0
        %8601 = vmatprep.mubr.bf16.mxu0 0
        %8602 = vmatmul.mubr.bf16.gmra.mrb[0].mxu0 %v8338
        %v8603 = vpop.f32.mrb[0].mxu0
        %v8604 = vadd.f32 %v8539, %v8603
        %v8605 = vpop.f32.mrb[0].mxu0
        %v8606 = vpop.f32.mrb[0].mxu0
        %v8607 = vadd.f32 %v8542, %v8606
        %v8608 = vpop.f32.mrb[0].mxu0
        %8609 = vmatprep.mubr.bf16.mxu0 0
        %8610 = vmatmul.mubr.bf16.gmra.mrb[0].mxu0 %v8341
        %v8611 = vpop.f32.mrb[0].mxu0
        %v8612 = vadd.f32 %v8547, %v8611
        %v8613 = vpop.f32.mrb[0].mxu0
        %v8614 = vpop.f32.mrb[0].mxu0
        %v8615 = vadd.f32 %v8550, %v8614
        %v8616 = vpop.f32.mrb[0].mxu0
        %8617 = vmatprep.mubr.bf16.mxu0 0
        %8618 = vmatmul.mubr.bf16.gmra.mrb[0].mxu0 %v8344
        %v8619 = vpop.f32.mrb[0].mxu0
        %v8620 = vadd.f32 %v8555, %v8619
        %v8621 = vpop.f32.mrb[0].mxu0
        %v8622 = vpop.f32.mrb[0].mxu0
        %v8623 = vadd.f32 %v8558, %v8622
        %v8624 = vpop.f32.mrb[0].mxu0
        %8625 = vmatprep.mubr.bf16.mxu0 0
        %8626 = vmatmul.mubr.bf16.gmra.mrb[0].mxu0 %v8347
        %v8627 = vpop.f32.mrb[0].mxu0
        %v8628 = vadd.f32 %v8563, %v8627
        %v8629 = vpop.f32.mrb[0].mxu0
        %v8630 = vpop.f32.mrb[0].mxu0
        %v8631 = vadd.f32 %v8566, %v8630
        %v8632 = vpop.f32.mrb[0].mxu0
        %8633 = vdwg.mxu0
        %s8634 = scalar_lea.vmem [#allocation4], 16
        %v8635 = vld [vmem:[%s8634] sm:$0xf]
        %v8636 = vld [vmem:[%s8634 + $0x8] sm:$0xf]
        %v8637 = vld [vmem:[%s8634 + $0x10] sm:$0xf]
        %v8638 = vld [vmem:[%s8634 + $0x18] sm:$0xf]
        %v8639 = vld [vmem:[%s8634 + $0x20] sm:$0xf]
        %v8640 = vld [vmem:[%s8634 + $0x28] sm:$0xf]
        %v8641 = vld [vmem:[%s8634 + $0x30] sm:$0xf]
        %v8642 = vld [vmem:[%s8634 + $0x38] sm:$0xf]
        %v8643 = vld [vmem:[%s8634] sm:$0x1f]
        %v8644 = vld [vmem:[%s8634 + $0x8] sm:$0x1f]
        %v8645 = vld [vmem:[%s8634 + $0x10] sm:$0x1f]
        %v8646 = vld [vmem:[%s8634 + $0x18] sm:$0x1f]
        %v8647 = vld [vmem:[%s8634 + $0x20] sm:$0x1f]
        %v8648 = vld [vmem:[%s8634 + $0x28] sm:$0x1f]
        %v8649 = vld [vmem:[%s8634 + $0x30] sm:$0x1f]
        %v8650 = vld [vmem:[%s8634 + $0x38] sm:$0x1f]
        %v8651 = vld [vmem:[%s8634] sm:$0x1e]
        %v8652 = vld [vmem:[%s8634 + $0x8] sm:$0x1e]
        %v8653 = vld [vmem:[%s8634 + $0x10] sm:$0x1e]
        %v8654 = vld [vmem:[%s8634 + $0x18] sm:$0x1e]
        %v8655 = vld [vmem:[%s8634 + $0x20] sm:$0x1e]
        %v8656 = vld [vmem:[%s8634 + $0x28] sm:$0x1e]
        %v8657 = vld [vmem:[%s8634 + $0x30] sm:$0x1e]
        %v8658 = vld [vmem:[%s8634 + $0x38] sm:$0x1e]
        %v8660 = vshrl.u32 %v8643, 16
        %v8662 = vshll.u32 %v8643, 16
        %v8664 = vrot.slane %v8662, 1
        %v8665 = vor.u32 %v8660, %v8664
        %v8667 = vshrl.u32 %v8644, 16
        %v8669 = vshll.u32 %v8644, 16
        %v8671 = vrot.slane %v8669, 1
        %v8672 = vor.u32 %v8667, %v8671
        %v8674 = vshrl.u32 %v8645, 16
        %v8676 = vshll.u32 %v8645, 16
        %v8678 = vrot.slane %v8676, 1
        %v8679 = vor.u32 %v8674, %v8678
        %v8681 = vshrl.u32 %v8646, 16
        %v8683 = vshll.u32 %v8646, 16
        %v8685 = vrot.slane %v8683, 1
        %v8686 = vor.u32 %v8681, %v8685
        %v8688 = vshrl.u32 %v8647, 16
        %v8690 = vshll.u32 %v8647, 16
        %v8692 = vrot.slane %v8690, 1
        %v8693 = vor.u32 %v8688, %v8692
        %v8695 = vshrl.u32 %v8648, 16
        %v8697 = vshll.u32 %v8648, 16
        %v8699 = vrot.slane %v8697, 1
        %v8700 = vor.u32 %v8695, %v8699
        %v8702 = vshrl.u32 %v8649, 16
        %v8704 = vshll.u32 %v8649, 16
        %v8706 = vrot.slane %v8704, 1
        %v8707 = vor.u32 %v8702, %v8706
        %v8709 = vshrl.u32 %v8650, 16
        %v8711 = vshll.u32 %v8650, 16
        %v8713 = vrot.slane %v8711, 1
        %v8714 = vor.u32 %v8709, %v8713
        %v8723 = vrot.slane %v8651, 1
        %v8724 = vrot.slane %v8652, 1
        %v8725 = vrot.slane %v8653, 1
        %v8726 = vrot.slane %v8654, 1
        %v8727 = vrot.slane %v8655, 1
        %v8728 = vrot.slane %v8656, 1
        %v8729 = vrot.slane %v8657, 1
        %v8730 = vrot.slane %v8658, 1
        %v8739 = vunpack.c.l.b16 %v8635
        %v8740 = vunpack.c.l.b16 %v8665
        %v8741 = vunpack.c.l.b16 %v8723
        %v8742 = vunpack.c.l.b16 %v8636
        %v8743 = vunpack.c.l.b16 %v8672
        %v8744 = vunpack.c.l.b16 %v8724
        %v8745 = vunpack.c.l.b16 %v8637
        %v8746 = vunpack.c.l.b16 %v8679
        %v8747 = vunpack.c.l.b16 %v8725
        %v8748 = vunpack.c.l.b16 %v8638
        %v8749 = vunpack.c.l.b16 %v8686
        %v8750 = vunpack.c.l.b16 %v8726
        %v8751 = vunpack.c.l.b16 %v8639
        %v8752 = vunpack.c.l.b16 %v8693
        %v8753 = vunpack.c.l.b16 %v8727
        %v8754 = vunpack.c.l.b16 %v8640
        %v8755 = vunpack.c.l.b16 %v8700
        %v8756 = vunpack.c.l.b16 %v8728
        %v8757 = vunpack.c.l.b16 %v8641
        %v8758 = vunpack.c.l.b16 %v8707
        %v8759 = vunpack.c.l.b16 %v8729
        %v8760 = vunpack.c.l.b16 %v8642
        %v8761 = vunpack.c.l.b16 %v8714
        %v8762 = vunpack.c.l.b16 %v8730
        %s8763 = scalar_lea.vmem [#allocation5], 384
        %v8764 = vld [vmem:[%s8763] sm:$0xf]
        %v8765 = vld [vmem:[%s8763 + $0x4] sm:$0xf]
        %v8766 = vld [vmem:[%s8763 + $0x8] sm:$0xf]
        %v8767 = vld [vmem:[%s8763 + $0xc] sm:$0xf]
        %v8768 = vld [vmem:[%s8763 + $0x10] sm:$0xf]
        %v8769 = vld [vmem:[%s8763 + $0x14] sm:$0xf]
        %v8770 = vld [vmem:[%s8763 + $0x18] sm:$0xf]
        %v8771 = vld [vmem:[%s8763 + $0x1c] sm:$0xf]
        %v8772 = vld [vmem:[%s8763 + $0x20] sm:$0xf]
        %v8773 = vld [vmem:[%s8763 + $0x24] sm:$0xf]
        %v8774 = vld [vmem:[%s8763 + $0x28] sm:$0xf]
        %v8775 = vld [vmem:[%s8763 + $0x2c] sm:$0xf]
        %v8776 = vld [vmem:[%s8763 + $0x30] sm:$0xf]
        %v8777 = vld [vmem:[%s8763 + $0x34] sm:$0xf]
        %v8778 = vld [vmem:[%s8763 + $0x38] sm:$0xf]
        %v8779 = vld [vmem:[%s8763 + $0x3c] sm:$0xf]
        %v8780 = vld [vmem:[%s8763 + $0x40] sm:$0xf]
        %v8781 = vld [vmem:[%s8763 + $0x44] sm:$0xf]
        %v8782 = vld [vmem:[%s8763 + $0x48] sm:$0xf]
        %v8783 = vld [vmem:[%s8763 + $0x4c] sm:$0xf]
        %v8784 = vld [vmem:[%s8763 + $0x50] sm:$0xf]
        %v8785 = vld [vmem:[%s8763 + $0x54] sm:$0xf]
        %v8786 = vld [vmem:[%s8763 + $0x58] sm:$0xf]
        %v8787 = vld [vmem:[%s8763 + $0x5c] sm:$0xf]
        %v8788 = vld [vmem:[%s8763 + $0x60] sm:$0xf]
        %v8789 = vld [vmem:[%s8763 + $0x64] sm:$0xf]
        %v8790 = vld [vmem:[%s8763 + $0x68] sm:$0xf]
        %v8791 = vld [vmem:[%s8763 + $0x6c] sm:$0xf]
        %v8792 = vld [vmem:[%s8763 + $0x70] sm:$0xf]
        %v8793 = vld [vmem:[%s8763 + $0x74] sm:$0xf]
        %v8794 = vld [vmem:[%s8763 + $0x78] sm:$0xf]
        %v8795 = vld [vmem:[%s8763 + $0x7c] sm:$0xf]
        %v8796 = vld [vmem:[%s8763 + $0x80] sm:$0xf]
        %v8797 = vld [vmem:[%s8763 + $0x84] sm:$0xf]
        %v8798 = vld [vmem:[%s8763 + $0x88] sm:$0xf]
        %v8799 = vld [vmem:[%s8763 + $0x8c] sm:$0xf]
        %v8800 = vld [vmem:[%s8763 + $0x90] sm:$0xf]
        %v8801 = vld [vmem:[%s8763 + $0x94] sm:$0xf]
        %v8802 = vld [vmem:[%s8763 + $0x98] sm:$0xf]
        %v8803 = vld [vmem:[%s8763 + $0x9c] sm:$0xf]
        %v8804 = vld [vmem:[%s8763 + $0xa0] sm:$0xf]
        %v8805 = vld [vmem:[%s8763 + $0xa4] sm:$0xf]
        %v8806 = vld [vmem:[%s8763 + $0xa8] sm:$0xf]
        %v8807 = vld [vmem:[%s8763 + $0xac] sm:$0xf]
        %v8808 = vld [vmem:[%s8763 + $0xb0] sm:$0xf]
        %v8809 = vld [vmem:[%s8763 + $0xb4] sm:$0xf]
        %v8810 = vld [vmem:[%s8763 + $0xb8] sm:$0xf]
        %v8811 = vld [vmem:[%s8763 + $0xbc] sm:$0xf]
        %v8812 = vpack.c.b16 %v8742, %v8739
        %v8813 = vpack.c.b16 %v8743, %v8740
        %v8814 = vpack.c.b16 %v8744, %v8741
        %v8815 = vpack.c.b16 %v8748, %v8745
        %v8816 = vpack.c.b16 %v8749, %v8746
        %v8817 = vpack.c.b16 %v8750, %v8747
        %v8818 = vpack.c.b16 %v8754, %v8751
        %v8819 = vpack.c.b16 %v8755, %v8752
        %v8820 = vpack.c.b16 %v8756, %v8753
        %v8821 = vpack.c.b16 %v8760, %v8757
        %v8822 = vpack.c.b16 %v8761, %v8758
        %v8823 = vpack.c.b16 %v8762, %v8759
        %v8884 = vunpack.c.l.b16 %v8764
        %v8885 = vunpack.c.l.b16 %v8765
        %v8886 = vunpack.c.l.b16 %v8766
        %v8887 = vunpack.c.l.b16 %v8767
        %v8888 = vunpack.c.l.b16 %v8768
        %v8889 = vunpack.c.l.b16 %v8769
        %v8890 = vunpack.c.l.b16 %v8770
        %v8891 = vunpack.c.l.b16 %v8771
        %v8892 = vunpack.c.l.b16 %v8772
        %v8893 = vunpack.c.l.b16 %v8773
        %v8894 = vunpack.c.l.b16 %v8774
        %v8895 = vunpack.c.l.b16 %v8775
        %v8896 = vunpack.c.l.b16 %v8776
        %v8897 = vunpack.c.l.b16 %v8777
        %v8898 = vunpack.c.l.b16 %v8778
        %v8899 = vunpack.c.l.b16 %v8779
        %v8900 = vunpack.c.l.b16 %v8780
        %v8901 = vunpack.c.l.b16 %v8781
        %v8902 = vunpack.c.l.b16 %v8782
        %v8903 = vunpack.c.l.b16 %v8783
        %v8904 = vunpack.c.l.b16 %v8784
        %v8905 = vunpack.c.l.b16 %v8785
        %v8906 = vunpack.c.l.b16 %v8786
        %v8907 = vunpack.c.l.b16 %v8787
        %v8908 = vunpack.c.l.b16 %v8788
        %v8909 = vunpack.c.l.b16 %v8789
        %v8910 = vunpack.c.l.b16 %v8790
        %v8911 = vunpack.c.l.b16 %v8791
        %v8912 = vunpack.c.l.b16 %v8792
        %v8913 = vunpack.c.l.b16 %v8793
        %v8914 = vunpack.c.l.b16 %v8794
        %v8915 = vunpack.c.l.b16 %v8795
        %v8916 = vunpack.c.l.b16 %v8796
        %v8917 = vunpack.c.l.b16 %v8797
        %v8918 = vunpack.c.l.b16 %v8798
        %v8919 = vunpack.c.l.b16 %v8799
        %v8920 = vunpack.c.l.b16 %v8800
        %v8921 = vunpack.c.l.b16 %v8801
        %v8922 = vunpack.c.l.b16 %v8802
        %v8923 = vunpack.c.l.b16 %v8803
        %v8924 = vunpack.c.l.b16 %v8804
        %v8925 = vunpack.c.l.b16 %v8805
        %v8926 = vunpack.c.l.b16 %v8806
        %v8927 = vunpack.c.l.b16 %v8807
        %v8928 = vunpack.c.l.b16 %v8808
        %v8929 = vunpack.c.l.b16 %v8809
        %v8930 = vunpack.c.l.b16 %v8810
        %v8931 = vunpack.c.l.b16 %v8811
        %v8932 = vpack.c.b16 %v8885, %v8884
        %v8933 = vpack.c.b16 %v8887, %v8886
        %v8934 = vpack.c.b16 %v8889, %v8888
        %v8935 = vpack.c.b16 %v8891, %v8890
        %v8936 = vpack.c.b16 %v8893, %v8892
        %v8937 = vpack.c.b16 %v8895, %v8894
        %v8938 = vpack.c.b16 %v8897, %v8896
        %v8939 = vpack.c.b16 %v8899, %v8898
        %v8940 = vpack.c.b16 %v8901, %v8900
        %v8941 = vpack.c.b16 %v8903, %v8902
        %v8942 = vpack.c.b16 %v8905, %v8904
        %v8943 = vpack.c.b16 %v8907, %v8906
        %v8944 = vpack.c.b16 %v8909, %v8908
        %v8945 = vpack.c.b16 %v8911, %v8910
        %v8946 = vpack.c.b16 %v8913, %v8912
        %v8947 = vpack.c.b16 %v8915, %v8914
        %v8948 = vpack.c.b16 %v8917, %v8916
        %v8949 = vpack.c.b16 %v8919, %v8918
        %v8950 = vpack.c.b16 %v8921, %v8920
        %v8951 = vpack.c.b16 %v8923, %v8922
        %v8952 = vpack.c.b16 %v8925, %v8924
        %v8953 = vpack.c.b16 %v8927, %v8926
        %v8954 = vpack.c.b16 %v8929, %v8928
        %v8955 = vpack.c.b16 %v8931, %v8930
        %8980 = vmatprep.subr.bf16.mxu0 0
        %8981 = vmatpush1.bf16.msra.mxu0 %v8932
        %8982 = vmatprep.subr.bf16.mxu0 0
        %8983 = vmatpush1.bf16.msra.mxu0 %v8933
        %8984 = vmatprep.subr.bf16.mxu0 0
        %8985 = vmatpush1.bf16.msra.mxu0 %v8934
        %8986 = vmatprep.subr.bf16.mxu0 0
        %8987 = vmatpush1.bf16.msra.mxu0 %v8935
        %8988 = vmatprep.subr.bf16.mxu0 0
        %8989 = vmatpush1.bf16.msra.mxu0 %v8936
        %8990 = vmatprep.subr.bf16.mxu0 0
        %8991 = vmatpush1.bf16.msra.mxu0 %v8937
        %8992 = vmatprep.subr.bf16.mxu0 0
        %8993 = vmatpush1.bf16.msra.mxu0 %v8938
        %8994 = vmatprep.subr.bf16.mxu0 0
        %8995 = vmatpush1.bf16.msra.mxu0 %v8939
        %8996 = vmatprep.subr.bf16.mxu0 0
        %8997 = vmatpush1.bf16.msra.mxu0 %v8940
        %8998 = vmatprep.subr.bf16.mxu0 0
        %8999 = vmatpush1.bf16.msra.mxu0 %v8941
        %9000 = vmatprep.subr.bf16.mxu0 0
        %9001 = vmatpush1.bf16.msra.mxu0 %v8942
        %9002 = vmatprep.subr.bf16.mxu0 0
        %9003 = vmatpush1.bf16.msra.mxu0 %v8943
        %9004 = vmatprep.subr.bf16.mxu0 0
        %9005 = vmatpush1.bf16.msra.mxu0 %v8944
        %9006 = vmatprep.subr.bf16.mxu0 0
        %9007 = vmatpush1.bf16.msra.mxu0 %v8945
        %9008 = vmatprep.subr.bf16.mxu0 0
        %9009 = vmatpush1.bf16.msra.mxu0 %v8946
        %9010 = vmatprep.subr.bf16.mxu0 0
        %9011 = vmatpush1.bf16.msra.mxu0 %v8947
        %9012 = vmatprep.mubr.bf16.mxu0 %v8813
        %9013 = vmatmul.mubr.bf16.gmra.mrb[0].mxu0 %v8812
        %v9014 = vpop.f32.mrb[0].mxu0
        %v9015 = vadd.f32 0.0, %v9014
        %v9016 = vpop.f32.mrb[0].mxu0
        %v9017 = vpop.f32.mrb[0].mxu0
        %v9018 = vadd.f32 0.0, %v9017
        %v9019 = vpop.f32.mrb[0].mxu0
        %9020 = vmatprep.mubr.bf16.mxu0 %v8816
        %9021 = vmatmul.mubr.bf16.gmra.mrb[0].mxu0 %v8815
        %v9022 = vpop.f32.mrb[0].mxu0
        %v9023 = vadd.f32 0.0, %v9022
        %v9024 = vpop.f32.mrb[0].mxu0
        %v9025 = vpop.f32.mrb[0].mxu0
        %v9026 = vadd.f32 0.0, %v9025
        %v9027 = vpop.f32.mrb[0].mxu0
        %9028 = vmatprep.mubr.bf16.mxu0 %v8819
        %9029 = vmatmul.mubr.bf16.gmra.mrb[0].mxu0 %v8818
        %v9030 = vpop.f32.mrb[0].mxu0
        %v9031 = vadd.f32 0.0, %v9030
        %v9032 = vpop.f32.mrb[0].mxu0
        %v9033 = vpop.f32.mrb[0].mxu0
        %v9034 = vadd.f32 0.0, %v9033
        %v9035 = vpop.f32.mrb[0].mxu0
        %9036 = vmatprep.mubr.bf16.mxu0 %v8822
        %9037 = vmatmul.mubr.bf16.gmra.mrb[0].mxu0 %v8821
        %v9038 = vpop.f32.mrb[0].mxu0
        %v9039 = vadd.f32 0.0, %v9038
        %v9040 = vpop.f32.mrb[0].mxu0
        %v9041 = vpop.f32.mrb[0].mxu0
        %v9042 = vadd.f32 0.0, %v9041
        %v9043 = vpop.f32.mrb[0].mxu0
        %9044 = vdwg.mxu0
        %9045 = vmatprep.subr.bf16.mxu0 0
        %9046 = vmatpush1.bf16.msra.mxu0 %v8948
        %9047 = vmatprep.subr.bf16.mxu0 0
        %9048 = vmatpush1.bf16.msra.mxu0 %v8949
        %9049 = vmatprep.subr.bf16.mxu0 0
        %9050 = vmatpush1.bf16.msra.mxu0 %v8950
        %9051 = vmatprep.subr.bf16.mxu0 0
        %9052 = vmatpush1.bf16.msra.mxu0 %v8951
        %9053 = vmatprep.subr.bf16.mxu0 0
        %9054 = vmatpush1.bf16.msra.mxu0 %v8952
        %9055 = vmatprep.subr.bf16.mxu0 0
        %9056 = vmatpush1.bf16.msra.mxu0 %v8953
        %9057 = vmatprep.subr.bf16.mxu0 0
        %9058 = vmatpush1.bf16.msra.mxu0 %v8954
        %9059 = vmatprep.subr.bf16.mxu0 0
        %9060 = vmatpush1.bf16.msra.mxu0 %v8955
        %9061 = vmatprep.subr.bf16.mxu0 0
        %9062 = vmatpush1.bf16.msra.mxu0 0
        %9063 = vmatprep.subr.bf16.mxu0 0
        %9064 = vmatpush1.bf16.msra.mxu0 0
        %9065 = vmatprep.subr.bf16.mxu0 0
        %9066 = vmatpush1.bf16.msra.mxu0 0
        %9067 = vmatprep.subr.bf16.mxu0 0
        %9068 = vmatpush1.bf16.msra.mxu0 0
        %9069 = vmatprep.subr.bf16.mxu0 0
        %9070 = vmatpush1.bf16.msra.mxu0 0
        %9071 = vmatprep.subr.bf16.mxu0 0
        %9072 = vmatpush1.bf16.msra.mxu0 0
        %9073 = vmatprep.subr.bf16.mxu0 0
        %9074 = vmatpush1.bf16.msra.mxu0 0
        %9075 = vmatprep.subr.bf16.mxu0 0
        %9076 = vmatpush1.bf16.msra.mxu0 0
        %9077 = vmatprep.mubr.bf16.mxu0 0
        %9078 = vmatmul.mubr.bf16.gmra.mrb[0].mxu0 %v8814
        %v9079 = vpop.f32.mrb[0].mxu0
        %v9080 = vadd.f32 %v9015, %v9079
        %v9081 = vpop.f32.mrb[0].mxu0
        %v9082 = vpop.f32.mrb[0].mxu0
        %v9083 = vadd.f32 %v9018, %v9082
        %v9084 = vpop.f32.mrb[0].mxu0
        %9085 = vmatprep.mubr.bf16.mxu0 0
        %9086 = vmatmul.mubr.bf16.gmra.mrb[0].mxu0 %v8817
        %v9087 = vpop.f32.mrb[0].mxu0
        %v9088 = vadd.f32 %v9023, %v9087
        %v9089 = vpop.f32.mrb[0].mxu0
        %v9090 = vpop.f32.mrb[0].mxu0
        %v9091 = vadd.f32 %v9026, %v9090
        %v9092 = vpop.f32.mrb[0].mxu0
        %9093 = vmatprep.mubr.bf16.mxu0 0
        %9094 = vmatmul.mubr.bf16.gmra.mrb[0].mxu0 %v8820
        %v9095 = vpop.f32.mrb[0].mxu0
        %v9096 = vadd.f32 %v9031, %v9095
        %v9097 = vpop.f32.mrb[0].mxu0
        %v9098 = vpop.f32.mrb[0].mxu0
        %v9099 = vadd.f32 %v9034, %v9098
        %v9100 = vpop.f32.mrb[0].mxu0
        %9101 = vmatprep.mubr.bf16.mxu0 0
        %9102 = vmatmul.mubr.bf16.gmra.mrb[0].mxu0 %v8823
        %v9103 = vpop.f32.mrb[0].mxu0
        %v9104 = vadd.f32 %v9039, %v9103
        %v9105 = vpop.f32.mrb[0].mxu0
        %v9106 = vpop.f32.mrb[0].mxu0
        %v9107 = vadd.f32 %v9042, %v9106
        %v9108 = vpop.f32.mrb[0].mxu0
        %9109 = vdwg.mxu0
        %v9110 = vadd.f32 %v8604, %v9080
        %v9111 = vadd.f32 %v8607, %v9083
        %v9112 = vadd.f32 %v8612, %v9088
        %v9113 = vadd.f32 %v8615, %v9091
        %v9114 = vadd.f32 %v8620, %v9096
        %v9115 = vadd.f32 %v8623, %v9099
        %v9116 = vadd.f32 %v8628, %v9104
        %v9117 = vadd.f32 %v8631, %v9107
        %v9118 = vlaneseq
        %v9119 = vshrl.u32 %v9118, 7
        %v9120 = vsub.s32 0, %v9119
        %v9121 = vrot.slane %v353, %v9120
        %v9122 = vmul.f32 %v9110, %v9121
        %v9123 = vmul.f32 %v9111, %v9121
        %v9124 = vmul.f32 %v9112, %v9121
        %v9125 = vmul.f32 %v9113, %v9121
        %v9126 = vmul.f32 %v9114, %v9121
        %v9127 = vmul.f32 %v9115, %v9121
        %v9128 = vmul.f32 %v9116, %v9121
        %v9129 = vmul.f32 %v9117, %v9121
        %v9130 = vlaneseq
        %v9131 = vshrl.u32 %v9130, 7
        %v9132 = vsub.s32 0, %v9131
        %v9133 = vrot.slane %v354, %v9132
        %v9134 = vadd.f32 %v9122, %v9133
        %v9135 = vadd.f32 %v9123, %v9133
        %v9136 = vadd.f32 %v9124, %v9133
        %v9137 = vadd.f32 %v9125, %v9133
        %v9138 = vadd.f32 %v9126, %v9133
        %v9139 = vadd.f32 %v9127, %v9133
        %v9140 = vadd.f32 %v9128, %v9133
        %v9141 = vadd.f32 %v9129, %v9133
        %v9142 = vmax.f32 %v9134, 0.0
        %v9143 = vmax.f32 %v9135, 0.0
        %v9144 = vmax.f32 %v9136, 0.0
        %v9145 = vmax.f32 %v9137, 0.0
        %v9146 = vmax.f32 %v9138, 0.0
        %v9147 = vmax.f32 %v9139, 0.0
        %v9148 = vmax.f32 %v9140, 0.0
        %v9149 = vmax.f32 %v9141, 0.0
        %v9150 = vld [vmem:[%s242] sm:$0x1f]
        %v9151 = vld [vmem:[%s242 + $0x8] sm:$0x1f]
        %v9152 = vld [vmem:[%s242 + $0x10] sm:$0x1f]
        %v9153 = vld [vmem:[%s242 + $0x18] sm:$0x1f]
        %v9154 = vld [vmem:[%s242 + $0x20] sm:$0x1f]
        %v9155 = vld [vmem:[%s242 + $0x28] sm:$0x1f]
        %v9156 = vld [vmem:[%s242 + $0x30] sm:$0x1f]
        %v9157 = vld [vmem:[%s242 + $0x38] sm:$0x1f]
        %v9166 = vunpack.c.l.b16 %v9150
        %v9167 = vunpack.c.h.b16 %v9150
        %v9168 = vunpack.c.l.b16 %v9151
        %v9169 = vunpack.c.h.b16 %v9151
        %v9170 = vunpack.c.l.b16 %v9152
        %v9171 = vunpack.c.h.b16 %v9152
        %v9172 = vunpack.c.l.b16 %v9153
        %v9173 = vunpack.c.h.b16 %v9153
        %v9174 = vunpack.c.l.b16 %v9154
        %v9175 = vunpack.c.h.b16 %v9154
        %v9176 = vunpack.c.l.b16 %v9155
        %v9177 = vunpack.c.h.b16 %v9155
        %v9178 = vunpack.c.l.b16 %v9156
        %v9179 = vunpack.c.h.b16 %v9156
        %v9180 = vunpack.c.l.b16 %v9157
        %v9181 = vunpack.c.h.b16 %v9157
        %v9182 = vpack.c.b16 %v9166, %v9166
        %v9183 = vpack.c.b16 %v9167, %v9167
        %v9184 = vpack.c.b16 %v9168, %v9168
        %v9185 = vpack.c.b16 %v9169, %v9169
        %v9186 = vpack.c.b16 %v9170, %v9170
        %v9187 = vpack.c.b16 %v9171, %v9171
        %v9188 = vpack.c.b16 %v9172, %v9172
        %v9189 = vpack.c.b16 %v9173, %v9173
        %v9190 = vpack.c.b16 %v9174, %v9174
        %v9191 = vpack.c.b16 %v9175, %v9175
        %v9192 = vpack.c.b16 %v9176, %v9176
        %v9193 = vpack.c.b16 %v9177, %v9177
        %v9194 = vpack.c.b16 %v9178, %v9178
        %v9195 = vpack.c.b16 %v9179, %v9179
        %v9196 = vpack.c.b16 %v9180, %v9180
        %v9197 = vpack.c.b16 %v9181, %v9181
        %vm9198 = vsmask.f32 3328
        %vm9199 = vsmask.f32 7440
        %vm9200 = vmor %vm9198, %vm9199
        %v9202 = vshrl.u32 %v9182, 16
        %v9204 = vrot.slane %v9202, 4
        %v9205 = vshll.u32 %v9182, 16
        %v9207 = vrot.slane %v9205, 5
        %v9208 = vor.u32 %v9204, %v9207
        %v9209 = vrot.slane %v9208, 4
        %v9211 = vshll.u32 %v9183, 16
        %v9213 = vrot.slane %v9211, 5
        %v9214 = vsel %vm9200, %v9209, %v9213
        %v9216 = vshrl.u32 %v9184, 16
        %v9218 = vrot.slane %v9216, 4
        %v9219 = vshll.u32 %v9184, 16
        %v9221 = vrot.slane %v9219, 5
        %v9222 = vor.u32 %v9218, %v9221
        %v9223 = vrot.slane %v9222, 4
        %v9225 = vshll.u32 %v9185, 16
        %v9227 = vrot.slane %v9225, 5
        %v9228 = vsel %vm9200, %v9223, %v9227
        %v9230 = vshrl.u32 %v9186, 16
        %v9232 = vrot.slane %v9230, 4
        %v9233 = vshll.u32 %v9186, 16
        %v9235 = vrot.slane %v9233, 5
        %v9236 = vor.u32 %v9232, %v9235
        %v9237 = vrot.slane %v9236, 4
        %v9239 = vshll.u32 %v9187, 16
        %v9241 = vrot.slane %v9239, 5
        %v9242 = vsel %vm9200, %v9237, %v9241
        %v9244 = vshrl.u32 %v9188, 16
        %v9246 = vrot.slane %v9244, 4
        %v9247 = vshll.u32 %v9188, 16
        %v9249 = vrot.slane %v9247, 5
        %v9250 = vor.u32 %v9246, %v9249
        %v9251 = vrot.slane %v9250, 4
        %v9253 = vshll.u32 %v9189, 16
        %v9255 = vrot.slane %v9253, 5
        %v9256 = vsel %vm9200, %v9251, %v9255
        %v9258 = vshrl.u32 %v9190, 16
        %v9260 = vrot.slane %v9258, 4
        %v9261 = vshll.u32 %v9190, 16
        %v9263 = vrot.slane %v9261, 5
        %v9264 = vor.u32 %v9260, %v9263
        %v9265 = vrot.slane %v9264, 4
        %v9267 = vshll.u32 %v9191, 16
        %v9269 = vrot.slane %v9267, 5
        %v9270 = vsel %vm9200, %v9265, %v9269
        %v9272 = vshrl.u32 %v9192, 16
        %v9274 = vrot.slane %v9272, 4
        %v9275 = vshll.u32 %v9192, 16
        %v9277 = vrot.slane %v9275, 5
        %v9278 = vor.u32 %v9274, %v9277
        %v9279 = vrot.slane %v9278, 4
        %v9281 = vshll.u32 %v9193, 16
        %v9283 = vrot.slane %v9281, 5
        %v9284 = vsel %vm9200, %v9279, %v9283
        %v9286 = vshrl.u32 %v9194, 16
        %v9288 = vrot.slane %v9286, 4
        %v9289 = vshll.u32 %v9194, 16
        %v9291 = vrot.slane %v9289, 5
        %v9292 = vor.u32 %v9288, %v9291
        %v9293 = vrot.slane %v9292, 4
        %v9295 = vshll.u32 %v9195, 16
        %v9297 = vrot.slane %v9295, 5
        %v9298 = vsel %vm9200, %v9293, %v9297
        %v9300 = vshrl.u32 %v9196, 16
        %v9302 = vrot.slane %v9300, 4
        %v9303 = vshll.u32 %v9196, 16
        %v9305 = vrot.slane %v9303, 5
        %v9306 = vor.u32 %v9302, %v9305
        %v9307 = vrot.slane %v9306, 4
        %v9309 = vshll.u32 %v9197, 16
        %v9311 = vrot.slane %v9309, 5
        %v9312 = vsel %vm9200, %v9307, %v9311
        %v9321 = vunpack.c.l.bf16 %v9214
        %v9322 = vunpack.c.l.bf16 %v9228
        %v9323 = vunpack.c.l.bf16 %v9242
        %v9324 = vunpack.c.l.bf16 %v9256
        %v9325 = vunpack.c.l.bf16 %v9270
        %v9326 = vunpack.c.l.bf16 %v9284
        %v9327 = vunpack.c.l.bf16 %v9298
        %v9328 = vunpack.c.l.bf16 %v9312
        %v9329 = vadd.f32 %v9321, %v9142
        %v9330 = vadd.f32 %v9322, %v9143
        %v9331 = vadd.f32 %v9323, %v9144
        %v9332 = vadd.f32 %v9324, %v9145
        %v9333 = vadd.f32 %v9325, %v9146
        %v9334 = vadd.f32 %v9326, %v9147
        %v9335 = vadd.f32 %v9327, %v9148
        %v9336 = vadd.f32 %v9328, %v9149
        %9337 = vst [vmem:[%s232] sm:$0xff] %v9329
        %9338 = vst [vmem:[%s232 + $0x8] sm:$0xff] %v9330
        %9339 = vst [vmem:[%s232 + $0x10] sm:$0xff] %v9331
        %9340 = vst [vmem:[%s232 + $0x18] sm:$0xff] %v9332
        %9341 = vst [vmem:[%s232 + $0x20] sm:$0xff] %v9333
        %9342 = vst [vmem:[%s232 + $0x28] sm:$0xff] %v9334
        %9343 = vst [vmem:[%s232 + $0x30] sm:$0xff] %v9335
        %9344 = vst [vmem:[%s232 + $0x38] sm:$0xff] %v9336
        %s9345 = sand.u32 %s138, 1
        %s9346 = scalar_lea.sflag [#allocation7], %s9345
        %s9347 = sand.u32 %s138, 1
        %s9348 = smul.addr %s9347, 64
        %s9349 = scalar_lea.vmem [#allocation8], %s9348
        // Predicated region
        $region45: #{residual_layer_forward.1} parent=39 // pred_check
          %p9350 = pneg %p148
        $region46: #{residual_layer_forward.1} parent=39 // pred_check_branch
          %9352 = sbr.rel (%p9350) target = $region48
        $region47: #{residual_layer_forward.1} parent=39 // pred_region
          %s9354 = ssub.s32 1024, 1024
          %9355 = vsyncadd %s9346, %s9354
          %s9356 = smul.addr %s20, 8
          %s9357 = smul.addr %s9356, 128
          %s9358 = scalar_lea.hbm %s5, %s9357
          %s9359 = sshll.u32 %s9349, 4
          %s9360 = int_to_ptr.vmem [resolvable:$true] %s9359
          %9365 = dma.vmem_to_hbm [thread:$0]  %s9360, 1024, %s9358, %s9346, 128, 128, 8
        $region48: #{residual_layer_forward.1} parent=39 // pred_fallthru
          _
      $region40: #{residual_layer_forward.1} parent=5 // pred_fallthru
        _
      %p9366 = scmp.le.s32.totalorder 2, %s15
      // Predicated region
      $region49: #{residual_layer_forward.1} parent=5 // pred_check
        %p9367 = pneg %p9366
      $region50: #{residual_layer_forward.1} parent=5 // pred_check_branch
        %9369 = sbr.rel (%p9367) target = $region52
      $region51: #{residual_layer_forward.1} parent=5 // pred_region
        %s9370 = ssub.s32 %s15, 2
        // Predicated region
        $region53: #{residual_layer_forward.1} parent=51 // pred_check
          %p9371 = pneg %p154
        $region54: #{residual_layer_forward.1} parent=51 // pred_check_branch
          %9373 = sbr.rel (%p9371) target = $region56
        $region55: #{residual_layer_forward.1} parent=51 // pred_region
          %s9374 = sand.u32 %s139, 1
          %s9375 = scalar_lea.sflag [#allocation7], %s9374
          %s9376 = sand.u32 %s139, 1
          %s9377 = smul.addr %s9376, 64
          %s9378 = scalar_lea.vmem [#allocation8], %s9377
          %9379 = dma.done %s9375, 1024
        $region56: #{residual_layer_forward.1} parent=51 // pred_fallthru
          _
      $region52: #{residual_layer_forward.1} parent=5 // pred_fallthru
        _
    $region6: #{residual_layer_forward.1} parent=1 // loop_footer
      %s19 = sadd.s32 1, %s15
    $region7: #{residual_layer_forward.1} parent=1 // loop_footer_branch
      %14 = sbr.rel target = $region3
    $region8: #{residual_layer_forward.1} parent=1 // loop_exit
      _
    %9380 = vsyncpa [#allocation6], 1
    %s9381 = scalar_lea.sflag [#allocation6], 1
    %9382 = vsyncpa %s9381, 1
    %9383 = vsyncpa [#allocation7], 1
    %s9384 = scalar_lea.sflag [#allocation7], 1
    %9385 = vsyncpa %s9384, 1

</llo_original>
